<compile_context>
chip_gen: v7x
topology: tpu7x:2x2x1
jax: 0.10.0
libtpu: 0.0.40
codegen_flags: <defaults>
</compile_context>

<pallas_src>
from functools import partial

import jax
import jax.numpy as jnp
import numpy as np
from jax import lax
from jax.experimental import pallas as pl
from jax.experimental.pallas import tpu as pltpu


# ----------------------------------------------------------------------------
# Fused double-conv kernel (one batch element per grid step)
# ----------------------------------------------------------------------------
def _double_conv_kernel(x_ref, w1_ref, s1_ref, w2_ref, s2_ref, o_ref,
                        xpad_ref, hpad_ref, *, H, W, Cin, Cmid, Cout):
    # x_ref : (1, H, W, Cin)   NHWC input tile (one batch element)
    # w1_ref: (9, Cin, Cmid)   conv1 taps with BN1 scale folded in
    # s1_ref: (1, Cmid)        conv1 bias*scale + BN1 shift
    # w2_ref: (9, Cmid, Cout)  conv2 taps with BN2 folded (no channel padding)
    # s2_ref: (1, Cout)
    # o_ref : (1, Cout, H*W)   channel-major output, lane-dense last dim
    # scratch: xpad (H+2, W+2, Cin), hpad (H+2, W+2, Cmid)

    # --- zero ONLY the 1-pixel borders; interiors are overwritten below ---
    xpad_ref[0:1, :, :] = jnp.zeros((1, W + 2, Cin), jnp.float32)
    xpad_ref[H + 1:H + 2, :, :] = jnp.zeros((1, W + 2, Cin), jnp.float32)
    xpad_ref[:, 0:1, :] = jnp.zeros((H + 2, 1, Cin), jnp.float32)
    xpad_ref[:, W + 1:W + 2, :] = jnp.zeros((H + 2, 1, Cin), jnp.float32)
    hpad_ref[0:1, :, :] = jnp.zeros((1, W + 2, Cmid), jnp.float32)
    hpad_ref[H + 1:H + 2, :, :] = jnp.zeros((1, W + 2, Cmid), jnp.float32)
    hpad_ref[:, 0:1, :] = jnp.zeros((H + 2, 1, Cmid), jnp.float32)
    hpad_ref[:, W + 1:W + 2, :] = jnp.zeros((H + 2, 1, Cmid), jnp.float32)

    xpad_ref[1:H + 1, 1:W + 1, :] = x_ref[0]

    # ---- conv1 + BN1 + ReLU: 9 taps accumulated in registers ----
    acc1 = jnp.zeros((H * W, Cmid), jnp.float32)
    for idx in range(9):
        dh, dw = idx // 3, idx % 3
        patch = xpad_ref[dh:dh + H, dw:dw + W, :].reshape(H * W, Cin)
        acc1 = acc1 + jnp.dot(patch, w1_ref[idx],
                              preferred_element_type=jnp.float32)
    h1 = jnp.maximum(acc1 + s1_ref[...], 0.0)                  # folded BN + ReLU
    hpad_ref[1:H + 1, 1:W + 1, :] = h1.reshape(H, W, Cmid)     # stays in VMEM

    # ---- conv2 + BN2 + ReLU: 9 taps accumulated in registers ----
    acc2 = jnp.zeros((H * W, Cout), jnp.float32)
    for idx in range(9):
        dh, dw = idx // 3, idx % 3
        patch = hpad_ref[dh:dh + H, dw:dw + W, :].reshape(H * W, Cmid)
        acc2 = acc2 + jnp.dot(patch, w2_ref[idx],
                              preferred_element_type=jnp.float32)
    h2 = jnp.maximum(acc2 + s2_ref[...], 0.0)                  # (H*W, Cout)

    # Tiny (H*W, Cout) -> (Cout, H*W) transpose so the HBM store is lane-dense
    # (H*W = 256 lanes, unmasked stores); no padded channels left to slice off.
    o_ref[0] = h2.T


# ----------------------------------------------------------------------------
# Host-side parameter folding (BN scale into weights, bias into shift)
# ----------------------------------------------------------------------------
def _fold_bn(w, b, scale, shift):
    """w: (3,3,Cin,Cout) HWIO. Returns (w*scale, b*scale + shift)."""
    return w * scale[None, None, None, :], b * scale + shift


def _prepare_operands(p1, p2):
    (w1, b1, sc1, sh1), (w2, b2, sc2, sh2) = p1, p2
    cin, cmid = w1.shape[2], w1.shape[3]
    cout = w2.shape[3]

    w1f, s1 = _fold_bn(w1, b1, sc1, sh1)
    w2f, s2 = _fold_bn(w2, b2, sc2, sh2)

    w1m = w1f.reshape(9, cin, cmid)       # per-tap weight matrices
    w2m = w2f.reshape(9, cmid, cout)      # NO output-channel padding
    s1m = s1.reshape(1, cmid)
    s2m = s2.reshape(1, cout)
    return w1m, s1m, w2m, s2m, cin, cmid, cout


@jax.jit
def inconv_forward(x_nchw, p1, p2):
    """Pallas implementation of inconv/double_conv. x_nchw: (N, Cin, H, W)."""
    w1m, s1m, w2m, s2m, cin, cmid, cout = _prepare_operands(p1, p2)
    N, C, H, W = x_nchw.shape
    assert C == cin

    x = jnp.transpose(x_nchw, (0, 2, 3, 1))     # NCHW -> NHWC (tiny, input only)

    kernel = partial(_double_conv_kernel, H=H, W=W, Cin=cin, Cmid=cmid, Cout=cout)
    y = pl.pallas_call(
        kernel,
        out_shape=jax.ShapeDtypeStruct((N, cout, H * W), jnp.float32),
        grid=(N,),
        in_specs=[
            pl.BlockSpec((1, H, W, cin), lambda n: (n, 0, 0, 0)),
            pl.BlockSpec((9, cin, cmid), lambda n: (0, 0, 0)),   # resident weights
            pl.BlockSpec((1, cmid), lambda n: (0, 0)),
            pl.BlockSpec((9, cmid, cout), lambda n: (0, 0, 0)),
            pl.BlockSpec((1, cout), lambda n: (0, 0)),
        ],
        out_specs=pl.BlockSpec((1, cout, H * W), lambda n: (n, 0, 0)),
        scratch_shapes=[
            pltpu.VMEM((H + 2, W + 2, cin), jnp.float32),    # padded input
            pltpu.VMEM((H + 2, W + 2, cmid), jnp.float32),   # padded conv1 act
        ],
        compiler_params=pltpu.CompilerParams(
            dimension_semantics=("parallel",),     # v7x: one batch element per TC
            vmem_limit_bytes=32 * 1024 * 1024),
    )(x, w1m, s1m, w2m, s2m)

    # (N, Cout, H*W) -> (N, Cout, H, W): contiguous, no transpose needed.
    return y.reshape(N, cout, H, W)


# ----------------------------------------------------------------------------
# Deterministic parameters (BN in eval mode, expressed as scale/shift)
# ----------------------------------------------------------------------------
def make_conv_bn_params(key, cin, cout, eps=1e-5):
    kw, kb = jax.random.split(key)
    w = 0.1 * jax.random.normal(kw, (3, 3, cin, cout), jnp.float32)   # HWIO
    b = 0.05 * jax.random.normal(kb, (cout,), jnp.float32)
    idx = jnp.arange(cout, dtype=jnp.float32)
    gamma = 1.0 + 0.10 * idx
    beta = 0.05 * idx
    r_mean = 0.01 * idx
    r_var = 1.0 + 0.02 * idx
    scale = gamma / jnp.sqrt(r_var + eps)
    shift = beta - r_mean * scale
    return w, b, scale, shift


# ----------------------------------------------------------------------------
# Pure-JAX reference (unfolded BN, independent of the kernel's weight folding)
# ----------------------------------------------------------------------------
def ref_conv_bn_relu(x, w, b, scale, shift):
    y = lax.conv_general_dilated(
        x, w, window_strides=(1, 1), padding="SAME",
        dimension_numbers=("NHWC", "HWIO", "NHWC"))
    y = y + b.reshape(1, 1, 1, -1)
    y = y * scale.reshape(1, 1, 1, -1) + shift.reshape(1, 1, 1, -1)
    return jnp.maximum(y, 0.0)


def ref_inconv(x_nchw, p1, p2):
    x = jnp.transpose(x_nchw, (0, 2, 3, 1))
    x = ref_conv_bn_relu(x, *p1)
    x = ref_conv_bn_relu(x, *p2)
    return jnp.transpose(x, (0, 3, 1, 2))


# ----------------------------------------------------------------------------
if __name__ == "__main__":
    N, Cin, Cout, H, W = 2, 4, 8, 16, 16

    key = jax.random.PRNGKey(0)
    kx, k1, k2 = jax.random.split(key, 3)
    x = jax.random.normal(kx, (N, Cin, H, W), jnp.float32)   # NCHW, like PyTorch

    p1 = make_conv_bn_params(k1, Cin, Cout)   # conv1: in_ch -> out_ch
    p2 = make_conv_bn_params(k2, Cout, Cout)  # conv2: out_ch -> out_ch

    out = jax.block_until_ready(inconv_forward(x, p1, p2))
    expected = jax.block_until_ready(ref_inconv(x, p1, p2))

    assert out.shape == (N, Cout, H, W), out.shape
    np.testing.assert_allclose(np.asarray(out), np.asarray(expected),
                               rtol=1e-4, atol=1e-4)
    print("KERNEL_OK")
</pallas_src>

<mosaic_0001>
module attributes {stable_mosaic.version = 11 : i64} {
  func.func @_double_conv_kernel(%arg0: i32, %arg1: memref<1x16x16x4xf32, #tpu.memory_space<vmem>>, %arg2: memref<9x4x8xf32, #tpu.memory_space<vmem>>, %arg3: memref<1x8xf32, #tpu.memory_space<vmem>>, %arg4: memref<9x8x8xf32, #tpu.memory_space<vmem>>, %arg5: memref<1x8xf32, #tpu.memory_space<vmem>>, %arg6: memref<1x8x256xf32, #tpu.memory_space<vmem>>, %arg7: memref<18x18x4xf32, #tpu.memory_space<vmem>>, %arg8: memref<18x18x8xf32, #tpu.memory_space<vmem>>) attributes {dimension_semantics = [#tpu.dimension_semantics<parallel>], iteration_bounds = array<i64: 2>, scalar_prefetch = 0 : i64, scratch_operands = 2 : i64, tpu.core_type = #tpu.core_type<tc>, window_params = [{transform_indices = @transform_0, window_bounds = array<i64: 1, 16, 16, 4>}, {pipeline_mode = #tpu.pipeline_mode<synchronous>, transform_indices = @transform_1, window_bounds = array<i64: 9, 4, 8>}, {pipeline_mode = #tpu.pipeline_mode<synchronous>, transform_indices = @transform_2, window_bounds = array<i64: 1, 8>}, {pipeline_mode = #tpu.pipeline_mode<synchronous>, transform_indices = @transform_3, window_bounds = array<i64: 9, 8, 8>}, {pipeline_mode = #tpu.pipeline_mode<synchronous>, transform_indices = @transform_4, window_bounds = array<i64: 1, 8>}, {transform_indices = @transform_5, window_bounds = array<i64: 1, 8, 256>}]} {
    %cst = arith.constant 0.000000e+00 : f32
    %0 = vector.broadcast %cst : f32 to vector<1x18x4xf32>
    %c0 = arith.constant 0 : index
    %c0_0 = arith.constant 0 : index
    %c0_1 = arith.constant 0 : index
    %1 = vector.load %arg7[%c0, %c0_0, %c0_1] : memref<18x18x4xf32, #tpu.memory_space<vmem>>, vector<1x18x4xf32>
    tpu.vector_store %arg7[%c0, %c0_0, %c0_1], %0 {strides = array<i32>} : memref<18x18x4xf32, #tpu.memory_space<vmem>>, vector<1x18x4xf32>,
    %cst_2 = arith.constant 0.000000e+00 : f32
    %2 = vector.broadcast %cst_2 : f32 to vector<1x18x4xf32>
    %c17 = arith.constant 17 : index
    %c0_3 = arith.constant 0 : index
    %c0_4 = arith.constant 0 : index
    %3 = vector.load %arg7[%c17, %c0_3, %c0_4] : memref<18x18x4xf32, #tpu.memory_space<vmem>>, vector<1x18x4xf32>
    tpu.vector_store %arg7[%c17, %c0_3, %c0_4], %2 {strides = array<i32>} : memref<18x18x4xf32, #tpu.memory_space<vmem>>, vector<1x18x4xf32>,
    %cst_5 = arith.constant 0.000000e+00 : f32
    %4 = vector.broadcast %cst_5 : f32 to vector<18x1x4xf32>
    %c0_6 = arith.constant 0 : index
    %c0_7 = arith.constant 0 : index
    %c0_8 = arith.constant 0 : index
    %5 = vector.load %arg7[%c0_6, %c0_7, %c0_8] : memref<18x18x4xf32, #tpu.memory_space<vmem>>, vector<18x1x4xf32>
    tpu.vector_store %arg7[%c0_6, %c0_7, %c0_8], %4 {strides = array<i32>} : memref<18x18x4xf32, #tpu.memory_space<vmem>>, vector<18x1x4xf32>,
    %cst_9 = arith.constant 0.000000e+00 : f32
    %6 = vector.broadcast %cst_9 : f32 to vector<18x1x4xf32>
    %c0_10 = arith.constant 0 : index
    %c17_11 = arith.constant 17 : index
    %c0_12 = arith.constant 0 : index
    %7 = vector.load %arg7[%c0_10, %c17_11, %c0_12] : memref<18x18x4xf32, #tpu.memory_space<vmem>>, vector<18x1x4xf32>
    tpu.vector_store %arg7[%c0_10, %c17_11, %c0_12], %6 {strides = array<i32>} : memref<18x18x4xf32, #tpu.memory_space<vmem>>, vector<18x1x4xf32>,
    %cst_13 = arith.constant 0.000000e+00 : f32
    %8 = vector.broadcast %cst_13 : f32 to vector<1x18x8xf32>
    %c0_14 = arith.constant 0 : index
    %c0_15 = arith.constant 0 : index
    %c0_16 = arith.constant 0 : index
    %9 = vector.load %arg8[%c0_14, %c0_15, %c0_16] : memref<18x18x8xf32, #tpu.memory_space<vmem>>, vector<1x18x8xf32>
    tpu.vector_store %arg8[%c0_14, %c0_15, %c0_16], %8 {strides = array<i32>} : memref<18x18x8xf32, #tpu.memory_space<vmem>>, vector<1x18x8xf32>,
    %cst_17 = arith.constant 0.000000e+00 : f32
    %10 = vector.broadcast %cst_17 : f32 to vector<1x18x8xf32>
    %c17_18 = arith.constant 17 : index
    %c0_19 = arith.constant 0 : index
    %c0_20 = arith.constant 0 : index
    %11 = vector.load %arg8[%c17_18, %c0_19, %c0_20] : memref<18x18x8xf32, #tpu.memory_space<vmem>>, vector<1x18x8xf32>
    tpu.vector_store %arg8[%c17_18, %c0_19, %c0_20], %10 {strides = array<i32>} : memref<18x18x8xf32, #tpu.memory_space<vmem>>, vector<1x18x8xf32>,
    %cst_21 = arith.constant 0.000000e+00 : f32
    %12 = vector.broadcast %cst_21 : f32 to vector<18x1x8xf32>
    %c0_22 = arith.constant 0 : index
    %c0_23 = arith.constant 0 : index
    %c0_24 = arith.constant 0 : index
    %13 = vector.load %arg8[%c0_22, %c0_23, %c0_24] : memref<18x18x8xf32, #tpu.memory_space<vmem>>, vector<18x1x8xf32>
    tpu.vector_store %arg8[%c0_22, %c0_23, %c0_24], %12 {strides = array<i32>} : memref<18x18x8xf32, #tpu.memory_space<vmem>>, vector<18x1x8xf32>,
    %cst_25 = arith.constant 0.000000e+00 : f32
    %14 = vector.broadcast %cst_25 : f32 to vector<18x1x8xf32>
    %c0_26 = arith.constant 0 : index
    %c17_27 = arith.constant 17 : index
    %c0_28 = arith.constant 0 : index
    %15 = vector.load %arg8[%c0_26, %c17_27, %c0_28] : memref<18x18x8xf32, #tpu.memory_space<vmem>>, vector<18x1x8xf32>
    tpu.vector_store %arg8[%c0_26, %c17_27, %c0_28], %14 {strides = array<i32>} : memref<18x18x8xf32, #tpu.memory_space<vmem>>, vector<18x1x8xf32>,
    %c0_29 = arith.constant 0 : index
    %c0_30 = arith.constant 0 : index
    %c0_31 = arith.constant 0 : index
    %c0_32 = arith.constant 0 : index
    %16 = vector.load %arg1[%c0_29, %c0_30, %c0_31, %c0_32] : memref<1x16x16x4xf32, #tpu.memory_space<vmem>>, vector<1x16x16x4xf32>
    %17 = vector.shape_cast %16 : vector<1x16x16x4xf32> to vector<16x16x4xf32>
    %c1 = arith.constant 1 : index
    %c1_33 = arith.constant 1 : index
    %c0_34 = arith.constant 0 : index
    %18 = vector.load %arg7[%c1, %c1_33, %c0_34] : memref<18x18x4xf32, #tpu.memory_space<vmem>>, vector<16x16x4xf32>
    tpu.vector_store %arg7[%c1, %c1_33, %c0_34], %17 {strides = array<i32>} : memref<18x18x4xf32, #tpu.memory_space<vmem>>, vector<16x16x4xf32>,
    %cst_35 = arith.constant 0.000000e+00 : f32
    %19 = vector.broadcast %cst_35 : f32 to vector<256x8xf32>
    %c0_36 = arith.constant 0 : index
    %c0_37 = arith.constant 0 : index
    %c0_38 = arith.constant 0 : index
    %20 = vector.load %arg7[%c0_36, %c0_37, %c0_38] : memref<18x18x4xf32, #tpu.memory_space<vmem>>, vector<16x16x4xf32>
    %21 = vector.shape_cast %20 : vector<16x16x4xf32> to vector<256x4xf32>
    %c0_39 = arith.constant 0 : index
    %c0_40 = arith.constant 0 : index
    %c0_41 = arith.constant 0 : index
    %22 = vector.load %arg2[%c0_39, %c0_40, %c0_41] : memref<9x4x8xf32, #tpu.memory_space<vmem>>, vector<1x4x8xf32>
    %23 = vector.shape_cast %22 : vector<1x4x8xf32> to vector<4x8xf32>
    %cst_42 = arith.constant dense<0.000000e+00> : vector<256x8xf32>
    %24 = tpu.matmul %21, %23, %cst_42 {dimension_numbers = #tpu.dot_dimension_numbers<[1], [0], [0], [1], [0, 0, 1, 1], [], []>} : vector<256x4xf32>, vector<4x8xf32>, vector<256x8xf32> -> vector<256x8xf32>
    %25 = arith.addf %19, %24 : vector<256x8xf32>
    %c0_43 = arith.constant 0 : index
    %c1_44 = arith.constant 1 : index
    %c0_45 = arith.constant 0 : index
    %26 = vector.load %arg7[%c0_43, %c1_44, %c0_45] : memref<18x18x4xf32, #tpu.memory_space<vmem>>, vector<16x16x4xf32>
    %27 = vector.shape_cast %26 : vector<16x16x4xf32> to vector<256x4xf32>
    %c1_46 = arith.constant 1 : index
    %c0_47 = arith.constant 0 : index
    %c0_48 = arith.constant 0 : index
    %28 = vector.load %arg2[%c1_46, %c0_47, %c0_48] : memref<9x4x8xf32, #tpu.memory_space<vmem>>, vector<1x4x8xf32>
    %29 = vector.shape_cast %28 : vector<1x4x8xf32> to vector<4x8xf32>
    %cst_49 = arith.constant dense<0.000000e+00> : vector<256x8xf32>
    %30 = tpu.matmul %27, %29, %cst_49 {dimension_numbers = #tpu.dot_dimension_numbers<[1], [0], [0], [1], [0, 0, 1, 1], [], []>} : vector<256x4xf32>, vector<4x8xf32>, vector<256x8xf32> -> vector<256x8xf32>
    %31 = arith.addf %25, %30 : vector<256x8xf32>
    %c0_50 = arith.constant 0 : index
    %c2 = arith.constant 2 : index
    %c0_51 = arith.constant 0 : index
    %32 = vector.load %arg7[%c0_50, %c2, %c0_51] : memref<18x18x4xf32, #tpu.memory_space<vmem>>, vector<16x16x4xf32>
    %33 = vector.shape_cast %32 : vector<16x16x4xf32> to vector<256x4xf32>
    %c2_52 = arith.constant 2 : index
    %c0_53 = arith.constant 0 : index
    %c0_54 = arith.constant 0 : index
    %34 = vector.load %arg2[%c2_52, %c0_53, %c0_54] : memref<9x4x8xf32, #tpu.memory_space<vmem>>, vector<1x4x8xf32>
    %35 = vector.shape_cast %34 : vector<1x4x8xf32> to vector<4x8xf32>
    %cst_55 = arith.constant dense<0.000000e+00> : vector<256x8xf32>
    %36 = tpu.matmul %33, %35, %cst_55 {dimension_numbers = #tpu.dot_dimension_numbers<[1], [0], [0], [1], [0, 0, 1, 1], [], []>} : vector<256x4xf32>, vector<4x8xf32>, vector<256x8xf32> -> vector<256x8xf32>
    %37 = arith.addf %31, %36 : vector<256x8xf32>
    %c1_56 = arith.constant 1 : index
    %c0_57 = arith.constant 0 : index
    %c0_58 = arith.constant 0 : index
    %38 = vector.load %arg7[%c1_56, %c0_57, %c0_58] : memref<18x18x4xf32, #tpu.memory_space<vmem>>, vector<16x16x4xf32>
    %39 = vector.shape_cast %38 : vector<16x16x4xf32> to vector<256x4xf32>
    %c3 = arith.constant 3 : index
    %c0_59 = arith.constant 0 : index
    %c0_60 = arith.constant 0 : index
    %40 = vector.load %arg2[%c3, %c0_59, %c0_60] : memref<9x4x8xf32, #tpu.memory_space<vmem>>, vector<1x4x8xf32>
    %41 = vector.shape_cast %40 : vector<1x4x8xf32> to vector<4x8xf32>
    %cst_61 = arith.constant dense<0.000000e+00> : vector<256x8xf32>
    %42 = tpu.matmul %39, %41, %cst_61 {dimension_numbers = #tpu.dot_dimension_numbers<[1], [0], [0], [1], [0, 0, 1, 1], [], []>} : vector<256x4xf32>, vector<4x8xf32>, vector<256x8xf32> -> vector<256x8xf32>
    %43 = arith.addf %37, %42 : vector<256x8xf32>
    %c1_62 = arith.constant 1 : index
    %c1_63 = arith.constant 1 : index
    %c0_64 = arith.constant 0 : index
    %44 = vector.load %arg7[%c1_62, %c1_63, %c0_64] : memref<18x18x4xf32, #tpu.memory_space<vmem>>, vector<16x16x4xf32>
    %45 = vector.shape_cast %44 : vector<16x16x4xf32> to vector<256x4xf32>
    %c4 = arith.constant 4 : index
    %c0_65 = arith.constant 0 : index
    %c0_66 = arith.constant 0 : index
    %46 = vector.load %arg2[%c4, %c0_65, %c0_66] : memref<9x4x8xf32, #tpu.memory_space<vmem>>, vector<1x4x8xf32>
    %47 = vector.shape_cast %46 : vector<1x4x8xf32> to vector<4x8xf32>
    %cst_67 = arith.constant dense<0.000000e+00> : vector<256x8xf32>
    %48 = tpu.matmul %45, %47, %cst_67 {dimension_numbers = #tpu.dot_dimension_numbers<[1], [0], [0], [1], [0, 0, 1, 1], [], []>} : vector<256x4xf32>, vector<4x8xf32>, vector<256x8xf32> -> vector<256x8xf32>
    %49 = arith.addf %43, %48 : vector<256x8xf32>
    %c1_68 = arith.constant 1 : index
    %c2_69 = arith.constant 2 : index
    %c0_70 = arith.constant 0 : index
    %50 = vector.load %arg7[%c1_68, %c2_69, %c0_70] : memref<18x18x4xf32, #tpu.memory_space<vmem>>, vector<16x16x4xf32>
    %51 = vector.shape_cast %50 : vector<16x16x4xf32> to vector<256x4xf32>
    %c5 = arith.constant 5 : index
    %c0_71 = arith.constant 0 : index
    %c0_72 = arith.constant 0 : index
    %52 = vector.load %arg2[%c5, %c0_71, %c0_72] : memref<9x4x8xf32, #tpu.memory_space<vmem>>, vector<1x4x8xf32>
    %53 = vector.shape_cast %52 : vector<1x4x8xf32> to vector<4x8xf32>
    %cst_73 = arith.constant dense<0.000000e+00> : vector<256x8xf32>
    %54 = tpu.matmul %51, %53, %cst_73 {dimension_numbers = #tpu.dot_dimension_numbers<[1], [0], [0], [1], [0, 0, 1, 1], [], []>} : vector<256x4xf32>, vector<4x8xf32>, vector<256x8xf32> -> vector<256x8xf32>
    %55 = arith.addf %49, %54 : vector<256x8xf32>
    %c2_74 = arith.constant 2 : index
    %c0_75 = arith.constant 0 : index
    %c0_76 = arith.constant 0 : index
    %56 = vector.load %arg7[%c2_74, %c0_75, %c0_76] : memref<18x18x4xf32, #tpu.memory_space<vmem>>, vector<16x16x4xf32>
    %57 = vector.shape_cast %56 : vector<16x16x4xf32> to vector<256x4xf32>
    %c6 = arith.constant 6 : index
    %c0_77 = arith.constant 0 : index
    %c0_78 = arith.constant 0 : index
    %58 = vector.load %arg2[%c6, %c0_77, %c0_78] : memref<9x4x8xf32, #tpu.memory_space<vmem>>, vector<1x4x8xf32>
    %59 = vector.shape_cast %58 : vector<1x4x8xf32> to vector<4x8xf32>
    %cst_79 = arith.constant dense<0.000000e+00> : vector<256x8xf32>
    %60 = tpu.matmul %57, %59, %cst_79 {dimension_numbers = #tpu.dot_dimension_numbers<[1], [0], [0], [1], [0, 0, 1, 1], [], []>} : vector<256x4xf32>, vector<4x8xf32>, vector<256x8xf32> -> vector<256x8xf32>
    %61 = arith.addf %55, %60 : vector<256x8xf32>
    %c2_80 = arith.constant 2 : index
    %c1_81 = arith.constant 1 : index
    %c0_82 = arith.constant 0 : index
    %62 = vector.load %arg7[%c2_80, %c1_81, %c0_82] : memref<18x18x4xf32, #tpu.memory_space<vmem>>, vector<16x16x4xf32>
    %63 = vector.shape_cast %62 : vector<16x16x4xf32> to vector<256x4xf32>
    %c7 = arith.constant 7 : index
    %c0_83 = arith.constant 0 : index
    %c0_84 = arith.constant 0 : index
    %64 = vector.load %arg2[%c7, %c0_83, %c0_84] : memref<9x4x8xf32, #tpu.memory_space<vmem>>, vector<1x4x8xf32>
    %65 = vector.shape_cast %64 : vector<1x4x8xf32> to vector<4x8xf32>
    %cst_85 = arith.constant dense<0.000000e+00> : vector<256x8xf32>
    %66 = tpu.matmul %63, %65, %cst_85 {dimension_numbers = #tpu.dot_dimension_numbers<[1], [0], [0], [1], [0, 0, 1, 1], [], []>} : vector<256x4xf32>, vector<4x8xf32>, vector<256x8xf32> -> vector<256x8xf32>
    %67 = arith.addf %61, %66 : vector<256x8xf32>
    %c2_86 = arith.constant 2 : index
    %c2_87 = arith.constant 2 : index
    %c0_88 = arith.constant 0 : index
    %68 = vector.load %arg7[%c2_86, %c2_87, %c0_88] : memref<18x18x4xf32, #tpu.memory_space<vmem>>, vector<16x16x4xf32>
    %69 = vector.shape_cast %68 : vector<16x16x4xf32> to vector<256x4xf32>
    %c8 = arith.constant 8 : index
    %c0_89 = arith.constant 0 : index
    %c0_90 = arith.constant 0 : index
    %70 = vector.load %arg2[%c8, %c0_89, %c0_90] : memref<9x4x8xf32, #tpu.memory_space<vmem>>, vector<1x4x8xf32>
    %71 = vector.shape_cast %70 : vector<1x4x8xf32> to vector<4x8xf32>
    %cst_91 = arith.constant dense<0.000000e+00> : vector<256x8xf32>
    %72 = tpu.matmul %69, %71, %cst_91 {dimension_numbers = #tpu.dot_dimension_numbers<[1], [0], [0], [1], [0, 0, 1, 1], [], []>} : vector<256x4xf32>, vector<4x8xf32>, vector<256x8xf32> -> vector<256x8xf32>
    %73 = arith.addf %67, %72 : vector<256x8xf32>
    %c0_92 = arith.constant 0 : index
    %c0_93 = arith.constant 0 : index
    %74 = vector.load %arg3[%c0_92, %c0_93] : memref<1x8xf32, #tpu.memory_space<vmem>>, vector<1x8xf32>
    %75 = vector.broadcast %74 : vector<1x8xf32> to vector<256x8xf32>
    %76 = arith.addf %73, %75 : vector<256x8xf32>
    %cst_94 = arith.constant 0.000000e+00 : f32
    %77 = vector.broadcast %cst_94 : f32 to vector<256x8xf32>
    %78 = arith.maximumf %76, %77 : vector<256x8xf32>
    %79 = vector.shape_cast %78 : vector<256x8xf32> to vector<16x16x8xf32>
    %c1_95 = arith.constant 1 : index
    %c1_96 = arith.constant 1 : index
    %c0_97 = arith.constant 0 : index
    %80 = vector.load %arg8[%c1_95, %c1_96, %c0_97] : memref<18x18x8xf32, #tpu.memory_space<vmem>>, vector<16x16x8xf32>
    tpu.vector_store %arg8[%c1_95, %c1_96, %c0_97], %79 {strides = array<i32>} : memref<18x18x8xf32, #tpu.memory_space<vmem>>, vector<16x16x8xf32>,
    %cst_98 = arith.constant 0.000000e+00 : f32
    %81 = vector.broadcast %cst_98 : f32 to vector<256x8xf32>
    %c0_99 = arith.constant 0 : index
    %c0_100 = arith.constant 0 : index
    %c0_101 = arith.constant 0 : index
    %82 = vector.load %arg8[%c0_99, %c0_100, %c0_101] : memref<18x18x8xf32, #tpu.memory_space<vmem>>, vector<16x16x8xf32>
    %83 = vector.shape_cast %82 : vector<16x16x8xf32> to vector<256x8xf32>
    %c0_102 = arith.constant 0 : index
    %c0_103 = arith.constant 0 : index
    %c0_104 = arith.constant 0 : index
    %84 = vector.load %arg4[%c0_102, %c0_103, %c0_104] : memref<9x8x8xf32, #tpu.memory_space<vmem>>, vector<1x8x8xf32>
    %85 = vector.shape_cast %84 : vector<1x8x8xf32> to vector<8x8xf32>
    %cst_105 = arith.constant dense<0.000000e+00> : vector<256x8xf32>
    %86 = tpu.matmul %83, %85, %cst_105 {dimension_numbers = #tpu.dot_dimension_numbers<[1], [0], [0], [1], [0, 0, 1, 1], [], []>} : vector<256x8xf32>, vector<8x8xf32>, vector<256x8xf32> -> vector<256x8xf32>
    %87 = arith.addf %81, %86 : vector<256x8xf32>
    %c0_106 = arith.constant 0 : index
    %c1_107 = arith.constant 1 : index
    %c0_108 = arith.constant 0 : index
    %88 = vector.load %arg8[%c0_106, %c1_107, %c0_108] : memref<18x18x8xf32, #tpu.memory_space<vmem>>, vector<16x16x8xf32>
    %89 = vector.shape_cast %88 : vector<16x16x8xf32> to vector<256x8xf32>
    %c1_109 = arith.constant 1 : index
    %c0_110 = arith.constant 0 : index
    %c0_111 = arith.constant 0 : index
    %90 = vector.load %arg4[%c1_109, %c0_110, %c0_111] : memref<9x8x8xf32, #tpu.memory_space<vmem>>, vector<1x8x8xf32>
    %91 = vector.shape_cast %90 : vector<1x8x8xf32> to vector<8x8xf32>
    %cst_112 = arith.constant dense<0.000000e+00> : vector<256x8xf32>
    %92 = tpu.matmul %89, %91, %cst_112 {dimension_numbers = #tpu.dot_dimension_numbers<[1], [0], [0], [1], [0, 0, 1, 1], [], []>} : vector<256x8xf32>, vector<8x8xf32>, vector<256x8xf32> -> vector<256x8xf32>
    %93 = arith.addf %87, %92 : vector<256x8xf32>
    %c0_113 = arith.constant 0 : index
    %c2_114 = arith.constant 2 : index
    %c0_115 = arith.constant 0 : index
    %94 = vector.load %arg8[%c0_113, %c2_114, %c0_115] : memref<18x18x8xf32, #tpu.memory_space<vmem>>, vector<16x16x8xf32>
    %95 = vector.shape_cast %94 : vector<16x16x8xf32> to vector<256x8xf32>
    %c2_116 = arith.constant 2 : index
    %c0_117 = arith.constant 0 : index
    %c0_118 = arith.constant 0 : index
    %96 = vector.load %arg4[%c2_116, %c0_117, %c0_118] : memref<9x8x8xf32, #tpu.memory_space<vmem>>, vector<1x8x8xf32>
    %97 = vector.shape_cast %96 : vector<1x8x8xf32> to vector<8x8xf32>
    %cst_119 = arith.constant dense<0.000000e+00> : vector<256x8xf32>
    %98 = tpu.matmul %95, %97, %cst_119 {dimension_numbers = #tpu.dot_dimension_numbers<[1], [0], [0], [1], [0, 0, 1, 1], [], []>} : vector<256x8xf32>, vector<8x8xf32>, vector<256x8xf32> -> vector<256x8xf32>
    %99 = arith.addf %93, %98 : vector<256x8xf32>
    %c1_120 = arith.constant 1 : index
    %c0_121 = arith.constant 0 : index
    %c0_122 = arith.constant 0 : index
    %100 = vector.load %arg8[%c1_120, %c0_121, %c0_122] : memref<18x18x8xf32, #tpu.memory_space<vmem>>, vector<16x16x8xf32>
    %101 = vector.shape_cast %100 : vector<16x16x8xf32> to vector<256x8xf32>
    %c3_123 = arith.constant 3 : index
    %c0_124 = arith.constant 0 : index
    %c0_125 = arith.constant 0 : index
    %102 = vector.load %arg4[%c3_123, %c0_124, %c0_125] : memref<9x8x8xf32, #tpu.memory_space<vmem>>, vector<1x8x8xf32>
    %103 = vector.shape_cast %102 : vector<1x8x8xf32> to vector<8x8xf32>
    %cst_126 = arith.constant dense<0.000000e+00> : vector<256x8xf32>
    %104 = tpu.matmul %101, %103, %cst_126 {dimension_numbers = #tpu.dot_dimension_numbers<[1], [0], [0], [1], [0, 0, 1, 1], [], []>} : vector<256x8xf32>, vector<8x8xf32>, vector<256x8xf32> -> vector<256x8xf32>
    %105 = arith.addf %99, %104 : vector<256x8xf32>
    %c1_127 = arith.constant 1 : index
    %c1_128 = arith.constant 1 : index
    %c0_129 = arith.constant 0 : index
    %106 = vector.load %arg8[%c1_127, %c1_128, %c0_129] : memref<18x18x8xf32, #tpu.memory_space<vmem>>, vector<16x16x8xf32>
    %107 = vector.shape_cast %106 : vector<16x16x8xf32> to vector<256x8xf32>
    %c4_130 = arith.constant 4 : index
    %c0_131 = arith.constant 0 : index
    %c0_132 = arith.constant 0 : index
    %108 = vector.load %arg4[%c4_130, %c0_131, %c0_132] : memref<9x8x8xf32, #tpu.memory_space<vmem>>, vector<1x8x8xf32>
    %109 = vector.shape_cast %108 : vector<1x8x8xf32> to vector<8x8xf32>
    %cst_133 = arith.constant dense<0.000000e+00> : vector<256x8xf32>
    %110 = tpu.matmul %107, %109, %cst_133 {dimension_numbers = #tpu.dot_dimension_numbers<[1], [0], [0], [1], [0, 0, 1, 1], [], []>} : vector<256x8xf32>, vector<8x8xf32>, vector<256x8xf32> -> vector<256x8xf32>
    %111 = arith.addf %105, %110 : vector<256x8xf32>
    %c1_134 = arith.constant 1 : index
    %c2_135 = arith.constant 2 : index
    %c0_136 = arith.constant 0 : index
    %112 = vector.load %arg8[%c1_134, %c2_135, %c0_136] : memref<18x18x8xf32, #tpu.memory_space<vmem>>, vector<16x16x8xf32>
    %113 = vector.shape_cast %112 : vector<16x16x8xf32> to vector<256x8xf32>
    %c5_137 = arith.constant 5 : index
    %c0_138 = arith.constant 0 : index
    %c0_139 = arith.constant 0 : index
    %114 = vector.load %arg4[%c5_137, %c0_138, %c0_139] : memref<9x8x8xf32, #tpu.memory_space<vmem>>, vector<1x8x8xf32>
    %115 = vector.shape_cast %114 : vector<1x8x8xf32> to vector<8x8xf32>
    %cst_140 = arith.constant dense<0.000000e+00> : vector<256x8xf32>
    %116 = tpu.matmul %113, %115, %cst_140 {dimension_numbers = #tpu.dot_dimension_numbers<[1], [0], [0], [1], [0, 0, 1, 1], [], []>} : vector<256x8xf32>, vector<8x8xf32>, vector<256x8xf32> -> vector<256x8xf32>
    %117 = arith.addf %111, %116 : vector<256x8xf32>
    %c2_141 = arith.constant 2 : index
    %c0_142 = arith.constant 0 : index
    %c0_143 = arith.constant 0 : index
    %118 = vector.load %arg8[%c2_141, %c0_142, %c0_143] : memref<18x18x8xf32, #tpu.memory_space<vmem>>, vector<16x16x8xf32>
    %119 = vector.shape_cast %118 : vector<16x16x8xf32> to vector<256x8xf32>
    %c6_144 = arith.constant 6 : index
    %c0_145 = arith.constant 0 : index
    %c0_146 = arith.constant 0 : index
    %120 = vector.load %arg4[%c6_144, %c0_145, %c0_146] : memref<9x8x8xf32, #tpu.memory_space<vmem>>, vector<1x8x8xf32>
    %121 = vector.shape_cast %120 : vector<1x8x8xf32> to vector<8x8xf32>
    %cst_147 = arith.constant dense<0.000000e+00> : vector<256x8xf32>
    %122 = tpu.matmul %119, %121, %cst_147 {dimension_numbers = #tpu.dot_dimension_numbers<[1], [0], [0], [1], [0, 0, 1, 1], [], []>} : vector<256x8xf32>, vector<8x8xf32>, vector<256x8xf32> -> vector<256x8xf32>
    %123 = arith.addf %117, %122 : vector<256x8xf32>
    %c2_148 = arith.constant 2 : index
    %c1_149 = arith.constant 1 : index
    %c0_150 = arith.constant 0 : index
    %124 = vector.load %arg8[%c2_148, %c1_149, %c0_150] : memref<18x18x8xf32, #tpu.memory_space<vmem>>, vector<16x16x8xf32>
    %125 = vector.shape_cast %124 : vector<16x16x8xf32> to vector<256x8xf32>
    %c7_151 = arith.constant 7 : index
    %c0_152 = arith.constant 0 : index
    %c0_153 = arith.constant 0 : index
    %126 = vector.load %arg4[%c7_151, %c0_152, %c0_153] : memref<9x8x8xf32, #tpu.memory_space<vmem>>, vector<1x8x8xf32>
    %127 = vector.shape_cast %126 : vector<1x8x8xf32> to vector<8x8xf32>
    %cst_154 = arith.constant dense<0.000000e+00> : vector<256x8xf32>
    %128 = tpu.matmul %125, %127, %cst_154 {dimension_numbers = #tpu.dot_dimension_numbers<[1], [0], [0], [1], [0, 0, 1, 1], [], []>} : vector<256x8xf32>, vector<8x8xf32>, vector<256x8xf32> -> vector<256x8xf32>
    %129 = arith.addf %123, %128 : vector<256x8xf32>
    %c2_155 = arith.constant 2 : index
    %c2_156 = arith.constant 2 : index
    %c0_157 = arith.constant 0 : index
    %130 = vector.load %arg8[%c2_155, %c2_156, %c0_157] : memref<18x18x8xf32, #tpu.memory_space<vmem>>, vector<16x16x8xf32>
    %131 = vector.shape_cast %130 : vector<16x16x8xf32> to vector<256x8xf32>
    %c8_158 = arith.constant 8 : index
    %c0_159 = arith.constant 0 : index
    %c0_160 = arith.constant 0 : index
    %132 = vector.load %arg4[%c8_158, %c0_159, %c0_160] : memref<9x8x8xf32, #tpu.memory_space<vmem>>, vector<1x8x8xf32>
    %133 = vector.shape_cast %132 : vector<1x8x8xf32> to vector<8x8xf32>
    %cst_161 = arith.constant dense<0.000000e+00> : vector<256x8xf32>
    %134 = tpu.matmul %131, %133, %cst_161 {dimension_numbers = #tpu.dot_dimension_numbers<[1], [0], [0], [1], [0, 0, 1, 1], [], []>} : vector<256x8xf32>, vector<8x8xf32>, vector<256x8xf32> -> vector<256x8xf32>
    %135 = arith.addf %129, %134 : vector<256x8xf32>
    %c0_162 = arith.constant 0 : index
    %c0_163 = arith.constant 0 : index
    %136 = vector.load %arg5[%c0_162, %c0_163] : memref<1x8xf32, #tpu.memory_space<vmem>>, vector<1x8xf32>
    %137 = vector.broadcast %136 : vector<1x8xf32> to vector<256x8xf32>
    %138 = arith.addf %135, %137 : vector<256x8xf32>
    %cst_164 = arith.constant 0.000000e+00 : f32
    %139 = vector.broadcast %cst_164 : f32 to vector<256x8xf32>
    %140 = arith.maximumf %138, %139 : vector<256x8xf32>
    %141 = tpu.transpose %140, [1, 0] : vector<256x8xf32> -> vector<8x256xf32>
    %c0_165 = arith.constant 0 : index
    %c0_166 = arith.constant 0 : index
    %c0_167 = arith.constant 0 : index
    %142 = vector.load %arg6[%c0_165, %c0_166, %c0_167] : memref<1x8x256xf32, #tpu.memory_space<vmem>>, vector<1x8x256xf32>
    %143 = vector.shape_cast %142 : vector<1x8x256xf32> to vector<8x256xf32>
    %144 = vector.shape_cast %141 : vector<8x256xf32> to vector<1x8x256xf32>
    tpu.vector_store %arg6[%c0_165, %c0_166, %c0_167], %144 {strides = array<i32>} : memref<1x8x256xf32, #tpu.memory_space<vmem>>, vector<1x8x256xf32>,
    return
  }
  func.func @transform_0(%arg0: i32) -> (i32, i32, i32, i32) {
    %c0_i32 = arith.constant 0 : i32
    %c0_i32_0 = arith.constant 0 : i32
    %c0_i32_1 = arith.constant 0 : i32
    %c0_i32_2 = arith.constant 0 : i32
    return %arg0, %c0_i32, %c0_i32_0, %c0_i32_1 : i32, i32, i32, i32
  }
  func.func @transform_1(%arg0: i32) -> (i32, i32, i32) {
    %c0_i32 = arith.constant 0 : i32
    %c0_i32_0 = arith.constant 0 : i32
    %c0_i32_1 = arith.constant 0 : i32
    %c0_i32_2 = arith.constant 0 : i32
    return %c0_i32, %c0_i32_0, %c0_i32_1 : i32, i32, i32
  }
  func.func @transform_2(%arg0: i32) -> (i32, i32) {
    %c0_i32 = arith.constant 0 : i32
    %c0_i32_0 = arith.constant 0 : i32
    %c0_i32_1 = arith.constant 0 : i32
    return %c0_i32, %c0_i32_0 : i32, i32
  }
  func.func @transform_3(%arg0: i32) -> (i32, i32, i32) {
    %c0_i32 = arith.constant 0 : i32
    %c0_i32_0 = arith.constant 0 : i32
    %c0_i32_1 = arith.constant 0 : i32
    %c0_i32_2 = arith.constant 0 : i32
    return %c0_i32, %c0_i32_0, %c0_i32_1 : i32, i32, i32
  }
  func.func @transform_4(%arg0: i32) -> (i32, i32) {
    %c0_i32 = arith.constant 0 : i32
    %c0_i32_0 = arith.constant 0 : i32
    %c0_i32_1 = arith.constant 0 : i32
    return %c0_i32, %c0_i32_0 : i32, i32
  }
  func.func @transform_5(%arg0: i32) -> (i32, i32, i32) {
    %c0_i32 = arith.constant 0 : i32
    %c0_i32_0 = arith.constant 0 : i32
    %c0_i32_1 = arith.constant 0 : i32
    return %arg0, %c0_i32, %c0_i32_0 : i32, i32, i32
  }
}

</mosaic_0001>

<llo_original>
// kernel: inconv_forward.1
$region0: #{inconv_forward.1}
  #allocation0 [shape = 'u32[]', space=smem, size = 0x4, offset = 0x4, fixed_abs, tag = 'smem constant byte address 0x4 - core index']
  #allocation1 [shape = 'u32[144,128]{1,0:T(1,128)}', space=vmem, size = 0x12000, scoped, tag = 'internal scratch']
  #allocation2 [shape = 'f32[18,18,4]{2,1,0:T(8,128)}', space=vmem, size = 0x36000, scoped, tag = 'scratch operand']
  #allocation3 [shape = 'f32[18,18,8]{2,1,0:T(8,128)}', space=vmem, size = 0x36000, scoped, tag = 'scratch operand']
  %s0 = inlined_call_operand.vmem [shape: f32[2,16,16,4], index: 0, kind: input, shape index: {}]
  %s1 = inlined_call_operand.vmem [shape: f32[9,4,8], index: 1, kind: input, shape index: {}]
  %s2 = inlined_call_operand.vmem [shape: f32[1,8], index: 2, kind: input, shape index: {}]
  %s3 = inlined_call_operand.vmem [shape: f32[9,8,8], index: 3, kind: input, shape index: {}]
  %s4 = inlined_call_operand.vmem [shape: f32[1,8], index: 4, kind: input, shape index: {}]
  %s5 = inlined_call_operand.vmem [shape: f32[2,8,256], index: 5, kind: output, shape index: {}]
  %s6 = sld [smem:[#allocation0]]
  $region53: #{inconv_forward.1} parent=0
    _
  %s8 = ssub.s32 1, %s6
  %s9 = scalar_select 0, %s8, %s6
  loop: start=0, step=1, limit=4
  $region2: #{inconv_forward.1} parent=0 // loop_pre_header
    _
  $region3: #{inconv_forward.1} parent=0 // loop_header
    %s11 = sphi 0, %s15
    %p12 = scmp.ge.s32.totalorder %s11, 4
    %s21 = sphi 0, %s23
    %s24 = sphi 0, %s21
    %s25 = sphi 0, %s24
    %s41 = sphi 0, %s25
    %s45 = sphi 0, %s45
    %s47 = sphi 0, %s45
    %s48 = sphi 0, %s47
    %s62 = sphi 0, %s48
    %s66 = sphi 0, %s66
    %s68 = sphi 0, %s66
    %s69 = sphi 0, %s68
    %s83 = sphi 0, %s69
    %s87 = sphi 0, %s87
    %s89 = sphi 0, %s87
    %s90 = sphi 0, %s89
    %s104 = sphi 0, %s90
    %s108 = sphi 0, %s108
    %s110 = sphi 0, %s108
    %s111 = sphi 0, %s110
    %s125 = sphi 0, %s111
    %s131 = sphi 0, %s133
    %s134 = sphi 0, %s131
    %s135 = sphi 0, %s134
    %s151 = sphi 0, %s135
  $region4: #{inconv_forward.1} parent=0 // loop_header_branch
    %14 = sbr.rel (%p12) target = $region8
  $region5: #{inconv_forward.1} parent=0 // loop_body
    %s16 = ssub.s32 %s11, 1
    %s17 = ssub.s32 %s11, 2
    %s18 = sadd.s32 %s11, 1
    %s19 = ssub.s32 %s11, %s18
    %p20 = scmp.eq.s32.totalorder %s19, 0
    %s22 = sadd.s32 %s21, 1
    %s23 = scalar_select %p20, %s21, %s22
    %p26 = pneg %p20
    %p27 = scmp.eq.s32.totalorder %s11, 1
    %p28 = por %p26, %p27
    %p29 = scmp.ne.s32.totalorder %s21, %s24
    %p30 = scmp.eq.s32.totalorder %s11, 0
    %p31 = por %p29, %p30
    %p32 = scmp.ne.s32.totalorder %s21, %s24
    %p33 = scmp.eq.s32.totalorder %s16, 1
    %p34 = por %p32, %p33
    %p35 = scmp.ne.s32.totalorder %s24, %s25
    %p36 = scmp.eq.s32.totalorder %s16, 0
    %p37 = por %p35, %p36
    %p38 = scmp.ne.s32.totalorder %s24, %s25
    %p39 = scmp.eq.s32.totalorder %s17, 1
    %p40 = por %p38, %p39
    %p42 = scmp.ne.s32.totalorder %s25, %s41
    %p43 = scmp.eq.s32.totalorder %s17, 0
    %p44 = por %p42, %p43
    %s46 = sadd.s32 %s45, 1
    %p49 = scmp.eq.s32.totalorder %s11, 1
    %p50 = scmp.ne.s32.totalorder %s45, %s47
    %p51 = scmp.eq.s32.totalorder %s11, 0
    %p52 = por %p50, %p51
    %p53 = scmp.ne.s32.totalorder %s45, %s47
    %p54 = scmp.eq.s32.totalorder %s16, 1
    %p55 = por %p53, %p54
    %p56 = scmp.ne.s32.totalorder %s47, %s48
    %p57 = scmp.eq.s32.totalorder %s16, 0
    %p58 = por %p56, %p57
    %p59 = scmp.ne.s32.totalorder %s47, %s48
    %p60 = scmp.eq.s32.totalorder %s17, 1
    %p61 = por %p59, %p60
    %p63 = scmp.ne.s32.totalorder %s48, %s62
    %p64 = scmp.eq.s32.totalorder %s17, 0
    %p65 = por %p63, %p64
    %s67 = sadd.s32 %s66, 1
    %p70 = scmp.eq.s32.totalorder %s11, 1
    %p71 = scmp.ne.s32.totalorder %s66, %s68
    %p72 = scmp.eq.s32.totalorder %s11, 0
    %p73 = por %p71, %p72
    %p74 = scmp.ne.s32.totalorder %s66, %s68
    %p75 = scmp.eq.s32.totalorder %s16, 1
    %p76 = por %p74, %p75
    %p77 = scmp.ne.s32.totalorder %s68, %s69
    %p78 = scmp.eq.s32.totalorder %s16, 0
    %p79 = por %p77, %p78
    %p80 = scmp.ne.s32.totalorder %s68, %s69
    %p81 = scmp.eq.s32.totalorder %s17, 1
    %p82 = por %p80, %p81
    %p84 = scmp.ne.s32.totalorder %s69, %s83
    %p85 = scmp.eq.s32.totalorder %s17, 0
    %p86 = por %p84, %p85
    %s88 = sadd.s32 %s87, 1
    %p91 = scmp.eq.s32.totalorder %s11, 1
    %p92 = scmp.ne.s32.totalorder %s87, %s89
    %p93 = scmp.eq.s32.totalorder %s11, 0
    %p94 = por %p92, %p93
    %p95 = scmp.ne.s32.totalorder %s87, %s89
    %p96 = scmp.eq.s32.totalorder %s16, 1
    %p97 = por %p95, %p96
    %p98 = scmp.ne.s32.totalorder %s89, %s90
    %p99 = scmp.eq.s32.totalorder %s16, 0
    %p100 = por %p98, %p99
    %p101 = scmp.ne.s32.totalorder %s89, %s90
    %p102 = scmp.eq.s32.totalorder %s17, 1
    %p103 = por %p101, %p102
    %p105 = scmp.ne.s32.totalorder %s90, %s104
    %p106 = scmp.eq.s32.totalorder %s17, 0
    %p107 = por %p105, %p106
    %s109 = sadd.s32 %s108, 1
    %p112 = scmp.eq.s32.totalorder %s11, 1
    %p113 = scmp.ne.s32.totalorder %s108, %s110
    %p114 = scmp.eq.s32.totalorder %s11, 0
    %p115 = por %p113, %p114
    %p116 = scmp.ne.s32.totalorder %s108, %s110
    %p117 = scmp.eq.s32.totalorder %s16, 1
    %p118 = por %p116, %p117
    %p119 = scmp.ne.s32.totalorder %s110, %s111
    %p120 = scmp.eq.s32.totalorder %s16, 0
    %p121 = por %p119, %p120
    %p122 = scmp.ne.s32.totalorder %s110, %s111
    %p123 = scmp.eq.s32.totalorder %s17, 1
    %p124 = por %p122, %p123
    %p126 = scmp.ne.s32.totalorder %s111, %s125
    %p127 = scmp.eq.s32.totalorder %s17, 0
    %p128 = por %p126, %p127
    %s129 = ssub.s32 %s11, %s18
    %p130 = scmp.eq.s32.totalorder %s129, 0
    %s132 = sadd.s32 %s131, 1
    %s133 = scalar_select %p130, %s131, %s132
    %p136 = pneg %p130
    %p137 = scmp.eq.s32.totalorder %s11, 1
    %p138 = por %p136, %p137
    %p139 = scmp.ne.s32.totalorder %s131, %s134
    %p140 = scmp.eq.s32.totalorder %s11, 0
    %p141 = por %p139, %p140
    %p142 = scmp.ne.s32.totalorder %s131, %s134
    %p143 = scmp.eq.s32.totalorder %s16, 1
    %p144 = por %p142, %p143
    %p145 = scmp.ne.s32.totalorder %s134, %s135
    %p146 = scmp.eq.s32.totalorder %s16, 0
    %p147 = por %p145, %p146
    %p148 = scmp.ne.s32.totalorder %s134, %s135
    %p149 = scmp.eq.s32.totalorder %s17, 1
    %p150 = por %p148, %p149
    %p152 = scmp.ne.s32.totalorder %s135, %s151
    %p153 = scmp.eq.s32.totalorder %s17, 0
    %p154 = por %p152, %p153
    %p155 = scmp.le.s32.totalorder 1, %s11
    %p156 = scmp.lt.s32.totalorder %s11, 3
    %p157 = pnand %p155, %p156
    %p158 = pneg %p157
    // Predicated region
    $region9: #{inconv_forward.1} parent=5 // pred_check
      _
    $region10: #{inconv_forward.1} parent=5 // pred_check_branch
      %160 = sbr.rel (%p157) target = $region12
    $region11: #{inconv_forward.1} parent=5 // pred_region
      %s161 = ssub.s32 %s11, 1
      // Predicated region
      $region13: #{inconv_forward.1} parent=11 // pred_check
        %p162 = pneg %p58
      $region14: #{inconv_forward.1} parent=11 // pred_check_branch
        %164 = sbr.rel (%p162) target = $region16
      $region15: #{inconv_forward.1} parent=11 // pred_region
        _
      $region16: #{inconv_forward.1} parent=11 // pred_fallthru
        _
      // Predicated region
      $region17: #{inconv_forward.1} parent=11 // pred_check
        %p165 = pneg %p79
      $region18: #{inconv_forward.1} parent=11 // pred_check_branch
        %167 = sbr.rel (%p165) target = $region20
      $region19: #{inconv_forward.1} parent=11 // pred_region
        _
      $region20: #{inconv_forward.1} parent=11 // pred_fallthru
        _
      // Predicated region
      $region21: #{inconv_forward.1} parent=11 // pred_check
        %p168 = pneg %p100
      $region22: #{inconv_forward.1} parent=11 // pred_check_branch
        %170 = sbr.rel (%p168) target = $region24
      $region23: #{inconv_forward.1} parent=11 // pred_region
        _
      $region24: #{inconv_forward.1} parent=11 // pred_fallthru
        _
      // Predicated region
      $region25: #{inconv_forward.1} parent=11 // pred_check
        %p171 = pneg %p121
      $region26: #{inconv_forward.1} parent=11 // pred_check_branch
        %173 = sbr.rel (%p171) target = $region28
      $region27: #{inconv_forward.1} parent=11 // pred_region
        _
      $region28: #{inconv_forward.1} parent=11 // pred_fallthru
        _
    $region12: #{inconv_forward.1} parent=5 // pred_fallthru
      _
    %p174 = scmp.lt.s32.totalorder %s11, 2
    // Predicated region
    $region29: #{inconv_forward.1} parent=5 // pred_check
      %p175 = pneg %p174
    $region30: #{inconv_forward.1} parent=5 // pred_check_branch
      %177 = sbr.rel (%p175) target = $region32
    $region31: #{inconv_forward.1} parent=5 // pred_region
      // Predicated region
      $region33: #{inconv_forward.1} parent=31 // pred_check
        %p178 = pneg %p31
      $region34: #{inconv_forward.1} parent=31 // pred_check_branch
        %180 = sbr.rel (%p178) target = $region36
      $region35: #{inconv_forward.1} parent=31 // pred_region
        %p181 = scmp.lt.s32.totalorder %s11, 1
        %s182 = scalar_select %p181, %s11, 1
        %s183 = smul.addr %s182, 32
        %s184 = smul.addr %s183, 8
        %s185 = scalar_lea.vmem %s0, %s184
      $region36: #{inconv_forward.1} parent=31 // pred_fallthru
        _
    $region32: #{inconv_forward.1} parent=5 // pred_fallthru
      _
    %p186 = scmp.le.s32.totalorder 1, %s11
    %p187 = scmp.lt.s32.totalorder %s11, 3
    %p188 = pnand %p186, %p187
    %p189 = pneg %p188
    // Predicated region
    $region37: #{inconv_forward.1} parent=5 // pred_check
      _
    $region38: #{inconv_forward.1} parent=5 // pred_check_branch
      %191 = sbr.rel (%p188) target = $region40
    $region39: #{inconv_forward.1} parent=5 // pred_region
      %s192 = ssub.s32 %s11, 1
      %p193 = scmp.lt.s32.totalorder %s16, 1
      %s194 = scalar_select %p193, %s16, 1
      %s195 = smul.addr %s194, 32
      %s196 = smul.addr %s195, 8
      %s197 = scalar_lea.vmem %s0, %s196
      %p198 = pneg %p37
      %p199 = pneg %p34
      %p200 = pneg %p58
      %p201 = pneg %p55
      %p202 = pneg %p79
      %p203 = pneg %p76
      %p204 = pneg %p100
      %p205 = pneg %p97
      %p206 = pneg %p121
      %p207 = pneg %p118
      %p208 = pneg %p147
      %p209 = pneg %p144
      %p210 = scmp.lt.s32.totalorder %s16, 1
      %s211 = scalar_select %p210, %s16, 1
      %s212 = smul.addr %s211, 2
      %s213 = smul.addr %s212, 8
      %s214 = scalar_lea.vmem %s5, %s213
      %p215 = scmp.lt.s32.totalorder %s16, 1
      %s216 = scalar_select %p215, %s16, 1
      %s217 = smul.addr %s216, 32
      %s218 = smul.addr %s217, 8
      %s219 = scalar_lea.vmem %s0, %s218
      %p220 = scmp.lt.s32.totalorder %s16, 1
      %s221 = scalar_select %p220, %s16, 1
      %s222 = smul.addr %s221, 2
      %s223 = smul.addr %s222, 8
      %s224 = scalar_lea.vmem %s5, %s223
      %vm225 = vcmask 31744
      %226 = vst.msk [vmem:[#allocation2] sm:$0xff] %vm225, 0.0
      %227 = vst.msk [vmem:[#allocation2 + $0x8] sm:$0xff] %vm225, 0.0
      %vm228 = vcmask 25600
      %229 = vst.msk [vmem:[#allocation2 + $0x10] sm:$0x3] %vm228, 0.0
      %s230 = scalar_lea.vmem [#allocation2], 408
      %231 = vst.msk [vmem:[%s230] sm:$0xff] %vm225, 0.0
      %232 = vst.msk [vmem:[%s230 + $0x8] sm:$0xff] %vm225, 0.0
      %233 = vst.msk [vmem:[%s230 + $0x10] sm:$0x3] %vm228, 0.0
      %vm234 = vcmask 24576
      %235 = vst.msk [vmem:[#allocation2] sm:$0x1] %vm234, 0.0
      %236 = vst.msk [vmem:[#allocation2 + $0x18] sm:$0x1] %vm234, 0.0
      %237 = vst.msk [vmem:[#allocation2 + $0x30] sm:$0x1] %vm234, 0.0
      %238 = vst.msk [vmem:[#allocation2 + $0x48] sm:$0x1] %vm234, 0.0
      %239 = vst.msk [vmem:[#allocation2 + $0x60] sm:$0x1] %vm234, 0.0
      %240 = vst.msk [vmem:[#allocation2 + $0x78] sm:$0x1] %vm234, 0.0
      %241 = vst.msk [vmem:[#allocation2 + $0x90] sm:$0x1] %vm234, 0.0
      %242 = vst.msk [vmem:[#allocation2 + $0xa8] sm:$0x1] %vm234, 0.0
      %243 = vst.msk [vmem:[#allocation2 + $0xc0] sm:$0x1] %vm234, 0.0
      %244 = vst.msk [vmem:[#allocation2 + $0xd8] sm:$0x1] %vm234, 0.0
      %245 = vst.msk [vmem:[#allocation2 + $0xf0] sm:$0x1] %vm234, 0.0
      %246 = vst.msk [vmem:[#allocation2 + $0x108] sm:$0x1] %vm234, 0.0
      %247 = vst.msk [vmem:[#allocation2 + $0x120] sm:$0x1] %vm234, 0.0
      %248 = vst.msk [vmem:[#allocation2 + $0x138] sm:$0x1] %vm234, 0.0
      %249 = vst.msk [vmem:[#allocation2 + $0x150] sm:$0x1] %vm234, 0.0
      %250 = vst.msk [vmem:[#allocation2 + $0x168] sm:$0x1] %vm234, 0.0
      %251 = vst.msk [vmem:[#allocation2 + $0x180] sm:$0x1] %vm234, 0.0
      %252 = vst.msk [vmem:[#allocation2 + $0x198] sm:$0x1] %vm234, 0.0
      %253 = vst.msk [vmem:[#allocation2 + $0x11] sm:$0x1] %vm234, 0.0
      %254 = vst.msk [vmem:[#allocation2 + $0x29] sm:$0x1] %vm234, 0.0
      %255 = vst.msk [vmem:[#allocation2 + $0x41] sm:$0x1] %vm234, 0.0
      %256 = vst.msk [vmem:[#allocation2 + $0x59] sm:$0x1] %vm234, 0.0
      %257 = vst.msk [vmem:[#allocation2 + $0x71] sm:$0x1] %vm234, 0.0
      %258 = vst.msk [vmem:[#allocation2 + $0x89] sm:$0x1] %vm234, 0.0
      %259 = vst.msk [vmem:[#allocation2 + $0xa1] sm:$0x1] %vm234, 0.0
      %260 = vst.msk [vmem:[#allocation2 + $0xb9] sm:$0x1] %vm234, 0.0
      %261 = vst.msk [vmem:[#allocation2 + $0xd1] sm:$0x1] %vm234, 0.0
      %262 = vst.msk [vmem:[#allocation2 + $0xe9] sm:$0x1] %vm234, 0.0
      %263 = vst.msk [vmem:[#allocation2 + $0x101] sm:$0x1] %vm234, 0.0
      %264 = vst.msk [vmem:[#allocation2 + $0x119] sm:$0x1] %vm234, 0.0
      %265 = vst.msk [vmem:[#allocation2 + $0x131] sm:$0x1] %vm234, 0.0
      %266 = vst.msk [vmem:[#allocation2 + $0x149] sm:$0x1] %vm234, 0.0
      %267 = vst.msk [vmem:[#allocation2 + $0x161] sm:$0x1] %vm234, 0.0
      %268 = vst.msk [vmem:[#allocation2 + $0x179] sm:$0x1] %vm234, 0.0
      %269 = vst.msk [vmem:[#allocation2 + $0x191] sm:$0x1] %vm234, 0.0
      %270 = vst.msk [vmem:[#allocation2 + $0x1a9] sm:$0x1] %vm234, 0.0
      %vm271 = vcmask 64512
      %272 = vst.msk [vmem:[#allocation3] sm:$0xff] %vm271, 0.0
      %273 = vst.msk [vmem:[#allocation3 + $0x8] sm:$0xff] %vm271, 0.0
      %vm274 = vcmask 58368
      %275 = vst.msk [vmem:[#allocation3 + $0x10] sm:$0x3] %vm274, 0.0
      %s276 = scalar_lea.vmem [#allocation3], 408
      %277 = vst.msk [vmem:[%s276] sm:$0xff] %vm271, 0.0
      %278 = vst.msk [vmem:[%s276 + $0x8] sm:$0xff] %vm271, 0.0
      %279 = vst.msk [vmem:[%s276 + $0x10] sm:$0x3] %vm274, 0.0
      %vm280 = vcmask 57344
      %281 = vst.msk [vmem:[#allocation3] sm:$0x1] %vm280, 0.0
      %282 = vst.msk [vmem:[#allocation3 + $0x18] sm:$0x1] %vm280, 0.0
      %283 = vst.msk [vmem:[#allocation3 + $0x30] sm:$0x1] %vm280, 0.0
      %284 = vst.msk [vmem:[#allocation3 + $0x48] sm:$0x1] %vm280, 0.0
      %285 = vst.msk [vmem:[#allocation3 + $0x60] sm:$0x1] %vm280, 0.0
      %286 = vst.msk [vmem:[#allocation3 + $0x78] sm:$0x1] %vm280, 0.0
      %287 = vst.msk [vmem:[#allocation3 + $0x90] sm:$0x1] %vm280, 0.0
      %288 = vst.msk [vmem:[#allocation3 + $0xa8] sm:$0x1] %vm280, 0.0
      %289 = vst.msk [vmem:[#allocation3 + $0xc0] sm:$0x1] %vm280, 0.0
      %290 = vst.msk [vmem:[#allocation3 + $0xd8] sm:$0x1] %vm280, 0.0
      %291 = vst.msk [vmem:[#allocation3 + $0xf0] sm:$0x1] %vm280, 0.0
      %292 = vst.msk [vmem:[#allocation3 + $0x108] sm:$0x1] %vm280, 0.0
      %293 = vst.msk [vmem:[#allocation3 + $0x120] sm:$0x1] %vm280, 0.0
      %294 = vst.msk [vmem:[#allocation3 + $0x138] sm:$0x1] %vm280, 0.0
      %295 = vst.msk [vmem:[#allocation3 + $0x150] sm:$0x1] %vm280, 0.0
      %296 = vst.msk [vmem:[#allocation3 + $0x168] sm:$0x1] %vm280, 0.0
      %297 = vst.msk [vmem:[#allocation3 + $0x180] sm:$0x1] %vm280, 0.0
      %298 = vst.msk [vmem:[#allocation3 + $0x198] sm:$0x1] %vm280, 0.0
      %299 = vst.msk [vmem:[#allocation3 + $0x11] sm:$0x1] %vm280, 0.0
      %300 = vst.msk [vmem:[#allocation3 + $0x29] sm:$0x1] %vm280, 0.0
      %301 = vst.msk [vmem:[#allocation3 + $0x41] sm:$0x1] %vm280, 0.0
      %302 = vst.msk [vmem:[#allocation3 + $0x59] sm:$0x1] %vm280, 0.0
      %303 = vst.msk [vmem:[#allocation3 + $0x71] sm:$0x1] %vm280, 0.0
      %304 = vst.msk [vmem:[#allocation3 + $0x89] sm:$0x1] %vm280, 0.0
      %305 = vst.msk [vmem:[#allocation3 + $0xa1] sm:$0x1] %vm280, 0.0
      %306 = vst.msk [vmem:[#allocation3 + $0xb9] sm:$0x1] %vm280, 0.0
      %307 = vst.msk [vmem:[#allocation3 + $0xd1] sm:$0x1] %vm280, 0.0
      %308 = vst.msk [vmem:[#allocation3 + $0xe9] sm:$0x1] %vm280, 0.0
      %309 = vst.msk [vmem:[#allocation3 + $0x101] sm:$0x1] %vm280, 0.0
      %310 = vst.msk [vmem:[#allocation3 + $0x119] sm:$0x1] %vm280, 0.0
      %311 = vst.msk [vmem:[#allocation3 + $0x131] sm:$0x1] %vm280, 0.0
      %312 = vst.msk [vmem:[#allocation3 + $0x149] sm:$0x1] %vm280, 0.0
      %313 = vst.msk [vmem:[#allocation3 + $0x161] sm:$0x1] %vm280, 0.0
      %314 = vst.msk [vmem:[#allocation3 + $0x179] sm:$0x1] %vm280, 0.0
      %315 = vst.msk [vmem:[#allocation3 + $0x191] sm:$0x1] %vm280, 0.0
      %316 = vst.msk [vmem:[#allocation3 + $0x1a9] sm:$0x1] %vm280, 0.0
      %v317 = vld [vmem:[%s219] sm:$0xff]
      %v318 = vld [vmem:[%s219 + $0x8] sm:$0xff]
      %v319 = vld [vmem:[%s219 + $0x10] sm:$0xff]
      %v320 = vld [vmem:[%s219 + $0x18] sm:$0xff]
      %v321 = vld [vmem:[%s219 + $0x20] sm:$0xff]
      %v322 = vld [vmem:[%s219 + $0x28] sm:$0xff]
      %v323 = vld [vmem:[%s219 + $0x30] sm:$0xff]
      %v324 = vld [vmem:[%s219 + $0x38] sm:$0xff]
      %v325 = vld [vmem:[%s219 + $0x40] sm:$0xff]
      %v326 = vld [vmem:[%s219 + $0x48] sm:$0xff]
      %v327 = vld [vmem:[%s219 + $0x50] sm:$0xff]
      %v328 = vld [vmem:[%s219 + $0x58] sm:$0xff]
      %v329 = vld [vmem:[%s219 + $0x60] sm:$0xff]
      %v330 = vld [vmem:[%s219 + $0x68] sm:$0xff]
      %v331 = vld [vmem:[%s219 + $0x70] sm:$0xff]
      %v332 = vld [vmem:[%s219 + $0x78] sm:$0xff]
      %v333 = vld [vmem:[%s219 + $0x80] sm:$0xff]
      %v334 = vld [vmem:[%s219 + $0x88] sm:$0xff]
      %v335 = vld [vmem:[%s219 + $0x90] sm:$0xff]
      %v336 = vld [vmem:[%s219 + $0x98] sm:$0xff]
      %v337 = vld [vmem:[%s219 + $0xa0] sm:$0xff]
      %v338 = vld [vmem:[%s219 + $0xa8] sm:$0xff]
      %v339 = vld [vmem:[%s219 + $0xb0] sm:$0xff]
      %v340 = vld [vmem:[%s219 + $0xb8] sm:$0xff]
      %v341 = vld [vmem:[%s219 + $0xc0] sm:$0xff]
      %v342 = vld [vmem:[%s219 + $0xc8] sm:$0xff]
      %v343 = vld [vmem:[%s219 + $0xd0] sm:$0xff]
      %v344 = vld [vmem:[%s219 + $0xd8] sm:$0xff]
      %v345 = vld [vmem:[%s219 + $0xe0] sm:$0xff]
      %v346 = vld [vmem:[%s219 + $0xe8] sm:$0xff]
      %v347 = vld [vmem:[%s219 + $0xf0] sm:$0xff]
      %v348 = vld [vmem:[%s219 + $0xf8] sm:$0xff]
      %s349 = scalar_lea.vmem [#allocation2], 24
      %350 = vst.msk [vmem:[%s349 + $0x1] sm:$0xff] %vm225, %v317
      %351 = vst.msk [vmem:[%s349 + $0x9] sm:$0xff] %vm225, %v318
      %352 = vst.msk [vmem:[%s349 + $0x19] sm:$0xff] %vm225, %v319
      %353 = vst.msk [vmem:[%s349 + $0x21] sm:$0xff] %vm225, %v320
      %354 = vst.msk [vmem:[%s349 + $0x31] sm:$0xff] %vm225, %v321
      %355 = vst.msk [vmem:[%s349 + $0x39] sm:$0xff] %vm225, %v322
      %356 = vst.msk [vmem:[%s349 + $0x49] sm:$0xff] %vm225, %v323
      %357 = vst.msk [vmem:[%s349 + $0x51] sm:$0xff] %vm225, %v324
      %358 = vst.msk [vmem:[%s349 + $0x61] sm:$0xff] %vm225, %v325
      %359 = vst.msk [vmem:[%s349 + $0x69] sm:$0xff] %vm225, %v326
      %360 = vst.msk [vmem:[%s349 + $0x79] sm:$0xff] %vm225, %v327
      %361 = vst.msk [vmem:[%s349 + $0x81] sm:$0xff] %vm225, %v328
      %362 = vst.msk [vmem:[%s349 + $0x91] sm:$0xff] %vm225, %v329
      %363 = vst.msk [vmem:[%s349 + $0x99] sm:$0xff] %vm225, %v330
      %364 = vst.msk [vmem:[%s349 + $0xa9] sm:$0xff] %vm225, %v331
      %365 = vst.msk [vmem:[%s349 + $0xb1] sm:$0xff] %vm225, %v332
      %366 = vst.msk [vmem:[%s349 + $0xc1] sm:$0xff] %vm225, %v333
      %367 = vst.msk [vmem:[%s349 + $0xc9] sm:$0xff] %vm225, %v334
      %368 = vst.msk [vmem:[%s349 + $0xd9] sm:$0xff] %vm225, %v335
      %369 = vst.msk [vmem:[%s349 + $0xe1] sm:$0xff] %vm225, %v336
      %370 = vst.msk [vmem:[%s349 + $0xf1] sm:$0xff] %vm225, %v337
      %371 = vst.msk [vmem:[%s349 + $0xf9] sm:$0xff] %vm225, %v338
      %372 = vst.msk [vmem:[%s349 + $0x109] sm:$0xff] %vm225, %v339
      %373 = vst.msk [vmem:[%s349 + $0x111] sm:$0xff] %vm225, %v340
      %374 = vst.msk [vmem:[%s349 + $0x121] sm:$0xff] %vm225, %v341
      %375 = vst.msk [vmem:[%s349 + $0x129] sm:$0xff] %vm225, %v342
      %376 = vst.msk [vmem:[%s349 + $0x139] sm:$0xff] %vm225, %v343
      %377 = vst.msk [vmem:[%s349 + $0x141] sm:$0xff] %vm225, %v344
      %378 = vst.msk [vmem:[%s349 + $0x151] sm:$0xff] %vm225, %v345
      %379 = vst.msk [vmem:[%s349 + $0x159] sm:$0xff] %vm225, %v346
      %380 = vst.msk [vmem:[%s349 + $0x169] sm:$0xff] %vm225, %v347
      %381 = vst.msk [vmem:[%s349 + $0x171] sm:$0xff] %vm225, %v348
      %v382 = vld [vmem:[#allocation2] sm:$0xff]
      %v383 = vld [vmem:[#allocation2 + $0x8] sm:$0xff]
      %v384 = vld [vmem:[#allocation2 + $0x18] sm:$0xff]
      %v385 = vld [vmem:[#allocation2 + $0x20] sm:$0xff]
      %v386 = vld [vmem:[#allocation2 + $0x30] sm:$0xff]
      %v387 = vld [vmem:[#allocation2 + $0x38] sm:$0xff]
      %v388 = vld [vmem:[#allocation2 + $0x48] sm:$0xff]
      %v389 = vld [vmem:[#allocation2 + $0x50] sm:$0xff]
      %v390 = vld [vmem:[#allocation2 + $0x60] sm:$0xff]
      %v391 = vld [vmem:[#allocation2 + $0x68] sm:$0xff]
      %v392 = vld [vmem:[#allocation2 + $0x78] sm:$0xff]
      %v393 = vld [vmem:[#allocation2 + $0x80] sm:$0xff]
      %v394 = vld [vmem:[#allocation2 + $0x90] sm:$0xff]
      %v395 = vld [vmem:[#allocation2 + $0x98] sm:$0xff]
      %v396 = vld [vmem:[#allocation2 + $0xa8] sm:$0xff]
      %v397 = vld [vmem:[#allocation2 + $0xb0] sm:$0xff]
      %v398 = vld [vmem:[#allocation2 + $0xc0] sm:$0xff]
      %v399 = vld [vmem:[#allocation2 + $0xc8] sm:$0xff]
      %v400 = vld [vmem:[#allocation2 + $0xd8] sm:$0xff]
      %v401 = vld [vmem:[#allocation2 + $0xe0] sm:$0xff]
      %v402 = vld [vmem:[#allocation2 + $0xf0] sm:$0xff]
      %v403 = vld [vmem:[#allocation2 + $0xf8] sm:$0xff]
      %v404 = vld [vmem:[#allocation2 + $0x108] sm:$0xff]
      %v405 = vld [vmem:[#allocation2 + $0x110] sm:$0xff]
      %v406 = vld [vmem:[#allocation2 + $0x120] sm:$0xff]
      %v407 = vld [vmem:[#allocation2 + $0x128] sm:$0xff]
      %v408 = vld [vmem:[#allocation2 + $0x138] sm:$0xff]
      %v409 = vld [vmem:[#allocation2 + $0x140] sm:$0xff]
      %v410 = vld [vmem:[#allocation2 + $0x150] sm:$0xff]
      %v411 = vld [vmem:[#allocation2 + $0x158] sm:$0xff]
      %v412 = vld [vmem:[#allocation2 + $0x168] sm:$0xff]
      %v413 = vld [vmem:[#allocation2 + $0x170] sm:$0xff]
      %v414 = vld [vmem:[%s1] sm:$0xf]
      %v415 = vld [vmem:[#allocation2 + $0x1] sm:$0xff]
      %v416 = vld [vmem:[#allocation2 + $0x9] sm:$0xff]
      %v417 = vld [vmem:[#allocation2 + $0x19] sm:$0xff]
      %v418 = vld [vmem:[#allocation2 + $0x21] sm:$0xff]
      %v419 = vld [vmem:[#allocation2 + $0x31] sm:$0xff]
      %v420 = vld [vmem:[#allocation2 + $0x39] sm:$0xff]
      %v421 = vld [vmem:[#allocation2 + $0x49] sm:$0xff]
      %v422 = vld [vmem:[#allocation2 + $0x51] sm:$0xff]
      %v423 = vld [vmem:[#allocation2 + $0x61] sm:$0xff]
      %v424 = vld [vmem:[#allocation2 + $0x69] sm:$0xff]
      %v425 = vld [vmem:[#allocation2 + $0x79] sm:$0xff]
      %v426 = vld [vmem:[#allocation2 + $0x81] sm:$0xff]
      %v427 = vld [vmem:[#allocation2 + $0x91] sm:$0xff]
      %v428 = vld [vmem:[#allocation2 + $0x99] sm:$0xff]
      %v429 = vld [vmem:[#allocation2 + $0xa9] sm:$0xff]
      %v430 = vld [vmem:[#allocation2 + $0xb1] sm:$0xff]
      %v431 = vld [vmem:[#allocation2 + $0xc1] sm:$0xff]
      %v432 = vld [vmem:[#allocation2 + $0xc9] sm:$0xff]
      %v433 = vld [vmem:[#allocation2 + $0xd9] sm:$0xff]
      %v434 = vld [vmem:[#allocation2 + $0xe1] sm:$0xff]
      %v435 = vld [vmem:[#allocation2 + $0xf1] sm:$0xff]
      %v436 = vld [vmem:[#allocation2 + $0xf9] sm:$0xff]
      %v437 = vld [vmem:[#allocation2 + $0x109] sm:$0xff]
      %v438 = vld [vmem:[#allocation2 + $0x111] sm:$0xff]
      %v439 = vld [vmem:[#allocation2 + $0x121] sm:$0xff]
      %v440 = vld [vmem:[#allocation2 + $0x129] sm:$0xff]
      %v441 = vld [vmem:[#allocation2 + $0x139] sm:$0xff]
      %v442 = vld [vmem:[#allocation2 + $0x141] sm:$0xff]
      %v443 = vld [vmem:[#allocation2 + $0x151] sm:$0xff]
      %v444 = vld [vmem:[#allocation2 + $0x159] sm:$0xff]
      %v445 = vld [vmem:[#allocation2 + $0x169] sm:$0xff]
      %v446 = vld [vmem:[#allocation2 + $0x171] sm:$0xff]
      %s447 = scalar_lea.vmem %s1, 4
      %v448 = vld [vmem:[%s447] sm:$0xf]
      %v450 = vsel %vm225, %v415, 0
      %v453 = vsel %vm225, %v416, 0
      %v456 = vsel %vm225, %v417, 0
      %v459 = vsel %vm225, %v418, 0
      %v462 = vsel %vm225, %v419, 0
      %v465 = vsel %vm225, %v420, 0
      %v468 = vsel %vm225, %v421, 0
      %v471 = vsel %vm225, %v422, 0
      %v474 = vsel %vm225, %v423, 0
      %v477 = vsel %vm225, %v424, 0
      %v480 = vsel %vm225, %v425, 0
      %v483 = vsel %vm225, %v426, 0
      %v486 = vsel %vm225, %v427, 0
      %v489 = vsel %vm225, %v428, 0
      %v492 = vsel %vm225, %v429, 0
      %v495 = vsel %vm225, %v430, 0
      %v498 = vsel %vm225, %v431, 0
      %v501 = vsel %vm225, %v432, 0
      %v504 = vsel %vm225, %v433, 0
      %v507 = vsel %vm225, %v434, 0
      %v510 = vsel %vm225, %v435, 0
      %v513 = vsel %vm225, %v436, 0
      %v516 = vsel %vm225, %v437, 0
      %v519 = vsel %vm225, %v438, 0
      %v522 = vsel %vm225, %v439, 0
      %v525 = vsel %vm225, %v440, 0
      %v528 = vsel %vm225, %v441, 0
      %v531 = vsel %vm225, %v442, 0
      %v534 = vsel %vm225, %v443, 0
      %v537 = vsel %vm225, %v444, 0
      %v540 = vsel %vm225, %v445, 0
      %v543 = vsel %vm225, %v446, 0
      %vm545 = vcmask 1043456
      %v547 = vsel %vm545, %v448, 0
      %549 = vmatprep.subr.mxu0 0.0
      %550 = vmatpush1.msra.mxu0 %v547
      %551 = vmatprep.subr.mxu0 0.0
      %552 = vmatpush1.msra.mxu0 0.0
      %553 = vmatprep.subr.mxu0 0.0
      %554 = vmatpush1.msra.mxu0 0.0
      %555 = vmatprep.subr.mxu0 0.0
      %556 = vmatpush1.msra.mxu0 0.0
      %557 = vmatprep.subr.mxu0 0.0
      %558 = vmatpush1.msra.mxu0 0.0
      %559 = vmatprep.subr.mxu0 0.0
      %560 = vmatpush1.msra.mxu0 0.0
      %561 = vmatprep.subr.mxu0 0.0
      %562 = vmatpush1.msra.mxu0 0.0
      %563 = vmatprep.subr.mxu0 0.0
      %564 = vmatpush1.msra.mxu0 0.0
      %565 = vmatprep.subr.mxu0 0.0
      %566 = vmatpush1.msra.mxu0 0.0
      %567 = vmatprep.subr.mxu0 0.0
      %568 = vmatpush1.msra.mxu0 0.0
      %569 = vmatprep.subr.mxu0 0.0
      %570 = vmatpush1.msra.mxu0 0.0
      %571 = vmatprep.subr.mxu0 0.0
      %572 = vmatpush1.msra.mxu0 0.0
      %573 = vmatprep.subr.mxu0 0.0
      %574 = vmatpush1.msra.mxu0 0.0
      %575 = vmatprep.subr.mxu0 0.0
      %576 = vmatpush1.msra.mxu0 0.0
      %577 = vmatprep.subr.mxu0 0.0
      %578 = vmatpush1.msra.mxu0 0.0
      %579 = vmatprep.subr.mxu0 0.0
      %580 = vmatpush1.msra.mxu0 0.0
      %581 = vmatprep.subr.mxu0 0.0
      %582 = vmatpush1.msra.mxu0 0.0
      %583 = vmatprep.subr.mxu0 0.0
      %584 = vmatpush1.msra.mxu0 0.0
      %585 = vmatprep.subr.mxu0 0.0
      %586 = vmatpush1.msra.mxu0 0.0
      %587 = vmatprep.subr.mxu0 0.0
      %588 = vmatpush1.msra.mxu0 0.0
      %589 = vmatprep.subr.mxu0 0.0
      %590 = vmatpush1.msra.mxu0 0.0
      %591 = vmatprep.subr.mxu0 0.0
      %592 = vmatpush1.msra.mxu0 0.0
      %593 = vmatprep.subr.mxu0 0.0
      %594 = vmatpush1.msra.mxu0 0.0
      %595 = vmatprep.subr.mxu0 0.0
      %596 = vmatpush1.msra.mxu0 0.0
      %597 = vmatprep.subr.mxu0 0.0
      %598 = vmatpush1.msra.mxu0 0.0
      %599 = vmatprep.subr.mxu0 0.0
      %600 = vmatpush1.msra.mxu0 0.0
      %601 = vmatprep.subr.mxu0 0.0
      %602 = vmatpush1.msra.mxu0 0.0
      %603 = vmatprep.subr.mxu0 0.0
      %604 = vmatpush1.msra.mxu0 0.0
      %605 = vmatprep.subr.mxu0 0.0
      %606 = vmatpush1.msra.mxu0 0.0
      %607 = vmatprep.subr.mxu0 0.0
      %608 = vmatpush1.msra.mxu0 0.0
      %609 = vmatprep.subr.mxu0 0.0
      %610 = vmatpush1.msra.mxu0 0.0
      %611 = vmatprep.subr.mxu0 0.0
      %612 = vmatpush1.msra.mxu0 0.0
      %613 = vmatprep.mubr.f32.mxu0 0.0
      %614 = vmatmul.mubr.f32.gmra.mrb[0].mxu0 %v450
      %v615 = vpop.f32.mrb[0].mxu0
      %v616 = vadd.f32 0.0, %v615
      %v617 = vpop.f32.mrb[0].mxu0
      %618 = vmatprep.mubr.f32.mxu0 0.0
      %619 = vmatmul.mubr.f32.gmra.mrb[0].mxu0 %v453
      %v620 = vpop.f32.mrb[0].mxu0
      %v621 = vadd.f32 0.0, %v620
      %v622 = vpop.f32.mrb[0].mxu0
      %623 = vmatprep.mubr.f32.mxu0 0.0
      %624 = vmatmul.mubr.f32.gmra.mrb[0].mxu0 %v456
      %v625 = vpop.f32.mrb[0].mxu0
      %v626 = vadd.f32 0.0, %v625
      %v627 = vpop.f32.mrb[0].mxu0
      %628 = vmatprep.mubr.f32.mxu0 0.0
      %629 = vmatmul.mubr.f32.gmra.mrb[0].mxu0 %v459
      %v630 = vpop.f32.mrb[0].mxu0
      %v631 = vadd.f32 0.0, %v630
      %v632 = vpop.f32.mrb[0].mxu0
      %633 = vmatprep.mubr.f32.mxu0 0.0
      %634 = vmatmul.mubr.f32.gmra.mrb[0].mxu0 %v462
      %v635 = vpop.f32.mrb[0].mxu0
      %v636 = vadd.f32 0.0, %v635
      %v637 = vpop.f32.mrb[0].mxu0
      %638 = vmatprep.mubr.f32.mxu0 0.0
      %639 = vmatmul.mubr.f32.gmra.mrb[0].mxu0 %v465
      %v640 = vpop.f32.mrb[0].mxu0
      %v641 = vadd.f32 0.0, %v640
      %v642 = vpop.f32.mrb[0].mxu0
      %643 = vmatprep.mubr.f32.mxu0 0.0
      %644 = vmatmul.mubr.f32.gmra.mrb[0].mxu0 %v468
      %v645 = vpop.f32.mrb[0].mxu0
      %v646 = vadd.f32 0.0, %v645
      %v647 = vpop.f32.mrb[0].mxu0
      %648 = vmatprep.mubr.f32.mxu0 0.0
      %649 = vmatmul.mubr.f32.gmra.mrb[0].mxu0 %v471
      %v650 = vpop.f32.mrb[0].mxu0
      %v651 = vadd.f32 0.0, %v650
      %v652 = vpop.f32.mrb[0].mxu0
      %653 = vmatprep.mubr.f32.mxu0 0.0
      %654 = vmatmul.mubr.f32.gmra.mrb[0].mxu0 %v474
      %v655 = vpop.f32.mrb[0].mxu0
      %v656 = vadd.f32 0.0, %v655
      %v657 = vpop.f32.mrb[0].mxu0
      %658 = vmatprep.mubr.f32.mxu0 0.0
      %659 = vmatmul.mubr.f32.gmra.mrb[0].mxu0 %v477
      %v660 = vpop.f32.mrb[0].mxu0
      %v661 = vadd.f32 0.0, %v660
      %v662 = vpop.f32.mrb[0].mxu0
      %663 = vmatprep.mubr.f32.mxu0 0.0
      %664 = vmatmul.mubr.f32.gmra.mrb[0].mxu0 %v480
      %v665 = vpop.f32.mrb[0].mxu0
      %v666 = vadd.f32 0.0, %v665
      %v667 = vpop.f32.mrb[0].mxu0
      %668 = vmatprep.mubr.f32.mxu0 0.0
      %669 = vmatmul.mubr.f32.gmra.mrb[0].mxu0 %v483
      %v670 = vpop.f32.mrb[0].mxu0
      %v671 = vadd.f32 0.0, %v670
      %v672 = vpop.f32.mrb[0].mxu0
      %673 = vmatprep.mubr.f32.mxu0 0.0
      %674 = vmatmul.mubr.f32.gmra.mrb[0].mxu0 %v486
      %v675 = vpop.f32.mrb[0].mxu0
      %v676 = vadd.f32 0.0, %v675
      %v677 = vpop.f32.mrb[0].mxu0
      %678 = vmatprep.mubr.f32.mxu0 0.0
      %679 = vmatmul.mubr.f32.gmra.mrb[0].mxu0 %v489
      %v680 = vpop.f32.mrb[0].mxu0
      %v681 = vadd.f32 0.0, %v680
      %v682 = vpop.f32.mrb[0].mxu0
      %683 = vmatprep.mubr.f32.mxu0 0.0
      %684 = vmatmul.mubr.f32.gmra.mrb[0].mxu0 %v492
      %v685 = vpop.f32.mrb[0].mxu0
      %v686 = vadd.f32 0.0, %v685
      %v687 = vpop.f32.mrb[0].mxu0
      %688 = vmatprep.mubr.f32.mxu0 0.0
      %689 = vmatmul.mubr.f32.gmra.mrb[0].mxu0 %v495
      %v690 = vpop.f32.mrb[0].mxu0
      %v691 = vadd.f32 0.0, %v690
      %v692 = vpop.f32.mrb[0].mxu0
      %693 = vmatprep.mubr.f32.mxu0 0.0
      %694 = vmatmul.mubr.f32.gmra.mrb[0].mxu0 %v498
      %v695 = vpop.f32.mrb[0].mxu0
      %v696 = vadd.f32 0.0, %v695
      %v697 = vpop.f32.mrb[0].mxu0
      %698 = vmatprep.mubr.f32.mxu0 0.0
      %699 = vmatmul.mubr.f32.gmra.mrb[0].mxu0 %v501
      %v700 = vpop.f32.mrb[0].mxu0
      %v701 = vadd.f32 0.0, %v700
      %v702 = vpop.f32.mrb[0].mxu0
      %703 = vmatprep.mubr.f32.mxu0 0.0
      %704 = vmatmul.mubr.f32.gmra.mrb[0].mxu0 %v504
      %v705 = vpop.f32.mrb[0].mxu0
      %v706 = vadd.f32 0.0, %v705
      %v707 = vpop.f32.mrb[0].mxu0
      %708 = vmatprep.mubr.f32.mxu0 0.0
      %709 = vmatmul.mubr.f32.gmra.mrb[0].mxu0 %v507
      %v710 = vpop.f32.mrb[0].mxu0
      %v711 = vadd.f32 0.0, %v710
      %v712 = vpop.f32.mrb[0].mxu0
      %713 = vmatprep.mubr.f32.mxu0 0.0
      %714 = vmatmul.mubr.f32.gmra.mrb[0].mxu0 %v510
      %v715 = vpop.f32.mrb[0].mxu0
      %v716 = vadd.f32 0.0, %v715
      %v717 = vpop.f32.mrb[0].mxu0
      %718 = vmatprep.mubr.f32.mxu0 0.0
      %719 = vmatmul.mubr.f32.gmra.mrb[0].mxu0 %v513
      %v720 = vpop.f32.mrb[0].mxu0
      %v721 = vadd.f32 0.0, %v720
      %v722 = vpop.f32.mrb[0].mxu0
      %723 = vmatprep.mubr.f32.mxu0 0.0
      %724 = vmatmul.mubr.f32.gmra.mrb[0].mxu0 %v516
      %v725 = vpop.f32.mrb[0].mxu0
      %v726 = vadd.f32 0.0, %v725
      %v727 = vpop.f32.mrb[0].mxu0
      %728 = vmatprep.mubr.f32.mxu0 0.0
      %729 = vmatmul.mubr.f32.gmra.mrb[0].mxu0 %v519
      %v730 = vpop.f32.mrb[0].mxu0
      %v731 = vadd.f32 0.0, %v730
      %v732 = vpop.f32.mrb[0].mxu0
      %733 = vmatprep.mubr.f32.mxu0 0.0
      %734 = vmatmul.mubr.f32.gmra.mrb[0].mxu0 %v522
      %v735 = vpop.f32.mrb[0].mxu0
      %v736 = vadd.f32 0.0, %v735
      %v737 = vpop.f32.mrb[0].mxu0
      %738 = vmatprep.mubr.f32.mxu0 0.0
      %739 = vmatmul.mubr.f32.gmra.mrb[0].mxu0 %v525
      %v740 = vpop.f32.mrb[0].mxu0
      %v741 = vadd.f32 0.0, %v740
      %v742 = vpop.f32.mrb[0].mxu0
      %743 = vmatprep.mubr.f32.mxu0 0.0
      %744 = vmatmul.mubr.f32.gmra.mrb[0].mxu0 %v528
      %v745 = vpop.f32.mrb[0].mxu0
      %v746 = vadd.f32 0.0, %v745
      %v747 = vpop.f32.mrb[0].mxu0
      %748 = vmatprep.mubr.f32.mxu0 0.0
      %749 = vmatmul.mubr.f32.gmra.mrb[0].mxu0 %v531
      %v750 = vpop.f32.mrb[0].mxu0
      %v751 = vadd.f32 0.0, %v750
      %v752 = vpop.f32.mrb[0].mxu0
      %753 = vmatprep.mubr.f32.mxu0 0.0
      %754 = vmatmul.mubr.f32.gmra.mrb[0].mxu0 %v534
      %v755 = vpop.f32.mrb[0].mxu0
      %v756 = vadd.f32 0.0, %v755
      %v757 = vpop.f32.mrb[0].mxu0
      %758 = vmatprep.mubr.f32.mxu0 0.0
      %759 = vmatmul.mubr.f32.gmra.mrb[0].mxu0 %v537
      %v760 = vpop.f32.mrb[0].mxu0
      %v761 = vadd.f32 0.0, %v760
      %v762 = vpop.f32.mrb[0].mxu0
      %763 = vmatprep.mubr.f32.mxu0 0.0
      %764 = vmatmul.mubr.f32.gmra.mrb[0].mxu0 %v540
      %v765 = vpop.f32.mrb[0].mxu0
      %v766 = vadd.f32 0.0, %v765
      %v767 = vpop.f32.mrb[0].mxu0
      %768 = vmatprep.mubr.f32.mxu0 0.0
      %769 = vmatmul.mubr.f32.gmra.mrb[0].mxu0 %v543
      %v770 = vpop.f32.mrb[0].mxu0
      %v771 = vadd.f32 0.0, %v770
      %v772 = vpop.f32.mrb[0].mxu0
      %773 = vdwg.mxu0
      %v775 = vsel %vm225, %v382, 0
      %v778 = vsel %vm225, %v383, 0
      %v781 = vsel %vm225, %v384, 0
      %v784 = vsel %vm225, %v385, 0
      %v787 = vsel %vm225, %v386, 0
      %v790 = vsel %vm225, %v387, 0
      %v793 = vsel %vm225, %v388, 0
      %v796 = vsel %vm225, %v389, 0
      %v799 = vsel %vm225, %v390, 0
      %v802 = vsel %vm225, %v391, 0
      %v805 = vsel %vm225, %v392, 0
      %v808 = vsel %vm225, %v393, 0
      %v811 = vsel %vm225, %v394, 0
      %v814 = vsel %vm225, %v395, 0
      %v817 = vsel %vm225, %v396, 0
      %v820 = vsel %vm225, %v397, 0
      %v823 = vsel %vm225, %v398, 0
      %v826 = vsel %vm225, %v399, 0
      %v829 = vsel %vm225, %v400, 0
      %v832 = vsel %vm225, %v401, 0
      %v835 = vsel %vm225, %v402, 0
      %v838 = vsel %vm225, %v403, 0
      %v841 = vsel %vm225, %v404, 0
      %v844 = vsel %vm225, %v405, 0
      %v847 = vsel %vm225, %v406, 0
      %v850 = vsel %vm225, %v407, 0
      %v853 = vsel %vm225, %v408, 0
      %v856 = vsel %vm225, %v409, 0
      %v859 = vsel %vm225, %v410, 0
      %v862 = vsel %vm225, %v411, 0
      %v865 = vsel %vm225, %v412, 0
      %v868 = vsel %vm225, %v413, 0
      %v871 = vsel %vm545, %v414, 0
      %873 = vmatprep.subr.mxu0 0.0
      %874 = vmatpush1.msra.mxu0 %v871
      %875 = vmatprep.subr.mxu0 0.0
      %876 = vmatpush1.msra.mxu0 0.0
      %877 = vmatprep.subr.mxu0 0.0
      %878 = vmatpush1.msra.mxu0 0.0
      %879 = vmatprep.subr.mxu0 0.0
      %880 = vmatpush1.msra.mxu0 0.0
      %881 = vmatprep.subr.mxu0 0.0
      %882 = vmatpush1.msra.mxu0 0.0
      %883 = vmatprep.subr.mxu0 0.0
      %884 = vmatpush1.msra.mxu0 0.0
      %885 = vmatprep.subr.mxu0 0.0
      %886 = vmatpush1.msra.mxu0 0.0
      %887 = vmatprep.subr.mxu0 0.0
      %888 = vmatpush1.msra.mxu0 0.0
      %889 = vmatprep.subr.mxu0 0.0
      %890 = vmatpush1.msra.mxu0 0.0
      %891 = vmatprep.subr.mxu0 0.0
      %892 = vmatpush1.msra.mxu0 0.0
      %893 = vmatprep.subr.mxu0 0.0
      %894 = vmatpush1.msra.mxu0 0.0
      %895 = vmatprep.subr.mxu0 0.0
      %896 = vmatpush1.msra.mxu0 0.0
      %897 = vmatprep.subr.mxu0 0.0
      %898 = vmatpush1.msra.mxu0 0.0
      %899 = vmatprep.subr.mxu0 0.0
      %900 = vmatpush1.msra.mxu0 0.0
      %901 = vmatprep.subr.mxu0 0.0
      %902 = vmatpush1.msra.mxu0 0.0
      %903 = vmatprep.subr.mxu0 0.0
      %904 = vmatpush1.msra.mxu0 0.0
      %905 = vmatprep.subr.mxu0 0.0
      %906 = vmatpush1.msra.mxu0 0.0
      %907 = vmatprep.subr.mxu0 0.0
      %908 = vmatpush1.msra.mxu0 0.0
      %909 = vmatprep.subr.mxu0 0.0
      %910 = vmatpush1.msra.mxu0 0.0
      %911 = vmatprep.subr.mxu0 0.0
      %912 = vmatpush1.msra.mxu0 0.0
      %913 = vmatprep.subr.mxu0 0.0
      %914 = vmatpush1.msra.mxu0 0.0
      %915 = vmatprep.subr.mxu0 0.0
      %916 = vmatpush1.msra.mxu0 0.0
      %917 = vmatprep.subr.mxu0 0.0
      %918 = vmatpush1.msra.mxu0 0.0
      %919 = vmatprep.subr.mxu0 0.0
      %920 = vmatpush1.msra.mxu0 0.0
      %921 = vmatprep.subr.mxu0 0.0
      %922 = vmatpush1.msra.mxu0 0.0
      %923 = vmatprep.subr.mxu0 0.0
      %924 = vmatpush1.msra.mxu0 0.0
      %925 = vmatprep.subr.mxu0 0.0
      %926 = vmatpush1.msra.mxu0 0.0
      %927 = vmatprep.subr.mxu0 0.0
      %928 = vmatpush1.msra.mxu0 0.0
      %929 = vmatprep.subr.mxu0 0.0
      %930 = vmatpush1.msra.mxu0 0.0
      %931 = vmatprep.subr.mxu0 0.0
      %932 = vmatpush1.msra.mxu0 0.0
      %933 = vmatprep.subr.mxu0 0.0
      %934 = vmatpush1.msra.mxu0 0.0
      %935 = vmatprep.subr.mxu0 0.0
      %936 = vmatpush1.msra.mxu0 0.0
      %937 = vmatprep.mubr.f32.mxu0 0.0
      %938 = vmatmul.mubr.f32.gmra.mrb[0].mxu0 %v775
      %v939 = vpop.f32.mrb[0].mxu0
      %v940 = vadd.f32 %v616, %v939
      %v941 = vpop.f32.mrb[0].mxu0
      %942 = vmatprep.mubr.f32.mxu0 0.0
      %943 = vmatmul.mubr.f32.gmra.mrb[0].mxu0 %v778
      %v944 = vpop.f32.mrb[0].mxu0
      %v945 = vadd.f32 %v621, %v944
      %v946 = vpop.f32.mrb[0].mxu0
      %947 = vmatprep.mubr.f32.mxu0 0.0
      %948 = vmatmul.mubr.f32.gmra.mrb[0].mxu0 %v781
      %v949 = vpop.f32.mrb[0].mxu0
      %v950 = vadd.f32 %v626, %v949
      %v951 = vpop.f32.mrb[0].mxu0
      %952 = vmatprep.mubr.f32.mxu0 0.0
      %953 = vmatmul.mubr.f32.gmra.mrb[0].mxu0 %v784
      %v954 = vpop.f32.mrb[0].mxu0
      %v955 = vadd.f32 %v631, %v954
      %v956 = vpop.f32.mrb[0].mxu0
      %957 = vmatprep.mubr.f32.mxu0 0.0
      %958 = vmatmul.mubr.f32.gmra.mrb[0].mxu0 %v787
      %v959 = vpop.f32.mrb[0].mxu0
      %v960 = vadd.f32 %v636, %v959
      %v961 = vpop.f32.mrb[0].mxu0
      %962 = vmatprep.mubr.f32.mxu0 0.0
      %963 = vmatmul.mubr.f32.gmra.mrb[0].mxu0 %v790
      %v964 = vpop.f32.mrb[0].mxu0
      %v965 = vadd.f32 %v641, %v964
      %v966 = vpop.f32.mrb[0].mxu0
      %967 = vmatprep.mubr.f32.mxu0 0.0
      %968 = vmatmul.mubr.f32.gmra.mrb[0].mxu0 %v793
      %v969 = vpop.f32.mrb[0].mxu0
      %v970 = vadd.f32 %v646, %v969
      %v971 = vpop.f32.mrb[0].mxu0
      %972 = vmatprep.mubr.f32.mxu0 0.0
      %973 = vmatmul.mubr.f32.gmra.mrb[0].mxu0 %v796
      %v974 = vpop.f32.mrb[0].mxu0
      %v975 = vadd.f32 %v651, %v974
      %v976 = vpop.f32.mrb[0].mxu0
      %977 = vmatprep.mubr.f32.mxu0 0.0
      %978 = vmatmul.mubr.f32.gmra.mrb[0].mxu0 %v799
      %v979 = vpop.f32.mrb[0].mxu0
      %v980 = vadd.f32 %v656, %v979
      %v981 = vpop.f32.mrb[0].mxu0
      %982 = vmatprep.mubr.f32.mxu0 0.0
      %983 = vmatmul.mubr.f32.gmra.mrb[0].mxu0 %v802
      %v984 = vpop.f32.mrb[0].mxu0
      %v985 = vadd.f32 %v661, %v984
      %v986 = vpop.f32.mrb[0].mxu0
      %987 = vmatprep.mubr.f32.mxu0 0.0
      %988 = vmatmul.mubr.f32.gmra.mrb[0].mxu0 %v805
      %v989 = vpop.f32.mrb[0].mxu0
      %v990 = vadd.f32 %v666, %v989
      %v991 = vpop.f32.mrb[0].mxu0
      %992 = vmatprep.mubr.f32.mxu0 0.0
      %993 = vmatmul.mubr.f32.gmra.mrb[0].mxu0 %v808
      %v994 = vpop.f32.mrb[0].mxu0
      %v995 = vadd.f32 %v671, %v994
      %v996 = vpop.f32.mrb[0].mxu0
      %997 = vmatprep.mubr.f32.mxu0 0.0
      %998 = vmatmul.mubr.f32.gmra.mrb[0].mxu0 %v811
      %v999 = vpop.f32.mrb[0].mxu0
      %v1000 = vadd.f32 %v676, %v999
      %v1001 = vpop.f32.mrb[0].mxu0
      %1002 = vmatprep.mubr.f32.mxu0 0.0
      %1003 = vmatmul.mubr.f32.gmra.mrb[0].mxu0 %v814
      %v1004 = vpop.f32.mrb[0].mxu0
      %v1005 = vadd.f32 %v681, %v1004
      %v1006 = vpop.f32.mrb[0].mxu0
      %1007 = vmatprep.mubr.f32.mxu0 0.0
      %1008 = vmatmul.mubr.f32.gmra.mrb[0].mxu0 %v817
      %v1009 = vpop.f32.mrb[0].mxu0
      %v1010 = vadd.f32 %v686, %v1009
      %v1011 = vpop.f32.mrb[0].mxu0
      %1012 = vmatprep.mubr.f32.mxu0 0.0
      %1013 = vmatmul.mubr.f32.gmra.mrb[0].mxu0 %v820
      %v1014 = vpop.f32.mrb[0].mxu0
      %v1015 = vadd.f32 %v691, %v1014
      %v1016 = vpop.f32.mrb[0].mxu0
      %1017 = vmatprep.mubr.f32.mxu0 0.0
      %1018 = vmatmul.mubr.f32.gmra.mrb[0].mxu0 %v823
      %v1019 = vpop.f32.mrb[0].mxu0
      %v1020 = vadd.f32 %v696, %v1019
      %v1021 = vpop.f32.mrb[0].mxu0
      %1022 = vmatprep.mubr.f32.mxu0 0.0
      %1023 = vmatmul.mubr.f32.gmra.mrb[0].mxu0 %v826
      %v1024 = vpop.f32.mrb[0].mxu0
      %v1025 = vadd.f32 %v701, %v1024
      %v1026 = vpop.f32.mrb[0].mxu0
      %1027 = vmatprep.mubr.f32.mxu0 0.0
      %1028 = vmatmul.mubr.f32.gmra.mrb[0].mxu0 %v829
      %v1029 = vpop.f32.mrb[0].mxu0
      %v1030 = vadd.f32 %v706, %v1029
      %v1031 = vpop.f32.mrb[0].mxu0
      %1032 = vmatprep.mubr.f32.mxu0 0.0
      %1033 = vmatmul.mubr.f32.gmra.mrb[0].mxu0 %v832
      %v1034 = vpop.f32.mrb[0].mxu0
      %v1035 = vadd.f32 %v711, %v1034
      %v1036 = vpop.f32.mrb[0].mxu0
      %1037 = vmatprep.mubr.f32.mxu0 0.0
      %1038 = vmatmul.mubr.f32.gmra.mrb[0].mxu0 %v835
      %v1039 = vpop.f32.mrb[0].mxu0
      %v1040 = vadd.f32 %v716, %v1039
      %v1041 = vpop.f32.mrb[0].mxu0
      %1042 = vmatprep.mubr.f32.mxu0 0.0
      %1043 = vmatmul.mubr.f32.gmra.mrb[0].mxu0 %v838
      %v1044 = vpop.f32.mrb[0].mxu0
      %v1045 = vadd.f32 %v721, %v1044
      %v1046 = vpop.f32.mrb[0].mxu0
      %1047 = vmatprep.mubr.f32.mxu0 0.0
      %1048 = vmatmul.mubr.f32.gmra.mrb[0].mxu0 %v841
      %v1049 = vpop.f32.mrb[0].mxu0
      %v1050 = vadd.f32 %v726, %v1049
      %v1051 = vpop.f32.mrb[0].mxu0
      %1052 = vmatprep.mubr.f32.mxu0 0.0
      %1053 = vmatmul.mubr.f32.gmra.mrb[0].mxu0 %v844
      %v1054 = vpop.f32.mrb[0].mxu0
      %v1055 = vadd.f32 %v731, %v1054
      %v1056 = vpop.f32.mrb[0].mxu0
      %1057 = vmatprep.mubr.f32.mxu0 0.0
      %1058 = vmatmul.mubr.f32.gmra.mrb[0].mxu0 %v847
      %v1059 = vpop.f32.mrb[0].mxu0
      %v1060 = vadd.f32 %v736, %v1059
      %v1061 = vpop.f32.mrb[0].mxu0
      %1062 = vmatprep.mubr.f32.mxu0 0.0
      %1063 = vmatmul.mubr.f32.gmra.mrb[0].mxu0 %v850
      %v1064 = vpop.f32.mrb[0].mxu0
      %v1065 = vadd.f32 %v741, %v1064
      %v1066 = vpop.f32.mrb[0].mxu0
      %1067 = vmatprep.mubr.f32.mxu0 0.0
      %1068 = vmatmul.mubr.f32.gmra.mrb[0].mxu0 %v853
      %v1069 = vpop.f32.mrb[0].mxu0
      %v1070 = vadd.f32 %v746, %v1069
      %v1071 = vpop.f32.mrb[0].mxu0
      %1072 = vmatprep.mubr.f32.mxu0 0.0
      %1073 = vmatmul.mubr.f32.gmra.mrb[0].mxu0 %v856
      %v1074 = vpop.f32.mrb[0].mxu0
      %v1075 = vadd.f32 %v751, %v1074
      %v1076 = vpop.f32.mrb[0].mxu0
      %1077 = vmatprep.mubr.f32.mxu0 0.0
      %1078 = vmatmul.mubr.f32.gmra.mrb[0].mxu0 %v859
      %v1079 = vpop.f32.mrb[0].mxu0
      %v1080 = vadd.f32 %v756, %v1079
      %v1081 = vpop.f32.mrb[0].mxu0
      %1082 = vmatprep.mubr.f32.mxu0 0.0
      %1083 = vmatmul.mubr.f32.gmra.mrb[0].mxu0 %v862
      %v1084 = vpop.f32.mrb[0].mxu0
      %v1085 = vadd.f32 %v761, %v1084
      %v1086 = vpop.f32.mrb[0].mxu0
      %1087 = vmatprep.mubr.f32.mxu0 0.0
      %1088 = vmatmul.mubr.f32.gmra.mrb[0].mxu0 %v865
      %v1089 = vpop.f32.mrb[0].mxu0
      %v1090 = vadd.f32 %v766, %v1089
      %v1091 = vpop.f32.mrb[0].mxu0
      %1092 = vmatprep.mubr.f32.mxu0 0.0
      %1093 = vmatmul.mubr.f32.gmra.mrb[0].mxu0 %v868
      %v1094 = vpop.f32.mrb[0].mxu0
      %v1095 = vadd.f32 %v771, %v1094
      %v1096 = vpop.f32.mrb[0].mxu0
      %1097 = vdwg.mxu0
      %v1098 = vld [vmem:[#allocation2 + $0x2] sm:$0xff]
      %v1099 = vld [vmem:[#allocation2 + $0xa] sm:$0xff]
      %v1100 = vld [vmem:[#allocation2 + $0x1a] sm:$0xff]
      %v1101 = vld [vmem:[#allocation2 + $0x22] sm:$0xff]
      %v1102 = vld [vmem:[#allocation2 + $0x32] sm:$0xff]
      %v1103 = vld [vmem:[#allocation2 + $0x3a] sm:$0xff]
      %v1104 = vld [vmem:[#allocation2 + $0x4a] sm:$0xff]
      %v1105 = vld [vmem:[#allocation2 + $0x52] sm:$0xff]
      %v1106 = vld [vmem:[#allocation2 + $0x62] sm:$0xff]
      %v1107 = vld [vmem:[#allocation2 + $0x6a] sm:$0xff]
      %v1108 = vld [vmem:[#allocation2 + $0x7a] sm:$0xff]
      %v1109 = vld [vmem:[#allocation2 + $0x82] sm:$0xff]
      %v1110 = vld [vmem:[#allocation2 + $0x92] sm:$0xff]
      %v1111 = vld [vmem:[#allocation2 + $0x9a] sm:$0xff]
      %v1112 = vld [vmem:[#allocation2 + $0xaa] sm:$0xff]
      %v1113 = vld [vmem:[#allocation2 + $0xb2] sm:$0xff]
      %v1114 = vld [vmem:[#allocation2 + $0xc2] sm:$0xff]
      %v1115 = vld [vmem:[#allocation2 + $0xca] sm:$0xff]
      %v1116 = vld [vmem:[#allocation2 + $0xda] sm:$0xff]
      %v1117 = vld [vmem:[#allocation2 + $0xe2] sm:$0xff]
      %v1118 = vld [vmem:[#allocation2 + $0xf2] sm:$0xff]
      %v1119 = vld [vmem:[#allocation2 + $0xfa] sm:$0xff]
      %v1120 = vld [vmem:[#allocation2 + $0x10a] sm:$0xff]
      %v1121 = vld [vmem:[#allocation2 + $0x112] sm:$0xff]
      %v1122 = vld [vmem:[#allocation2 + $0x122] sm:$0xff]
      %v1123 = vld [vmem:[#allocation2 + $0x12a] sm:$0xff]
      %v1124 = vld [vmem:[#allocation2 + $0x13a] sm:$0xff]
      %v1125 = vld [vmem:[#allocation2 + $0x142] sm:$0xff]
      %v1126 = vld [vmem:[#allocation2 + $0x152] sm:$0xff]
      %v1127 = vld [vmem:[#allocation2 + $0x15a] sm:$0xff]
      %v1128 = vld [vmem:[#allocation2 + $0x16a] sm:$0xff]
      %v1129 = vld [vmem:[#allocation2 + $0x172] sm:$0xff]
      %s1130 = scalar_lea.vmem %s1, 8
      %v1131 = vld [vmem:[%s1130] sm:$0xf]
      %v1133 = vsel %vm225, %v1098, 0
      %v1136 = vsel %vm225, %v1099, 0
      %v1139 = vsel %vm225, %v1100, 0
      %v1142 = vsel %vm225, %v1101, 0
      %v1145 = vsel %vm225, %v1102, 0
      %v1148 = vsel %vm225, %v1103, 0
      %v1151 = vsel %vm225, %v1104, 0
      %v1154 = vsel %vm225, %v1105, 0
      %v1157 = vsel %vm225, %v1106, 0
      %v1160 = vsel %vm225, %v1107, 0
      %v1163 = vsel %vm225, %v1108, 0
      %v1166 = vsel %vm225, %v1109, 0
      %v1169 = vsel %vm225, %v1110, 0
      %v1172 = vsel %vm225, %v1111, 0
      %v1175 = vsel %vm225, %v1112, 0
      %v1178 = vsel %vm225, %v1113, 0
      %v1181 = vsel %vm225, %v1114, 0
      %v1184 = vsel %vm225, %v1115, 0
      %v1187 = vsel %vm225, %v1116, 0
      %v1190 = vsel %vm225, %v1117, 0
      %v1193 = vsel %vm225, %v1118, 0
      %v1196 = vsel %vm225, %v1119, 0
      %v1199 = vsel %vm225, %v1120, 0
      %v1202 = vsel %vm225, %v1121, 0
      %v1205 = vsel %vm225, %v1122, 0
      %v1208 = vsel %vm225, %v1123, 0
      %v1211 = vsel %vm225, %v1124, 0
      %v1214 = vsel %vm225, %v1125, 0
      %v1217 = vsel %vm225, %v1126, 0
      %v1220 = vsel %vm225, %v1127, 0
      %v1223 = vsel %vm225, %v1128, 0
      %v1226 = vsel %vm225, %v1129, 0
      %v1229 = vsel %vm545, %v1131, 0
      %1231 = vmatprep.subr.mxu0 0.0
      %1232 = vmatpush1.msra.mxu0 %v1229
      %1233 = vmatprep.subr.mxu0 0.0
      %1234 = vmatpush1.msra.mxu0 0.0
      %1235 = vmatprep.subr.mxu0 0.0
      %1236 = vmatpush1.msra.mxu0 0.0
      %1237 = vmatprep.subr.mxu0 0.0
      %1238 = vmatpush1.msra.mxu0 0.0
      %1239 = vmatprep.subr.mxu0 0.0
      %1240 = vmatpush1.msra.mxu0 0.0
      %1241 = vmatprep.subr.mxu0 0.0
      %1242 = vmatpush1.msra.mxu0 0.0
      %1243 = vmatprep.subr.mxu0 0.0
      %1244 = vmatpush1.msra.mxu0 0.0
      %1245 = vmatprep.subr.mxu0 0.0
      %1246 = vmatpush1.msra.mxu0 0.0
      %1247 = vmatprep.subr.mxu0 0.0
      %1248 = vmatpush1.msra.mxu0 0.0
      %1249 = vmatprep.subr.mxu0 0.0
      %1250 = vmatpush1.msra.mxu0 0.0
      %1251 = vmatprep.subr.mxu0 0.0
      %1252 = vmatpush1.msra.mxu0 0.0
      %1253 = vmatprep.subr.mxu0 0.0
      %1254 = vmatpush1.msra.mxu0 0.0
      %1255 = vmatprep.subr.mxu0 0.0
      %1256 = vmatpush1.msra.mxu0 0.0
      %1257 = vmatprep.subr.mxu0 0.0
      %1258 = vmatpush1.msra.mxu0 0.0
      %1259 = vmatprep.subr.mxu0 0.0
      %1260 = vmatpush1.msra.mxu0 0.0
      %1261 = vmatprep.subr.mxu0 0.0
      %1262 = vmatpush1.msra.mxu0 0.0
      %1263 = vmatprep.subr.mxu0 0.0
      %1264 = vmatpush1.msra.mxu0 0.0
      %1265 = vmatprep.subr.mxu0 0.0
      %1266 = vmatpush1.msra.mxu0 0.0
      %1267 = vmatprep.subr.mxu0 0.0
      %1268 = vmatpush1.msra.mxu0 0.0
      %1269 = vmatprep.subr.mxu0 0.0
      %1270 = vmatpush1.msra.mxu0 0.0
      %1271 = vmatprep.subr.mxu0 0.0
      %1272 = vmatpush1.msra.mxu0 0.0
      %1273 = vmatprep.subr.mxu0 0.0
      %1274 = vmatpush1.msra.mxu0 0.0
      %1275 = vmatprep.subr.mxu0 0.0
      %1276 = vmatpush1.msra.mxu0 0.0
      %1277 = vmatprep.subr.mxu0 0.0
      %1278 = vmatpush1.msra.mxu0 0.0
      %1279 = vmatprep.subr.mxu0 0.0
      %1280 = vmatpush1.msra.mxu0 0.0
      %1281 = vmatprep.subr.mxu0 0.0
      %1282 = vmatpush1.msra.mxu0 0.0
      %1283 = vmatprep.subr.mxu0 0.0
      %1284 = vmatpush1.msra.mxu0 0.0
      %1285 = vmatprep.subr.mxu0 0.0
      %1286 = vmatpush1.msra.mxu0 0.0
      %1287 = vmatprep.subr.mxu0 0.0
      %1288 = vmatpush1.msra.mxu0 0.0
      %1289 = vmatprep.subr.mxu0 0.0
      %1290 = vmatpush1.msra.mxu0 0.0
      %1291 = vmatprep.subr.mxu0 0.0
      %1292 = vmatpush1.msra.mxu0 0.0
      %1293 = vmatprep.subr.mxu0 0.0
      %1294 = vmatpush1.msra.mxu0 0.0
      %1295 = vmatprep.mubr.f32.mxu0 0.0
      %1296 = vmatmul.mubr.f32.gmra.mrb[0].mxu0 %v1133
      %v1297 = vpop.f32.mrb[0].mxu0
      %v1298 = vadd.f32 0.0, %v1297
      %v1299 = vpop.f32.mrb[0].mxu0
      %1300 = vmatprep.mubr.f32.mxu0 0.0
      %1301 = vmatmul.mubr.f32.gmra.mrb[0].mxu0 %v1136
      %v1302 = vpop.f32.mrb[0].mxu0
      %v1303 = vadd.f32 0.0, %v1302
      %v1304 = vpop.f32.mrb[0].mxu0
      %1305 = vmatprep.mubr.f32.mxu0 0.0
      %1306 = vmatmul.mubr.f32.gmra.mrb[0].mxu0 %v1139
      %v1307 = vpop.f32.mrb[0].mxu0
      %v1308 = vadd.f32 0.0, %v1307
      %v1309 = vpop.f32.mrb[0].mxu0
      %1310 = vmatprep.mubr.f32.mxu0 0.0
      %1311 = vmatmul.mubr.f32.gmra.mrb[0].mxu0 %v1142
      %v1312 = vpop.f32.mrb[0].mxu0
      %v1313 = vadd.f32 0.0, %v1312
      %v1314 = vpop.f32.mrb[0].mxu0
      %1315 = vmatprep.mubr.f32.mxu0 0.0
      %1316 = vmatmul.mubr.f32.gmra.mrb[0].mxu0 %v1145
      %v1317 = vpop.f32.mrb[0].mxu0
      %v1318 = vadd.f32 0.0, %v1317
      %v1319 = vpop.f32.mrb[0].mxu0
      %1320 = vmatprep.mubr.f32.mxu0 0.0
      %1321 = vmatmul.mubr.f32.gmra.mrb[0].mxu0 %v1148
      %v1322 = vpop.f32.mrb[0].mxu0
      %v1323 = vadd.f32 0.0, %v1322
      %v1324 = vpop.f32.mrb[0].mxu0
      %1325 = vmatprep.mubr.f32.mxu0 0.0
      %1326 = vmatmul.mubr.f32.gmra.mrb[0].mxu0 %v1151
      %v1327 = vpop.f32.mrb[0].mxu0
      %v1328 = vadd.f32 0.0, %v1327
      %v1329 = vpop.f32.mrb[0].mxu0
      %1330 = vmatprep.mubr.f32.mxu0 0.0
      %1331 = vmatmul.mubr.f32.gmra.mrb[0].mxu0 %v1154
      %v1332 = vpop.f32.mrb[0].mxu0
      %v1333 = vadd.f32 0.0, %v1332
      %v1334 = vpop.f32.mrb[0].mxu0
      %1335 = vmatprep.mubr.f32.mxu0 0.0
      %1336 = vmatmul.mubr.f32.gmra.mrb[0].mxu0 %v1157
      %v1337 = vpop.f32.mrb[0].mxu0
      %v1338 = vadd.f32 0.0, %v1337
      %v1339 = vpop.f32.mrb[0].mxu0
      %1340 = vmatprep.mubr.f32.mxu0 0.0
      %1341 = vmatmul.mubr.f32.gmra.mrb[0].mxu0 %v1160
      %v1342 = vpop.f32.mrb[0].mxu0
      %v1343 = vadd.f32 0.0, %v1342
      %v1344 = vpop.f32.mrb[0].mxu0
      %1345 = vmatprep.mubr.f32.mxu0 0.0
      %1346 = vmatmul.mubr.f32.gmra.mrb[0].mxu0 %v1163
      %v1347 = vpop.f32.mrb[0].mxu0
      %v1348 = vadd.f32 0.0, %v1347
      %v1349 = vpop.f32.mrb[0].mxu0
      %1350 = vmatprep.mubr.f32.mxu0 0.0
      %1351 = vmatmul.mubr.f32.gmra.mrb[0].mxu0 %v1166
      %v1352 = vpop.f32.mrb[0].mxu0
      %v1353 = vadd.f32 0.0, %v1352
      %v1354 = vpop.f32.mrb[0].mxu0
      %1355 = vmatprep.mubr.f32.mxu0 0.0
      %1356 = vmatmul.mubr.f32.gmra.mrb[0].mxu0 %v1169
      %v1357 = vpop.f32.mrb[0].mxu0
      %v1358 = vadd.f32 0.0, %v1357
      %v1359 = vpop.f32.mrb[0].mxu0
      %1360 = vmatprep.mubr.f32.mxu0 0.0
      %1361 = vmatmul.mubr.f32.gmra.mrb[0].mxu0 %v1172
      %v1362 = vpop.f32.mrb[0].mxu0
      %v1363 = vadd.f32 0.0, %v1362
      %v1364 = vpop.f32.mrb[0].mxu0
      %1365 = vmatprep.mubr.f32.mxu0 0.0
      %1366 = vmatmul.mubr.f32.gmra.mrb[0].mxu0 %v1175
      %v1367 = vpop.f32.mrb[0].mxu0
      %v1368 = vadd.f32 0.0, %v1367
      %v1369 = vpop.f32.mrb[0].mxu0
      %1370 = vmatprep.mubr.f32.mxu0 0.0
      %1371 = vmatmul.mubr.f32.gmra.mrb[0].mxu0 %v1178
      %v1372 = vpop.f32.mrb[0].mxu0
      %v1373 = vadd.f32 0.0, %v1372
      %v1374 = vpop.f32.mrb[0].mxu0
      %1375 = vmatprep.mubr.f32.mxu0 0.0
      %1376 = vmatmul.mubr.f32.gmra.mrb[0].mxu0 %v1181
      %v1377 = vpop.f32.mrb[0].mxu0
      %v1378 = vadd.f32 0.0, %v1377
      %v1379 = vpop.f32.mrb[0].mxu0
      %1380 = vmatprep.mubr.f32.mxu0 0.0
      %1381 = vmatmul.mubr.f32.gmra.mrb[0].mxu0 %v1184
      %v1382 = vpop.f32.mrb[0].mxu0
      %v1383 = vadd.f32 0.0, %v1382
      %v1384 = vpop.f32.mrb[0].mxu0
      %1385 = vmatprep.mubr.f32.mxu0 0.0
      %1386 = vmatmul.mubr.f32.gmra.mrb[0].mxu0 %v1187
      %v1387 = vpop.f32.mrb[0].mxu0
      %v1388 = vadd.f32 0.0, %v1387
      %v1389 = vpop.f32.mrb[0].mxu0
      %1390 = vmatprep.mubr.f32.mxu0 0.0
      %1391 = vmatmul.mubr.f32.gmra.mrb[0].mxu0 %v1190
      %v1392 = vpop.f32.mrb[0].mxu0
      %v1393 = vadd.f32 0.0, %v1392
      %v1394 = vpop.f32.mrb[0].mxu0
      %1395 = vmatprep.mubr.f32.mxu0 0.0
      %1396 = vmatmul.mubr.f32.gmra.mrb[0].mxu0 %v1193
      %v1397 = vpop.f32.mrb[0].mxu0
      %v1398 = vadd.f32 0.0, %v1397
      %v1399 = vpop.f32.mrb[0].mxu0
      %1400 = vmatprep.mubr.f32.mxu0 0.0
      %1401 = vmatmul.mubr.f32.gmra.mrb[0].mxu0 %v1196
      %v1402 = vpop.f32.mrb[0].mxu0
      %v1403 = vadd.f32 0.0, %v1402
      %v1404 = vpop.f32.mrb[0].mxu0
      %1405 = vmatprep.mubr.f32.mxu0 0.0
      %1406 = vmatmul.mubr.f32.gmra.mrb[0].mxu0 %v1199
      %v1407 = vpop.f32.mrb[0].mxu0
      %v1408 = vadd.f32 0.0, %v1407
      %v1409 = vpop.f32.mrb[0].mxu0
      %1410 = vmatprep.mubr.f32.mxu0 0.0
      %1411 = vmatmul.mubr.f32.gmra.mrb[0].mxu0 %v1202
      %v1412 = vpop.f32.mrb[0].mxu0
      %v1413 = vadd.f32 0.0, %v1412
      %v1414 = vpop.f32.mrb[0].mxu0
      %1415 = vmatprep.mubr.f32.mxu0 0.0
      %1416 = vmatmul.mubr.f32.gmra.mrb[0].mxu0 %v1205
      %v1417 = vpop.f32.mrb[0].mxu0
      %v1418 = vadd.f32 0.0, %v1417
      %v1419 = vpop.f32.mrb[0].mxu0
      %1420 = vmatprep.mubr.f32.mxu0 0.0
      %1421 = vmatmul.mubr.f32.gmra.mrb[0].mxu0 %v1208
      %v1422 = vpop.f32.mrb[0].mxu0
      %v1423 = vadd.f32 0.0, %v1422
      %v1424 = vpop.f32.mrb[0].mxu0
      %1425 = vmatprep.mubr.f32.mxu0 0.0
      %1426 = vmatmul.mubr.f32.gmra.mrb[0].mxu0 %v1211
      %v1427 = vpop.f32.mrb[0].mxu0
      %v1428 = vadd.f32 0.0, %v1427
      %v1429 = vpop.f32.mrb[0].mxu0
      %1430 = vmatprep.mubr.f32.mxu0 0.0
      %1431 = vmatmul.mubr.f32.gmra.mrb[0].mxu0 %v1214
      %v1432 = vpop.f32.mrb[0].mxu0
      %v1433 = vadd.f32 0.0, %v1432
      %v1434 = vpop.f32.mrb[0].mxu0
      %1435 = vmatprep.mubr.f32.mxu0 0.0
      %1436 = vmatmul.mubr.f32.gmra.mrb[0].mxu0 %v1217
      %v1437 = vpop.f32.mrb[0].mxu0
      %v1438 = vadd.f32 0.0, %v1437
      %v1439 = vpop.f32.mrb[0].mxu0
      %1440 = vmatprep.mubr.f32.mxu0 0.0
      %1441 = vmatmul.mubr.f32.gmra.mrb[0].mxu0 %v1220
      %v1442 = vpop.f32.mrb[0].mxu0
      %v1443 = vadd.f32 0.0, %v1442
      %v1444 = vpop.f32.mrb[0].mxu0
      %1445 = vmatprep.mubr.f32.mxu0 0.0
      %1446 = vmatmul.mubr.f32.gmra.mrb[0].mxu0 %v1223
      %v1447 = vpop.f32.mrb[0].mxu0
      %v1448 = vadd.f32 0.0, %v1447
      %v1449 = vpop.f32.mrb[0].mxu0
      %1450 = vmatprep.mubr.f32.mxu0 0.0
      %1451 = vmatmul.mubr.f32.gmra.mrb[0].mxu0 %v1226
      %v1452 = vpop.f32.mrb[0].mxu0
      %v1453 = vadd.f32 0.0, %v1452
      %v1454 = vpop.f32.mrb[0].mxu0
      %1455 = vdwg.mxu0
      %v1456 = vadd.f32 %v940, %v1298
      %v1457 = vadd.f32 %v945, %v1303
      %v1458 = vadd.f32 %v950, %v1308
      %v1459 = vadd.f32 %v955, %v1313
      %v1460 = vadd.f32 %v960, %v1318
      %v1461 = vadd.f32 %v965, %v1323
      %v1462 = vadd.f32 %v970, %v1328
      %v1463 = vadd.f32 %v975, %v1333
      %v1464 = vadd.f32 %v980, %v1338
      %v1465 = vadd.f32 %v985, %v1343
      %v1466 = vadd.f32 %v990, %v1348
      %v1467 = vadd.f32 %v995, %v1353
      %v1468 = vadd.f32 %v1000, %v1358
      %v1469 = vadd.f32 %v1005, %v1363
      %v1470 = vadd.f32 %v1010, %v1368
      %v1471 = vadd.f32 %v1015, %v1373
      %v1472 = vadd.f32 %v1020, %v1378
      %v1473 = vadd.f32 %v1025, %v1383
      %v1474 = vadd.f32 %v1030, %v1388
      %v1475 = vadd.f32 %v1035, %v1393
      %v1476 = vadd.f32 %v1040, %v1398
      %v1477 = vadd.f32 %v1045, %v1403
      %v1478 = vadd.f32 %v1050, %v1408
      %v1479 = vadd.f32 %v1055, %v1413
      %v1480 = vadd.f32 %v1060, %v1418
      %v1481 = vadd.f32 %v1065, %v1423
      %v1482 = vadd.f32 %v1070, %v1428
      %v1483 = vadd.f32 %v1075, %v1433
      %v1484 = vadd.f32 %v1080, %v1438
      %v1485 = vadd.f32 %v1085, %v1443
      %v1486 = vadd.f32 %v1090, %v1448
      %v1487 = vadd.f32 %v1095, %v1453
      %v1488 = vld [vmem:[%s349] sm:$0xff]
      %v1489 = vld [vmem:[%s349 + $0x8] sm:$0xff]
      %v1490 = vld [vmem:[%s349 + $0x18] sm:$0xff]
      %v1491 = vld [vmem:[%s349 + $0x20] sm:$0xff]
      %v1492 = vld [vmem:[%s349 + $0x30] sm:$0xff]
      %v1493 = vld [vmem:[%s349 + $0x38] sm:$0xff]
      %v1494 = vld [vmem:[%s349 + $0x48] sm:$0xff]
      %v1495 = vld [vmem:[%s349 + $0x50] sm:$0xff]
      %v1496 = vld [vmem:[%s349 + $0x60] sm:$0xff]
      %v1497 = vld [vmem:[%s349 + $0x68] sm:$0xff]
      %v1498 = vld [vmem:[%s349 + $0x78] sm:$0xff]
      %v1499 = vld [vmem:[%s349 + $0x80] sm:$0xff]
      %v1500 = vld [vmem:[%s349 + $0x90] sm:$0xff]
      %v1501 = vld [vmem:[%s349 + $0x98] sm:$0xff]
      %v1502 = vld [vmem:[%s349 + $0xa8] sm:$0xff]
      %v1503 = vld [vmem:[%s349 + $0xb0] sm:$0xff]
      %v1504 = vld [vmem:[%s349 + $0xc0] sm:$0xff]
      %v1505 = vld [vmem:[%s349 + $0xc8] sm:$0xff]
      %v1506 = vld [vmem:[%s349 + $0xd8] sm:$0xff]
      %v1507 = vld [vmem:[%s349 + $0xe0] sm:$0xff]
      %v1508 = vld [vmem:[%s349 + $0xf0] sm:$0xff]
      %v1509 = vld [vmem:[%s349 + $0xf8] sm:$0xff]
      %v1510 = vld [vmem:[%s349 + $0x108] sm:$0xff]
      %v1511 = vld [vmem:[%s349 + $0x110] sm:$0xff]
      %v1512 = vld [vmem:[%s349 + $0x120] sm:$0xff]
      %v1513 = vld [vmem:[%s349 + $0x128] sm:$0xff]
      %v1514 = vld [vmem:[%s349 + $0x138] sm:$0xff]
      %v1515 = vld [vmem:[%s349 + $0x140] sm:$0xff]
      %v1516 = vld [vmem:[%s349 + $0x150] sm:$0xff]
      %v1517 = vld [vmem:[%s349 + $0x158] sm:$0xff]
      %v1518 = vld [vmem:[%s349 + $0x168] sm:$0xff]
      %v1519 = vld [vmem:[%s349 + $0x170] sm:$0xff]
      %s1520 = scalar_lea.vmem %s1, 12
      %v1521 = vld [vmem:[%s1520] sm:$0xf]
      %v1523 = vsel %vm225, %v1488, 0
      %v1526 = vsel %vm225, %v1489, 0
      %v1529 = vsel %vm225, %v1490, 0
      %v1532 = vsel %vm225, %v1491, 0
      %v1535 = vsel %vm225, %v1492, 0
      %v1538 = vsel %vm225, %v1493, 0
      %v1541 = vsel %vm225, %v1494, 0
      %v1544 = vsel %vm225, %v1495, 0
      %v1547 = vsel %vm225, %v1496, 0
      %v1550 = vsel %vm225, %v1497, 0
      %v1553 = vsel %vm225, %v1498, 0
      %v1556 = vsel %vm225, %v1499, 0
      %v1559 = vsel %vm225, %v1500, 0
      %v1562 = vsel %vm225, %v1501, 0
      %v1565 = vsel %vm225, %v1502, 0
      %v1568 = vsel %vm225, %v1503, 0
      %v1571 = vsel %vm225, %v1504, 0
      %v1574 = vsel %vm225, %v1505, 0
      %v1577 = vsel %vm225, %v1506, 0
      %v1580 = vsel %vm225, %v1507, 0
      %v1583 = vsel %vm225, %v1508, 0
      %v1586 = vsel %vm225, %v1509, 0
      %v1589 = vsel %vm225, %v1510, 0
      %v1592 = vsel %vm225, %v1511, 0
      %v1595 = vsel %vm225, %v1512, 0
      %v1598 = vsel %vm225, %v1513, 0
      %v1601 = vsel %vm225, %v1514, 0
      %v1604 = vsel %vm225, %v1515, 0
      %v1607 = vsel %vm225, %v1516, 0
      %v1610 = vsel %vm225, %v1517, 0
      %v1613 = vsel %vm225, %v1518, 0
      %v1616 = vsel %vm225, %v1519, 0
      %v1619 = vsel %vm545, %v1521, 0
      %1621 = vmatprep.subr.mxu0 0.0
      %1622 = vmatpush1.msra.mxu0 %v1619
      %1623 = vmatprep.subr.mxu0 0.0
      %1624 = vmatpush1.msra.mxu0 0.0
      %1625 = vmatprep.subr.mxu0 0.0
      %1626 = vmatpush1.msra.mxu0 0.0
      %1627 = vmatprep.subr.mxu0 0.0
      %1628 = vmatpush1.msra.mxu0 0.0
      %1629 = vmatprep.subr.mxu0 0.0
      %1630 = vmatpush1.msra.mxu0 0.0
      %1631 = vmatprep.subr.mxu0 0.0
      %1632 = vmatpush1.msra.mxu0 0.0
      %1633 = vmatprep.subr.mxu0 0.0
      %1634 = vmatpush1.msra.mxu0 0.0
      %1635 = vmatprep.subr.mxu0 0.0
      %1636 = vmatpush1.msra.mxu0 0.0
      %1637 = vmatprep.subr.mxu0 0.0
      %1638 = vmatpush1.msra.mxu0 0.0
      %1639 = vmatprep.subr.mxu0 0.0
      %1640 = vmatpush1.msra.mxu0 0.0
      %1641 = vmatprep.subr.mxu0 0.0
      %1642 = vmatpush1.msra.mxu0 0.0
      %1643 = vmatprep.subr.mxu0 0.0
      %1644 = vmatpush1.msra.mxu0 0.0
      %1645 = vmatprep.subr.mxu0 0.0
      %1646 = vmatpush1.msra.mxu0 0.0
      %1647 = vmatprep.subr.mxu0 0.0
      %1648 = vmatpush1.msra.mxu0 0.0
      %1649 = vmatprep.subr.mxu0 0.0
      %1650 = vmatpush1.msra.mxu0 0.0
      %1651 = vmatprep.subr.mxu0 0.0
      %1652 = vmatpush1.msra.mxu0 0.0
      %1653 = vmatprep.subr.mxu0 0.0
      %1654 = vmatpush1.msra.mxu0 0.0
      %1655 = vmatprep.subr.mxu0 0.0
      %1656 = vmatpush1.msra.mxu0 0.0
      %1657 = vmatprep.subr.mxu0 0.0
      %1658 = vmatpush1.msra.mxu0 0.0
      %1659 = vmatprep.subr.mxu0 0.0
      %1660 = vmatpush1.msra.mxu0 0.0
      %1661 = vmatprep.subr.mxu0 0.0
      %1662 = vmatpush1.msra.mxu0 0.0
      %1663 = vmatprep.subr.mxu0 0.0
      %1664 = vmatpush1.msra.mxu0 0.0
      %1665 = vmatprep.subr.mxu0 0.0
      %1666 = vmatpush1.msra.mxu0 0.0
      %1667 = vmatprep.subr.mxu0 0.0
      %1668 = vmatpush1.msra.mxu0 0.0
      %1669 = vmatprep.subr.mxu0 0.0
      %1670 = vmatpush1.msra.mxu0 0.0
      %1671 = vmatprep.subr.mxu0 0.0
      %1672 = vmatpush1.msra.mxu0 0.0
      %1673 = vmatprep.subr.mxu0 0.0
      %1674 = vmatpush1.msra.mxu0 0.0
      %1675 = vmatprep.subr.mxu0 0.0
      %1676 = vmatpush1.msra.mxu0 0.0
      %1677 = vmatprep.subr.mxu0 0.0
      %1678 = vmatpush1.msra.mxu0 0.0
      %1679 = vmatprep.subr.mxu0 0.0
      %1680 = vmatpush1.msra.mxu0 0.0
      %1681 = vmatprep.subr.mxu0 0.0
      %1682 = vmatpush1.msra.mxu0 0.0
      %1683 = vmatprep.subr.mxu0 0.0
      %1684 = vmatpush1.msra.mxu0 0.0
      %1685 = vmatprep.mubr.f32.mxu0 0.0
      %1686 = vmatmul.mubr.f32.gmra.mrb[0].mxu0 %v1523
      %v1687 = vpop.f32.mrb[0].mxu0
      %v1688 = vadd.f32 0.0, %v1687
      %v1689 = vpop.f32.mrb[0].mxu0
      %1690 = vmatprep.mubr.f32.mxu0 0.0
      %1691 = vmatmul.mubr.f32.gmra.mrb[0].mxu0 %v1526
      %v1692 = vpop.f32.mrb[0].mxu0
      %v1693 = vadd.f32 0.0, %v1692
      %v1694 = vpop.f32.mrb[0].mxu0
      %1695 = vmatprep.mubr.f32.mxu0 0.0
      %1696 = vmatmul.mubr.f32.gmra.mrb[0].mxu0 %v1529
      %v1697 = vpop.f32.mrb[0].mxu0
      %v1698 = vadd.f32 0.0, %v1697
      %v1699 = vpop.f32.mrb[0].mxu0
      %1700 = vmatprep.mubr.f32.mxu0 0.0
      %1701 = vmatmul.mubr.f32.gmra.mrb[0].mxu0 %v1532
      %v1702 = vpop.f32.mrb[0].mxu0
      %v1703 = vadd.f32 0.0, %v1702
      %v1704 = vpop.f32.mrb[0].mxu0
      %1705 = vmatprep.mubr.f32.mxu0 0.0
      %1706 = vmatmul.mubr.f32.gmra.mrb[0].mxu0 %v1535
      %v1707 = vpop.f32.mrb[0].mxu0
      %v1708 = vadd.f32 0.0, %v1707
      %v1709 = vpop.f32.mrb[0].mxu0
      %1710 = vmatprep.mubr.f32.mxu0 0.0
      %1711 = vmatmul.mubr.f32.gmra.mrb[0].mxu0 %v1538
      %v1712 = vpop.f32.mrb[0].mxu0
      %v1713 = vadd.f32 0.0, %v1712
      %v1714 = vpop.f32.mrb[0].mxu0
      %1715 = vmatprep.mubr.f32.mxu0 0.0
      %1716 = vmatmul.mubr.f32.gmra.mrb[0].mxu0 %v1541
      %v1717 = vpop.f32.mrb[0].mxu0
      %v1718 = vadd.f32 0.0, %v1717
      %v1719 = vpop.f32.mrb[0].mxu0
      %1720 = vmatprep.mubr.f32.mxu0 0.0
      %1721 = vmatmul.mubr.f32.gmra.mrb[0].mxu0 %v1544
      %v1722 = vpop.f32.mrb[0].mxu0
      %v1723 = vadd.f32 0.0, %v1722
      %v1724 = vpop.f32.mrb[0].mxu0
      %1725 = vmatprep.mubr.f32.mxu0 0.0
      %1726 = vmatmul.mubr.f32.gmra.mrb[0].mxu0 %v1547
      %v1727 = vpop.f32.mrb[0].mxu0
      %v1728 = vadd.f32 0.0, %v1727
      %v1729 = vpop.f32.mrb[0].mxu0
      %1730 = vmatprep.mubr.f32.mxu0 0.0
      %1731 = vmatmul.mubr.f32.gmra.mrb[0].mxu0 %v1550
      %v1732 = vpop.f32.mrb[0].mxu0
      %v1733 = vadd.f32 0.0, %v1732
      %v1734 = vpop.f32.mrb[0].mxu0
      %1735 = vmatprep.mubr.f32.mxu0 0.0
      %1736 = vmatmul.mubr.f32.gmra.mrb[0].mxu0 %v1553
      %v1737 = vpop.f32.mrb[0].mxu0
      %v1738 = vadd.f32 0.0, %v1737
      %v1739 = vpop.f32.mrb[0].mxu0
      %1740 = vmatprep.mubr.f32.mxu0 0.0
      %1741 = vmatmul.mubr.f32.gmra.mrb[0].mxu0 %v1556
      %v1742 = vpop.f32.mrb[0].mxu0
      %v1743 = vadd.f32 0.0, %v1742
      %v1744 = vpop.f32.mrb[0].mxu0
      %1745 = vmatprep.mubr.f32.mxu0 0.0
      %1746 = vmatmul.mubr.f32.gmra.mrb[0].mxu0 %v1559
      %v1747 = vpop.f32.mrb[0].mxu0
      %v1748 = vadd.f32 0.0, %v1747
      %v1749 = vpop.f32.mrb[0].mxu0
      %1750 = vmatprep.mubr.f32.mxu0 0.0
      %1751 = vmatmul.mubr.f32.gmra.mrb[0].mxu0 %v1562
      %v1752 = vpop.f32.mrb[0].mxu0
      %v1753 = vadd.f32 0.0, %v1752
      %v1754 = vpop.f32.mrb[0].mxu0
      %1755 = vmatprep.mubr.f32.mxu0 0.0
      %1756 = vmatmul.mubr.f32.gmra.mrb[0].mxu0 %v1565
      %v1757 = vpop.f32.mrb[0].mxu0
      %v1758 = vadd.f32 0.0, %v1757
      %v1759 = vpop.f32.mrb[0].mxu0
      %1760 = vmatprep.mubr.f32.mxu0 0.0
      %1761 = vmatmul.mubr.f32.gmra.mrb[0].mxu0 %v1568
      %v1762 = vpop.f32.mrb[0].mxu0
      %v1763 = vadd.f32 0.0, %v1762
      %v1764 = vpop.f32.mrb[0].mxu0
      %1765 = vmatprep.mubr.f32.mxu0 0.0
      %1766 = vmatmul.mubr.f32.gmra.mrb[0].mxu0 %v1571
      %v1767 = vpop.f32.mrb[0].mxu0
      %v1768 = vadd.f32 0.0, %v1767
      %v1769 = vpop.f32.mrb[0].mxu0
      %1770 = vmatprep.mubr.f32.mxu0 0.0
      %1771 = vmatmul.mubr.f32.gmra.mrb[0].mxu0 %v1574
      %v1772 = vpop.f32.mrb[0].mxu0
      %v1773 = vadd.f32 0.0, %v1772
      %v1774 = vpop.f32.mrb[0].mxu0
      %1775 = vmatprep.mubr.f32.mxu0 0.0
      %1776 = vmatmul.mubr.f32.gmra.mrb[0].mxu0 %v1577
      %v1777 = vpop.f32.mrb[0].mxu0
      %v1778 = vadd.f32 0.0, %v1777
      %v1779 = vpop.f32.mrb[0].mxu0
      %1780 = vmatprep.mubr.f32.mxu0 0.0
      %1781 = vmatmul.mubr.f32.gmra.mrb[0].mxu0 %v1580
      %v1782 = vpop.f32.mrb[0].mxu0
      %v1783 = vadd.f32 0.0, %v1782
      %v1784 = vpop.f32.mrb[0].mxu0
      %1785 = vmatprep.mubr.f32.mxu0 0.0
      %1786 = vmatmul.mubr.f32.gmra.mrb[0].mxu0 %v1583
      %v1787 = vpop.f32.mrb[0].mxu0
      %v1788 = vadd.f32 0.0, %v1787
      %v1789 = vpop.f32.mrb[0].mxu0
      %1790 = vmatprep.mubr.f32.mxu0 0.0
      %1791 = vmatmul.mubr.f32.gmra.mrb[0].mxu0 %v1586
      %v1792 = vpop.f32.mrb[0].mxu0
      %v1793 = vadd.f32 0.0, %v1792
      %v1794 = vpop.f32.mrb[0].mxu0
      %1795 = vmatprep.mubr.f32.mxu0 0.0
      %1796 = vmatmul.mubr.f32.gmra.mrb[0].mxu0 %v1589
      %v1797 = vpop.f32.mrb[0].mxu0
      %v1798 = vadd.f32 0.0, %v1797
      %v1799 = vpop.f32.mrb[0].mxu0
      %1800 = vmatprep.mubr.f32.mxu0 0.0
      %1801 = vmatmul.mubr.f32.gmra.mrb[0].mxu0 %v1592
      %v1802 = vpop.f32.mrb[0].mxu0
      %v1803 = vadd.f32 0.0, %v1802
      %v1804 = vpop.f32.mrb[0].mxu0
      %1805 = vmatprep.mubr.f32.mxu0 0.0
      %1806 = vmatmul.mubr.f32.gmra.mrb[0].mxu0 %v1595
      %v1807 = vpop.f32.mrb[0].mxu0
      %v1808 = vadd.f32 0.0, %v1807
      %v1809 = vpop.f32.mrb[0].mxu0
      %1810 = vmatprep.mubr.f32.mxu0 0.0
      %1811 = vmatmul.mubr.f32.gmra.mrb[0].mxu0 %v1598
      %v1812 = vpop.f32.mrb[0].mxu0
      %v1813 = vadd.f32 0.0, %v1812
      %v1814 = vpop.f32.mrb[0].mxu0
      %1815 = vmatprep.mubr.f32.mxu0 0.0
      %1816 = vmatmul.mubr.f32.gmra.mrb[0].mxu0 %v1601
      %v1817 = vpop.f32.mrb[0].mxu0
      %v1818 = vadd.f32 0.0, %v1817
      %v1819 = vpop.f32.mrb[0].mxu0
      %1820 = vmatprep.mubr.f32.mxu0 0.0
      %1821 = vmatmul.mubr.f32.gmra.mrb[0].mxu0 %v1604
      %v1822 = vpop.f32.mrb[0].mxu0
      %v1823 = vadd.f32 0.0, %v1822
      %v1824 = vpop.f32.mrb[0].mxu0
      %1825 = vmatprep.mubr.f32.mxu0 0.0
      %1826 = vmatmul.mubr.f32.gmra.mrb[0].mxu0 %v1607
      %v1827 = vpop.f32.mrb[0].mxu0
      %v1828 = vadd.f32 0.0, %v1827
      %v1829 = vpop.f32.mrb[0].mxu0
      %1830 = vmatprep.mubr.f32.mxu0 0.0
      %1831 = vmatmul.mubr.f32.gmra.mrb[0].mxu0 %v1610
      %v1832 = vpop.f32.mrb[0].mxu0
      %v1833 = vadd.f32 0.0, %v1832
      %v1834 = vpop.f32.mrb[0].mxu0
      %1835 = vmatprep.mubr.f32.mxu0 0.0
      %1836 = vmatmul.mubr.f32.gmra.mrb[0].mxu0 %v1613
      %v1837 = vpop.f32.mrb[0].mxu0
      %v1838 = vadd.f32 0.0, %v1837
      %v1839 = vpop.f32.mrb[0].mxu0
      %1840 = vmatprep.mubr.f32.mxu0 0.0
      %1841 = vmatmul.mubr.f32.gmra.mrb[0].mxu0 %v1616
      %v1842 = vpop.f32.mrb[0].mxu0
      %v1843 = vadd.f32 0.0, %v1842
      %v1844 = vpop.f32.mrb[0].mxu0
      %1845 = vdwg.mxu0
      %v1846 = vadd.f32 %v1456, %v1688
      %v1847 = vadd.f32 %v1457, %v1693
      %v1848 = vadd.f32 %v1458, %v1698
      %v1849 = vadd.f32 %v1459, %v1703
      %v1850 = vadd.f32 %v1460, %v1708
      %v1851 = vadd.f32 %v1461, %v1713
      %v1852 = vadd.f32 %v1462, %v1718
      %v1853 = vadd.f32 %v1463, %v1723
      %v1854 = vadd.f32 %v1464, %v1728
      %v1855 = vadd.f32 %v1465, %v1733
      %v1856 = vadd.f32 %v1466, %v1738
      %v1857 = vadd.f32 %v1467, %v1743
      %v1858 = vadd.f32 %v1468, %v1748
      %v1859 = vadd.f32 %v1469, %v1753
      %v1860 = vadd.f32 %v1470, %v1758
      %v1861 = vadd.f32 %v1471, %v1763
      %v1862 = vadd.f32 %v1472, %v1768
      %v1863 = vadd.f32 %v1473, %v1773
      %v1864 = vadd.f32 %v1474, %v1778
      %v1865 = vadd.f32 %v1475, %v1783
      %v1866 = vadd.f32 %v1476, %v1788
      %v1867 = vadd.f32 %v1477, %v1793
      %v1868 = vadd.f32 %v1478, %v1798
      %v1869 = vadd.f32 %v1479, %v1803
      %v1870 = vadd.f32 %v1480, %v1808
      %v1871 = vadd.f32 %v1481, %v1813
      %v1872 = vadd.f32 %v1482, %v1818
      %v1873 = vadd.f32 %v1483, %v1823
      %v1874 = vadd.f32 %v1484, %v1828
      %v1875 = vadd.f32 %v1485, %v1833
      %v1876 = vadd.f32 %v1486, %v1838
      %v1877 = vadd.f32 %v1487, %v1843
      %v1878 = vld [vmem:[%s349 + $0x1] sm:$0xff]
      %v1879 = vld [vmem:[%s349 + $0x9] sm:$0xff]
      %v1880 = vld [vmem:[%s349 + $0x19] sm:$0xff]
      %v1881 = vld [vmem:[%s349 + $0x21] sm:$0xff]
      %v1882 = vld [vmem:[%s349 + $0x31] sm:$0xff]
      %v1883 = vld [vmem:[%s349 + $0x39] sm:$0xff]
      %v1884 = vld [vmem:[%s349 + $0x49] sm:$0xff]
      %v1885 = vld [vmem:[%s349 + $0x51] sm:$0xff]
      %v1886 = vld [vmem:[%s349 + $0x61] sm:$0xff]
      %v1887 = vld [vmem:[%s349 + $0x69] sm:$0xff]
      %v1888 = vld [vmem:[%s349 + $0x79] sm:$0xff]
      %v1889 = vld [vmem:[%s349 + $0x81] sm:$0xff]
      %v1890 = vld [vmem:[%s349 + $0x91] sm:$0xff]
      %v1891 = vld [vmem:[%s349 + $0x99] sm:$0xff]
      %v1892 = vld [vmem:[%s349 + $0xa9] sm:$0xff]
      %v1893 = vld [vmem:[%s349 + $0xb1] sm:$0xff]
      %v1894 = vld [vmem:[%s349 + $0xc1] sm:$0xff]
      %v1895 = vld [vmem:[%s349 + $0xc9] sm:$0xff]
      %v1896 = vld [vmem:[%s349 + $0xd9] sm:$0xff]
      %v1897 = vld [vmem:[%s349 + $0xe1] sm:$0xff]
      %v1898 = vld [vmem:[%s349 + $0xf1] sm:$0xff]
      %v1899 = vld [vmem:[%s349 + $0xf9] sm:$0xff]
      %v1900 = vld [vmem:[%s349 + $0x109] sm:$0xff]
      %v1901 = vld [vmem:[%s349 + $0x111] sm:$0xff]
      %v1902 = vld [vmem:[%s349 + $0x121] sm:$0xff]
      %v1903 = vld [vmem:[%s349 + $0x129] sm:$0xff]
      %v1904 = vld [vmem:[%s349 + $0x139] sm:$0xff]
      %v1905 = vld [vmem:[%s349 + $0x141] sm:$0xff]
      %v1906 = vld [vmem:[%s349 + $0x151] sm:$0xff]
      %v1907 = vld [vmem:[%s349 + $0x159] sm:$0xff]
      %v1908 = vld [vmem:[%s349 + $0x169] sm:$0xff]
      %v1909 = vld [vmem:[%s349 + $0x171] sm:$0xff]
      %s1910 = scalar_lea.vmem %s1, 16
      %v1911 = vld [vmem:[%s1910] sm:$0xf]
      %v1913 = vsel %vm225, %v1878, 0
      %v1916 = vsel %vm225, %v1879, 0
      %v1919 = vsel %vm225, %v1880, 0
      %v1922 = vsel %vm225, %v1881, 0
      %v1925 = vsel %vm225, %v1882, 0
      %v1928 = vsel %vm225, %v1883, 0
      %v1931 = vsel %vm225, %v1884, 0
      %v1934 = vsel %vm225, %v1885, 0
      %v1937 = vsel %vm225, %v1886, 0
      %v1940 = vsel %vm225, %v1887, 0
      %v1943 = vsel %vm225, %v1888, 0
      %v1946 = vsel %vm225, %v1889, 0
      %v1949 = vsel %vm225, %v1890, 0
      %v1952 = vsel %vm225, %v1891, 0
      %v1955 = vsel %vm225, %v1892, 0
      %v1958 = vsel %vm225, %v1893, 0
      %v1961 = vsel %vm225, %v1894, 0
      %v1964 = vsel %vm225, %v1895, 0
      %v1967 = vsel %vm225, %v1896, 0
      %v1970 = vsel %vm225, %v1897, 0
      %v1973 = vsel %vm225, %v1898, 0
      %v1976 = vsel %vm225, %v1899, 0
      %v1979 = vsel %vm225, %v1900, 0
      %v1982 = vsel %vm225, %v1901, 0
      %v1985 = vsel %vm225, %v1902, 0
      %v1988 = vsel %vm225, %v1903, 0
      %v1991 = vsel %vm225, %v1904, 0
      %v1994 = vsel %vm225, %v1905, 0
      %v1997 = vsel %vm225, %v1906, 0
      %v2000 = vsel %vm225, %v1907, 0
      %v2003 = vsel %vm225, %v1908, 0
      %v2006 = vsel %vm225, %v1909, 0
      %v2009 = vsel %vm545, %v1911, 0
      %2011 = vmatprep.subr.mxu0 0.0
      %2012 = vmatpush1.msra.mxu0 %v2009
      %2013 = vmatprep.subr.mxu0 0.0
      %2014 = vmatpush1.msra.mxu0 0.0
      %2015 = vmatprep.subr.mxu0 0.0
      %2016 = vmatpush1.msra.mxu0 0.0
      %2017 = vmatprep.subr.mxu0 0.0
      %2018 = vmatpush1.msra.mxu0 0.0
      %2019 = vmatprep.subr.mxu0 0.0
      %2020 = vmatpush1.msra.mxu0 0.0
      %2021 = vmatprep.subr.mxu0 0.0
      %2022 = vmatpush1.msra.mxu0 0.0
      %2023 = vmatprep.subr.mxu0 0.0
      %2024 = vmatpush1.msra.mxu0 0.0
      %2025 = vmatprep.subr.mxu0 0.0
      %2026 = vmatpush1.msra.mxu0 0.0
      %2027 = vmatprep.subr.mxu0 0.0
      %2028 = vmatpush1.msra.mxu0 0.0
      %2029 = vmatprep.subr.mxu0 0.0
      %2030 = vmatpush1.msra.mxu0 0.0
      %2031 = vmatprep.subr.mxu0 0.0
      %2032 = vmatpush1.msra.mxu0 0.0
      %2033 = vmatprep.subr.mxu0 0.0
      %2034 = vmatpush1.msra.mxu0 0.0
      %2035 = vmatprep.subr.mxu0 0.0
      %2036 = vmatpush1.msra.mxu0 0.0
      %2037 = vmatprep.subr.mxu0 0.0
      %2038 = vmatpush1.msra.mxu0 0.0
      %2039 = vmatprep.subr.mxu0 0.0
      %2040 = vmatpush1.msra.mxu0 0.0
      %2041 = vmatprep.subr.mxu0 0.0
      %2042 = vmatpush1.msra.mxu0 0.0
      %2043 = vmatprep.subr.mxu0 0.0
      %2044 = vmatpush1.msra.mxu0 0.0
      %2045 = vmatprep.subr.mxu0 0.0
      %2046 = vmatpush1.msra.mxu0 0.0
      %2047 = vmatprep.subr.mxu0 0.0
      %2048 = vmatpush1.msra.mxu0 0.0
      %2049 = vmatprep.subr.mxu0 0.0
      %2050 = vmatpush1.msra.mxu0 0.0
      %2051 = vmatprep.subr.mxu0 0.0
      %2052 = vmatpush1.msra.mxu0 0.0
      %2053 = vmatprep.subr.mxu0 0.0
      %2054 = vmatpush1.msra.mxu0 0.0
      %2055 = vmatprep.subr.mxu0 0.0
      %2056 = vmatpush1.msra.mxu0 0.0
      %2057 = vmatprep.subr.mxu0 0.0
      %2058 = vmatpush1.msra.mxu0 0.0
      %2059 = vmatprep.subr.mxu0 0.0
      %2060 = vmatpush1.msra.mxu0 0.0
      %2061 = vmatprep.subr.mxu0 0.0
      %2062 = vmatpush1.msra.mxu0 0.0
      %2063 = vmatprep.subr.mxu0 0.0
      %2064 = vmatpush1.msra.mxu0 0.0
      %2065 = vmatprep.subr.mxu0 0.0
      %2066 = vmatpush1.msra.mxu0 0.0
      %2067 = vmatprep.subr.mxu0 0.0
      %2068 = vmatpush1.msra.mxu0 0.0
      %2069 = vmatprep.subr.mxu0 0.0
      %2070 = vmatpush1.msra.mxu0 0.0
      %2071 = vmatprep.subr.mxu0 0.0
      %2072 = vmatpush1.msra.mxu0 0.0
      %2073 = vmatprep.subr.mxu0 0.0
      %2074 = vmatpush1.msra.mxu0 0.0
      %2075 = vmatprep.mubr.f32.mxu0 0.0
      %2076 = vmatmul.mubr.f32.gmra.mrb[0].mxu0 %v1913
      %v2077 = vpop.f32.mrb[0].mxu0
      %v2078 = vadd.f32 0.0, %v2077
      %v2079 = vpop.f32.mrb[0].mxu0
      %2080 = vmatprep.mubr.f32.mxu0 0.0
      %2081 = vmatmul.mubr.f32.gmra.mrb[0].mxu0 %v1916
      %v2082 = vpop.f32.mrb[0].mxu0
      %v2083 = vadd.f32 0.0, %v2082
      %v2084 = vpop.f32.mrb[0].mxu0
      %2085 = vmatprep.mubr.f32.mxu0 0.0
      %2086 = vmatmul.mubr.f32.gmra.mrb[0].mxu0 %v1919
      %v2087 = vpop.f32.mrb[0].mxu0
      %v2088 = vadd.f32 0.0, %v2087
      %v2089 = vpop.f32.mrb[0].mxu0
      %2090 = vmatprep.mubr.f32.mxu0 0.0
      %2091 = vmatmul.mubr.f32.gmra.mrb[0].mxu0 %v1922
      %v2092 = vpop.f32.mrb[0].mxu0
      %v2093 = vadd.f32 0.0, %v2092
      %v2094 = vpop.f32.mrb[0].mxu0
      %2095 = vmatprep.mubr.f32.mxu0 0.0
      %2096 = vmatmul.mubr.f32.gmra.mrb[0].mxu0 %v1925
      %v2097 = vpop.f32.mrb[0].mxu0
      %v2098 = vadd.f32 0.0, %v2097
      %v2099 = vpop.f32.mrb[0].mxu0
      %2100 = vmatprep.mubr.f32.mxu0 0.0
      %2101 = vmatmul.mubr.f32.gmra.mrb[0].mxu0 %v1928
      %v2102 = vpop.f32.mrb[0].mxu0
      %v2103 = vadd.f32 0.0, %v2102
      %v2104 = vpop.f32.mrb[0].mxu0
      %2105 = vmatprep.mubr.f32.mxu0 0.0
      %2106 = vmatmul.mubr.f32.gmra.mrb[0].mxu0 %v1931
      %v2107 = vpop.f32.mrb[0].mxu0
      %v2108 = vadd.f32 0.0, %v2107
      %v2109 = vpop.f32.mrb[0].mxu0
      %2110 = vmatprep.mubr.f32.mxu0 0.0
      %2111 = vmatmul.mubr.f32.gmra.mrb[0].mxu0 %v1934
      %v2112 = vpop.f32.mrb[0].mxu0
      %v2113 = vadd.f32 0.0, %v2112
      %v2114 = vpop.f32.mrb[0].mxu0
      %2115 = vmatprep.mubr.f32.mxu0 0.0
      %2116 = vmatmul.mubr.f32.gmra.mrb[0].mxu0 %v1937
      %v2117 = vpop.f32.mrb[0].mxu0
      %v2118 = vadd.f32 0.0, %v2117
      %v2119 = vpop.f32.mrb[0].mxu0
      %2120 = vmatprep.mubr.f32.mxu0 0.0
      %2121 = vmatmul.mubr.f32.gmra.mrb[0].mxu0 %v1940
      %v2122 = vpop.f32.mrb[0].mxu0
      %v2123 = vadd.f32 0.0, %v2122
      %v2124 = vpop.f32.mrb[0].mxu0
      %2125 = vmatprep.mubr.f32.mxu0 0.0
      %2126 = vmatmul.mubr.f32.gmra.mrb[0].mxu0 %v1943
      %v2127 = vpop.f32.mrb[0].mxu0
      %v2128 = vadd.f32 0.0, %v2127
      %v2129 = vpop.f32.mrb[0].mxu0
      %2130 = vmatprep.mubr.f32.mxu0 0.0
      %2131 = vmatmul.mubr.f32.gmra.mrb[0].mxu0 %v1946
      %v2132 = vpop.f32.mrb[0].mxu0
      %v2133 = vadd.f32 0.0, %v2132
      %v2134 = vpop.f32.mrb[0].mxu0
      %2135 = vmatprep.mubr.f32.mxu0 0.0
      %2136 = vmatmul.mubr.f32.gmra.mrb[0].mxu0 %v1949
      %v2137 = vpop.f32.mrb[0].mxu0
      %v2138 = vadd.f32 0.0, %v2137
      %v2139 = vpop.f32.mrb[0].mxu0
      %2140 = vmatprep.mubr.f32.mxu0 0.0
      %2141 = vmatmul.mubr.f32.gmra.mrb[0].mxu0 %v1952
      %v2142 = vpop.f32.mrb[0].mxu0
      %v2143 = vadd.f32 0.0, %v2142
      %v2144 = vpop.f32.mrb[0].mxu0
      %2145 = vmatprep.mubr.f32.mxu0 0.0
      %2146 = vmatmul.mubr.f32.gmra.mrb[0].mxu0 %v1955
      %v2147 = vpop.f32.mrb[0].mxu0
      %v2148 = vadd.f32 0.0, %v2147
      %v2149 = vpop.f32.mrb[0].mxu0
      %2150 = vmatprep.mubr.f32.mxu0 0.0
      %2151 = vmatmul.mubr.f32.gmra.mrb[0].mxu0 %v1958
      %v2152 = vpop.f32.mrb[0].mxu0
      %v2153 = vadd.f32 0.0, %v2152
      %v2154 = vpop.f32.mrb[0].mxu0
      %2155 = vmatprep.mubr.f32.mxu0 0.0
      %2156 = vmatmul.mubr.f32.gmra.mrb[0].mxu0 %v1961
      %v2157 = vpop.f32.mrb[0].mxu0
      %v2158 = vadd.f32 0.0, %v2157
      %v2159 = vpop.f32.mrb[0].mxu0
      %2160 = vmatprep.mubr.f32.mxu0 0.0
      %2161 = vmatmul.mubr.f32.gmra.mrb[0].mxu0 %v1964
      %v2162 = vpop.f32.mrb[0].mxu0
      %v2163 = vadd.f32 0.0, %v2162
      %v2164 = vpop.f32.mrb[0].mxu0
      %2165 = vmatprep.mubr.f32.mxu0 0.0
      %2166 = vmatmul.mubr.f32.gmra.mrb[0].mxu0 %v1967
      %v2167 = vpop.f32.mrb[0].mxu0
      %v2168 = vadd.f32 0.0, %v2167
      %v2169 = vpop.f32.mrb[0].mxu0
      %2170 = vmatprep.mubr.f32.mxu0 0.0
      %2171 = vmatmul.mubr.f32.gmra.mrb[0].mxu0 %v1970
      %v2172 = vpop.f32.mrb[0].mxu0
      %v2173 = vadd.f32 0.0, %v2172
      %v2174 = vpop.f32.mrb[0].mxu0
      %2175 = vmatprep.mubr.f32.mxu0 0.0
      %2176 = vmatmul.mubr.f32.gmra.mrb[0].mxu0 %v1973
      %v2177 = vpop.f32.mrb[0].mxu0
      %v2178 = vadd.f32 0.0, %v2177
      %v2179 = vpop.f32.mrb[0].mxu0
      %2180 = vmatprep.mubr.f32.mxu0 0.0
      %2181 = vmatmul.mubr.f32.gmra.mrb[0].mxu0 %v1976
      %v2182 = vpop.f32.mrb[0].mxu0
      %v2183 = vadd.f32 0.0, %v2182
      %v2184 = vpop.f32.mrb[0].mxu0
      %2185 = vmatprep.mubr.f32.mxu0 0.0
      %2186 = vmatmul.mubr.f32.gmra.mrb[0].mxu0 %v1979
      %v2187 = vpop.f32.mrb[0].mxu0
      %v2188 = vadd.f32 0.0, %v2187
      %v2189 = vpop.f32.mrb[0].mxu0
      %2190 = vmatprep.mubr.f32.mxu0 0.0
      %2191 = vmatmul.mubr.f32.gmra.mrb[0].mxu0 %v1982
      %v2192 = vpop.f32.mrb[0].mxu0
      %v2193 = vadd.f32 0.0, %v2192
      %v2194 = vpop.f32.mrb[0].mxu0
      %2195 = vmatprep.mubr.f32.mxu0 0.0
      %2196 = vmatmul.mubr.f32.gmra.mrb[0].mxu0 %v1985
      %v2197 = vpop.f32.mrb[0].mxu0
      %v2198 = vadd.f32 0.0, %v2197
      %v2199 = vpop.f32.mrb[0].mxu0
      %2200 = vmatprep.mubr.f32.mxu0 0.0
      %2201 = vmatmul.mubr.f32.gmra.mrb[0].mxu0 %v1988
      %v2202 = vpop.f32.mrb[0].mxu0
      %v2203 = vadd.f32 0.0, %v2202
      %v2204 = vpop.f32.mrb[0].mxu0
      %2205 = vmatprep.mubr.f32.mxu0 0.0
      %2206 = vmatmul.mubr.f32.gmra.mrb[0].mxu0 %v1991
      %v2207 = vpop.f32.mrb[0].mxu0
      %v2208 = vadd.f32 0.0, %v2207
      %v2209 = vpop.f32.mrb[0].mxu0
      %2210 = vmatprep.mubr.f32.mxu0 0.0
      %2211 = vmatmul.mubr.f32.gmra.mrb[0].mxu0 %v1994
      %v2212 = vpop.f32.mrb[0].mxu0
      %v2213 = vadd.f32 0.0, %v2212
      %v2214 = vpop.f32.mrb[0].mxu0
      %2215 = vmatprep.mubr.f32.mxu0 0.0
      %2216 = vmatmul.mubr.f32.gmra.mrb[0].mxu0 %v1997
      %v2217 = vpop.f32.mrb[0].mxu0
      %v2218 = vadd.f32 0.0, %v2217
      %v2219 = vpop.f32.mrb[0].mxu0
      %2220 = vmatprep.mubr.f32.mxu0 0.0
      %2221 = vmatmul.mubr.f32.gmra.mrb[0].mxu0 %v2000
      %v2222 = vpop.f32.mrb[0].mxu0
      %v2223 = vadd.f32 0.0, %v2222
      %v2224 = vpop.f32.mrb[0].mxu0
      %2225 = vmatprep.mubr.f32.mxu0 0.0
      %2226 = vmatmul.mubr.f32.gmra.mrb[0].mxu0 %v2003
      %v2227 = vpop.f32.mrb[0].mxu0
      %v2228 = vadd.f32 0.0, %v2227
      %v2229 = vpop.f32.mrb[0].mxu0
      %2230 = vmatprep.mubr.f32.mxu0 0.0
      %2231 = vmatmul.mubr.f32.gmra.mrb[0].mxu0 %v2006
      %v2232 = vpop.f32.mrb[0].mxu0
      %v2233 = vadd.f32 0.0, %v2232
      %v2234 = vpop.f32.mrb[0].mxu0
      %2235 = vdwg.mxu0
      %v2236 = vadd.f32 %v1846, %v2078
      %v2237 = vadd.f32 %v1847, %v2083
      %v2238 = vadd.f32 %v1848, %v2088
      %v2239 = vadd.f32 %v1849, %v2093
      %v2240 = vadd.f32 %v1850, %v2098
      %v2241 = vadd.f32 %v1851, %v2103
      %v2242 = vadd.f32 %v1852, %v2108
      %v2243 = vadd.f32 %v1853, %v2113
      %v2244 = vadd.f32 %v1854, %v2118
      %v2245 = vadd.f32 %v1855, %v2123
      %v2246 = vadd.f32 %v1856, %v2128
      %v2247 = vadd.f32 %v1857, %v2133
      %v2248 = vadd.f32 %v1858, %v2138
      %v2249 = vadd.f32 %v1859, %v2143
      %v2250 = vadd.f32 %v1860, %v2148
      %v2251 = vadd.f32 %v1861, %v2153
      %v2252 = vadd.f32 %v1862, %v2158
      %v2253 = vadd.f32 %v1863, %v2163
      %v2254 = vadd.f32 %v1864, %v2168
      %v2255 = vadd.f32 %v1865, %v2173
      %v2256 = vadd.f32 %v1866, %v2178
      %v2257 = vadd.f32 %v1867, %v2183
      %v2258 = vadd.f32 %v1868, %v2188
      %v2259 = vadd.f32 %v1869, %v2193
      %v2260 = vadd.f32 %v1870, %v2198
      %v2261 = vadd.f32 %v1871, %v2203
      %v2262 = vadd.f32 %v1872, %v2208
      %v2263 = vadd.f32 %v1873, %v2213
      %v2264 = vadd.f32 %v1874, %v2218
      %v2265 = vadd.f32 %v1875, %v2223
      %v2266 = vadd.f32 %v1876, %v2228
      %v2267 = vadd.f32 %v1877, %v2233
      %v2268 = vld [vmem:[%s349 + $0x2] sm:$0xff]
      %v2269 = vld [vmem:[%s349 + $0xa] sm:$0xff]
      %v2270 = vld [vmem:[%s349 + $0x1a] sm:$0xff]
      %v2271 = vld [vmem:[%s349 + $0x22] sm:$0xff]
      %v2272 = vld [vmem:[%s349 + $0x32] sm:$0xff]
      %v2273 = vld [vmem:[%s349 + $0x3a] sm:$0xff]
      %v2274 = vld [vmem:[%s349 + $0x4a] sm:$0xff]
      %v2275 = vld [vmem:[%s349 + $0x52] sm:$0xff]
      %v2276 = vld [vmem:[%s349 + $0x62] sm:$0xff]
      %v2277 = vld [vmem:[%s349 + $0x6a] sm:$0xff]
      %v2278 = vld [vmem:[%s349 + $0x7a] sm:$0xff]
      %v2279 = vld [vmem:[%s349 + $0x82] sm:$0xff]
      %v2280 = vld [vmem:[%s349 + $0x92] sm:$0xff]
      %v2281 = vld [vmem:[%s349 + $0x9a] sm:$0xff]
      %v2282 = vld [vmem:[%s349 + $0xaa] sm:$0xff]
      %v2283 = vld [vmem:[%s349 + $0xb2] sm:$0xff]
      %v2284 = vld [vmem:[%s349 + $0xc2] sm:$0xff]
      %v2285 = vld [vmem:[%s349 + $0xca] sm:$0xff]
      %v2286 = vld [vmem:[%s349 + $0xda] sm:$0xff]
      %v2287 = vld [vmem:[%s349 + $0xe2] sm:$0xff]
      %v2288 = vld [vmem:[%s349 + $0xf2] sm:$0xff]
      %v2289 = vld [vmem:[%s349 + $0xfa] sm:$0xff]
      %v2290 = vld [vmem:[%s349 + $0x10a] sm:$0xff]
      %v2291 = vld [vmem:[%s349 + $0x112] sm:$0xff]
      %v2292 = vld [vmem:[%s349 + $0x122] sm:$0xff]
      %v2293 = vld [vmem:[%s349 + $0x12a] sm:$0xff]
      %v2294 = vld [vmem:[%s349 + $0x13a] sm:$0xff]
      %v2295 = vld [vmem:[%s349 + $0x142] sm:$0xff]
      %v2296 = vld [vmem:[%s349 + $0x152] sm:$0xff]
      %v2297 = vld [vmem:[%s349 + $0x15a] sm:$0xff]
      %v2298 = vld [vmem:[%s349 + $0x16a] sm:$0xff]
      %v2299 = vld [vmem:[%s349 + $0x172] sm:$0xff]
      %s2300 = scalar_lea.vmem %s1, 20
      %v2301 = vld [vmem:[%s2300] sm:$0xf]
      %v2303 = vsel %vm225, %v2268, 0
      %v2306 = vsel %vm225, %v2269, 0
      %v2309 = vsel %vm225, %v2270, 0
      %v2312 = vsel %vm225, %v2271, 0
      %v2315 = vsel %vm225, %v2272, 0
      %v2318 = vsel %vm225, %v2273, 0
      %v2321 = vsel %vm225, %v2274, 0
      %v2324 = vsel %vm225, %v2275, 0
      %v2327 = vsel %vm225, %v2276, 0
      %v2330 = vsel %vm225, %v2277, 0
      %v2333 = vsel %vm225, %v2278, 0
      %v2336 = vsel %vm225, %v2279, 0
      %v2339 = vsel %vm225, %v2280, 0
      %v2342 = vsel %vm225, %v2281, 0
      %v2345 = vsel %vm225, %v2282, 0
      %v2348 = vsel %vm225, %v2283, 0
      %v2351 = vsel %vm225, %v2284, 0
      %v2354 = vsel %vm225, %v2285, 0
      %v2357 = vsel %vm225, %v2286, 0
      %v2360 = vsel %vm225, %v2287, 0
      %v2363 = vsel %vm225, %v2288, 0
      %v2366 = vsel %vm225, %v2289, 0
      %v2369 = vsel %vm225, %v2290, 0
      %v2372 = vsel %vm225, %v2291, 0
      %v2375 = vsel %vm225, %v2292, 0
      %v2378 = vsel %vm225, %v2293, 0
      %v2381 = vsel %vm225, %v2294, 0
      %v2384 = vsel %vm225, %v2295, 0
      %v2387 = vsel %vm225, %v2296, 0
      %v2390 = vsel %vm225, %v2297, 0
      %v2393 = vsel %vm225, %v2298, 0
      %v2396 = vsel %vm225, %v2299, 0
      %v2399 = vsel %vm545, %v2301, 0
      %2401 = vmatprep.subr.mxu0 0.0
      %2402 = vmatpush1.msra.mxu0 %v2399
      %2403 = vmatprep.subr.mxu0 0.0
      %2404 = vmatpush1.msra.mxu0 0.0
      %2405 = vmatprep.subr.mxu0 0.0
      %2406 = vmatpush1.msra.mxu0 0.0
      %2407 = vmatprep.subr.mxu0 0.0
      %2408 = vmatpush1.msra.mxu0 0.0
      %2409 = vmatprep.subr.mxu0 0.0
      %2410 = vmatpush1.msra.mxu0 0.0
      %2411 = vmatprep.subr.mxu0 0.0
      %2412 = vmatpush1.msra.mxu0 0.0
      %2413 = vmatprep.subr.mxu0 0.0
      %2414 = vmatpush1.msra.mxu0 0.0
      %2415 = vmatprep.subr.mxu0 0.0
      %2416 = vmatpush1.msra.mxu0 0.0
      %2417 = vmatprep.subr.mxu0 0.0
      %2418 = vmatpush1.msra.mxu0 0.0
      %2419 = vmatprep.subr.mxu0 0.0
      %2420 = vmatpush1.msra.mxu0 0.0
      %2421 = vmatprep.subr.mxu0 0.0
      %2422 = vmatpush1.msra.mxu0 0.0
      %2423 = vmatprep.subr.mxu0 0.0
      %2424 = vmatpush1.msra.mxu0 0.0
      %2425 = vmatprep.subr.mxu0 0.0
      %2426 = vmatpush1.msra.mxu0 0.0
      %2427 = vmatprep.subr.mxu0 0.0
      %2428 = vmatpush1.msra.mxu0 0.0
      %2429 = vmatprep.subr.mxu0 0.0
      %2430 = vmatpush1.msra.mxu0 0.0
      %2431 = vmatprep.subr.mxu0 0.0
      %2432 = vmatpush1.msra.mxu0 0.0
      %2433 = vmatprep.subr.mxu0 0.0
      %2434 = vmatpush1.msra.mxu0 0.0
      %2435 = vmatprep.subr.mxu0 0.0
      %2436 = vmatpush1.msra.mxu0 0.0
      %2437 = vmatprep.subr.mxu0 0.0
      %2438 = vmatpush1.msra.mxu0 0.0
      %2439 = vmatprep.subr.mxu0 0.0
      %2440 = vmatpush1.msra.mxu0 0.0
      %2441 = vmatprep.subr.mxu0 0.0
      %2442 = vmatpush1.msra.mxu0 0.0
      %2443 = vmatprep.subr.mxu0 0.0
      %2444 = vmatpush1.msra.mxu0 0.0
      %2445 = vmatprep.subr.mxu0 0.0
      %2446 = vmatpush1.msra.mxu0 0.0
      %2447 = vmatprep.subr.mxu0 0.0
      %2448 = vmatpush1.msra.mxu0 0.0
      %2449 = vmatprep.subr.mxu0 0.0
      %2450 = vmatpush1.msra.mxu0 0.0
      %2451 = vmatprep.subr.mxu0 0.0
      %2452 = vmatpush1.msra.mxu0 0.0
      %2453 = vmatprep.subr.mxu0 0.0
      %2454 = vmatpush1.msra.mxu0 0.0
      %2455 = vmatprep.subr.mxu0 0.0
      %2456 = vmatpush1.msra.mxu0 0.0
      %2457 = vmatprep.subr.mxu0 0.0
      %2458 = vmatpush1.msra.mxu0 0.0
      %2459 = vmatprep.subr.mxu0 0.0
      %2460 = vmatpush1.msra.mxu0 0.0
      %2461 = vmatprep.subr.mxu0 0.0
      %2462 = vmatpush1.msra.mxu0 0.0
      %2463 = vmatprep.subr.mxu0 0.0
      %2464 = vmatpush1.msra.mxu0 0.0
      %2465 = vmatprep.mubr.f32.mxu0 0.0
      %2466 = vmatmul.mubr.f32.gmra.mrb[0].mxu0 %v2303
      %v2467 = vpop.f32.mrb[0].mxu0
      %v2468 = vadd.f32 0.0, %v2467
      %v2469 = vpop.f32.mrb[0].mxu0
      %2470 = vmatprep.mubr.f32.mxu0 0.0
      %2471 = vmatmul.mubr.f32.gmra.mrb[0].mxu0 %v2306
      %v2472 = vpop.f32.mrb[0].mxu0
      %v2473 = vadd.f32 0.0, %v2472
      %v2474 = vpop.f32.mrb[0].mxu0
      %2475 = vmatprep.mubr.f32.mxu0 0.0
      %2476 = vmatmul.mubr.f32.gmra.mrb[0].mxu0 %v2309
      %v2477 = vpop.f32.mrb[0].mxu0
      %v2478 = vadd.f32 0.0, %v2477
      %v2479 = vpop.f32.mrb[0].mxu0
      %2480 = vmatprep.mubr.f32.mxu0 0.0
      %2481 = vmatmul.mubr.f32.gmra.mrb[0].mxu0 %v2312
      %v2482 = vpop.f32.mrb[0].mxu0
      %v2483 = vadd.f32 0.0, %v2482
      %v2484 = vpop.f32.mrb[0].mxu0
      %2485 = vmatprep.mubr.f32.mxu0 0.0
      %2486 = vmatmul.mubr.f32.gmra.mrb[0].mxu0 %v2315
      %v2487 = vpop.f32.mrb[0].mxu0
      %v2488 = vadd.f32 0.0, %v2487
      %v2489 = vpop.f32.mrb[0].mxu0
      %2490 = vmatprep.mubr.f32.mxu0 0.0
      %2491 = vmatmul.mubr.f32.gmra.mrb[0].mxu0 %v2318
      %v2492 = vpop.f32.mrb[0].mxu0
      %v2493 = vadd.f32 0.0, %v2492
      %v2494 = vpop.f32.mrb[0].mxu0
      %2495 = vmatprep.mubr.f32.mxu0 0.0
      %2496 = vmatmul.mubr.f32.gmra.mrb[0].mxu0 %v2321
      %v2497 = vpop.f32.mrb[0].mxu0
      %v2498 = vadd.f32 0.0, %v2497
      %v2499 = vpop.f32.mrb[0].mxu0
      %2500 = vmatprep.mubr.f32.mxu0 0.0
      %2501 = vmatmul.mubr.f32.gmra.mrb[0].mxu0 %v2324
      %v2502 = vpop.f32.mrb[0].mxu0
      %v2503 = vadd.f32 0.0, %v2502
      %v2504 = vpop.f32.mrb[0].mxu0
      %2505 = vmatprep.mubr.f32.mxu0 0.0
      %2506 = vmatmul.mubr.f32.gmra.mrb[0].mxu0 %v2327
      %v2507 = vpop.f32.mrb[0].mxu0
      %v2508 = vadd.f32 0.0, %v2507
      %v2509 = vpop.f32.mrb[0].mxu0
      %2510 = vmatprep.mubr.f32.mxu0 0.0
      %2511 = vmatmul.mubr.f32.gmra.mrb[0].mxu0 %v2330
      %v2512 = vpop.f32.mrb[0].mxu0
      %v2513 = vadd.f32 0.0, %v2512
      %v2514 = vpop.f32.mrb[0].mxu0
      %2515 = vmatprep.mubr.f32.mxu0 0.0
      %2516 = vmatmul.mubr.f32.gmra.mrb[0].mxu0 %v2333
      %v2517 = vpop.f32.mrb[0].mxu0
      %v2518 = vadd.f32 0.0, %v2517
      %v2519 = vpop.f32.mrb[0].mxu0
      %2520 = vmatprep.mubr.f32.mxu0 0.0
      %2521 = vmatmul.mubr.f32.gmra.mrb[0].mxu0 %v2336
      %v2522 = vpop.f32.mrb[0].mxu0
      %v2523 = vadd.f32 0.0, %v2522
      %v2524 = vpop.f32.mrb[0].mxu0
      %2525 = vmatprep.mubr.f32.mxu0 0.0
      %2526 = vmatmul.mubr.f32.gmra.mrb[0].mxu0 %v2339
      %v2527 = vpop.f32.mrb[0].mxu0
      %v2528 = vadd.f32 0.0, %v2527
      %v2529 = vpop.f32.mrb[0].mxu0
      %2530 = vmatprep.mubr.f32.mxu0 0.0
      %2531 = vmatmul.mubr.f32.gmra.mrb[0].mxu0 %v2342
      %v2532 = vpop.f32.mrb[0].mxu0
      %v2533 = vadd.f32 0.0, %v2532
      %v2534 = vpop.f32.mrb[0].mxu0
      %2535 = vmatprep.mubr.f32.mxu0 0.0
      %2536 = vmatmul.mubr.f32.gmra.mrb[0].mxu0 %v2345
      %v2537 = vpop.f32.mrb[0].mxu0
      %v2538 = vadd.f32 0.0, %v2537
      %v2539 = vpop.f32.mrb[0].mxu0
      %2540 = vmatprep.mubr.f32.mxu0 0.0
      %2541 = vmatmul.mubr.f32.gmra.mrb[0].mxu0 %v2348
      %v2542 = vpop.f32.mrb[0].mxu0
      %v2543 = vadd.f32 0.0, %v2542
      %v2544 = vpop.f32.mrb[0].mxu0
      %2545 = vmatprep.mubr.f32.mxu0 0.0
      %2546 = vmatmul.mubr.f32.gmra.mrb[0].mxu0 %v2351
      %v2547 = vpop.f32.mrb[0].mxu0
      %v2548 = vadd.f32 0.0, %v2547
      %v2549 = vpop.f32.mrb[0].mxu0
      %2550 = vmatprep.mubr.f32.mxu0 0.0
      %2551 = vmatmul.mubr.f32.gmra.mrb[0].mxu0 %v2354
      %v2552 = vpop.f32.mrb[0].mxu0
      %v2553 = vadd.f32 0.0, %v2552
      %v2554 = vpop.f32.mrb[0].mxu0
      %2555 = vmatprep.mubr.f32.mxu0 0.0
      %2556 = vmatmul.mubr.f32.gmra.mrb[0].mxu0 %v2357
      %v2557 = vpop.f32.mrb[0].mxu0
      %v2558 = vadd.f32 0.0, %v2557
      %v2559 = vpop.f32.mrb[0].mxu0
      %2560 = vmatprep.mubr.f32.mxu0 0.0
      %2561 = vmatmul.mubr.f32.gmra.mrb[0].mxu0 %v2360
      %v2562 = vpop.f32.mrb[0].mxu0
      %v2563 = vadd.f32 0.0, %v2562
      %v2564 = vpop.f32.mrb[0].mxu0
      %2565 = vmatprep.mubr.f32.mxu0 0.0
      %2566 = vmatmul.mubr.f32.gmra.mrb[0].mxu0 %v2363
      %v2567 = vpop.f32.mrb[0].mxu0
      %v2568 = vadd.f32 0.0, %v2567
      %v2569 = vpop.f32.mrb[0].mxu0
      %2570 = vmatprep.mubr.f32.mxu0 0.0
      %2571 = vmatmul.mubr.f32.gmra.mrb[0].mxu0 %v2366
      %v2572 = vpop.f32.mrb[0].mxu0
      %v2573 = vadd.f32 0.0, %v2572
      %v2574 = vpop.f32.mrb[0].mxu0
      %2575 = vmatprep.mubr.f32.mxu0 0.0
      %2576 = vmatmul.mubr.f32.gmra.mrb[0].mxu0 %v2369
      %v2577 = vpop.f32.mrb[0].mxu0
      %v2578 = vadd.f32 0.0, %v2577
      %v2579 = vpop.f32.mrb[0].mxu0
      %2580 = vmatprep.mubr.f32.mxu0 0.0
      %2581 = vmatmul.mubr.f32.gmra.mrb[0].mxu0 %v2372
      %v2582 = vpop.f32.mrb[0].mxu0
      %v2583 = vadd.f32 0.0, %v2582
      %v2584 = vpop.f32.mrb[0].mxu0
      %2585 = vmatprep.mubr.f32.mxu0 0.0
      %2586 = vmatmul.mubr.f32.gmra.mrb[0].mxu0 %v2375
      %v2587 = vpop.f32.mrb[0].mxu0
      %v2588 = vadd.f32 0.0, %v2587
      %v2589 = vpop.f32.mrb[0].mxu0
      %2590 = vmatprep.mubr.f32.mxu0 0.0
      %2591 = vmatmul.mubr.f32.gmra.mrb[0].mxu0 %v2378
      %v2592 = vpop.f32.mrb[0].mxu0
      %v2593 = vadd.f32 0.0, %v2592
      %v2594 = vpop.f32.mrb[0].mxu0
      %2595 = vmatprep.mubr.f32.mxu0 0.0
      %2596 = vmatmul.mubr.f32.gmra.mrb[0].mxu0 %v2381
      %v2597 = vpop.f32.mrb[0].mxu0
      %v2598 = vadd.f32 0.0, %v2597
      %v2599 = vpop.f32.mrb[0].mxu0
      %2600 = vmatprep.mubr.f32.mxu0 0.0
      %2601 = vmatmul.mubr.f32.gmra.mrb[0].mxu0 %v2384
      %v2602 = vpop.f32.mrb[0].mxu0
      %v2603 = vadd.f32 0.0, %v2602
      %v2604 = vpop.f32.mrb[0].mxu0
      %2605 = vmatprep.mubr.f32.mxu0 0.0
      %2606 = vmatmul.mubr.f32.gmra.mrb[0].mxu0 %v2387
      %v2607 = vpop.f32.mrb[0].mxu0
      %v2608 = vadd.f32 0.0, %v2607
      %v2609 = vpop.f32.mrb[0].mxu0
      %2610 = vmatprep.mubr.f32.mxu0 0.0
      %2611 = vmatmul.mubr.f32.gmra.mrb[0].mxu0 %v2390
      %v2612 = vpop.f32.mrb[0].mxu0
      %v2613 = vadd.f32 0.0, %v2612
      %v2614 = vpop.f32.mrb[0].mxu0
      %2615 = vmatprep.mubr.f32.mxu0 0.0
      %2616 = vmatmul.mubr.f32.gmra.mrb[0].mxu0 %v2393
      %v2617 = vpop.f32.mrb[0].mxu0
      %v2618 = vadd.f32 0.0, %v2617
      %v2619 = vpop.f32.mrb[0].mxu0
      %2620 = vmatprep.mubr.f32.mxu0 0.0
      %2621 = vmatmul.mubr.f32.gmra.mrb[0].mxu0 %v2396
      %v2622 = vpop.f32.mrb[0].mxu0
      %v2623 = vadd.f32 0.0, %v2622
      %v2624 = vpop.f32.mrb[0].mxu0
      %2625 = vdwg.mxu0
      %v2626 = vadd.f32 %v2236, %v2468
      %v2627 = vadd.f32 %v2237, %v2473
      %v2628 = vadd.f32 %v2238, %v2478
      %v2629 = vadd.f32 %v2239, %v2483
      %v2630 = vadd.f32 %v2240, %v2488
      %v2631 = vadd.f32 %v2241, %v2493
      %v2632 = vadd.f32 %v2242, %v2498
      %v2633 = vadd.f32 %v2243, %v2503
      %v2634 = vadd.f32 %v2244, %v2508
      %v2635 = vadd.f32 %v2245, %v2513
      %v2636 = vadd.f32 %v2246, %v2518
      %v2637 = vadd.f32 %v2247, %v2523
      %v2638 = vadd.f32 %v2248, %v2528
      %v2639 = vadd.f32 %v2249, %v2533
      %v2640 = vadd.f32 %v2250, %v2538
      %v2641 = vadd.f32 %v2251, %v2543
      %v2642 = vadd.f32 %v2252, %v2548
      %v2643 = vadd.f32 %v2253, %v2553
      %v2644 = vadd.f32 %v2254, %v2558
      %v2645 = vadd.f32 %v2255, %v2563
      %v2646 = vadd.f32 %v2256, %v2568
      %v2647 = vadd.f32 %v2257, %v2573
      %v2648 = vadd.f32 %v2258, %v2578
      %v2649 = vadd.f32 %v2259, %v2583
      %v2650 = vadd.f32 %v2260, %v2588
      %v2651 = vadd.f32 %v2261, %v2593
      %v2652 = vadd.f32 %v2262, %v2598
      %v2653 = vadd.f32 %v2263, %v2603
      %v2654 = vadd.f32 %v2264, %v2608
      %v2655 = vadd.f32 %v2265, %v2613
      %v2656 = vadd.f32 %v2266, %v2618
      %v2657 = vadd.f32 %v2267, %v2623
      %s2658 = scalar_lea.vmem [#allocation2], 48
      %v2659 = vld [vmem:[%s2658] sm:$0xff]
      %v2660 = vld [vmem:[%s2658 + $0x8] sm:$0xff]
      %v2661 = vld [vmem:[%s2658 + $0x18] sm:$0xff]
      %v2662 = vld [vmem:[%s2658 + $0x20] sm:$0xff]
      %v2663 = vld [vmem:[%s2658 + $0x30] sm:$0xff]
      %v2664 = vld [vmem:[%s2658 + $0x38] sm:$0xff]
      %v2665 = vld [vmem:[%s2658 + $0x48] sm:$0xff]
      %v2666 = vld [vmem:[%s2658 + $0x50] sm:$0xff]
      %v2667 = vld [vmem:[%s2658 + $0x60] sm:$0xff]
      %v2668 = vld [vmem:[%s2658 + $0x68] sm:$0xff]
      %v2669 = vld [vmem:[%s2658 + $0x78] sm:$0xff]
      %v2670 = vld [vmem:[%s2658 + $0x80] sm:$0xff]
      %v2671 = vld [vmem:[%s2658 + $0x90] sm:$0xff]
      %v2672 = vld [vmem:[%s2658 + $0x98] sm:$0xff]
      %v2673 = vld [vmem:[%s2658 + $0xa8] sm:$0xff]
      %v2674 = vld [vmem:[%s2658 + $0xb0] sm:$0xff]
      %v2675 = vld [vmem:[%s2658 + $0xc0] sm:$0xff]
      %v2676 = vld [vmem:[%s2658 + $0xc8] sm:$0xff]
      %v2677 = vld [vmem:[%s2658 + $0xd8] sm:$0xff]
      %v2678 = vld [vmem:[%s2658 + $0xe0] sm:$0xff]
      %v2679 = vld [vmem:[%s2658 + $0xf0] sm:$0xff]
      %v2680 = vld [vmem:[%s2658 + $0xf8] sm:$0xff]
      %v2681 = vld [vmem:[%s2658 + $0x108] sm:$0xff]
      %v2682 = vld [vmem:[%s2658 + $0x110] sm:$0xff]
      %v2683 = vld [vmem:[%s2658 + $0x120] sm:$0xff]
      %v2684 = vld [vmem:[%s2658 + $0x128] sm:$0xff]
      %v2685 = vld [vmem:[%s2658 + $0x138] sm:$0xff]
      %v2686 = vld [vmem:[%s2658 + $0x140] sm:$0xff]
      %v2687 = vld [vmem:[%s2658 + $0x150] sm:$0xff]
      %v2688 = vld [vmem:[%s2658 + $0x158] sm:$0xff]
      %v2689 = vld [vmem:[%s2658 + $0x168] sm:$0xff]
      %v2690 = vld [vmem:[%s2658 + $0x170] sm:$0xff]
      %s2691 = scalar_lea.vmem %s1, 24
      %v2692 = vld [vmem:[%s2691] sm:$0xf]
      %v2694 = vsel %vm225, %v2659, 0
      %v2697 = vsel %vm225, %v2660, 0
      %v2700 = vsel %vm225, %v2661, 0
      %v2703 = vsel %vm225, %v2662, 0
      %v2706 = vsel %vm225, %v2663, 0
      %v2709 = vsel %vm225, %v2664, 0
      %v2712 = vsel %vm225, %v2665, 0
      %v2715 = vsel %vm225, %v2666, 0
      %v2718 = vsel %vm225, %v2667, 0
      %v2721 = vsel %vm225, %v2668, 0
      %v2724 = vsel %vm225, %v2669, 0
      %v2727 = vsel %vm225, %v2670, 0
      %v2730 = vsel %vm225, %v2671, 0
      %v2733 = vsel %vm225, %v2672, 0
      %v2736 = vsel %vm225, %v2673, 0
      %v2739 = vsel %vm225, %v2674, 0
      %v2742 = vsel %vm225, %v2675, 0
      %v2745 = vsel %vm225, %v2676, 0
      %v2748 = vsel %vm225, %v2677, 0
      %v2751 = vsel %vm225, %v2678, 0
      %v2754 = vsel %vm225, %v2679, 0
      %v2757 = vsel %vm225, %v2680, 0
      %v2760 = vsel %vm225, %v2681, 0
      %v2763 = vsel %vm225, %v2682, 0
      %v2766 = vsel %vm225, %v2683, 0
      %v2769 = vsel %vm225, %v2684, 0
      %v2772 = vsel %vm225, %v2685, 0
      %v2775 = vsel %vm225, %v2686, 0
      %v2778 = vsel %vm225, %v2687, 0
      %v2781 = vsel %vm225, %v2688, 0
      %v2784 = vsel %vm225, %v2689, 0
      %v2787 = vsel %vm225, %v2690, 0
      %v2790 = vsel %vm545, %v2692, 0
      %2792 = vmatprep.subr.mxu0 0.0
      %2793 = vmatpush1.msra.mxu0 %v2790
      %2794 = vmatprep.subr.mxu0 0.0
      %2795 = vmatpush1.msra.mxu0 0.0
      %2796 = vmatprep.subr.mxu0 0.0
      %2797 = vmatpush1.msra.mxu0 0.0
      %2798 = vmatprep.subr.mxu0 0.0
      %2799 = vmatpush1.msra.mxu0 0.0
      %2800 = vmatprep.subr.mxu0 0.0
      %2801 = vmatpush1.msra.mxu0 0.0
      %2802 = vmatprep.subr.mxu0 0.0
      %2803 = vmatpush1.msra.mxu0 0.0
      %2804 = vmatprep.subr.mxu0 0.0
      %2805 = vmatpush1.msra.mxu0 0.0
      %2806 = vmatprep.subr.mxu0 0.0
      %2807 = vmatpush1.msra.mxu0 0.0
      %2808 = vmatprep.subr.mxu0 0.0
      %2809 = vmatpush1.msra.mxu0 0.0
      %2810 = vmatprep.subr.mxu0 0.0
      %2811 = vmatpush1.msra.mxu0 0.0
      %2812 = vmatprep.subr.mxu0 0.0
      %2813 = vmatpush1.msra.mxu0 0.0
      %2814 = vmatprep.subr.mxu0 0.0
      %2815 = vmatpush1.msra.mxu0 0.0
      %2816 = vmatprep.subr.mxu0 0.0
      %2817 = vmatpush1.msra.mxu0 0.0
      %2818 = vmatprep.subr.mxu0 0.0
      %2819 = vmatpush1.msra.mxu0 0.0
      %2820 = vmatprep.subr.mxu0 0.0
      %2821 = vmatpush1.msra.mxu0 0.0
      %2822 = vmatprep.subr.mxu0 0.0
      %2823 = vmatpush1.msra.mxu0 0.0
      %2824 = vmatprep.subr.mxu0 0.0
      %2825 = vmatpush1.msra.mxu0 0.0
      %2826 = vmatprep.subr.mxu0 0.0
      %2827 = vmatpush1.msra.mxu0 0.0
      %2828 = vmatprep.subr.mxu0 0.0
      %2829 = vmatpush1.msra.mxu0 0.0
      %2830 = vmatprep.subr.mxu0 0.0
      %2831 = vmatpush1.msra.mxu0 0.0
      %2832 = vmatprep.subr.mxu0 0.0
      %2833 = vmatpush1.msra.mxu0 0.0
      %2834 = vmatprep.subr.mxu0 0.0
      %2835 = vmatpush1.msra.mxu0 0.0
      %2836 = vmatprep.subr.mxu0 0.0
      %2837 = vmatpush1.msra.mxu0 0.0
      %2838 = vmatprep.subr.mxu0 0.0
      %2839 = vmatpush1.msra.mxu0 0.0
      %2840 = vmatprep.subr.mxu0 0.0
      %2841 = vmatpush1.msra.mxu0 0.0
      %2842 = vmatprep.subr.mxu0 0.0
      %2843 = vmatpush1.msra.mxu0 0.0
      %2844 = vmatprep.subr.mxu0 0.0
      %2845 = vmatpush1.msra.mxu0 0.0
      %2846 = vmatprep.subr.mxu0 0.0
      %2847 = vmatpush1.msra.mxu0 0.0
      %2848 = vmatprep.subr.mxu0 0.0
      %2849 = vmatpush1.msra.mxu0 0.0
      %2850 = vmatprep.subr.mxu0 0.0
      %2851 = vmatpush1.msra.mxu0 0.0
      %2852 = vmatprep.subr.mxu0 0.0
      %2853 = vmatpush1.msra.mxu0 0.0
      %2854 = vmatprep.subr.mxu0 0.0
      %2855 = vmatpush1.msra.mxu0 0.0
      %2856 = vmatprep.mubr.f32.mxu0 0.0
      %2857 = vmatmul.mubr.f32.gmra.mrb[0].mxu0 %v2694
      %v2858 = vpop.f32.mrb[0].mxu0
      %v2859 = vadd.f32 0.0, %v2858
      %v2860 = vpop.f32.mrb[0].mxu0
      %2861 = vmatprep.mubr.f32.mxu0 0.0
      %2862 = vmatmul.mubr.f32.gmra.mrb[0].mxu0 %v2697
      %v2863 = vpop.f32.mrb[0].mxu0
      %v2864 = vadd.f32 0.0, %v2863
      %v2865 = vpop.f32.mrb[0].mxu0
      %2866 = vmatprep.mubr.f32.mxu0 0.0
      %2867 = vmatmul.mubr.f32.gmra.mrb[0].mxu0 %v2700
      %v2868 = vpop.f32.mrb[0].mxu0
      %v2869 = vadd.f32 0.0, %v2868
      %v2870 = vpop.f32.mrb[0].mxu0
      %2871 = vmatprep.mubr.f32.mxu0 0.0
      %2872 = vmatmul.mubr.f32.gmra.mrb[0].mxu0 %v2703
      %v2873 = vpop.f32.mrb[0].mxu0
      %v2874 = vadd.f32 0.0, %v2873
      %v2875 = vpop.f32.mrb[0].mxu0
      %2876 = vmatprep.mubr.f32.mxu0 0.0
      %2877 = vmatmul.mubr.f32.gmra.mrb[0].mxu0 %v2706
      %v2878 = vpop.f32.mrb[0].mxu0
      %v2879 = vadd.f32 0.0, %v2878
      %v2880 = vpop.f32.mrb[0].mxu0
      %2881 = vmatprep.mubr.f32.mxu0 0.0
      %2882 = vmatmul.mubr.f32.gmra.mrb[0].mxu0 %v2709
      %v2883 = vpop.f32.mrb[0].mxu0
      %v2884 = vadd.f32 0.0, %v2883
      %v2885 = vpop.f32.mrb[0].mxu0
      %2886 = vmatprep.mubr.f32.mxu0 0.0
      %2887 = vmatmul.mubr.f32.gmra.mrb[0].mxu0 %v2712
      %v2888 = vpop.f32.mrb[0].mxu0
      %v2889 = vadd.f32 0.0, %v2888
      %v2890 = vpop.f32.mrb[0].mxu0
      %2891 = vmatprep.mubr.f32.mxu0 0.0
      %2892 = vmatmul.mubr.f32.gmra.mrb[0].mxu0 %v2715
      %v2893 = vpop.f32.mrb[0].mxu0
      %v2894 = vadd.f32 0.0, %v2893
      %v2895 = vpop.f32.mrb[0].mxu0
      %2896 = vmatprep.mubr.f32.mxu0 0.0
      %2897 = vmatmul.mubr.f32.gmra.mrb[0].mxu0 %v2718
      %v2898 = vpop.f32.mrb[0].mxu0
      %v2899 = vadd.f32 0.0, %v2898
      %v2900 = vpop.f32.mrb[0].mxu0
      %2901 = vmatprep.mubr.f32.mxu0 0.0
      %2902 = vmatmul.mubr.f32.gmra.mrb[0].mxu0 %v2721
      %v2903 = vpop.f32.mrb[0].mxu0
      %v2904 = vadd.f32 0.0, %v2903
      %v2905 = vpop.f32.mrb[0].mxu0
      %2906 = vmatprep.mubr.f32.mxu0 0.0
      %2907 = vmatmul.mubr.f32.gmra.mrb[0].mxu0 %v2724
      %v2908 = vpop.f32.mrb[0].mxu0
      %v2909 = vadd.f32 0.0, %v2908
      %v2910 = vpop.f32.mrb[0].mxu0
      %2911 = vmatprep.mubr.f32.mxu0 0.0
      %2912 = vmatmul.mubr.f32.gmra.mrb[0].mxu0 %v2727
      %v2913 = vpop.f32.mrb[0].mxu0
      %v2914 = vadd.f32 0.0, %v2913
      %v2915 = vpop.f32.mrb[0].mxu0
      %2916 = vmatprep.mubr.f32.mxu0 0.0
      %2917 = vmatmul.mubr.f32.gmra.mrb[0].mxu0 %v2730
      %v2918 = vpop.f32.mrb[0].mxu0
      %v2919 = vadd.f32 0.0, %v2918
      %v2920 = vpop.f32.mrb[0].mxu0
      %2921 = vmatprep.mubr.f32.mxu0 0.0
      %2922 = vmatmul.mubr.f32.gmra.mrb[0].mxu0 %v2733
      %v2923 = vpop.f32.mrb[0].mxu0
      %v2924 = vadd.f32 0.0, %v2923
      %v2925 = vpop.f32.mrb[0].mxu0
      %2926 = vmatprep.mubr.f32.mxu0 0.0
      %2927 = vmatmul.mubr.f32.gmra.mrb[0].mxu0 %v2736
      %v2928 = vpop.f32.mrb[0].mxu0
      %v2929 = vadd.f32 0.0, %v2928
      %v2930 = vpop.f32.mrb[0].mxu0
      %2931 = vmatprep.mubr.f32.mxu0 0.0
      %2932 = vmatmul.mubr.f32.gmra.mrb[0].mxu0 %v2739
      %v2933 = vpop.f32.mrb[0].mxu0
      %v2934 = vadd.f32 0.0, %v2933
      %v2935 = vpop.f32.mrb[0].mxu0
      %2936 = vmatprep.mubr.f32.mxu0 0.0
      %2937 = vmatmul.mubr.f32.gmra.mrb[0].mxu0 %v2742
      %v2938 = vpop.f32.mrb[0].mxu0
      %v2939 = vadd.f32 0.0, %v2938
      %v2940 = vpop.f32.mrb[0].mxu0
      %2941 = vmatprep.mubr.f32.mxu0 0.0
      %2942 = vmatmul.mubr.f32.gmra.mrb[0].mxu0 %v2745
      %v2943 = vpop.f32.mrb[0].mxu0
      %v2944 = vadd.f32 0.0, %v2943
      %v2945 = vpop.f32.mrb[0].mxu0
      %2946 = vmatprep.mubr.f32.mxu0 0.0
      %2947 = vmatmul.mubr.f32.gmra.mrb[0].mxu0 %v2748
      %v2948 = vpop.f32.mrb[0].mxu0
      %v2949 = vadd.f32 0.0, %v2948
      %v2950 = vpop.f32.mrb[0].mxu0
      %2951 = vmatprep.mubr.f32.mxu0 0.0
      %2952 = vmatmul.mubr.f32.gmra.mrb[0].mxu0 %v2751
      %v2953 = vpop.f32.mrb[0].mxu0
      %v2954 = vadd.f32 0.0, %v2953
      %v2955 = vpop.f32.mrb[0].mxu0
      %2956 = vmatprep.mubr.f32.mxu0 0.0
      %2957 = vmatmul.mubr.f32.gmra.mrb[0].mxu0 %v2754
      %v2958 = vpop.f32.mrb[0].mxu0
      %v2959 = vadd.f32 0.0, %v2958
      %v2960 = vpop.f32.mrb[0].mxu0
      %2961 = vmatprep.mubr.f32.mxu0 0.0
      %2962 = vmatmul.mubr.f32.gmra.mrb[0].mxu0 %v2757
      %v2963 = vpop.f32.mrb[0].mxu0
      %v2964 = vadd.f32 0.0, %v2963
      %v2965 = vpop.f32.mrb[0].mxu0
      %2966 = vmatprep.mubr.f32.mxu0 0.0
      %2967 = vmatmul.mubr.f32.gmra.mrb[0].mxu0 %v2760
      %v2968 = vpop.f32.mrb[0].mxu0
      %v2969 = vadd.f32 0.0, %v2968
      %v2970 = vpop.f32.mrb[0].mxu0
      %2971 = vmatprep.mubr.f32.mxu0 0.0
      %2972 = vmatmul.mubr.f32.gmra.mrb[0].mxu0 %v2763
      %v2973 = vpop.f32.mrb[0].mxu0
      %v2974 = vadd.f32 0.0, %v2973
      %v2975 = vpop.f32.mrb[0].mxu0
      %2976 = vmatprep.mubr.f32.mxu0 0.0
      %2977 = vmatmul.mubr.f32.gmra.mrb[0].mxu0 %v2766
      %v2978 = vpop.f32.mrb[0].mxu0
      %v2979 = vadd.f32 0.0, %v2978
      %v2980 = vpop.f32.mrb[0].mxu0
      %2981 = vmatprep.mubr.f32.mxu0 0.0
      %2982 = vmatmul.mubr.f32.gmra.mrb[0].mxu0 %v2769
      %v2983 = vpop.f32.mrb[0].mxu0
      %v2984 = vadd.f32 0.0, %v2983
      %v2985 = vpop.f32.mrb[0].mxu0
      %2986 = vmatprep.mubr.f32.mxu0 0.0
      %2987 = vmatmul.mubr.f32.gmra.mrb[0].mxu0 %v2772
      %v2988 = vpop.f32.mrb[0].mxu0
      %v2989 = vadd.f32 0.0, %v2988
      %v2990 = vpop.f32.mrb[0].mxu0
      %2991 = vmatprep.mubr.f32.mxu0 0.0
      %2992 = vmatmul.mubr.f32.gmra.mrb[0].mxu0 %v2775
      %v2993 = vpop.f32.mrb[0].mxu0
      %v2994 = vadd.f32 0.0, %v2993
      %v2995 = vpop.f32.mrb[0].mxu0
      %2996 = vmatprep.mubr.f32.mxu0 0.0
      %2997 = vmatmul.mubr.f32.gmra.mrb[0].mxu0 %v2778
      %v2998 = vpop.f32.mrb[0].mxu0
      %v2999 = vadd.f32 0.0, %v2998
      %v3000 = vpop.f32.mrb[0].mxu0
      %3001 = vmatprep.mubr.f32.mxu0 0.0
      %3002 = vmatmul.mubr.f32.gmra.mrb[0].mxu0 %v2781
      %v3003 = vpop.f32.mrb[0].mxu0
      %v3004 = vadd.f32 0.0, %v3003
      %v3005 = vpop.f32.mrb[0].mxu0
      %3006 = vmatprep.mubr.f32.mxu0 0.0
      %3007 = vmatmul.mubr.f32.gmra.mrb[0].mxu0 %v2784
      %v3008 = vpop.f32.mrb[0].mxu0
      %v3009 = vadd.f32 0.0, %v3008
      %v3010 = vpop.f32.mrb[0].mxu0
      %3011 = vmatprep.mubr.f32.mxu0 0.0
      %3012 = vmatmul.mubr.f32.gmra.mrb[0].mxu0 %v2787
      %v3013 = vpop.f32.mrb[0].mxu0
      %v3014 = vadd.f32 0.0, %v3013
      %v3015 = vpop.f32.mrb[0].mxu0
      %3016 = vdwg.mxu0
      %v3017 = vadd.f32 %v2626, %v2859
      %v3018 = vadd.f32 %v2627, %v2864
      %v3019 = vadd.f32 %v2628, %v2869
      %v3020 = vadd.f32 %v2629, %v2874
      %v3021 = vadd.f32 %v2630, %v2879
      %v3022 = vadd.f32 %v2631, %v2884
      %v3023 = vadd.f32 %v2632, %v2889
      %v3024 = vadd.f32 %v2633, %v2894
      %v3025 = vadd.f32 %v2634, %v2899
      %v3026 = vadd.f32 %v2635, %v2904
      %v3027 = vadd.f32 %v2636, %v2909
      %v3028 = vadd.f32 %v2637, %v2914
      %v3029 = vadd.f32 %v2638, %v2919
      %v3030 = vadd.f32 %v2639, %v2924
      %v3031 = vadd.f32 %v2640, %v2929
      %v3032 = vadd.f32 %v2641, %v2934
      %v3033 = vadd.f32 %v2642, %v2939
      %v3034 = vadd.f32 %v2643, %v2944
      %v3035 = vadd.f32 %v2644, %v2949
      %v3036 = vadd.f32 %v2645, %v2954
      %v3037 = vadd.f32 %v2646, %v2959
      %v3038 = vadd.f32 %v2647, %v2964
      %v3039 = vadd.f32 %v2648, %v2969
      %v3040 = vadd.f32 %v2649, %v2974
      %v3041 = vadd.f32 %v2650, %v2979
      %v3042 = vadd.f32 %v2651, %v2984
      %v3043 = vadd.f32 %v2652, %v2989
      %v3044 = vadd.f32 %v2653, %v2994
      %v3045 = vadd.f32 %v2654, %v2999
      %v3046 = vadd.f32 %v2655, %v3004
      %v3047 = vadd.f32 %v2656, %v3009
      %v3048 = vadd.f32 %v2657, %v3014
      %v3049 = vld [vmem:[%s2658 + $0x1] sm:$0xff]
      %v3050 = vld [vmem:[%s2658 + $0x9] sm:$0xff]
      %v3051 = vld [vmem:[%s2658 + $0x19] sm:$0xff]
      %v3052 = vld [vmem:[%s2658 + $0x21] sm:$0xff]
      %v3053 = vld [vmem:[%s2658 + $0x31] sm:$0xff]
      %v3054 = vld [vmem:[%s2658 + $0x39] sm:$0xff]
      %v3055 = vld [vmem:[%s2658 + $0x49] sm:$0xff]
      %v3056 = vld [vmem:[%s2658 + $0x51] sm:$0xff]
      %v3057 = vld [vmem:[%s2658 + $0x61] sm:$0xff]
      %v3058 = vld [vmem:[%s2658 + $0x69] sm:$0xff]
      %v3059 = vld [vmem:[%s2658 + $0x79] sm:$0xff]
      %v3060 = vld [vmem:[%s2658 + $0x81] sm:$0xff]
      %v3061 = vld [vmem:[%s2658 + $0x91] sm:$0xff]
      %v3062 = vld [vmem:[%s2658 + $0x99] sm:$0xff]
      %v3063 = vld [vmem:[%s2658 + $0xa9] sm:$0xff]
      %v3064 = vld [vmem:[%s2658 + $0xb1] sm:$0xff]
      %v3065 = vld [vmem:[%s2658 + $0xc1] sm:$0xff]
      %v3066 = vld [vmem:[%s2658 + $0xc9] sm:$0xff]
      %v3067 = vld [vmem:[%s2658 + $0xd9] sm:$0xff]
      %v3068 = vld [vmem:[%s2658 + $0xe1] sm:$0xff]
      %v3069 = vld [vmem:[%s2658 + $0xf1] sm:$0xff]
      %v3070 = vld [vmem:[%s2658 + $0xf9] sm:$0xff]
      %v3071 = vld [vmem:[%s2658 + $0x109] sm:$0xff]
      %v3072 = vld [vmem:[%s2658 + $0x111] sm:$0xff]
      %v3073 = vld [vmem:[%s2658 + $0x121] sm:$0xff]
      %v3074 = vld [vmem:[%s2658 + $0x129] sm:$0xff]
      %v3075 = vld [vmem:[%s2658 + $0x139] sm:$0xff]
      %v3076 = vld [vmem:[%s2658 + $0x141] sm:$0xff]
      %v3077 = vld [vmem:[%s2658 + $0x151] sm:$0xff]
      %v3078 = vld [vmem:[%s2658 + $0x159] sm:$0xff]
      %v3079 = vld [vmem:[%s2658 + $0x169] sm:$0xff]
      %v3080 = vld [vmem:[%s2658 + $0x171] sm:$0xff]
      %s3081 = scalar_lea.vmem %s1, 28
      %v3082 = vld [vmem:[%s3081] sm:$0xf]
      %v3084 = vsel %vm225, %v3049, 0
      %v3087 = vsel %vm225, %v3050, 0
      %v3090 = vsel %vm225, %v3051, 0
      %v3093 = vsel %vm225, %v3052, 0
      %v3096 = vsel %vm225, %v3053, 0
      %v3099 = vsel %vm225, %v3054, 0
      %v3102 = vsel %vm225, %v3055, 0
      %v3105 = vsel %vm225, %v3056, 0
      %v3108 = vsel %vm225, %v3057, 0
      %v3111 = vsel %vm225, %v3058, 0
      %v3114 = vsel %vm225, %v3059, 0
      %v3117 = vsel %vm225, %v3060, 0
      %v3120 = vsel %vm225, %v3061, 0
      %v3123 = vsel %vm225, %v3062, 0
      %v3126 = vsel %vm225, %v3063, 0
      %v3129 = vsel %vm225, %v3064, 0
      %v3132 = vsel %vm225, %v3065, 0
      %v3135 = vsel %vm225, %v3066, 0
      %v3138 = vsel %vm225, %v3067, 0
      %v3141 = vsel %vm225, %v3068, 0
      %v3144 = vsel %vm225, %v3069, 0
      %v3147 = vsel %vm225, %v3070, 0
      %v3150 = vsel %vm225, %v3071, 0
      %v3153 = vsel %vm225, %v3072, 0
      %v3156 = vsel %vm225, %v3073, 0
      %v3159 = vsel %vm225, %v3074, 0
      %v3162 = vsel %vm225, %v3075, 0
      %v3165 = vsel %vm225, %v3076, 0
      %v3168 = vsel %vm225, %v3077, 0
      %v3171 = vsel %vm225, %v3078, 0
      %v3174 = vsel %vm225, %v3079, 0
      %v3177 = vsel %vm225, %v3080, 0
      %v3180 = vsel %vm545, %v3082, 0
      %3182 = vmatprep.subr.mxu0 0.0
      %3183 = vmatpush1.msra.mxu0 %v3180
      %3184 = vmatprep.subr.mxu0 0.0
      %3185 = vmatpush1.msra.mxu0 0.0
      %3186 = vmatprep.subr.mxu0 0.0
      %3187 = vmatpush1.msra.mxu0 0.0
      %3188 = vmatprep.subr.mxu0 0.0
      %3189 = vmatpush1.msra.mxu0 0.0
      %3190 = vmatprep.subr.mxu0 0.0
      %3191 = vmatpush1.msra.mxu0 0.0
      %3192 = vmatprep.subr.mxu0 0.0
      %3193 = vmatpush1.msra.mxu0 0.0
      %3194 = vmatprep.subr.mxu0 0.0
      %3195 = vmatpush1.msra.mxu0 0.0
      %3196 = vmatprep.subr.mxu0 0.0
      %3197 = vmatpush1.msra.mxu0 0.0
      %3198 = vmatprep.subr.mxu0 0.0
      %3199 = vmatpush1.msra.mxu0 0.0
      %3200 = vmatprep.subr.mxu0 0.0
      %3201 = vmatpush1.msra.mxu0 0.0
      %3202 = vmatprep.subr.mxu0 0.0
      %3203 = vmatpush1.msra.mxu0 0.0
      %3204 = vmatprep.subr.mxu0 0.0
      %3205 = vmatpush1.msra.mxu0 0.0
      %3206 = vmatprep.subr.mxu0 0.0
      %3207 = vmatpush1.msra.mxu0 0.0
      %3208 = vmatprep.subr.mxu0 0.0
      %3209 = vmatpush1.msra.mxu0 0.0
      %3210 = vmatprep.subr.mxu0 0.0
      %3211 = vmatpush1.msra.mxu0 0.0
      %3212 = vmatprep.subr.mxu0 0.0
      %3213 = vmatpush1.msra.mxu0 0.0
      %3214 = vmatprep.subr.mxu0 0.0
      %3215 = vmatpush1.msra.mxu0 0.0
      %3216 = vmatprep.subr.mxu0 0.0
      %3217 = vmatpush1.msra.mxu0 0.0
      %3218 = vmatprep.subr.mxu0 0.0
      %3219 = vmatpush1.msra.mxu0 0.0
      %3220 = vmatprep.subr.mxu0 0.0
      %3221 = vmatpush1.msra.mxu0 0.0
      %3222 = vmatprep.subr.mxu0 0.0
      %3223 = vmatpush1.msra.mxu0 0.0
      %3224 = vmatprep.subr.mxu0 0.0
      %3225 = vmatpush1.msra.mxu0 0.0
      %3226 = vmatprep.subr.mxu0 0.0
      %3227 = vmatpush1.msra.mxu0 0.0
      %3228 = vmatprep.subr.mxu0 0.0
      %3229 = vmatpush1.msra.mxu0 0.0
      %3230 = vmatprep.subr.mxu0 0.0
      %3231 = vmatpush1.msra.mxu0 0.0
      %3232 = vmatprep.subr.mxu0 0.0
      %3233 = vmatpush1.msra.mxu0 0.0
      %3234 = vmatprep.subr.mxu0 0.0
      %3235 = vmatpush1.msra.mxu0 0.0
      %3236 = vmatprep.subr.mxu0 0.0
      %3237 = vmatpush1.msra.mxu0 0.0
      %3238 = vmatprep.subr.mxu0 0.0
      %3239 = vmatpush1.msra.mxu0 0.0
      %3240 = vmatprep.subr.mxu0 0.0
      %3241 = vmatpush1.msra.mxu0 0.0
      %3242 = vmatprep.subr.mxu0 0.0
      %3243 = vmatpush1.msra.mxu0 0.0
      %3244 = vmatprep.subr.mxu0 0.0
      %3245 = vmatpush1.msra.mxu0 0.0
      %3246 = vmatprep.mubr.f32.mxu0 0.0
      %3247 = vmatmul.mubr.f32.gmra.mrb[0].mxu0 %v3084
      %v3248 = vpop.f32.mrb[0].mxu0
      %v3249 = vadd.f32 0.0, %v3248
      %v3250 = vpop.f32.mrb[0].mxu0
      %3251 = vmatprep.mubr.f32.mxu0 0.0
      %3252 = vmatmul.mubr.f32.gmra.mrb[0].mxu0 %v3087
      %v3253 = vpop.f32.mrb[0].mxu0
      %v3254 = vadd.f32 0.0, %v3253
      %v3255 = vpop.f32.mrb[0].mxu0
      %3256 = vmatprep.mubr.f32.mxu0 0.0
      %3257 = vmatmul.mubr.f32.gmra.mrb[0].mxu0 %v3090
      %v3258 = vpop.f32.mrb[0].mxu0
      %v3259 = vadd.f32 0.0, %v3258
      %v3260 = vpop.f32.mrb[0].mxu0
      %3261 = vmatprep.mubr.f32.mxu0 0.0
      %3262 = vmatmul.mubr.f32.gmra.mrb[0].mxu0 %v3093
      %v3263 = vpop.f32.mrb[0].mxu0
      %v3264 = vadd.f32 0.0, %v3263
      %v3265 = vpop.f32.mrb[0].mxu0
      %3266 = vmatprep.mubr.f32.mxu0 0.0
      %3267 = vmatmul.mubr.f32.gmra.mrb[0].mxu0 %v3096
      %v3268 = vpop.f32.mrb[0].mxu0
      %v3269 = vadd.f32 0.0, %v3268
      %v3270 = vpop.f32.mrb[0].mxu0
      %3271 = vmatprep.mubr.f32.mxu0 0.0
      %3272 = vmatmul.mubr.f32.gmra.mrb[0].mxu0 %v3099
      %v3273 = vpop.f32.mrb[0].mxu0
      %v3274 = vadd.f32 0.0, %v3273
      %v3275 = vpop.f32.mrb[0].mxu0
      %3276 = vmatprep.mubr.f32.mxu0 0.0
      %3277 = vmatmul.mubr.f32.gmra.mrb[0].mxu0 %v3102
      %v3278 = vpop.f32.mrb[0].mxu0
      %v3279 = vadd.f32 0.0, %v3278
      %v3280 = vpop.f32.mrb[0].mxu0
      %3281 = vmatprep.mubr.f32.mxu0 0.0
      %3282 = vmatmul.mubr.f32.gmra.mrb[0].mxu0 %v3105
      %v3283 = vpop.f32.mrb[0].mxu0
      %v3284 = vadd.f32 0.0, %v3283
      %v3285 = vpop.f32.mrb[0].mxu0
      %3286 = vmatprep.mubr.f32.mxu0 0.0
      %3287 = vmatmul.mubr.f32.gmra.mrb[0].mxu0 %v3108
      %v3288 = vpop.f32.mrb[0].mxu0
      %v3289 = vadd.f32 0.0, %v3288
      %v3290 = vpop.f32.mrb[0].mxu0
      %3291 = vmatprep.mubr.f32.mxu0 0.0
      %3292 = vmatmul.mubr.f32.gmra.mrb[0].mxu0 %v3111
      %v3293 = vpop.f32.mrb[0].mxu0
      %v3294 = vadd.f32 0.0, %v3293
      %v3295 = vpop.f32.mrb[0].mxu0
      %3296 = vmatprep.mubr.f32.mxu0 0.0
      %3297 = vmatmul.mubr.f32.gmra.mrb[0].mxu0 %v3114
      %v3298 = vpop.f32.mrb[0].mxu0
      %v3299 = vadd.f32 0.0, %v3298
      %v3300 = vpop.f32.mrb[0].mxu0
      %3301 = vmatprep.mubr.f32.mxu0 0.0
      %3302 = vmatmul.mubr.f32.gmra.mrb[0].mxu0 %v3117
      %v3303 = vpop.f32.mrb[0].mxu0
      %v3304 = vadd.f32 0.0, %v3303
      %v3305 = vpop.f32.mrb[0].mxu0
      %3306 = vmatprep.mubr.f32.mxu0 0.0
      %3307 = vmatmul.mubr.f32.gmra.mrb[0].mxu0 %v3120
      %v3308 = vpop.f32.mrb[0].mxu0
      %v3309 = vadd.f32 0.0, %v3308
      %v3310 = vpop.f32.mrb[0].mxu0
      %3311 = vmatprep.mubr.f32.mxu0 0.0
      %3312 = vmatmul.mubr.f32.gmra.mrb[0].mxu0 %v3123
      %v3313 = vpop.f32.mrb[0].mxu0
      %v3314 = vadd.f32 0.0, %v3313
      %v3315 = vpop.f32.mrb[0].mxu0
      %3316 = vmatprep.mubr.f32.mxu0 0.0
      %3317 = vmatmul.mubr.f32.gmra.mrb[0].mxu0 %v3126
      %v3318 = vpop.f32.mrb[0].mxu0
      %v3319 = vadd.f32 0.0, %v3318
      %v3320 = vpop.f32.mrb[0].mxu0
      %3321 = vmatprep.mubr.f32.mxu0 0.0
      %3322 = vmatmul.mubr.f32.gmra.mrb[0].mxu0 %v3129
      %v3323 = vpop.f32.mrb[0].mxu0
      %v3324 = vadd.f32 0.0, %v3323
      %v3325 = vpop.f32.mrb[0].mxu0
      %3326 = vmatprep.mubr.f32.mxu0 0.0
      %3327 = vmatmul.mubr.f32.gmra.mrb[0].mxu0 %v3132
      %v3328 = vpop.f32.mrb[0].mxu0
      %v3329 = vadd.f32 0.0, %v3328
      %v3330 = vpop.f32.mrb[0].mxu0
      %3331 = vmatprep.mubr.f32.mxu0 0.0
      %3332 = vmatmul.mubr.f32.gmra.mrb[0].mxu0 %v3135
      %v3333 = vpop.f32.mrb[0].mxu0
      %v3334 = vadd.f32 0.0, %v3333
      %v3335 = vpop.f32.mrb[0].mxu0
      %3336 = vmatprep.mubr.f32.mxu0 0.0
      %3337 = vmatmul.mubr.f32.gmra.mrb[0].mxu0 %v3138
      %v3338 = vpop.f32.mrb[0].mxu0
      %v3339 = vadd.f32 0.0, %v3338
      %v3340 = vpop.f32.mrb[0].mxu0
      %3341 = vmatprep.mubr.f32.mxu0 0.0
      %3342 = vmatmul.mubr.f32.gmra.mrb[0].mxu0 %v3141
      %v3343 = vpop.f32.mrb[0].mxu0
      %v3344 = vadd.f32 0.0, %v3343
      %v3345 = vpop.f32.mrb[0].mxu0
      %3346 = vmatprep.mubr.f32.mxu0 0.0
      %3347 = vmatmul.mubr.f32.gmra.mrb[0].mxu0 %v3144
      %v3348 = vpop.f32.mrb[0].mxu0
      %v3349 = vadd.f32 0.0, %v3348
      %v3350 = vpop.f32.mrb[0].mxu0
      %3351 = vmatprep.mubr.f32.mxu0 0.0
      %3352 = vmatmul.mubr.f32.gmra.mrb[0].mxu0 %v3147
      %v3353 = vpop.f32.mrb[0].mxu0
      %v3354 = vadd.f32 0.0, %v3353
      %v3355 = vpop.f32.mrb[0].mxu0
      %3356 = vmatprep.mubr.f32.mxu0 0.0
      %3357 = vmatmul.mubr.f32.gmra.mrb[0].mxu0 %v3150
      %v3358 = vpop.f32.mrb[0].mxu0
      %v3359 = vadd.f32 0.0, %v3358
      %v3360 = vpop.f32.mrb[0].mxu0
      %3361 = vmatprep.mubr.f32.mxu0 0.0
      %3362 = vmatmul.mubr.f32.gmra.mrb[0].mxu0 %v3153
      %v3363 = vpop.f32.mrb[0].mxu0
      %v3364 = vadd.f32 0.0, %v3363
      %v3365 = vpop.f32.mrb[0].mxu0
      %3366 = vmatprep.mubr.f32.mxu0 0.0
      %3367 = vmatmul.mubr.f32.gmra.mrb[0].mxu0 %v3156
      %v3368 = vpop.f32.mrb[0].mxu0
      %v3369 = vadd.f32 0.0, %v3368
      %v3370 = vpop.f32.mrb[0].mxu0
      %3371 = vmatprep.mubr.f32.mxu0 0.0
      %3372 = vmatmul.mubr.f32.gmra.mrb[0].mxu0 %v3159
      %v3373 = vpop.f32.mrb[0].mxu0
      %v3374 = vadd.f32 0.0, %v3373
      %v3375 = vpop.f32.mrb[0].mxu0
      %3376 = vmatprep.mubr.f32.mxu0 0.0
      %3377 = vmatmul.mubr.f32.gmra.mrb[0].mxu0 %v3162
      %v3378 = vpop.f32.mrb[0].mxu0
      %v3379 = vadd.f32 0.0, %v3378
      %v3380 = vpop.f32.mrb[0].mxu0
      %3381 = vmatprep.mubr.f32.mxu0 0.0
      %3382 = vmatmul.mubr.f32.gmra.mrb[0].mxu0 %v3165
      %v3383 = vpop.f32.mrb[0].mxu0
      %v3384 = vadd.f32 0.0, %v3383
      %v3385 = vpop.f32.mrb[0].mxu0
      %3386 = vmatprep.mubr.f32.mxu0 0.0
      %3387 = vmatmul.mubr.f32.gmra.mrb[0].mxu0 %v3168
      %v3388 = vpop.f32.mrb[0].mxu0
      %v3389 = vadd.f32 0.0, %v3388
      %v3390 = vpop.f32.mrb[0].mxu0
      %3391 = vmatprep.mubr.f32.mxu0 0.0
      %3392 = vmatmul.mubr.f32.gmra.mrb[0].mxu0 %v3171
      %v3393 = vpop.f32.mrb[0].mxu0
      %v3394 = vadd.f32 0.0, %v3393
      %v3395 = vpop.f32.mrb[0].mxu0
      %3396 = vmatprep.mubr.f32.mxu0 0.0
      %3397 = vmatmul.mubr.f32.gmra.mrb[0].mxu0 %v3174
      %v3398 = vpop.f32.mrb[0].mxu0
      %v3399 = vadd.f32 0.0, %v3398
      %v3400 = vpop.f32.mrb[0].mxu0
      %3401 = vmatprep.mubr.f32.mxu0 0.0
      %3402 = vmatmul.mubr.f32.gmra.mrb[0].mxu0 %v3177
      %v3403 = vpop.f32.mrb[0].mxu0
      %v3404 = vadd.f32 0.0, %v3403
      %v3405 = vpop.f32.mrb[0].mxu0
      %3406 = vdwg.mxu0
      %v3407 = vadd.f32 %v3017, %v3249
      %v3408 = vadd.f32 %v3018, %v3254
      %v3409 = vadd.f32 %v3019, %v3259
      %v3410 = vadd.f32 %v3020, %v3264
      %v3411 = vadd.f32 %v3021, %v3269
      %v3412 = vadd.f32 %v3022, %v3274
      %v3413 = vadd.f32 %v3023, %v3279
      %v3414 = vadd.f32 %v3024, %v3284
      %v3415 = vadd.f32 %v3025, %v3289
      %v3416 = vadd.f32 %v3026, %v3294
      %v3417 = vadd.f32 %v3027, %v3299
      %v3418 = vadd.f32 %v3028, %v3304
      %v3419 = vadd.f32 %v3029, %v3309
      %v3420 = vadd.f32 %v3030, %v3314
      %v3421 = vadd.f32 %v3031, %v3319
      %v3422 = vadd.f32 %v3032, %v3324
      %v3423 = vadd.f32 %v3033, %v3329
      %v3424 = vadd.f32 %v3034, %v3334
      %v3425 = vadd.f32 %v3035, %v3339
      %v3426 = vadd.f32 %v3036, %v3344
      %v3427 = vadd.f32 %v3037, %v3349
      %v3428 = vadd.f32 %v3038, %v3354
      %v3429 = vadd.f32 %v3039, %v3359
      %v3430 = vadd.f32 %v3040, %v3364
      %v3431 = vadd.f32 %v3041, %v3369
      %v3432 = vadd.f32 %v3042, %v3374
      %v3433 = vadd.f32 %v3043, %v3379
      %v3434 = vadd.f32 %v3044, %v3384
      %v3435 = vadd.f32 %v3045, %v3389
      %v3436 = vadd.f32 %v3046, %v3394
      %v3437 = vadd.f32 %v3047, %v3399
      %v3438 = vadd.f32 %v3048, %v3404
      %v3439 = vld [vmem:[%s2658 + $0x2] sm:$0xff]
      %v3440 = vld [vmem:[%s2658 + $0xa] sm:$0xff]
      %v3441 = vld [vmem:[%s2658 + $0x1a] sm:$0xff]
      %v3442 = vld [vmem:[%s2658 + $0x22] sm:$0xff]
      %v3443 = vld [vmem:[%s2658 + $0x32] sm:$0xff]
      %v3444 = vld [vmem:[%s2658 + $0x3a] sm:$0xff]
      %v3445 = vld [vmem:[%s2658 + $0x4a] sm:$0xff]
      %v3446 = vld [vmem:[%s2658 + $0x52] sm:$0xff]
      %v3447 = vld [vmem:[%s2658 + $0x62] sm:$0xff]
      %v3448 = vld [vmem:[%s2658 + $0x6a] sm:$0xff]
      %v3449 = vld [vmem:[%s2658 + $0x7a] sm:$0xff]
      %v3450 = vld [vmem:[%s2658 + $0x82] sm:$0xff]
      %v3451 = vld [vmem:[%s2658 + $0x92] sm:$0xff]
      %v3452 = vld [vmem:[%s2658 + $0x9a] sm:$0xff]
      %v3453 = vld [vmem:[%s2658 + $0xaa] sm:$0xff]
      %v3454 = vld [vmem:[%s2658 + $0xb2] sm:$0xff]
      %v3455 = vld [vmem:[%s2658 + $0xc2] sm:$0xff]
      %v3456 = vld [vmem:[%s2658 + $0xca] sm:$0xff]
      %v3457 = vld [vmem:[%s2658 + $0xda] sm:$0xff]
      %v3458 = vld [vmem:[%s2658 + $0xe2] sm:$0xff]
      %v3459 = vld [vmem:[%s2658 + $0xf2] sm:$0xff]
      %v3460 = vld [vmem:[%s2658 + $0xfa] sm:$0xff]
      %v3461 = vld [vmem:[%s2658 + $0x10a] sm:$0xff]
      %v3462 = vld [vmem:[%s2658 + $0x112] sm:$0xff]
      %v3463 = vld [vmem:[%s2658 + $0x122] sm:$0xff]
      %v3464 = vld [vmem:[%s2658 + $0x12a] sm:$0xff]
      %v3465 = vld [vmem:[%s2658 + $0x13a] sm:$0xff]
      %v3466 = vld [vmem:[%s2658 + $0x142] sm:$0xff]
      %v3467 = vld [vmem:[%s2658 + $0x152] sm:$0xff]
      %v3468 = vld [vmem:[%s2658 + $0x15a] sm:$0xff]
      %v3469 = vld [vmem:[%s2658 + $0x16a] sm:$0xff]
      %v3470 = vld [vmem:[%s2658 + $0x172] sm:$0xff]
      %s3471 = scalar_lea.vmem %s1, 32
      %v3472 = vld [vmem:[%s3471] sm:$0xf]
      %v3474 = vsel %vm225, %v3439, 0
      %v3477 = vsel %vm225, %v3440, 0
      %v3480 = vsel %vm225, %v3441, 0
      %v3483 = vsel %vm225, %v3442, 0
      %v3486 = vsel %vm225, %v3443, 0
      %v3489 = vsel %vm225, %v3444, 0
      %v3492 = vsel %vm225, %v3445, 0
      %v3495 = vsel %vm225, %v3446, 0
      %v3498 = vsel %vm225, %v3447, 0
      %v3501 = vsel %vm225, %v3448, 0
      %v3504 = vsel %vm225, %v3449, 0
      %v3507 = vsel %vm225, %v3450, 0
      %v3510 = vsel %vm225, %v3451, 0
      %v3513 = vsel %vm225, %v3452, 0
      %v3516 = vsel %vm225, %v3453, 0
      %v3519 = vsel %vm225, %v3454, 0
      %v3522 = vsel %vm225, %v3455, 0
      %v3525 = vsel %vm225, %v3456, 0
      %v3528 = vsel %vm225, %v3457, 0
      %v3531 = vsel %vm225, %v3458, 0
      %v3534 = vsel %vm225, %v3459, 0
      %v3537 = vsel %vm225, %v3460, 0
      %v3540 = vsel %vm225, %v3461, 0
      %v3543 = vsel %vm225, %v3462, 0
      %v3546 = vsel %vm225, %v3463, 0
      %v3549 = vsel %vm225, %v3464, 0
      %v3552 = vsel %vm225, %v3465, 0
      %v3555 = vsel %vm225, %v3466, 0
      %v3558 = vsel %vm225, %v3467, 0
      %v3561 = vsel %vm225, %v3468, 0
      %v3564 = vsel %vm225, %v3469, 0
      %v3567 = vsel %vm225, %v3470, 0
      %v3570 = vsel %vm545, %v3472, 0
      %3572 = vmatprep.subr.mxu0 0.0
      %3573 = vmatpush1.msra.mxu0 %v3570
      %3574 = vmatprep.subr.mxu0 0.0
      %3575 = vmatpush1.msra.mxu0 0.0
      %3576 = vmatprep.subr.mxu0 0.0
      %3577 = vmatpush1.msra.mxu0 0.0
      %3578 = vmatprep.subr.mxu0 0.0
      %3579 = vmatpush1.msra.mxu0 0.0
      %3580 = vmatprep.subr.mxu0 0.0
      %3581 = vmatpush1.msra.mxu0 0.0
      %3582 = vmatprep.subr.mxu0 0.0
      %3583 = vmatpush1.msra.mxu0 0.0
      %3584 = vmatprep.subr.mxu0 0.0
      %3585 = vmatpush1.msra.mxu0 0.0
      %3586 = vmatprep.subr.mxu0 0.0
      %3587 = vmatpush1.msra.mxu0 0.0
      %3588 = vmatprep.subr.mxu0 0.0
      %3589 = vmatpush1.msra.mxu0 0.0
      %3590 = vmatprep.subr.mxu0 0.0
      %3591 = vmatpush1.msra.mxu0 0.0
      %3592 = vmatprep.subr.mxu0 0.0
      %3593 = vmatpush1.msra.mxu0 0.0
      %3594 = vmatprep.subr.mxu0 0.0
      %3595 = vmatpush1.msra.mxu0 0.0
      %3596 = vmatprep.subr.mxu0 0.0
      %3597 = vmatpush1.msra.mxu0 0.0
      %3598 = vmatprep.subr.mxu0 0.0
      %3599 = vmatpush1.msra.mxu0 0.0
      %3600 = vmatprep.subr.mxu0 0.0
      %3601 = vmatpush1.msra.mxu0 0.0
      %3602 = vmatprep.subr.mxu0 0.0
      %3603 = vmatpush1.msra.mxu0 0.0
      %3604 = vmatprep.subr.mxu0 0.0
      %3605 = vmatpush1.msra.mxu0 0.0
      %3606 = vmatprep.subr.mxu0 0.0
      %3607 = vmatpush1.msra.mxu0 0.0
      %3608 = vmatprep.subr.mxu0 0.0
      %3609 = vmatpush1.msra.mxu0 0.0
      %3610 = vmatprep.subr.mxu0 0.0
      %3611 = vmatpush1.msra.mxu0 0.0
      %3612 = vmatprep.subr.mxu0 0.0
      %3613 = vmatpush1.msra.mxu0 0.0
      %3614 = vmatprep.subr.mxu0 0.0
      %3615 = vmatpush1.msra.mxu0 0.0
      %3616 = vmatprep.subr.mxu0 0.0
      %3617 = vmatpush1.msra.mxu0 0.0
      %3618 = vmatprep.subr.mxu0 0.0
      %3619 = vmatpush1.msra.mxu0 0.0
      %3620 = vmatprep.subr.mxu0 0.0
      %3621 = vmatpush1.msra.mxu0 0.0
      %3622 = vmatprep.subr.mxu0 0.0
      %3623 = vmatpush1.msra.mxu0 0.0
      %3624 = vmatprep.subr.mxu0 0.0
      %3625 = vmatpush1.msra.mxu0 0.0
      %3626 = vmatprep.subr.mxu0 0.0
      %3627 = vmatpush1.msra.mxu0 0.0
      %3628 = vmatprep.subr.mxu0 0.0
      %3629 = vmatpush1.msra.mxu0 0.0
      %3630 = vmatprep.subr.mxu0 0.0
      %3631 = vmatpush1.msra.mxu0 0.0
      %3632 = vmatprep.subr.mxu0 0.0
      %3633 = vmatpush1.msra.mxu0 0.0
      %3634 = vmatprep.subr.mxu0 0.0
      %3635 = vmatpush1.msra.mxu0 0.0
      %3636 = vmatprep.mubr.f32.mxu0 0.0
      %3637 = vmatmul.mubr.f32.gmra.mrb[0].mxu0 %v3474
      %v3638 = vpop.f32.mrb[0].mxu0
      %v3639 = vadd.f32 0.0, %v3638
      %v3640 = vpop.f32.mrb[0].mxu0
      %3641 = vmatprep.mubr.f32.mxu0 0.0
      %3642 = vmatmul.mubr.f32.gmra.mrb[0].mxu0 %v3477
      %v3643 = vpop.f32.mrb[0].mxu0
      %v3644 = vadd.f32 0.0, %v3643
      %v3645 = vpop.f32.mrb[0].mxu0
      %3646 = vmatprep.mubr.f32.mxu0 0.0
      %3647 = vmatmul.mubr.f32.gmra.mrb[0].mxu0 %v3480
      %v3648 = vpop.f32.mrb[0].mxu0
      %v3649 = vadd.f32 0.0, %v3648
      %v3650 = vpop.f32.mrb[0].mxu0
      %3651 = vmatprep.mubr.f32.mxu0 0.0
      %3652 = vmatmul.mubr.f32.gmra.mrb[0].mxu0 %v3483
      %v3653 = vpop.f32.mrb[0].mxu0
      %v3654 = vadd.f32 0.0, %v3653
      %v3655 = vpop.f32.mrb[0].mxu0
      %3656 = vmatprep.mubr.f32.mxu0 0.0
      %3657 = vmatmul.mubr.f32.gmra.mrb[0].mxu0 %v3486
      %v3658 = vpop.f32.mrb[0].mxu0
      %v3659 = vadd.f32 0.0, %v3658
      %v3660 = vpop.f32.mrb[0].mxu0
      %3661 = vmatprep.mubr.f32.mxu0 0.0
      %3662 = vmatmul.mubr.f32.gmra.mrb[0].mxu0 %v3489
      %v3663 = vpop.f32.mrb[0].mxu0
      %v3664 = vadd.f32 0.0, %v3663
      %v3665 = vpop.f32.mrb[0].mxu0
      %3666 = vmatprep.mubr.f32.mxu0 0.0
      %3667 = vmatmul.mubr.f32.gmra.mrb[0].mxu0 %v3492
      %v3668 = vpop.f32.mrb[0].mxu0
      %v3669 = vadd.f32 0.0, %v3668
      %v3670 = vpop.f32.mrb[0].mxu0
      %3671 = vmatprep.mubr.f32.mxu0 0.0
      %3672 = vmatmul.mubr.f32.gmra.mrb[0].mxu0 %v3495
      %v3673 = vpop.f32.mrb[0].mxu0
      %v3674 = vadd.f32 0.0, %v3673
      %v3675 = vpop.f32.mrb[0].mxu0
      %3676 = vmatprep.mubr.f32.mxu0 0.0
      %3677 = vmatmul.mubr.f32.gmra.mrb[0].mxu0 %v3498
      %v3678 = vpop.f32.mrb[0].mxu0
      %v3679 = vadd.f32 0.0, %v3678
      %v3680 = vpop.f32.mrb[0].mxu0
      %3681 = vmatprep.mubr.f32.mxu0 0.0
      %3682 = vmatmul.mubr.f32.gmra.mrb[0].mxu0 %v3501
      %v3683 = vpop.f32.mrb[0].mxu0
      %v3684 = vadd.f32 0.0, %v3683
      %v3685 = vpop.f32.mrb[0].mxu0
      %3686 = vmatprep.mubr.f32.mxu0 0.0
      %3687 = vmatmul.mubr.f32.gmra.mrb[0].mxu0 %v3504
      %v3688 = vpop.f32.mrb[0].mxu0
      %v3689 = vadd.f32 0.0, %v3688
      %v3690 = vpop.f32.mrb[0].mxu0
      %3691 = vmatprep.mubr.f32.mxu0 0.0
      %3692 = vmatmul.mubr.f32.gmra.mrb[0].mxu0 %v3507
      %v3693 = vpop.f32.mrb[0].mxu0
      %v3694 = vadd.f32 0.0, %v3693
      %v3695 = vpop.f32.mrb[0].mxu0
      %3696 = vmatprep.mubr.f32.mxu0 0.0
      %3697 = vmatmul.mubr.f32.gmra.mrb[0].mxu0 %v3510
      %v3698 = vpop.f32.mrb[0].mxu0
      %v3699 = vadd.f32 0.0, %v3698
      %v3700 = vpop.f32.mrb[0].mxu0
      %3701 = vmatprep.mubr.f32.mxu0 0.0
      %3702 = vmatmul.mubr.f32.gmra.mrb[0].mxu0 %v3513
      %v3703 = vpop.f32.mrb[0].mxu0
      %v3704 = vadd.f32 0.0, %v3703
      %v3705 = vpop.f32.mrb[0].mxu0
      %3706 = vmatprep.mubr.f32.mxu0 0.0
      %3707 = vmatmul.mubr.f32.gmra.mrb[0].mxu0 %v3516
      %v3708 = vpop.f32.mrb[0].mxu0
      %v3709 = vadd.f32 0.0, %v3708
      %v3710 = vpop.f32.mrb[0].mxu0
      %3711 = vmatprep.mubr.f32.mxu0 0.0
      %3712 = vmatmul.mubr.f32.gmra.mrb[0].mxu0 %v3519
      %v3713 = vpop.f32.mrb[0].mxu0
      %v3714 = vadd.f32 0.0, %v3713
      %v3715 = vpop.f32.mrb[0].mxu0
      %3716 = vmatprep.mubr.f32.mxu0 0.0
      %3717 = vmatmul.mubr.f32.gmra.mrb[0].mxu0 %v3522
      %v3718 = vpop.f32.mrb[0].mxu0
      %v3719 = vadd.f32 0.0, %v3718
      %v3720 = vpop.f32.mrb[0].mxu0
      %3721 = vmatprep.mubr.f32.mxu0 0.0
      %3722 = vmatmul.mubr.f32.gmra.mrb[0].mxu0 %v3525
      %v3723 = vpop.f32.mrb[0].mxu0
      %v3724 = vadd.f32 0.0, %v3723
      %v3725 = vpop.f32.mrb[0].mxu0
      %3726 = vmatprep.mubr.f32.mxu0 0.0
      %3727 = vmatmul.mubr.f32.gmra.mrb[0].mxu0 %v3528
      %v3728 = vpop.f32.mrb[0].mxu0
      %v3729 = vadd.f32 0.0, %v3728
      %v3730 = vpop.f32.mrb[0].mxu0
      %3731 = vmatprep.mubr.f32.mxu0 0.0
      %3732 = vmatmul.mubr.f32.gmra.mrb[0].mxu0 %v3531
      %v3733 = vpop.f32.mrb[0].mxu0
      %v3734 = vadd.f32 0.0, %v3733
      %v3735 = vpop.f32.mrb[0].mxu0
      %3736 = vmatprep.mubr.f32.mxu0 0.0
      %3737 = vmatmul.mubr.f32.gmra.mrb[0].mxu0 %v3534
      %v3738 = vpop.f32.mrb[0].mxu0
      %v3739 = vadd.f32 0.0, %v3738
      %v3740 = vpop.f32.mrb[0].mxu0
      %3741 = vmatprep.mubr.f32.mxu0 0.0
      %3742 = vmatmul.mubr.f32.gmra.mrb[0].mxu0 %v3537
      %v3743 = vpop.f32.mrb[0].mxu0
      %v3744 = vadd.f32 0.0, %v3743
      %v3745 = vpop.f32.mrb[0].mxu0
      %3746 = vmatprep.mubr.f32.mxu0 0.0
      %3747 = vmatmul.mubr.f32.gmra.mrb[0].mxu0 %v3540
      %v3748 = vpop.f32.mrb[0].mxu0
      %v3749 = vadd.f32 0.0, %v3748
      %v3750 = vpop.f32.mrb[0].mxu0
      %3751 = vmatprep.mubr.f32.mxu0 0.0
      %3752 = vmatmul.mubr.f32.gmra.mrb[0].mxu0 %v3543
      %v3753 = vpop.f32.mrb[0].mxu0
      %v3754 = vadd.f32 0.0, %v3753
      %v3755 = vpop.f32.mrb[0].mxu0
      %3756 = vmatprep.mubr.f32.mxu0 0.0
      %3757 = vmatmul.mubr.f32.gmra.mrb[0].mxu0 %v3546
      %v3758 = vpop.f32.mrb[0].mxu0
      %v3759 = vadd.f32 0.0, %v3758
      %v3760 = vpop.f32.mrb[0].mxu0
      %3761 = vmatprep.mubr.f32.mxu0 0.0
      %3762 = vmatmul.mubr.f32.gmra.mrb[0].mxu0 %v3549
      %v3763 = vpop.f32.mrb[0].mxu0
      %v3764 = vadd.f32 0.0, %v3763
      %v3765 = vpop.f32.mrb[0].mxu0
      %3766 = vmatprep.mubr.f32.mxu0 0.0
      %3767 = vmatmul.mubr.f32.gmra.mrb[0].mxu0 %v3552
      %v3768 = vpop.f32.mrb[0].mxu0
      %v3769 = vadd.f32 0.0, %v3768
      %v3770 = vpop.f32.mrb[0].mxu0
      %3771 = vmatprep.mubr.f32.mxu0 0.0
      %3772 = vmatmul.mubr.f32.gmra.mrb[0].mxu0 %v3555
      %v3773 = vpop.f32.mrb[0].mxu0
      %v3774 = vadd.f32 0.0, %v3773
      %v3775 = vpop.f32.mrb[0].mxu0
      %3776 = vmatprep.mubr.f32.mxu0 0.0
      %3777 = vmatmul.mubr.f32.gmra.mrb[0].mxu0 %v3558
      %v3778 = vpop.f32.mrb[0].mxu0
      %v3779 = vadd.f32 0.0, %v3778
      %v3780 = vpop.f32.mrb[0].mxu0
      %3781 = vmatprep.mubr.f32.mxu0 0.0
      %3782 = vmatmul.mubr.f32.gmra.mrb[0].mxu0 %v3561
      %v3783 = vpop.f32.mrb[0].mxu0
      %v3784 = vadd.f32 0.0, %v3783
      %v3785 = vpop.f32.mrb[0].mxu0
      %3786 = vmatprep.mubr.f32.mxu0 0.0
      %3787 = vmatmul.mubr.f32.gmra.mrb[0].mxu0 %v3564
      %v3788 = vpop.f32.mrb[0].mxu0
      %v3789 = vadd.f32 0.0, %v3788
      %v3790 = vpop.f32.mrb[0].mxu0
      %3791 = vmatprep.mubr.f32.mxu0 0.0
      %3792 = vmatmul.mubr.f32.gmra.mrb[0].mxu0 %v3567
      %v3793 = vpop.f32.mrb[0].mxu0
      %v3794 = vadd.f32 0.0, %v3793
      %v3795 = vpop.f32.mrb[0].mxu0
      %3796 = vdwg.mxu0
      %v3797 = vadd.f32 %v3407, %v3639
      %v3798 = vadd.f32 %v3408, %v3644
      %v3799 = vadd.f32 %v3409, %v3649
      %v3800 = vadd.f32 %v3410, %v3654
      %v3801 = vadd.f32 %v3411, %v3659
      %v3802 = vadd.f32 %v3412, %v3664
      %v3803 = vadd.f32 %v3413, %v3669
      %v3804 = vadd.f32 %v3414, %v3674
      %v3805 = vadd.f32 %v3415, %v3679
      %v3806 = vadd.f32 %v3416, %v3684
      %v3807 = vadd.f32 %v3417, %v3689
      %v3808 = vadd.f32 %v3418, %v3694
      %v3809 = vadd.f32 %v3419, %v3699
      %v3810 = vadd.f32 %v3420, %v3704
      %v3811 = vadd.f32 %v3421, %v3709
      %v3812 = vadd.f32 %v3422, %v3714
      %v3813 = vadd.f32 %v3423, %v3719
      %v3814 = vadd.f32 %v3424, %v3724
      %v3815 = vadd.f32 %v3425, %v3729
      %v3816 = vadd.f32 %v3426, %v3734
      %v3817 = vadd.f32 %v3427, %v3739
      %v3818 = vadd.f32 %v3428, %v3744
      %v3819 = vadd.f32 %v3429, %v3749
      %v3820 = vadd.f32 %v3430, %v3754
      %v3821 = vadd.f32 %v3431, %v3759
      %v3822 = vadd.f32 %v3432, %v3764
      %v3823 = vadd.f32 %v3433, %v3769
      %v3824 = vadd.f32 %v3434, %v3774
      %v3825 = vadd.f32 %v3435, %v3779
      %v3826 = vadd.f32 %v3436, %v3784
      %v3827 = vadd.f32 %v3437, %v3789
      %v3828 = vadd.f32 %v3438, %v3794
      %v3829 = vld [vmem:[%s2] sm:$0x1]
      %v3831 = vlaneseq
      %v3832 = vshrl.u32 %v3831, 7
      %v3833 = vsub.s32 0, %v3832
      %v3834 = vrot.slane %v3829, %v3833
      %v3836 = vadd.f32 %v3797, %v3834
      %v3837 = vadd.f32 %v3798, %v3834
      %v3838 = vadd.f32 %v3799, %v3834
      %v3839 = vadd.f32 %v3800, %v3834
      %v3840 = vadd.f32 %v3801, %v3834
      %v3841 = vadd.f32 %v3802, %v3834
      %v3842 = vadd.f32 %v3803, %v3834
      %v3843 = vadd.f32 %v3804, %v3834
      %v3844 = vadd.f32 %v3805, %v3834
      %v3845 = vadd.f32 %v3806, %v3834
      %v3846 = vadd.f32 %v3807, %v3834
      %v3847 = vadd.f32 %v3808, %v3834
      %v3848 = vadd.f32 %v3809, %v3834
      %v3849 = vadd.f32 %v3810, %v3834
      %v3850 = vadd.f32 %v3811, %v3834
      %v3851 = vadd.f32 %v3812, %v3834
      %v3852 = vadd.f32 %v3813, %v3834
      %v3853 = vadd.f32 %v3814, %v3834
      %v3854 = vadd.f32 %v3815, %v3834
      %v3855 = vadd.f32 %v3816, %v3834
      %v3856 = vadd.f32 %v3817, %v3834
      %v3857 = vadd.f32 %v3818, %v3834
      %v3858 = vadd.f32 %v3819, %v3834
      %v3859 = vadd.f32 %v3820, %v3834
      %v3860 = vadd.f32 %v3821, %v3834
      %v3861 = vadd.f32 %v3822, %v3834
      %v3862 = vadd.f32 %v3823, %v3834
      %v3863 = vadd.f32 %v3824, %v3834
      %v3864 = vadd.f32 %v3825, %v3834
      %v3865 = vadd.f32 %v3826, %v3834
      %v3866 = vadd.f32 %v3827, %v3834
      %v3867 = vadd.f32 %v3828, %v3834
      %v3868 = vmax.f32 %v3836, 0.0
      %v3869 = vmax.f32 %v3837, 0.0
      %v3870 = vmax.f32 %v3838, 0.0
      %v3871 = vmax.f32 %v3839, 0.0
      %v3872 = vmax.f32 %v3840, 0.0
      %v3873 = vmax.f32 %v3841, 0.0
      %v3874 = vmax.f32 %v3842, 0.0
      %v3875 = vmax.f32 %v3843, 0.0
      %v3876 = vmax.f32 %v3844, 0.0
      %v3877 = vmax.f32 %v3845, 0.0
      %v3878 = vmax.f32 %v3846, 0.0
      %v3879 = vmax.f32 %v3847, 0.0
      %v3880 = vmax.f32 %v3848, 0.0
      %v3881 = vmax.f32 %v3849, 0.0
      %v3882 = vmax.f32 %v3850, 0.0
      %v3883 = vmax.f32 %v3851, 0.0
      %v3884 = vmax.f32 %v3852, 0.0
      %v3885 = vmax.f32 %v3853, 0.0
      %v3886 = vmax.f32 %v3854, 0.0
      %v3887 = vmax.f32 %v3855, 0.0
      %v3888 = vmax.f32 %v3856, 0.0
      %v3889 = vmax.f32 %v3857, 0.0
      %v3890 = vmax.f32 %v3858, 0.0
      %v3891 = vmax.f32 %v3859, 0.0
      %v3892 = vmax.f32 %v3860, 0.0
      %v3893 = vmax.f32 %v3861, 0.0
      %v3894 = vmax.f32 %v3862, 0.0
      %v3895 = vmax.f32 %v3863, 0.0
      %v3896 = vmax.f32 %v3864, 0.0
      %v3897 = vmax.f32 %v3865, 0.0
      %v3898 = vmax.f32 %v3866, 0.0
      %v3899 = vmax.f32 %v3867, 0.0
      %s3900 = scalar_lea.vmem [#allocation3], 24
      %3901 = vst.msk [vmem:[%s3900 + $0x1] sm:$0xff] %vm271, %v3868
      %3902 = vst.msk [vmem:[%s3900 + $0x9] sm:$0xff] %vm271, %v3869
      %3903 = vst.msk [vmem:[%s3900 + $0x19] sm:$0xff] %vm271, %v3870
      %3904 = vst.msk [vmem:[%s3900 + $0x21] sm:$0xff] %vm271, %v3871
      %3905 = vst.msk [vmem:[%s3900 + $0x31] sm:$0xff] %vm271, %v3872
      %3906 = vst.msk [vmem:[%s3900 + $0x39] sm:$0xff] %vm271, %v3873
      %3907 = vst.msk [vmem:[%s3900 + $0x49] sm:$0xff] %vm271, %v3874
      %3908 = vst.msk [vmem:[%s3900 + $0x51] sm:$0xff] %vm271, %v3875
      %3909 = vst.msk [vmem:[%s3900 + $0x61] sm:$0xff] %vm271, %v3876
      %3910 = vst.msk [vmem:[%s3900 + $0x69] sm:$0xff] %vm271, %v3877
      %3911 = vst.msk [vmem:[%s3900 + $0x79] sm:$0xff] %vm271, %v3878
      %3912 = vst.msk [vmem:[%s3900 + $0x81] sm:$0xff] %vm271, %v3879
      %3913 = vst.msk [vmem:[%s3900 + $0x91] sm:$0xff] %vm271, %v3880
      %3914 = vst.msk [vmem:[%s3900 + $0x99] sm:$0xff] %vm271, %v3881
      %3915 = vst.msk [vmem:[%s3900 + $0xa9] sm:$0xff] %vm271, %v3882
      %3916 = vst.msk [vmem:[%s3900 + $0xb1] sm:$0xff] %vm271, %v3883
      %3917 = vst.msk [vmem:[%s3900 + $0xc1] sm:$0xff] %vm271, %v3884
      %3918 = vst.msk [vmem:[%s3900 + $0xc9] sm:$0xff] %vm271, %v3885
      %3919 = vst.msk [vmem:[%s3900 + $0xd9] sm:$0xff] %vm271, %v3886
      %3920 = vst.msk [vmem:[%s3900 + $0xe1] sm:$0xff] %vm271, %v3887
      %3921 = vst.msk [vmem:[%s3900 + $0xf1] sm:$0xff] %vm271, %v3888
      %3922 = vst.msk [vmem:[%s3900 + $0xf9] sm:$0xff] %vm271, %v3889
      %3923 = vst.msk [vmem:[%s3900 + $0x109] sm:$0xff] %vm271, %v3890
      %3924 = vst.msk [vmem:[%s3900 + $0x111] sm:$0xff] %vm271, %v3891
      %3925 = vst.msk [vmem:[%s3900 + $0x121] sm:$0xff] %vm271, %v3892
      %3926 = vst.msk [vmem:[%s3900 + $0x129] sm:$0xff] %vm271, %v3893
      %3927 = vst.msk [vmem:[%s3900 + $0x139] sm:$0xff] %vm271, %v3894
      %3928 = vst.msk [vmem:[%s3900 + $0x141] sm:$0xff] %vm271, %v3895
      %3929 = vst.msk [vmem:[%s3900 + $0x151] sm:$0xff] %vm271, %v3896
      %3930 = vst.msk [vmem:[%s3900 + $0x159] sm:$0xff] %vm271, %v3897
      %3931 = vst.msk [vmem:[%s3900 + $0x169] sm:$0xff] %vm271, %v3898
      %3932 = vst.msk [vmem:[%s3900 + $0x171] sm:$0xff] %vm271, %v3899
      %v3933 = vld [vmem:[#allocation3] sm:$0xff]
      %v3934 = vld [vmem:[#allocation3 + $0x8] sm:$0xff]
      %v3935 = vld [vmem:[#allocation3 + $0x18] sm:$0xff]
      %v3936 = vld [vmem:[#allocation3 + $0x20] sm:$0xff]
      %v3937 = vld [vmem:[#allocation3 + $0x30] sm:$0xff]
      %v3938 = vld [vmem:[#allocation3 + $0x38] sm:$0xff]
      %v3939 = vld [vmem:[#allocation3 + $0x48] sm:$0xff]
      %v3940 = vld [vmem:[#allocation3 + $0x50] sm:$0xff]
      %v3941 = vld [vmem:[#allocation3 + $0x60] sm:$0xff]
      %v3942 = vld [vmem:[#allocation3 + $0x68] sm:$0xff]
      %v3943 = vld [vmem:[#allocation3 + $0x78] sm:$0xff]
      %v3944 = vld [vmem:[#allocation3 + $0x80] sm:$0xff]
      %v3945 = vld [vmem:[#allocation3 + $0x90] sm:$0xff]
      %v3946 = vld [vmem:[#allocation3 + $0x98] sm:$0xff]
      %v3947 = vld [vmem:[#allocation3 + $0xa8] sm:$0xff]
      %v3948 = vld [vmem:[#allocation3 + $0xb0] sm:$0xff]
      %v3949 = vld [vmem:[#allocation3 + $0xc0] sm:$0xff]
      %v3950 = vld [vmem:[#allocation3 + $0xc8] sm:$0xff]
      %v3951 = vld [vmem:[#allocation3 + $0xd8] sm:$0xff]
      %v3952 = vld [vmem:[#allocation3 + $0xe0] sm:$0xff]
      %v3953 = vld [vmem:[#allocation3 + $0xf0] sm:$0xff]
      %v3954 = vld [vmem:[#allocation3 + $0xf8] sm:$0xff]
      %v3955 = vld [vmem:[#allocation3 + $0x108] sm:$0xff]
      %v3956 = vld [vmem:[#allocation3 + $0x110] sm:$0xff]
      %v3957 = vld [vmem:[#allocation3 + $0x120] sm:$0xff]
      %v3958 = vld [vmem:[#allocation3 + $0x128] sm:$0xff]
      %v3959 = vld [vmem:[#allocation3 + $0x138] sm:$0xff]
      %v3960 = vld [vmem:[#allocation3 + $0x140] sm:$0xff]
      %v3961 = vld [vmem:[#allocation3 + $0x150] sm:$0xff]
      %v3962 = vld [vmem:[#allocation3 + $0x158] sm:$0xff]
      %v3963 = vld [vmem:[#allocation3 + $0x168] sm:$0xff]
      %v3964 = vld [vmem:[#allocation3 + $0x170] sm:$0xff]
      %v3965 = vld [vmem:[%s3] sm:$0xff]
      %v3966 = vld [vmem:[#allocation3 + $0x1] sm:$0xff]
      %v3967 = vld [vmem:[#allocation3 + $0x9] sm:$0xff]
      %v3968 = vld [vmem:[#allocation3 + $0x19] sm:$0xff]
      %v3969 = vld [vmem:[#allocation3 + $0x21] sm:$0xff]
      %v3970 = vld [vmem:[#allocation3 + $0x31] sm:$0xff]
      %v3971 = vld [vmem:[#allocation3 + $0x39] sm:$0xff]
      %v3972 = vld [vmem:[#allocation3 + $0x49] sm:$0xff]
      %v3973 = vld [vmem:[#allocation3 + $0x51] sm:$0xff]
      %v3974 = vld [vmem:[#allocation3 + $0x61] sm:$0xff]
      %v3975 = vld [vmem:[#allocation3 + $0x69] sm:$0xff]
      %v3976 = vld [vmem:[#allocation3 + $0x79] sm:$0xff]
      %v3977 = vld [vmem:[#allocation3 + $0x81] sm:$0xff]
      %v3978 = vld [vmem:[#allocation3 + $0x91] sm:$0xff]
      %v3979 = vld [vmem:[#allocation3 + $0x99] sm:$0xff]
      %v3980 = vld [vmem:[#allocation3 + $0xa9] sm:$0xff]
      %v3981 = vld [vmem:[#allocation3 + $0xb1] sm:$0xff]
      %v3982 = vld [vmem:[#allocation3 + $0xc1] sm:$0xff]
      %v3983 = vld [vmem:[#allocation3 + $0xc9] sm:$0xff]
      %v3984 = vld [vmem:[#allocation3 + $0xd9] sm:$0xff]
      %v3985 = vld [vmem:[#allocation3 + $0xe1] sm:$0xff]
      %v3986 = vld [vmem:[#allocation3 + $0xf1] sm:$0xff]
      %v3987 = vld [vmem:[#allocation3 + $0xf9] sm:$0xff]
      %v3988 = vld [vmem:[#allocation3 + $0x109] sm:$0xff]
      %v3989 = vld [vmem:[#allocation3 + $0x111] sm:$0xff]
      %v3990 = vld [vmem:[#allocation3 + $0x121] sm:$0xff]
      %v3991 = vld [vmem:[#allocation3 + $0x129] sm:$0xff]
      %v3992 = vld [vmem:[#allocation3 + $0x139] sm:$0xff]
      %v3993 = vld [vmem:[#allocation3 + $0x141] sm:$0xff]
      %v3994 = vld [vmem:[#allocation3 + $0x151] sm:$0xff]
      %v3995 = vld [vmem:[#allocation3 + $0x159] sm:$0xff]
      %v3996 = vld [vmem:[#allocation3 + $0x169] sm:$0xff]
      %v3997 = vld [vmem:[#allocation3 + $0x171] sm:$0xff]
      %s3998 = scalar_lea.vmem %s3, 8
      %v3999 = vld [vmem:[%s3998] sm:$0xff]
      %v4001 = vsel %vm271, %v3966, 0
      %v4004 = vsel %vm271, %v3967, 0
      %v4007 = vsel %vm271, %v3968, 0
      %v4010 = vsel %vm271, %v3969, 0
      %v4013 = vsel %vm271, %v3970, 0
      %v4016 = vsel %vm271, %v3971, 0
      %v4019 = vsel %vm271, %v3972, 0
      %v4022 = vsel %vm271, %v3973, 0
      %v4025 = vsel %vm271, %v3974, 0
      %v4028 = vsel %vm271, %v3975, 0
      %v4031 = vsel %vm271, %v3976, 0
      %v4034 = vsel %vm271, %v3977, 0
      %v4037 = vsel %vm271, %v3978, 0
      %v4040 = vsel %vm271, %v3979, 0
      %v4043 = vsel %vm271, %v3980, 0
      %v4046 = vsel %vm271, %v3981, 0
      %v4049 = vsel %vm271, %v3982, 0
      %v4052 = vsel %vm271, %v3983, 0
      %v4055 = vsel %vm271, %v3984, 0
      %v4058 = vsel %vm271, %v3985, 0
      %v4061 = vsel %vm271, %v3986, 0
      %v4064 = vsel %vm271, %v3987, 0
      %v4067 = vsel %vm271, %v3988, 0
      %v4070 = vsel %vm271, %v3989, 0
      %v4073 = vsel %vm271, %v3990, 0
      %v4076 = vsel %vm271, %v3991, 0
      %v4079 = vsel %vm271, %v3992, 0
      %v4082 = vsel %vm271, %v3993, 0
      %v4085 = vsel %vm271, %v3994, 0
      %v4088 = vsel %vm271, %v3995, 0
      %v4091 = vsel %vm271, %v3996, 0
      %v4094 = vsel %vm271, %v3997, 0
      %4096 = vmatprep.subr.mxu0 0.0
      %4097 = vmatpush1.msra.mxu0 %v3999
      %4098 = vmatprep.subr.mxu0 0.0
      %4099 = vmatpush1.msra.mxu0 0.0
      %4100 = vmatprep.subr.mxu0 0.0
      %4101 = vmatpush1.msra.mxu0 0.0
      %4102 = vmatprep.subr.mxu0 0.0
      %4103 = vmatpush1.msra.mxu0 0.0
      %4104 = vmatprep.subr.mxu0 0.0
      %4105 = vmatpush1.msra.mxu0 0.0
      %4106 = vmatprep.subr.mxu0 0.0
      %4107 = vmatpush1.msra.mxu0 0.0
      %4108 = vmatprep.subr.mxu0 0.0
      %4109 = vmatpush1.msra.mxu0 0.0
      %4110 = vmatprep.subr.mxu0 0.0
      %4111 = vmatpush1.msra.mxu0 0.0
      %4112 = vmatprep.subr.mxu0 0.0
      %4113 = vmatpush1.msra.mxu0 0.0
      %4114 = vmatprep.subr.mxu0 0.0
      %4115 = vmatpush1.msra.mxu0 0.0
      %4116 = vmatprep.subr.mxu0 0.0
      %4117 = vmatpush1.msra.mxu0 0.0
      %4118 = vmatprep.subr.mxu0 0.0
      %4119 = vmatpush1.msra.mxu0 0.0
      %4120 = vmatprep.subr.mxu0 0.0
      %4121 = vmatpush1.msra.mxu0 0.0
      %4122 = vmatprep.subr.mxu0 0.0
      %4123 = vmatpush1.msra.mxu0 0.0
      %4124 = vmatprep.subr.mxu0 0.0
      %4125 = vmatpush1.msra.mxu0 0.0
      %4126 = vmatprep.subr.mxu0 0.0
      %4127 = vmatpush1.msra.mxu0 0.0
      %4128 = vmatprep.subr.mxu0 0.0
      %4129 = vmatpush1.msra.mxu0 0.0
      %4130 = vmatprep.subr.mxu0 0.0
      %4131 = vmatpush1.msra.mxu0 0.0
      %4132 = vmatprep.subr.mxu0 0.0
      %4133 = vmatpush1.msra.mxu0 0.0
      %4134 = vmatprep.subr.mxu0 0.0
      %4135 = vmatpush1.msra.mxu0 0.0
      %4136 = vmatprep.subr.mxu0 0.0
      %4137 = vmatpush1.msra.mxu0 0.0
      %4138 = vmatprep.subr.mxu0 0.0
      %4139 = vmatpush1.msra.mxu0 0.0
      %4140 = vmatprep.subr.mxu0 0.0
      %4141 = vmatpush1.msra.mxu0 0.0
      %4142 = vmatprep.subr.mxu0 0.0
      %4143 = vmatpush1.msra.mxu0 0.0
      %4144 = vmatprep.subr.mxu0 0.0
      %4145 = vmatpush1.msra.mxu0 0.0
      %4146 = vmatprep.subr.mxu0 0.0
      %4147 = vmatpush1.msra.mxu0 0.0
      %4148 = vmatprep.subr.mxu0 0.0
      %4149 = vmatpush1.msra.mxu0 0.0
      %4150 = vmatprep.subr.mxu0 0.0
      %4151 = vmatpush1.msra.mxu0 0.0
      %4152 = vmatprep.subr.mxu0 0.0
      %4153 = vmatpush1.msra.mxu0 0.0
      %4154 = vmatprep.subr.mxu0 0.0
      %4155 = vmatpush1.msra.mxu0 0.0
      %4156 = vmatprep.subr.mxu0 0.0
      %4157 = vmatpush1.msra.mxu0 0.0
      %4158 = vmatprep.subr.mxu0 0.0
      %4159 = vmatpush1.msra.mxu0 0.0
      %4160 = vmatprep.mubr.f32.mxu0 0.0
      %4161 = vmatmul.mubr.f32.gmra.mrb[0].mxu0 %v4001
      %v4162 = vpop.f32.mrb[0].mxu0
      %v4163 = vadd.f32 0.0, %v4162
      %v4164 = vpop.f32.mrb[0].mxu0
      %4165 = vmatprep.mubr.f32.mxu0 0.0
      %4166 = vmatmul.mubr.f32.gmra.mrb[0].mxu0 %v4004
      %v4167 = vpop.f32.mrb[0].mxu0
      %v4168 = vadd.f32 0.0, %v4167
      %v4169 = vpop.f32.mrb[0].mxu0
      %4170 = vmatprep.mubr.f32.mxu0 0.0
      %4171 = vmatmul.mubr.f32.gmra.mrb[0].mxu0 %v4007
      %v4172 = vpop.f32.mrb[0].mxu0
      %v4173 = vadd.f32 0.0, %v4172
      %v4174 = vpop.f32.mrb[0].mxu0
      %4175 = vmatprep.mubr.f32.mxu0 0.0
      %4176 = vmatmul.mubr.f32.gmra.mrb[0].mxu0 %v4010
      %v4177 = vpop.f32.mrb[0].mxu0
      %v4178 = vadd.f32 0.0, %v4177
      %v4179 = vpop.f32.mrb[0].mxu0
      %4180 = vmatprep.mubr.f32.mxu0 0.0
      %4181 = vmatmul.mubr.f32.gmra.mrb[0].mxu0 %v4013
      %v4182 = vpop.f32.mrb[0].mxu0
      %v4183 = vadd.f32 0.0, %v4182
      %v4184 = vpop.f32.mrb[0].mxu0
      %4185 = vmatprep.mubr.f32.mxu0 0.0
      %4186 = vmatmul.mubr.f32.gmra.mrb[0].mxu0 %v4016
      %v4187 = vpop.f32.mrb[0].mxu0
      %v4188 = vadd.f32 0.0, %v4187
      %v4189 = vpop.f32.mrb[0].mxu0
      %4190 = vmatprep.mubr.f32.mxu0 0.0
      %4191 = vmatmul.mubr.f32.gmra.mrb[0].mxu0 %v4019
      %v4192 = vpop.f32.mrb[0].mxu0
      %v4193 = vadd.f32 0.0, %v4192
      %v4194 = vpop.f32.mrb[0].mxu0
      %4195 = vmatprep.mubr.f32.mxu0 0.0
      %4196 = vmatmul.mubr.f32.gmra.mrb[0].mxu0 %v4022
      %v4197 = vpop.f32.mrb[0].mxu0
      %v4198 = vadd.f32 0.0, %v4197
      %v4199 = vpop.f32.mrb[0].mxu0
      %4200 = vmatprep.mubr.f32.mxu0 0.0
      %4201 = vmatmul.mubr.f32.gmra.mrb[0].mxu0 %v4025
      %v4202 = vpop.f32.mrb[0].mxu0
      %v4203 = vadd.f32 0.0, %v4202
      %v4204 = vpop.f32.mrb[0].mxu0
      %4205 = vmatprep.mubr.f32.mxu0 0.0
      %4206 = vmatmul.mubr.f32.gmra.mrb[0].mxu0 %v4028
      %v4207 = vpop.f32.mrb[0].mxu0
      %v4208 = vadd.f32 0.0, %v4207
      %v4209 = vpop.f32.mrb[0].mxu0
      %4210 = vmatprep.mubr.f32.mxu0 0.0
      %4211 = vmatmul.mubr.f32.gmra.mrb[0].mxu0 %v4031
      %v4212 = vpop.f32.mrb[0].mxu0
      %v4213 = vadd.f32 0.0, %v4212
      %v4214 = vpop.f32.mrb[0].mxu0
      %4215 = vmatprep.mubr.f32.mxu0 0.0
      %4216 = vmatmul.mubr.f32.gmra.mrb[0].mxu0 %v4034
      %v4217 = vpop.f32.mrb[0].mxu0
      %v4218 = vadd.f32 0.0, %v4217
      %v4219 = vpop.f32.mrb[0].mxu0
      %4220 = vmatprep.mubr.f32.mxu0 0.0
      %4221 = vmatmul.mubr.f32.gmra.mrb[0].mxu0 %v4037
      %v4222 = vpop.f32.mrb[0].mxu0
      %v4223 = vadd.f32 0.0, %v4222
      %v4224 = vpop.f32.mrb[0].mxu0
      %4225 = vmatprep.mubr.f32.mxu0 0.0
      %4226 = vmatmul.mubr.f32.gmra.mrb[0].mxu0 %v4040
      %v4227 = vpop.f32.mrb[0].mxu0
      %v4228 = vadd.f32 0.0, %v4227
      %v4229 = vpop.f32.mrb[0].mxu0
      %4230 = vmatprep.mubr.f32.mxu0 0.0
      %4231 = vmatmul.mubr.f32.gmra.mrb[0].mxu0 %v4043
      %v4232 = vpop.f32.mrb[0].mxu0
      %v4233 = vadd.f32 0.0, %v4232
      %v4234 = vpop.f32.mrb[0].mxu0
      %4235 = vmatprep.mubr.f32.mxu0 0.0
      %4236 = vmatmul.mubr.f32.gmra.mrb[0].mxu0 %v4046
      %v4237 = vpop.f32.mrb[0].mxu0
      %v4238 = vadd.f32 0.0, %v4237
      %v4239 = vpop.f32.mrb[0].mxu0
      %4240 = vmatprep.mubr.f32.mxu0 0.0
      %4241 = vmatmul.mubr.f32.gmra.mrb[0].mxu0 %v4049
      %v4242 = vpop.f32.mrb[0].mxu0
      %v4243 = vadd.f32 0.0, %v4242
      %v4244 = vpop.f32.mrb[0].mxu0
      %4245 = vmatprep.mubr.f32.mxu0 0.0
      %4246 = vmatmul.mubr.f32.gmra.mrb[0].mxu0 %v4052
      %v4247 = vpop.f32.mrb[0].mxu0
      %v4248 = vadd.f32 0.0, %v4247
      %v4249 = vpop.f32.mrb[0].mxu0
      %4250 = vmatprep.mubr.f32.mxu0 0.0
      %4251 = vmatmul.mubr.f32.gmra.mrb[0].mxu0 %v4055
      %v4252 = vpop.f32.mrb[0].mxu0
      %v4253 = vadd.f32 0.0, %v4252
      %v4254 = vpop.f32.mrb[0].mxu0
      %4255 = vmatprep.mubr.f32.mxu0 0.0
      %4256 = vmatmul.mubr.f32.gmra.mrb[0].mxu0 %v4058
      %v4257 = vpop.f32.mrb[0].mxu0
      %v4258 = vadd.f32 0.0, %v4257
      %v4259 = vpop.f32.mrb[0].mxu0
      %4260 = vmatprep.mubr.f32.mxu0 0.0
      %4261 = vmatmul.mubr.f32.gmra.mrb[0].mxu0 %v4061
      %v4262 = vpop.f32.mrb[0].mxu0
      %v4263 = vadd.f32 0.0, %v4262
      %v4264 = vpop.f32.mrb[0].mxu0
      %4265 = vmatprep.mubr.f32.mxu0 0.0
      %4266 = vmatmul.mubr.f32.gmra.mrb[0].mxu0 %v4064
      %v4267 = vpop.f32.mrb[0].mxu0
      %v4268 = vadd.f32 0.0, %v4267
      %v4269 = vpop.f32.mrb[0].mxu0
      %4270 = vmatprep.mubr.f32.mxu0 0.0
      %4271 = vmatmul.mubr.f32.gmra.mrb[0].mxu0 %v4067
      %v4272 = vpop.f32.mrb[0].mxu0
      %v4273 = vadd.f32 0.0, %v4272
      %v4274 = vpop.f32.mrb[0].mxu0
      %4275 = vmatprep.mubr.f32.mxu0 0.0
      %4276 = vmatmul.mubr.f32.gmra.mrb[0].mxu0 %v4070
      %v4277 = vpop.f32.mrb[0].mxu0
      %v4278 = vadd.f32 0.0, %v4277
      %v4279 = vpop.f32.mrb[0].mxu0
      %4280 = vmatprep.mubr.f32.mxu0 0.0
      %4281 = vmatmul.mubr.f32.gmra.mrb[0].mxu0 %v4073
      %v4282 = vpop.f32.mrb[0].mxu0
      %v4283 = vadd.f32 0.0, %v4282
      %v4284 = vpop.f32.mrb[0].mxu0
      %4285 = vmatprep.mubr.f32.mxu0 0.0
      %4286 = vmatmul.mubr.f32.gmra.mrb[0].mxu0 %v4076
      %v4287 = vpop.f32.mrb[0].mxu0
      %v4288 = vadd.f32 0.0, %v4287
      %v4289 = vpop.f32.mrb[0].mxu0
      %4290 = vmatprep.mubr.f32.mxu0 0.0
      %4291 = vmatmul.mubr.f32.gmra.mrb[0].mxu0 %v4079
      %v4292 = vpop.f32.mrb[0].mxu0
      %v4293 = vadd.f32 0.0, %v4292
      %v4294 = vpop.f32.mrb[0].mxu0
      %4295 = vmatprep.mubr.f32.mxu0 0.0
      %4296 = vmatmul.mubr.f32.gmra.mrb[0].mxu0 %v4082
      %v4297 = vpop.f32.mrb[0].mxu0
      %v4298 = vadd.f32 0.0, %v4297
      %v4299 = vpop.f32.mrb[0].mxu0
      %4300 = vmatprep.mubr.f32.mxu0 0.0
      %4301 = vmatmul.mubr.f32.gmra.mrb[0].mxu0 %v4085
      %v4302 = vpop.f32.mrb[0].mxu0
      %v4303 = vadd.f32 0.0, %v4302
      %v4304 = vpop.f32.mrb[0].mxu0
      %4305 = vmatprep.mubr.f32.mxu0 0.0
      %4306 = vmatmul.mubr.f32.gmra.mrb[0].mxu0 %v4088
      %v4307 = vpop.f32.mrb[0].mxu0
      %v4308 = vadd.f32 0.0, %v4307
      %v4309 = vpop.f32.mrb[0].mxu0
      %4310 = vmatprep.mubr.f32.mxu0 0.0
      %4311 = vmatmul.mubr.f32.gmra.mrb[0].mxu0 %v4091
      %v4312 = vpop.f32.mrb[0].mxu0
      %v4313 = vadd.f32 0.0, %v4312
      %v4314 = vpop.f32.mrb[0].mxu0
      %4315 = vmatprep.mubr.f32.mxu0 0.0
      %4316 = vmatmul.mubr.f32.gmra.mrb[0].mxu0 %v4094
      %v4317 = vpop.f32.mrb[0].mxu0
      %v4318 = vadd.f32 0.0, %v4317
      %v4319 = vpop.f32.mrb[0].mxu0
      %4320 = vdwg.mxu0
      %v4322 = vsel %vm271, %v3933, 0
      %v4325 = vsel %vm271, %v3934, 0
      %v4328 = vsel %vm271, %v3935, 0
      %v4331 = vsel %vm271, %v3936, 0
      %v4334 = vsel %vm271, %v3937, 0
      %v4337 = vsel %vm271, %v3938, 0
      %v4340 = vsel %vm271, %v3939, 0
      %v4343 = vsel %vm271, %v3940, 0
      %v4346 = vsel %vm271, %v3941, 0
      %v4349 = vsel %vm271, %v3942, 0
      %v4352 = vsel %vm271, %v3943, 0
      %v4355 = vsel %vm271, %v3944, 0
      %v4358 = vsel %vm271, %v3945, 0
      %v4361 = vsel %vm271, %v3946, 0
      %v4364 = vsel %vm271, %v3947, 0
      %v4367 = vsel %vm271, %v3948, 0
      %v4370 = vsel %vm271, %v3949, 0
      %v4373 = vsel %vm271, %v3950, 0
      %v4376 = vsel %vm271, %v3951, 0
      %v4379 = vsel %vm271, %v3952, 0
      %v4382 = vsel %vm271, %v3953, 0
      %v4385 = vsel %vm271, %v3954, 0
      %v4388 = vsel %vm271, %v3955, 0
      %v4391 = vsel %vm271, %v3956, 0
      %v4394 = vsel %vm271, %v3957, 0
      %v4397 = vsel %vm271, %v3958, 0
      %v4400 = vsel %vm271, %v3959, 0
      %v4403 = vsel %vm271, %v3960, 0
      %v4406 = vsel %vm271, %v3961, 0
      %v4409 = vsel %vm271, %v3962, 0
      %v4412 = vsel %vm271, %v3963, 0
      %v4415 = vsel %vm271, %v3964, 0
      %4417 = vmatprep.subr.mxu0 0.0
      %4418 = vmatpush1.msra.mxu0 %v3965
      %4419 = vmatprep.subr.mxu0 0.0
      %4420 = vmatpush1.msra.mxu0 0.0
      %4421 = vmatprep.subr.mxu0 0.0
      %4422 = vmatpush1.msra.mxu0 0.0
      %4423 = vmatprep.subr.mxu0 0.0
      %4424 = vmatpush1.msra.mxu0 0.0
      %4425 = vmatprep.subr.mxu0 0.0
      %4426 = vmatpush1.msra.mxu0 0.0
      %4427 = vmatprep.subr.mxu0 0.0
      %4428 = vmatpush1.msra.mxu0 0.0
      %4429 = vmatprep.subr.mxu0 0.0
      %4430 = vmatpush1.msra.mxu0 0.0
      %4431 = vmatprep.subr.mxu0 0.0
      %4432 = vmatpush1.msra.mxu0 0.0
      %4433 = vmatprep.subr.mxu0 0.0
      %4434 = vmatpush1.msra.mxu0 0.0
      %4435 = vmatprep.subr.mxu0 0.0
      %4436 = vmatpush1.msra.mxu0 0.0
      %4437 = vmatprep.subr.mxu0 0.0
      %4438 = vmatpush1.msra.mxu0 0.0
      %4439 = vmatprep.subr.mxu0 0.0
      %4440 = vmatpush1.msra.mxu0 0.0
      %4441 = vmatprep.subr.mxu0 0.0
      %4442 = vmatpush1.msra.mxu0 0.0
      %4443 = vmatprep.subr.mxu0 0.0
      %4444 = vmatpush1.msra.mxu0 0.0
      %4445 = vmatprep.subr.mxu0 0.0
      %4446 = vmatpush1.msra.mxu0 0.0
      %4447 = vmatprep.subr.mxu0 0.0
      %4448 = vmatpush1.msra.mxu0 0.0
      %4449 = vmatprep.subr.mxu0 0.0
      %4450 = vmatpush1.msra.mxu0 0.0
      %4451 = vmatprep.subr.mxu0 0.0
      %4452 = vmatpush1.msra.mxu0 0.0
      %4453 = vmatprep.subr.mxu0 0.0
      %4454 = vmatpush1.msra.mxu0 0.0
      %4455 = vmatprep.subr.mxu0 0.0
      %4456 = vmatpush1.msra.mxu0 0.0
      %4457 = vmatprep.subr.mxu0 0.0
      %4458 = vmatpush1.msra.mxu0 0.0
      %4459 = vmatprep.subr.mxu0 0.0
      %4460 = vmatpush1.msra.mxu0 0.0
      %4461 = vmatprep.subr.mxu0 0.0
      %4462 = vmatpush1.msra.mxu0 0.0
      %4463 = vmatprep.subr.mxu0 0.0
      %4464 = vmatpush1.msra.mxu0 0.0
      %4465 = vmatprep.subr.mxu0 0.0
      %4466 = vmatpush1.msra.mxu0 0.0
      %4467 = vmatprep.subr.mxu0 0.0
      %4468 = vmatpush1.msra.mxu0 0.0
      %4469 = vmatprep.subr.mxu0 0.0
      %4470 = vmatpush1.msra.mxu0 0.0
      %4471 = vmatprep.subr.mxu0 0.0
      %4472 = vmatpush1.msra.mxu0 0.0
      %4473 = vmatprep.subr.mxu0 0.0
      %4474 = vmatpush1.msra.mxu0 0.0
      %4475 = vmatprep.subr.mxu0 0.0
      %4476 = vmatpush1.msra.mxu0 0.0
      %4477 = vmatprep.subr.mxu0 0.0
      %4478 = vmatpush1.msra.mxu0 0.0
      %4479 = vmatprep.subr.mxu0 0.0
      %4480 = vmatpush1.msra.mxu0 0.0
      %4481 = vmatprep.mubr.f32.mxu0 0.0
      %4482 = vmatmul.mubr.f32.gmra.mrb[0].mxu0 %v4322
      %v4483 = vpop.f32.mrb[0].mxu0
      %v4484 = vadd.f32 %v4163, %v4483
      %v4485 = vpop.f32.mrb[0].mxu0
      %4486 = vmatprep.mubr.f32.mxu0 0.0
      %4487 = vmatmul.mubr.f32.gmra.mrb[0].mxu0 %v4325
      %v4488 = vpop.f32.mrb[0].mxu0
      %v4489 = vadd.f32 %v4168, %v4488
      %v4490 = vpop.f32.mrb[0].mxu0
      %4491 = vmatprep.mubr.f32.mxu0 0.0
      %4492 = vmatmul.mubr.f32.gmra.mrb[0].mxu0 %v4328
      %v4493 = vpop.f32.mrb[0].mxu0
      %v4494 = vadd.f32 %v4173, %v4493
      %v4495 = vpop.f32.mrb[0].mxu0
      %4496 = vmatprep.mubr.f32.mxu0 0.0
      %4497 = vmatmul.mubr.f32.gmra.mrb[0].mxu0 %v4331
      %v4498 = vpop.f32.mrb[0].mxu0
      %v4499 = vadd.f32 %v4178, %v4498
      %v4500 = vpop.f32.mrb[0].mxu0
      %4501 = vmatprep.mubr.f32.mxu0 0.0
      %4502 = vmatmul.mubr.f32.gmra.mrb[0].mxu0 %v4334
      %v4503 = vpop.f32.mrb[0].mxu0
      %v4504 = vadd.f32 %v4183, %v4503
      %v4505 = vpop.f32.mrb[0].mxu0
      %4506 = vmatprep.mubr.f32.mxu0 0.0
      %4507 = vmatmul.mubr.f32.gmra.mrb[0].mxu0 %v4337
      %v4508 = vpop.f32.mrb[0].mxu0
      %v4509 = vadd.f32 %v4188, %v4508
      %v4510 = vpop.f32.mrb[0].mxu0
      %4511 = vmatprep.mubr.f32.mxu0 0.0
      %4512 = vmatmul.mubr.f32.gmra.mrb[0].mxu0 %v4340
      %v4513 = vpop.f32.mrb[0].mxu0
      %v4514 = vadd.f32 %v4193, %v4513
      %v4515 = vpop.f32.mrb[0].mxu0
      %4516 = vmatprep.mubr.f32.mxu0 0.0
      %4517 = vmatmul.mubr.f32.gmra.mrb[0].mxu0 %v4343
      %v4518 = vpop.f32.mrb[0].mxu0
      %v4519 = vadd.f32 %v4198, %v4518
      %v4520 = vpop.f32.mrb[0].mxu0
      %4521 = vmatprep.mubr.f32.mxu0 0.0
      %4522 = vmatmul.mubr.f32.gmra.mrb[0].mxu0 %v4346
      %v4523 = vpop.f32.mrb[0].mxu0
      %v4524 = vadd.f32 %v4203, %v4523
      %v4525 = vpop.f32.mrb[0].mxu0
      %4526 = vmatprep.mubr.f32.mxu0 0.0
      %4527 = vmatmul.mubr.f32.gmra.mrb[0].mxu0 %v4349
      %v4528 = vpop.f32.mrb[0].mxu0
      %v4529 = vadd.f32 %v4208, %v4528
      %v4530 = vpop.f32.mrb[0].mxu0
      %4531 = vmatprep.mubr.f32.mxu0 0.0
      %4532 = vmatmul.mubr.f32.gmra.mrb[0].mxu0 %v4352
      %v4533 = vpop.f32.mrb[0].mxu0
      %v4534 = vadd.f32 %v4213, %v4533
      %v4535 = vpop.f32.mrb[0].mxu0
      %4536 = vmatprep.mubr.f32.mxu0 0.0
      %4537 = vmatmul.mubr.f32.gmra.mrb[0].mxu0 %v4355
      %v4538 = vpop.f32.mrb[0].mxu0
      %v4539 = vadd.f32 %v4218, %v4538
      %v4540 = vpop.f32.mrb[0].mxu0
      %4541 = vmatprep.mubr.f32.mxu0 0.0
      %4542 = vmatmul.mubr.f32.gmra.mrb[0].mxu0 %v4358
      %v4543 = vpop.f32.mrb[0].mxu0
      %v4544 = vadd.f32 %v4223, %v4543
      %v4545 = vpop.f32.mrb[0].mxu0
      %4546 = vmatprep.mubr.f32.mxu0 0.0
      %4547 = vmatmul.mubr.f32.gmra.mrb[0].mxu0 %v4361
      %v4548 = vpop.f32.mrb[0].mxu0
      %v4549 = vadd.f32 %v4228, %v4548
      %v4550 = vpop.f32.mrb[0].mxu0
      %4551 = vmatprep.mubr.f32.mxu0 0.0
      %4552 = vmatmul.mubr.f32.gmra.mrb[0].mxu0 %v4364
      %v4553 = vpop.f32.mrb[0].mxu0
      %v4554 = vadd.f32 %v4233, %v4553
      %v4555 = vpop.f32.mrb[0].mxu0
      %4556 = vmatprep.mubr.f32.mxu0 0.0
      %4557 = vmatmul.mubr.f32.gmra.mrb[0].mxu0 %v4367
      %v4558 = vpop.f32.mrb[0].mxu0
      %v4559 = vadd.f32 %v4238, %v4558
      %v4560 = vpop.f32.mrb[0].mxu0
      %4561 = vmatprep.mubr.f32.mxu0 0.0
      %4562 = vmatmul.mubr.f32.gmra.mrb[0].mxu0 %v4370
      %v4563 = vpop.f32.mrb[0].mxu0
      %v4564 = vadd.f32 %v4243, %v4563
      %v4565 = vpop.f32.mrb[0].mxu0
      %4566 = vmatprep.mubr.f32.mxu0 0.0
      %4567 = vmatmul.mubr.f32.gmra.mrb[0].mxu0 %v4373
      %v4568 = vpop.f32.mrb[0].mxu0
      %v4569 = vadd.f32 %v4248, %v4568
      %v4570 = vpop.f32.mrb[0].mxu0
      %4571 = vmatprep.mubr.f32.mxu0 0.0
      %4572 = vmatmul.mubr.f32.gmra.mrb[0].mxu0 %v4376
      %v4573 = vpop.f32.mrb[0].mxu0
      %v4574 = vadd.f32 %v4253, %v4573
      %v4575 = vpop.f32.mrb[0].mxu0
      %4576 = vmatprep.mubr.f32.mxu0 0.0
      %4577 = vmatmul.mubr.f32.gmra.mrb[0].mxu0 %v4379
      %v4578 = vpop.f32.mrb[0].mxu0
      %v4579 = vadd.f32 %v4258, %v4578
      %v4580 = vpop.f32.mrb[0].mxu0
      %4581 = vmatprep.mubr.f32.mxu0 0.0
      %4582 = vmatmul.mubr.f32.gmra.mrb[0].mxu0 %v4382
      %v4583 = vpop.f32.mrb[0].mxu0
      %v4584 = vadd.f32 %v4263, %v4583
      %v4585 = vpop.f32.mrb[0].mxu0
      %4586 = vmatprep.mubr.f32.mxu0 0.0
      %4587 = vmatmul.mubr.f32.gmra.mrb[0].mxu0 %v4385
      %v4588 = vpop.f32.mrb[0].mxu0
      %v4589 = vadd.f32 %v4268, %v4588
      %v4590 = vpop.f32.mrb[0].mxu0
      %4591 = vmatprep.mubr.f32.mxu0 0.0
      %4592 = vmatmul.mubr.f32.gmra.mrb[0].mxu0 %v4388
      %v4593 = vpop.f32.mrb[0].mxu0
      %v4594 = vadd.f32 %v4273, %v4593
      %v4595 = vpop.f32.mrb[0].mxu0
      %4596 = vmatprep.mubr.f32.mxu0 0.0
      %4597 = vmatmul.mubr.f32.gmra.mrb[0].mxu0 %v4391
      %v4598 = vpop.f32.mrb[0].mxu0
      %v4599 = vadd.f32 %v4278, %v4598
      %v4600 = vpop.f32.mrb[0].mxu0
      %4601 = vmatprep.mubr.f32.mxu0 0.0
      %4602 = vmatmul.mubr.f32.gmra.mrb[0].mxu0 %v4394
      %v4603 = vpop.f32.mrb[0].mxu0
      %v4604 = vadd.f32 %v4283, %v4603
      %v4605 = vpop.f32.mrb[0].mxu0
      %4606 = vmatprep.mubr.f32.mxu0 0.0
      %4607 = vmatmul.mubr.f32.gmra.mrb[0].mxu0 %v4397
      %v4608 = vpop.f32.mrb[0].mxu0
      %v4609 = vadd.f32 %v4288, %v4608
      %v4610 = vpop.f32.mrb[0].mxu0
      %4611 = vmatprep.mubr.f32.mxu0 0.0
      %4612 = vmatmul.mubr.f32.gmra.mrb[0].mxu0 %v4400
      %v4613 = vpop.f32.mrb[0].mxu0
      %v4614 = vadd.f32 %v4293, %v4613
      %v4615 = vpop.f32.mrb[0].mxu0
      %4616 = vmatprep.mubr.f32.mxu0 0.0
      %4617 = vmatmul.mubr.f32.gmra.mrb[0].mxu0 %v4403
      %v4618 = vpop.f32.mrb[0].mxu0
      %v4619 = vadd.f32 %v4298, %v4618
      %v4620 = vpop.f32.mrb[0].mxu0
      %4621 = vmatprep.mubr.f32.mxu0 0.0
      %4622 = vmatmul.mubr.f32.gmra.mrb[0].mxu0 %v4406
      %v4623 = vpop.f32.mrb[0].mxu0
      %v4624 = vadd.f32 %v4303, %v4623
      %v4625 = vpop.f32.mrb[0].mxu0
      %4626 = vmatprep.mubr.f32.mxu0 0.0
      %4627 = vmatmul.mubr.f32.gmra.mrb[0].mxu0 %v4409
      %v4628 = vpop.f32.mrb[0].mxu0
      %v4629 = vadd.f32 %v4308, %v4628
      %v4630 = vpop.f32.mrb[0].mxu0
      %4631 = vmatprep.mubr.f32.mxu0 0.0
      %4632 = vmatmul.mubr.f32.gmra.mrb[0].mxu0 %v4412
      %v4633 = vpop.f32.mrb[0].mxu0
      %v4634 = vadd.f32 %v4313, %v4633
      %v4635 = vpop.f32.mrb[0].mxu0
      %4636 = vmatprep.mubr.f32.mxu0 0.0
      %4637 = vmatmul.mubr.f32.gmra.mrb[0].mxu0 %v4415
      %v4638 = vpop.f32.mrb[0].mxu0
      %v4639 = vadd.f32 %v4318, %v4638
      %v4640 = vpop.f32.mrb[0].mxu0
      %4641 = vdwg.mxu0
      %v4642 = vld [vmem:[#allocation3 + $0x2] sm:$0xff]
      %v4643 = vld [vmem:[#allocation3 + $0xa] sm:$0xff]
      %v4644 = vld [vmem:[#allocation3 + $0x1a] sm:$0xff]
      %v4645 = vld [vmem:[#allocation3 + $0x22] sm:$0xff]
      %v4646 = vld [vmem:[#allocation3 + $0x32] sm:$0xff]
      %v4647 = vld [vmem:[#allocation3 + $0x3a] sm:$0xff]
      %v4648 = vld [vmem:[#allocation3 + $0x4a] sm:$0xff]
      %v4649 = vld [vmem:[#allocation3 + $0x52] sm:$0xff]
      %v4650 = vld [vmem:[#allocation3 + $0x62] sm:$0xff]
      %v4651 = vld [vmem:[#allocation3 + $0x6a] sm:$0xff]
      %v4652 = vld [vmem:[#allocation3 + $0x7a] sm:$0xff]
      %v4653 = vld [vmem:[#allocation3 + $0x82] sm:$0xff]
      %v4654 = vld [vmem:[#allocation3 + $0x92] sm:$0xff]
      %v4655 = vld [vmem:[#allocation3 + $0x9a] sm:$0xff]
      %v4656 = vld [vmem:[#allocation3 + $0xaa] sm:$0xff]
      %v4657 = vld [vmem:[#allocation3 + $0xb2] sm:$0xff]
      %v4658 = vld [vmem:[#allocation3 + $0xc2] sm:$0xff]
      %v4659 = vld [vmem:[#allocation3 + $0xca] sm:$0xff]
      %v4660 = vld [vmem:[#allocation3 + $0xda] sm:$0xff]
      %v4661 = vld [vmem:[#allocation3 + $0xe2] sm:$0xff]
      %v4662 = vld [vmem:[#allocation3 + $0xf2] sm:$0xff]
      %v4663 = vld [vmem:[#allocation3 + $0xfa] sm:$0xff]
      %v4664 = vld [vmem:[#allocation3 + $0x10a] sm:$0xff]
      %v4665 = vld [vmem:[#allocation3 + $0x112] sm:$0xff]
      %v4666 = vld [vmem:[#allocation3 + $0x122] sm:$0xff]
      %v4667 = vld [vmem:[#allocation3 + $0x12a] sm:$0xff]
      %v4668 = vld [vmem:[#allocation3 + $0x13a] sm:$0xff]
      %v4669 = vld [vmem:[#allocation3 + $0x142] sm:$0xff]
      %v4670 = vld [vmem:[#allocation3 + $0x152] sm:$0xff]
      %v4671 = vld [vmem:[#allocation3 + $0x15a] sm:$0xff]
      %v4672 = vld [vmem:[#allocation3 + $0x16a] sm:$0xff]
      %v4673 = vld [vmem:[#allocation3 + $0x172] sm:$0xff]
      %s4674 = scalar_lea.vmem %s3, 16
      %v4675 = vld [vmem:[%s4674] sm:$0xff]
      %v4677 = vsel %vm271, %v4642, 0
      %v4680 = vsel %vm271, %v4643, 0
      %v4683 = vsel %vm271, %v4644, 0
      %v4686 = vsel %vm271, %v4645, 0
      %v4689 = vsel %vm271, %v4646, 0
      %v4692 = vsel %vm271, %v4647, 0
      %v4695 = vsel %vm271, %v4648, 0
      %v4698 = vsel %vm271, %v4649, 0
      %v4701 = vsel %vm271, %v4650, 0
      %v4704 = vsel %vm271, %v4651, 0
      %v4707 = vsel %vm271, %v4652, 0
      %v4710 = vsel %vm271, %v4653, 0
      %v4713 = vsel %vm271, %v4654, 0
      %v4716 = vsel %vm271, %v4655, 0
      %v4719 = vsel %vm271, %v4656, 0
      %v4722 = vsel %vm271, %v4657, 0
      %v4725 = vsel %vm271, %v4658, 0
      %v4728 = vsel %vm271, %v4659, 0
      %v4731 = vsel %vm271, %v4660, 0
      %v4734 = vsel %vm271, %v4661, 0
      %v4737 = vsel %vm271, %v4662, 0
      %v4740 = vsel %vm271, %v4663, 0
      %v4743 = vsel %vm271, %v4664, 0
      %v4746 = vsel %vm271, %v4665, 0
      %v4749 = vsel %vm271, %v4666, 0
      %v4752 = vsel %vm271, %v4667, 0
      %v4755 = vsel %vm271, %v4668, 0
      %v4758 = vsel %vm271, %v4669, 0
      %v4761 = vsel %vm271, %v4670, 0
      %v4764 = vsel %vm271, %v4671, 0
      %v4767 = vsel %vm271, %v4672, 0
      %v4770 = vsel %vm271, %v4673, 0
      %4772 = vmatprep.subr.mxu0 0.0
      %4773 = vmatpush1.msra.mxu0 %v4675
      %4774 = vmatprep.subr.mxu0 0.0
      %4775 = vmatpush1.msra.mxu0 0.0
      %4776 = vmatprep.subr.mxu0 0.0
      %4777 = vmatpush1.msra.mxu0 0.0
      %4778 = vmatprep.subr.mxu0 0.0
      %4779 = vmatpush1.msra.mxu0 0.0
      %4780 = vmatprep.subr.mxu0 0.0
      %4781 = vmatpush1.msra.mxu0 0.0
      %4782 = vmatprep.subr.mxu0 0.0
      %4783 = vmatpush1.msra.mxu0 0.0
      %4784 = vmatprep.subr.mxu0 0.0
      %4785 = vmatpush1.msra.mxu0 0.0
      %4786 = vmatprep.subr.mxu0 0.0
      %4787 = vmatpush1.msra.mxu0 0.0
      %4788 = vmatprep.subr.mxu0 0.0
      %4789 = vmatpush1.msra.mxu0 0.0
      %4790 = vmatprep.subr.mxu0 0.0
      %4791 = vmatpush1.msra.mxu0 0.0
      %4792 = vmatprep.subr.mxu0 0.0
      %4793 = vmatpush1.msra.mxu0 0.0
      %4794 = vmatprep.subr.mxu0 0.0
      %4795 = vmatpush1.msra.mxu0 0.0
      %4796 = vmatprep.subr.mxu0 0.0
      %4797 = vmatpush1.msra.mxu0 0.0
      %4798 = vmatprep.subr.mxu0 0.0
      %4799 = vmatpush1.msra.mxu0 0.0
      %4800 = vmatprep.subr.mxu0 0.0
      %4801 = vmatpush1.msra.mxu0 0.0
      %4802 = vmatprep.subr.mxu0 0.0
      %4803 = vmatpush1.msra.mxu0 0.0
      %4804 = vmatprep.subr.mxu0 0.0
      %4805 = vmatpush1.msra.mxu0 0.0
      %4806 = vmatprep.subr.mxu0 0.0
      %4807 = vmatpush1.msra.mxu0 0.0
      %4808 = vmatprep.subr.mxu0 0.0
      %4809 = vmatpush1.msra.mxu0 0.0
      %4810 = vmatprep.subr.mxu0 0.0
      %4811 = vmatpush1.msra.mxu0 0.0
      %4812 = vmatprep.subr.mxu0 0.0
      %4813 = vmatpush1.msra.mxu0 0.0
      %4814 = vmatprep.subr.mxu0 0.0
      %4815 = vmatpush1.msra.mxu0 0.0
      %4816 = vmatprep.subr.mxu0 0.0
      %4817 = vmatpush1.msra.mxu0 0.0
      %4818 = vmatprep.subr.mxu0 0.0
      %4819 = vmatpush1.msra.mxu0 0.0
      %4820 = vmatprep.subr.mxu0 0.0
      %4821 = vmatpush1.msra.mxu0 0.0
      %4822 = vmatprep.subr.mxu0 0.0
      %4823 = vmatpush1.msra.mxu0 0.0
      %4824 = vmatprep.subr.mxu0 0.0
      %4825 = vmatpush1.msra.mxu0 0.0
      %4826 = vmatprep.subr.mxu0 0.0
      %4827 = vmatpush1.msra.mxu0 0.0
      %4828 = vmatprep.subr.mxu0 0.0
      %4829 = vmatpush1.msra.mxu0 0.0
      %4830 = vmatprep.subr.mxu0 0.0
      %4831 = vmatpush1.msra.mxu0 0.0
      %4832 = vmatprep.subr.mxu0 0.0
      %4833 = vmatpush1.msra.mxu0 0.0
      %4834 = vmatprep.subr.mxu0 0.0
      %4835 = vmatpush1.msra.mxu0 0.0
      %4836 = vmatprep.mubr.f32.mxu0 0.0
      %4837 = vmatmul.mubr.f32.gmra.mrb[0].mxu0 %v4677
      %v4838 = vpop.f32.mrb[0].mxu0
      %v4839 = vadd.f32 0.0, %v4838
      %v4840 = vpop.f32.mrb[0].mxu0
      %4841 = vmatprep.mubr.f32.mxu0 0.0
      %4842 = vmatmul.mubr.f32.gmra.mrb[0].mxu0 %v4680
      %v4843 = vpop.f32.mrb[0].mxu0
      %v4844 = vadd.f32 0.0, %v4843
      %v4845 = vpop.f32.mrb[0].mxu0
      %4846 = vmatprep.mubr.f32.mxu0 0.0
      %4847 = vmatmul.mubr.f32.gmra.mrb[0].mxu0 %v4683
      %v4848 = vpop.f32.mrb[0].mxu0
      %v4849 = vadd.f32 0.0, %v4848
      %v4850 = vpop.f32.mrb[0].mxu0
      %4851 = vmatprep.mubr.f32.mxu0 0.0
      %4852 = vmatmul.mubr.f32.gmra.mrb[0].mxu0 %v4686
      %v4853 = vpop.f32.mrb[0].mxu0
      %v4854 = vadd.f32 0.0, %v4853
      %v4855 = vpop.f32.mrb[0].mxu0
      %4856 = vmatprep.mubr.f32.mxu0 0.0
      %4857 = vmatmul.mubr.f32.gmra.mrb[0].mxu0 %v4689
      %v4858 = vpop.f32.mrb[0].mxu0
      %v4859 = vadd.f32 0.0, %v4858
      %v4860 = vpop.f32.mrb[0].mxu0
      %4861 = vmatprep.mubr.f32.mxu0 0.0
      %4862 = vmatmul.mubr.f32.gmra.mrb[0].mxu0 %v4692
      %v4863 = vpop.f32.mrb[0].mxu0
      %v4864 = vadd.f32 0.0, %v4863
      %v4865 = vpop.f32.mrb[0].mxu0
      %4866 = vmatprep.mubr.f32.mxu0 0.0
      %4867 = vmatmul.mubr.f32.gmra.mrb[0].mxu0 %v4695
      %v4868 = vpop.f32.mrb[0].mxu0
      %v4869 = vadd.f32 0.0, %v4868
      %v4870 = vpop.f32.mrb[0].mxu0
      %4871 = vmatprep.mubr.f32.mxu0 0.0
      %4872 = vmatmul.mubr.f32.gmra.mrb[0].mxu0 %v4698
      %v4873 = vpop.f32.mrb[0].mxu0
      %v4874 = vadd.f32 0.0, %v4873
      %v4875 = vpop.f32.mrb[0].mxu0
      %4876 = vmatprep.mubr.f32.mxu0 0.0
      %4877 = vmatmul.mubr.f32.gmra.mrb[0].mxu0 %v4701
      %v4878 = vpop.f32.mrb[0].mxu0
      %v4879 = vadd.f32 0.0, %v4878
      %v4880 = vpop.f32.mrb[0].mxu0
      %4881 = vmatprep.mubr.f32.mxu0 0.0
      %4882 = vmatmul.mubr.f32.gmra.mrb[0].mxu0 %v4704
      %v4883 = vpop.f32.mrb[0].mxu0
      %v4884 = vadd.f32 0.0, %v4883
      %v4885 = vpop.f32.mrb[0].mxu0
      %4886 = vmatprep.mubr.f32.mxu0 0.0
      %4887 = vmatmul.mubr.f32.gmra.mrb[0].mxu0 %v4707
      %v4888 = vpop.f32.mrb[0].mxu0
      %v4889 = vadd.f32 0.0, %v4888
      %v4890 = vpop.f32.mrb[0].mxu0
      %4891 = vmatprep.mubr.f32.mxu0 0.0
      %4892 = vmatmul.mubr.f32.gmra.mrb[0].mxu0 %v4710
      %v4893 = vpop.f32.mrb[0].mxu0
      %v4894 = vadd.f32 0.0, %v4893
      %v4895 = vpop.f32.mrb[0].mxu0
      %4896 = vmatprep.mubr.f32.mxu0 0.0
      %4897 = vmatmul.mubr.f32.gmra.mrb[0].mxu0 %v4713
      %v4898 = vpop.f32.mrb[0].mxu0
      %v4899 = vadd.f32 0.0, %v4898
      %v4900 = vpop.f32.mrb[0].mxu0
      %4901 = vmatprep.mubr.f32.mxu0 0.0
      %4902 = vmatmul.mubr.f32.gmra.mrb[0].mxu0 %v4716
      %v4903 = vpop.f32.mrb[0].mxu0
      %v4904 = vadd.f32 0.0, %v4903
      %v4905 = vpop.f32.mrb[0].mxu0
      %4906 = vmatprep.mubr.f32.mxu0 0.0
      %4907 = vmatmul.mubr.f32.gmra.mrb[0].mxu0 %v4719
      %v4908 = vpop.f32.mrb[0].mxu0
      %v4909 = vadd.f32 0.0, %v4908
      %v4910 = vpop.f32.mrb[0].mxu0
      %4911 = vmatprep.mubr.f32.mxu0 0.0
      %4912 = vmatmul.mubr.f32.gmra.mrb[0].mxu0 %v4722
      %v4913 = vpop.f32.mrb[0].mxu0
      %v4914 = vadd.f32 0.0, %v4913
      %v4915 = vpop.f32.mrb[0].mxu0
      %4916 = vmatprep.mubr.f32.mxu0 0.0
      %4917 = vmatmul.mubr.f32.gmra.mrb[0].mxu0 %v4725
      %v4918 = vpop.f32.mrb[0].mxu0
      %v4919 = vadd.f32 0.0, %v4918
      %v4920 = vpop.f32.mrb[0].mxu0
      %4921 = vmatprep.mubr.f32.mxu0 0.0
      %4922 = vmatmul.mubr.f32.gmra.mrb[0].mxu0 %v4728
      %v4923 = vpop.f32.mrb[0].mxu0
      %v4924 = vadd.f32 0.0, %v4923
      %v4925 = vpop.f32.mrb[0].mxu0
      %4926 = vmatprep.mubr.f32.mxu0 0.0
      %4927 = vmatmul.mubr.f32.gmra.mrb[0].mxu0 %v4731
      %v4928 = vpop.f32.mrb[0].mxu0
      %v4929 = vadd.f32 0.0, %v4928
      %v4930 = vpop.f32.mrb[0].mxu0
      %4931 = vmatprep.mubr.f32.mxu0 0.0
      %4932 = vmatmul.mubr.f32.gmra.mrb[0].mxu0 %v4734
      %v4933 = vpop.f32.mrb[0].mxu0
      %v4934 = vadd.f32 0.0, %v4933
      %v4935 = vpop.f32.mrb[0].mxu0
      %4936 = vmatprep.mubr.f32.mxu0 0.0
      %4937 = vmatmul.mubr.f32.gmra.mrb[0].mxu0 %v4737
      %v4938 = vpop.f32.mrb[0].mxu0
      %v4939 = vadd.f32 0.0, %v4938
      %v4940 = vpop.f32.mrb[0].mxu0
      %4941 = vmatprep.mubr.f32.mxu0 0.0
      %4942 = vmatmul.mubr.f32.gmra.mrb[0].mxu0 %v4740
      %v4943 = vpop.f32.mrb[0].mxu0
      %v4944 = vadd.f32 0.0, %v4943
      %v4945 = vpop.f32.mrb[0].mxu0
      %4946 = vmatprep.mubr.f32.mxu0 0.0
      %4947 = vmatmul.mubr.f32.gmra.mrb[0].mxu0 %v4743
      %v4948 = vpop.f32.mrb[0].mxu0
      %v4949 = vadd.f32 0.0, %v4948
      %v4950 = vpop.f32.mrb[0].mxu0
      %4951 = vmatprep.mubr.f32.mxu0 0.0
      %4952 = vmatmul.mubr.f32.gmra.mrb[0].mxu0 %v4746
      %v4953 = vpop.f32.mrb[0].mxu0
      %v4954 = vadd.f32 0.0, %v4953
      %v4955 = vpop.f32.mrb[0].mxu0
      %4956 = vmatprep.mubr.f32.mxu0 0.0
      %4957 = vmatmul.mubr.f32.gmra.mrb[0].mxu0 %v4749
      %v4958 = vpop.f32.mrb[0].mxu0
      %v4959 = vadd.f32 0.0, %v4958
      %v4960 = vpop.f32.mrb[0].mxu0
      %4961 = vmatprep.mubr.f32.mxu0 0.0
      %4962 = vmatmul.mubr.f32.gmra.mrb[0].mxu0 %v4752
      %v4963 = vpop.f32.mrb[0].mxu0
      %v4964 = vadd.f32 0.0, %v4963
      %v4965 = vpop.f32.mrb[0].mxu0
      %4966 = vmatprep.mubr.f32.mxu0 0.0
      %4967 = vmatmul.mubr.f32.gmra.mrb[0].mxu0 %v4755
      %v4968 = vpop.f32.mrb[0].mxu0
      %v4969 = vadd.f32 0.0, %v4968
      %v4970 = vpop.f32.mrb[0].mxu0
      %4971 = vmatprep.mubr.f32.mxu0 0.0
      %4972 = vmatmul.mubr.f32.gmra.mrb[0].mxu0 %v4758
      %v4973 = vpop.f32.mrb[0].mxu0
      %v4974 = vadd.f32 0.0, %v4973
      %v4975 = vpop.f32.mrb[0].mxu0
      %4976 = vmatprep.mubr.f32.mxu0 0.0
      %4977 = vmatmul.mubr.f32.gmra.mrb[0].mxu0 %v4761
      %v4978 = vpop.f32.mrb[0].mxu0
      %v4979 = vadd.f32 0.0, %v4978
      %v4980 = vpop.f32.mrb[0].mxu0
      %4981 = vmatprep.mubr.f32.mxu0 0.0
      %4982 = vmatmul.mubr.f32.gmra.mrb[0].mxu0 %v4764
      %v4983 = vpop.f32.mrb[0].mxu0
      %v4984 = vadd.f32 0.0, %v4983
      %v4985 = vpop.f32.mrb[0].mxu0
      %4986 = vmatprep.mubr.f32.mxu0 0.0
      %4987 = vmatmul.mubr.f32.gmra.mrb[0].mxu0 %v4767
      %v4988 = vpop.f32.mrb[0].mxu0
      %v4989 = vadd.f32 0.0, %v4988
      %v4990 = vpop.f32.mrb[0].mxu0
      %4991 = vmatprep.mubr.f32.mxu0 0.0
      %4992 = vmatmul.mubr.f32.gmra.mrb[0].mxu0 %v4770
      %v4993 = vpop.f32.mrb[0].mxu0
      %v4994 = vadd.f32 0.0, %v4993
      %v4995 = vpop.f32.mrb[0].mxu0
      %4996 = vdwg.mxu0
      %v4997 = vadd.f32 %v4484, %v4839
      %v4998 = vadd.f32 %v4489, %v4844
      %v4999 = vadd.f32 %v4494, %v4849
      %v5000 = vadd.f32 %v4499, %v4854
      %v5001 = vadd.f32 %v4504, %v4859
      %v5002 = vadd.f32 %v4509, %v4864
      %v5003 = vadd.f32 %v4514, %v4869
      %v5004 = vadd.f32 %v4519, %v4874
      %v5005 = vadd.f32 %v4524, %v4879
      %v5006 = vadd.f32 %v4529, %v4884
      %v5007 = vadd.f32 %v4534, %v4889
      %v5008 = vadd.f32 %v4539, %v4894
      %v5009 = vadd.f32 %v4544, %v4899
      %v5010 = vadd.f32 %v4549, %v4904
      %v5011 = vadd.f32 %v4554, %v4909
      %v5012 = vadd.f32 %v4559, %v4914
      %v5013 = vadd.f32 %v4564, %v4919
      %v5014 = vadd.f32 %v4569, %v4924
      %v5015 = vadd.f32 %v4574, %v4929
      %v5016 = vadd.f32 %v4579, %v4934
      %v5017 = vadd.f32 %v4584, %v4939
      %v5018 = vadd.f32 %v4589, %v4944
      %v5019 = vadd.f32 %v4594, %v4949
      %v5020 = vadd.f32 %v4599, %v4954
      %v5021 = vadd.f32 %v4604, %v4959
      %v5022 = vadd.f32 %v4609, %v4964
      %v5023 = vadd.f32 %v4614, %v4969
      %v5024 = vadd.f32 %v4619, %v4974
      %v5025 = vadd.f32 %v4624, %v4979
      %v5026 = vadd.f32 %v4629, %v4984
      %v5027 = vadd.f32 %v4634, %v4989
      %v5028 = vadd.f32 %v4639, %v4994
      %v5029 = vld [vmem:[%s3900] sm:$0xff]
      %v5030 = vld [vmem:[%s3900 + $0x8] sm:$0xff]
      %v5031 = vld [vmem:[%s3900 + $0x18] sm:$0xff]
      %v5032 = vld [vmem:[%s3900 + $0x20] sm:$0xff]
      %v5033 = vld [vmem:[%s3900 + $0x30] sm:$0xff]
      %v5034 = vld [vmem:[%s3900 + $0x38] sm:$0xff]
      %v5035 = vld [vmem:[%s3900 + $0x48] sm:$0xff]
      %v5036 = vld [vmem:[%s3900 + $0x50] sm:$0xff]
      %v5037 = vld [vmem:[%s3900 + $0x60] sm:$0xff]
      %v5038 = vld [vmem:[%s3900 + $0x68] sm:$0xff]
      %v5039 = vld [vmem:[%s3900 + $0x78] sm:$0xff]
      %v5040 = vld [vmem:[%s3900 + $0x80] sm:$0xff]
      %v5041 = vld [vmem:[%s3900 + $0x90] sm:$0xff]
      %v5042 = vld [vmem:[%s3900 + $0x98] sm:$0xff]
      %v5043 = vld [vmem:[%s3900 + $0xa8] sm:$0xff]
      %v5044 = vld [vmem:[%s3900 + $0xb0] sm:$0xff]
      %v5045 = vld [vmem:[%s3900 + $0xc0] sm:$0xff]
      %v5046 = vld [vmem:[%s3900 + $0xc8] sm:$0xff]
      %v5047 = vld [vmem:[%s3900 + $0xd8] sm:$0xff]
      %v5048 = vld [vmem:[%s3900 + $0xe0] sm:$0xff]
      %v5049 = vld [vmem:[%s3900 + $0xf0] sm:$0xff]
      %v5050 = vld [vmem:[%s3900 + $0xf8] sm:$0xff]
      %v5051 = vld [vmem:[%s3900 + $0x108] sm:$0xff]
      %v5052 = vld [vmem:[%s3900 + $0x110] sm:$0xff]
      %v5053 = vld [vmem:[%s3900 + $0x120] sm:$0xff]
      %v5054 = vld [vmem:[%s3900 + $0x128] sm:$0xff]
      %v5055 = vld [vmem:[%s3900 + $0x138] sm:$0xff]
      %v5056 = vld [vmem:[%s3900 + $0x140] sm:$0xff]
      %v5057 = vld [vmem:[%s3900 + $0x150] sm:$0xff]
      %v5058 = vld [vmem:[%s3900 + $0x158] sm:$0xff]
      %v5059 = vld [vmem:[%s3900 + $0x168] sm:$0xff]
      %v5060 = vld [vmem:[%s3900 + $0x170] sm:$0xff]
      %s5061 = scalar_lea.vmem %s3, 24
      %v5062 = vld [vmem:[%s5061] sm:$0xff]
      %v5064 = vsel %vm271, %v5029, 0
      %v5067 = vsel %vm271, %v5030, 0
      %v5070 = vsel %vm271, %v5031, 0
      %v5073 = vsel %vm271, %v5032, 0
      %v5076 = vsel %vm271, %v5033, 0
      %v5079 = vsel %vm271, %v5034, 0
      %v5082 = vsel %vm271, %v5035, 0
      %v5085 = vsel %vm271, %v5036, 0
      %v5088 = vsel %vm271, %v5037, 0
      %v5091 = vsel %vm271, %v5038, 0
      %v5094 = vsel %vm271, %v5039, 0
      %v5097 = vsel %vm271, %v5040, 0
      %v5100 = vsel %vm271, %v5041, 0
      %v5103 = vsel %vm271, %v5042, 0
      %v5106 = vsel %vm271, %v5043, 0
      %v5109 = vsel %vm271, %v5044, 0
      %v5112 = vsel %vm271, %v5045, 0
      %v5115 = vsel %vm271, %v5046, 0
      %v5118 = vsel %vm271, %v5047, 0
      %v5121 = vsel %vm271, %v5048, 0
      %v5124 = vsel %vm271, %v5049, 0
      %v5127 = vsel %vm271, %v5050, 0
      %v5130 = vsel %vm271, %v5051, 0
      %v5133 = vsel %vm271, %v5052, 0
      %v5136 = vsel %vm271, %v5053, 0
      %v5139 = vsel %vm271, %v5054, 0
      %v5142 = vsel %vm271, %v5055, 0
      %v5145 = vsel %vm271, %v5056, 0
      %v5148 = vsel %vm271, %v5057, 0
      %v5151 = vsel %vm271, %v5058, 0
      %v5154 = vsel %vm271, %v5059, 0
      %v5157 = vsel %vm271, %v5060, 0
      %5159 = vmatprep.subr.mxu0 0.0
      %5160 = vmatpush1.msra.mxu0 %v5062
      %5161 = vmatprep.subr.mxu0 0.0
      %5162 = vmatpush1.msra.mxu0 0.0
      %5163 = vmatprep.subr.mxu0 0.0
      %5164 = vmatpush1.msra.mxu0 0.0
      %5165 = vmatprep.subr.mxu0 0.0
      %5166 = vmatpush1.msra.mxu0 0.0
      %5167 = vmatprep.subr.mxu0 0.0
      %5168 = vmatpush1.msra.mxu0 0.0
      %5169 = vmatprep.subr.mxu0 0.0
      %5170 = vmatpush1.msra.mxu0 0.0
      %5171 = vmatprep.subr.mxu0 0.0
      %5172 = vmatpush1.msra.mxu0 0.0
      %5173 = vmatprep.subr.mxu0 0.0
      %5174 = vmatpush1.msra.mxu0 0.0
      %5175 = vmatprep.subr.mxu0 0.0
      %5176 = vmatpush1.msra.mxu0 0.0
      %5177 = vmatprep.subr.mxu0 0.0
      %5178 = vmatpush1.msra.mxu0 0.0
      %5179 = vmatprep.subr.mxu0 0.0
      %5180 = vmatpush1.msra.mxu0 0.0
      %5181 = vmatprep.subr.mxu0 0.0
      %5182 = vmatpush1.msra.mxu0 0.0
      %5183 = vmatprep.subr.mxu0 0.0
      %5184 = vmatpush1.msra.mxu0 0.0
      %5185 = vmatprep.subr.mxu0 0.0
      %5186 = vmatpush1.msra.mxu0 0.0
      %5187 = vmatprep.subr.mxu0 0.0
      %5188 = vmatpush1.msra.mxu0 0.0
      %5189 = vmatprep.subr.mxu0 0.0
      %5190 = vmatpush1.msra.mxu0 0.0
      %5191 = vmatprep.subr.mxu0 0.0
      %5192 = vmatpush1.msra.mxu0 0.0
      %5193 = vmatprep.subr.mxu0 0.0
      %5194 = vmatpush1.msra.mxu0 0.0
      %5195 = vmatprep.subr.mxu0 0.0
      %5196 = vmatpush1.msra.mxu0 0.0
      %5197 = vmatprep.subr.mxu0 0.0
      %5198 = vmatpush1.msra.mxu0 0.0
      %5199 = vmatprep.subr.mxu0 0.0
      %5200 = vmatpush1.msra.mxu0 0.0
      %5201 = vmatprep.subr.mxu0 0.0
      %5202 = vmatpush1.msra.mxu0 0.0
      %5203 = vmatprep.subr.mxu0 0.0
      %5204 = vmatpush1.msra.mxu0 0.0
      %5205 = vmatprep.subr.mxu0 0.0
      %5206 = vmatpush1.msra.mxu0 0.0
      %5207 = vmatprep.subr.mxu0 0.0
      %5208 = vmatpush1.msra.mxu0 0.0
      %5209 = vmatprep.subr.mxu0 0.0
      %5210 = vmatpush1.msra.mxu0 0.0
      %5211 = vmatprep.subr.mxu0 0.0
      %5212 = vmatpush1.msra.mxu0 0.0
      %5213 = vmatprep.subr.mxu0 0.0
      %5214 = vmatpush1.msra.mxu0 0.0
      %5215 = vmatprep.subr.mxu0 0.0
      %5216 = vmatpush1.msra.mxu0 0.0
      %5217 = vmatprep.subr.mxu0 0.0
      %5218 = vmatpush1.msra.mxu0 0.0
      %5219 = vmatprep.subr.mxu0 0.0
      %5220 = vmatpush1.msra.mxu0 0.0
      %5221 = vmatprep.subr.mxu0 0.0
      %5222 = vmatpush1.msra.mxu0 0.0
      %5223 = vmatprep.mubr.f32.mxu0 0.0
      %5224 = vmatmul.mubr.f32.gmra.mrb[0].mxu0 %v5064
      %v5225 = vpop.f32.mrb[0].mxu0
      %v5226 = vadd.f32 0.0, %v5225
      %v5227 = vpop.f32.mrb[0].mxu0
      %5228 = vmatprep.mubr.f32.mxu0 0.0
      %5229 = vmatmul.mubr.f32.gmra.mrb[0].mxu0 %v5067
      %v5230 = vpop.f32.mrb[0].mxu0
      %v5231 = vadd.f32 0.0, %v5230
      %v5232 = vpop.f32.mrb[0].mxu0
      %5233 = vmatprep.mubr.f32.mxu0 0.0
      %5234 = vmatmul.mubr.f32.gmra.mrb[0].mxu0 %v5070
      %v5235 = vpop.f32.mrb[0].mxu0
      %v5236 = vadd.f32 0.0, %v5235
      %v5237 = vpop.f32.mrb[0].mxu0
      %5238 = vmatprep.mubr.f32.mxu0 0.0
      %5239 = vmatmul.mubr.f32.gmra.mrb[0].mxu0 %v5073
      %v5240 = vpop.f32.mrb[0].mxu0
      %v5241 = vadd.f32 0.0, %v5240
      %v5242 = vpop.f32.mrb[0].mxu0
      %5243 = vmatprep.mubr.f32.mxu0 0.0
      %5244 = vmatmul.mubr.f32.gmra.mrb[0].mxu0 %v5076
      %v5245 = vpop.f32.mrb[0].mxu0
      %v5246 = vadd.f32 0.0, %v5245
      %v5247 = vpop.f32.mrb[0].mxu0
      %5248 = vmatprep.mubr.f32.mxu0 0.0
      %5249 = vmatmul.mubr.f32.gmra.mrb[0].mxu0 %v5079
      %v5250 = vpop.f32.mrb[0].mxu0
      %v5251 = vadd.f32 0.0, %v5250
      %v5252 = vpop.f32.mrb[0].mxu0
      %5253 = vmatprep.mubr.f32.mxu0 0.0
      %5254 = vmatmul.mubr.f32.gmra.mrb[0].mxu0 %v5082
      %v5255 = vpop.f32.mrb[0].mxu0
      %v5256 = vadd.f32 0.0, %v5255
      %v5257 = vpop.f32.mrb[0].mxu0
      %5258 = vmatprep.mubr.f32.mxu0 0.0
      %5259 = vmatmul.mubr.f32.gmra.mrb[0].mxu0 %v5085
      %v5260 = vpop.f32.mrb[0].mxu0
      %v5261 = vadd.f32 0.0, %v5260
      %v5262 = vpop.f32.mrb[0].mxu0
      %5263 = vmatprep.mubr.f32.mxu0 0.0
      %5264 = vmatmul.mubr.f32.gmra.mrb[0].mxu0 %v5088
      %v5265 = vpop.f32.mrb[0].mxu0
      %v5266 = vadd.f32 0.0, %v5265
      %v5267 = vpop.f32.mrb[0].mxu0
      %5268 = vmatprep.mubr.f32.mxu0 0.0
      %5269 = vmatmul.mubr.f32.gmra.mrb[0].mxu0 %v5091
      %v5270 = vpop.f32.mrb[0].mxu0
      %v5271 = vadd.f32 0.0, %v5270
      %v5272 = vpop.f32.mrb[0].mxu0
      %5273 = vmatprep.mubr.f32.mxu0 0.0
      %5274 = vmatmul.mubr.f32.gmra.mrb[0].mxu0 %v5094
      %v5275 = vpop.f32.mrb[0].mxu0
      %v5276 = vadd.f32 0.0, %v5275
      %v5277 = vpop.f32.mrb[0].mxu0
      %5278 = vmatprep.mubr.f32.mxu0 0.0
      %5279 = vmatmul.mubr.f32.gmra.mrb[0].mxu0 %v5097
      %v5280 = vpop.f32.mrb[0].mxu0
      %v5281 = vadd.f32 0.0, %v5280
      %v5282 = vpop.f32.mrb[0].mxu0
      %5283 = vmatprep.mubr.f32.mxu0 0.0
      %5284 = vmatmul.mubr.f32.gmra.mrb[0].mxu0 %v5100
      %v5285 = vpop.f32.mrb[0].mxu0
      %v5286 = vadd.f32 0.0, %v5285
      %v5287 = vpop.f32.mrb[0].mxu0
      %5288 = vmatprep.mubr.f32.mxu0 0.0
      %5289 = vmatmul.mubr.f32.gmra.mrb[0].mxu0 %v5103
      %v5290 = vpop.f32.mrb[0].mxu0
      %v5291 = vadd.f32 0.0, %v5290
      %v5292 = vpop.f32.mrb[0].mxu0
      %5293 = vmatprep.mubr.f32.mxu0 0.0
      %5294 = vmatmul.mubr.f32.gmra.mrb[0].mxu0 %v5106
      %v5295 = vpop.f32.mrb[0].mxu0
      %v5296 = vadd.f32 0.0, %v5295
      %v5297 = vpop.f32.mrb[0].mxu0
      %5298 = vmatprep.mubr.f32.mxu0 0.0
      %5299 = vmatmul.mubr.f32.gmra.mrb[0].mxu0 %v5109
      %v5300 = vpop.f32.mrb[0].mxu0
      %v5301 = vadd.f32 0.0, %v5300
      %v5302 = vpop.f32.mrb[0].mxu0
      %5303 = vmatprep.mubr.f32.mxu0 0.0
      %5304 = vmatmul.mubr.f32.gmra.mrb[0].mxu0 %v5112
      %v5305 = vpop.f32.mrb[0].mxu0
      %v5306 = vadd.f32 0.0, %v5305
      %v5307 = vpop.f32.mrb[0].mxu0
      %5308 = vmatprep.mubr.f32.mxu0 0.0
      %5309 = vmatmul.mubr.f32.gmra.mrb[0].mxu0 %v5115
      %v5310 = vpop.f32.mrb[0].mxu0
      %v5311 = vadd.f32 0.0, %v5310
      %v5312 = vpop.f32.mrb[0].mxu0
      %5313 = vmatprep.mubr.f32.mxu0 0.0
      %5314 = vmatmul.mubr.f32.gmra.mrb[0].mxu0 %v5118
      %v5315 = vpop.f32.mrb[0].mxu0
      %v5316 = vadd.f32 0.0, %v5315
      %v5317 = vpop.f32.mrb[0].mxu0
      %5318 = vmatprep.mubr.f32.mxu0 0.0
      %5319 = vmatmul.mubr.f32.gmra.mrb[0].mxu0 %v5121
      %v5320 = vpop.f32.mrb[0].mxu0
      %v5321 = vadd.f32 0.0, %v5320
      %v5322 = vpop.f32.mrb[0].mxu0
      %5323 = vmatprep.mubr.f32.mxu0 0.0
      %5324 = vmatmul.mubr.f32.gmra.mrb[0].mxu0 %v5124
      %v5325 = vpop.f32.mrb[0].mxu0
      %v5326 = vadd.f32 0.0, %v5325
      %v5327 = vpop.f32.mrb[0].mxu0
      %5328 = vmatprep.mubr.f32.mxu0 0.0
      %5329 = vmatmul.mubr.f32.gmra.mrb[0].mxu0 %v5127
      %v5330 = vpop.f32.mrb[0].mxu0
      %v5331 = vadd.f32 0.0, %v5330
      %v5332 = vpop.f32.mrb[0].mxu0
      %5333 = vmatprep.mubr.f32.mxu0 0.0
      %5334 = vmatmul.mubr.f32.gmra.mrb[0].mxu0 %v5130
      %v5335 = vpop.f32.mrb[0].mxu0
      %v5336 = vadd.f32 0.0, %v5335
      %v5337 = vpop.f32.mrb[0].mxu0
      %5338 = vmatprep.mubr.f32.mxu0 0.0
      %5339 = vmatmul.mubr.f32.gmra.mrb[0].mxu0 %v5133
      %v5340 = vpop.f32.mrb[0].mxu0
      %v5341 = vadd.f32 0.0, %v5340
      %v5342 = vpop.f32.mrb[0].mxu0
      %5343 = vmatprep.mubr.f32.mxu0 0.0
      %5344 = vmatmul.mubr.f32.gmra.mrb[0].mxu0 %v5136
      %v5345 = vpop.f32.mrb[0].mxu0
      %v5346 = vadd.f32 0.0, %v5345
      %v5347 = vpop.f32.mrb[0].mxu0
      %5348 = vmatprep.mubr.f32.mxu0 0.0
      %5349 = vmatmul.mubr.f32.gmra.mrb[0].mxu0 %v5139
      %v5350 = vpop.f32.mrb[0].mxu0
      %v5351 = vadd.f32 0.0, %v5350
      %v5352 = vpop.f32.mrb[0].mxu0
      %5353 = vmatprep.mubr.f32.mxu0 0.0
      %5354 = vmatmul.mubr.f32.gmra.mrb[0].mxu0 %v5142
      %v5355 = vpop.f32.mrb[0].mxu0
      %v5356 = vadd.f32 0.0, %v5355
      %v5357 = vpop.f32.mrb[0].mxu0
      %5358 = vmatprep.mubr.f32.mxu0 0.0
      %5359 = vmatmul.mubr.f32.gmra.mrb[0].mxu0 %v5145
      %v5360 = vpop.f32.mrb[0].mxu0
      %v5361 = vadd.f32 0.0, %v5360
      %v5362 = vpop.f32.mrb[0].mxu0
      %5363 = vmatprep.mubr.f32.mxu0 0.0
      %5364 = vmatmul.mubr.f32.gmra.mrb[0].mxu0 %v5148
      %v5365 = vpop.f32.mrb[0].mxu0
      %v5366 = vadd.f32 0.0, %v5365
      %v5367 = vpop.f32.mrb[0].mxu0
      %5368 = vmatprep.mubr.f32.mxu0 0.0
      %5369 = vmatmul.mubr.f32.gmra.mrb[0].mxu0 %v5151
      %v5370 = vpop.f32.mrb[0].mxu0
      %v5371 = vadd.f32 0.0, %v5370
      %v5372 = vpop.f32.mrb[0].mxu0
      %5373 = vmatprep.mubr.f32.mxu0 0.0
      %5374 = vmatmul.mubr.f32.gmra.mrb[0].mxu0 %v5154
      %v5375 = vpop.f32.mrb[0].mxu0
      %v5376 = vadd.f32 0.0, %v5375
      %v5377 = vpop.f32.mrb[0].mxu0
      %5378 = vmatprep.mubr.f32.mxu0 0.0
      %5379 = vmatmul.mubr.f32.gmra.mrb[0].mxu0 %v5157
      %v5380 = vpop.f32.mrb[0].mxu0
      %v5381 = vadd.f32 0.0, %v5380
      %v5382 = vpop.f32.mrb[0].mxu0
      %5383 = vdwg.mxu0
      %v5384 = vadd.f32 %v4997, %v5226
      %v5385 = vadd.f32 %v4998, %v5231
      %v5386 = vadd.f32 %v4999, %v5236
      %v5387 = vadd.f32 %v5000, %v5241
      %v5388 = vadd.f32 %v5001, %v5246
      %v5389 = vadd.f32 %v5002, %v5251
      %v5390 = vadd.f32 %v5003, %v5256
      %v5391 = vadd.f32 %v5004, %v5261
      %v5392 = vadd.f32 %v5005, %v5266
      %v5393 = vadd.f32 %v5006, %v5271
      %v5394 = vadd.f32 %v5007, %v5276
      %v5395 = vadd.f32 %v5008, %v5281
      %v5396 = vadd.f32 %v5009, %v5286
      %v5397 = vadd.f32 %v5010, %v5291
      %v5398 = vadd.f32 %v5011, %v5296
      %v5399 = vadd.f32 %v5012, %v5301
      %v5400 = vadd.f32 %v5013, %v5306
      %v5401 = vadd.f32 %v5014, %v5311
      %v5402 = vadd.f32 %v5015, %v5316
      %v5403 = vadd.f32 %v5016, %v5321
      %v5404 = vadd.f32 %v5017, %v5326
      %v5405 = vadd.f32 %v5018, %v5331
      %v5406 = vadd.f32 %v5019, %v5336
      %v5407 = vadd.f32 %v5020, %v5341
      %v5408 = vadd.f32 %v5021, %v5346
      %v5409 = vadd.f32 %v5022, %v5351
      %v5410 = vadd.f32 %v5023, %v5356
      %v5411 = vadd.f32 %v5024, %v5361
      %v5412 = vadd.f32 %v5025, %v5366
      %v5413 = vadd.f32 %v5026, %v5371
      %v5414 = vadd.f32 %v5027, %v5376
      %v5415 = vadd.f32 %v5028, %v5381
      %v5416 = vld [vmem:[%s3900 + $0x1] sm:$0xff]
      %v5417 = vld [vmem:[%s3900 + $0x9] sm:$0xff]
      %v5418 = vld [vmem:[%s3900 + $0x19] sm:$0xff]
      %v5419 = vld [vmem:[%s3900 + $0x21] sm:$0xff]
      %v5420 = vld [vmem:[%s3900 + $0x31] sm:$0xff]
      %v5421 = vld [vmem:[%s3900 + $0x39] sm:$0xff]
      %v5422 = vld [vmem:[%s3900 + $0x49] sm:$0xff]
      %v5423 = vld [vmem:[%s3900 + $0x51] sm:$0xff]
      %v5424 = vld [vmem:[%s3900 + $0x61] sm:$0xff]
      %v5425 = vld [vmem:[%s3900 + $0x69] sm:$0xff]
      %v5426 = vld [vmem:[%s3900 + $0x79] sm:$0xff]
      %v5427 = vld [vmem:[%s3900 + $0x81] sm:$0xff]
      %v5428 = vld [vmem:[%s3900 + $0x91] sm:$0xff]
      %v5429 = vld [vmem:[%s3900 + $0x99] sm:$0xff]
      %v5430 = vld [vmem:[%s3900 + $0xa9] sm:$0xff]
      %v5431 = vld [vmem:[%s3900 + $0xb1] sm:$0xff]
      %v5432 = vld [vmem:[%s3900 + $0xc1] sm:$0xff]
      %v5433 = vld [vmem:[%s3900 + $0xc9] sm:$0xff]
      %v5434 = vld [vmem:[%s3900 + $0xd9] sm:$0xff]
      %v5435 = vld [vmem:[%s3900 + $0xe1] sm:$0xff]
      %v5436 = vld [vmem:[%s3900 + $0xf1] sm:$0xff]
      %v5437 = vld [vmem:[%s3900 + $0xf9] sm:$0xff]
      %v5438 = vld [vmem:[%s3900 + $0x109] sm:$0xff]
      %v5439 = vld [vmem:[%s3900 + $0x111] sm:$0xff]
      %v5440 = vld [vmem:[%s3900 + $0x121] sm:$0xff]
      %v5441 = vld [vmem:[%s3900 + $0x129] sm:$0xff]
      %v5442 = vld [vmem:[%s3900 + $0x139] sm:$0xff]
      %v5443 = vld [vmem:[%s3900 + $0x141] sm:$0xff]
      %v5444 = vld [vmem:[%s3900 + $0x151] sm:$0xff]
      %v5445 = vld [vmem:[%s3900 + $0x159] sm:$0xff]
      %v5446 = vld [vmem:[%s3900 + $0x169] sm:$0xff]
      %v5447 = vld [vmem:[%s3900 + $0x171] sm:$0xff]
      %s5448 = scalar_lea.vmem %s3, 32
      %v5449 = vld [vmem:[%s5448] sm:$0xff]
      %v5451 = vsel %vm271, %v5416, 0
      %v5454 = vsel %vm271, %v5417, 0
      %v5457 = vsel %vm271, %v5418, 0
      %v5460 = vsel %vm271, %v5419, 0
      %v5463 = vsel %vm271, %v5420, 0
      %v5466 = vsel %vm271, %v5421, 0
      %v5469 = vsel %vm271, %v5422, 0
      %v5472 = vsel %vm271, %v5423, 0
      %v5475 = vsel %vm271, %v5424, 0
      %v5478 = vsel %vm271, %v5425, 0
      %v5481 = vsel %vm271, %v5426, 0
      %v5484 = vsel %vm271, %v5427, 0
      %v5487 = vsel %vm271, %v5428, 0
      %v5490 = vsel %vm271, %v5429, 0
      %v5493 = vsel %vm271, %v5430, 0
      %v5496 = vsel %vm271, %v5431, 0
      %v5499 = vsel %vm271, %v5432, 0
      %v5502 = vsel %vm271, %v5433, 0
      %v5505 = vsel %vm271, %v5434, 0
      %v5508 = vsel %vm271, %v5435, 0
      %v5511 = vsel %vm271, %v5436, 0
      %v5514 = vsel %vm271, %v5437, 0
      %v5517 = vsel %vm271, %v5438, 0
      %v5520 = vsel %vm271, %v5439, 0
      %v5523 = vsel %vm271, %v5440, 0
      %v5526 = vsel %vm271, %v5441, 0
      %v5529 = vsel %vm271, %v5442, 0
      %v5532 = vsel %vm271, %v5443, 0
      %v5535 = vsel %vm271, %v5444, 0
      %v5538 = vsel %vm271, %v5445, 0
      %v5541 = vsel %vm271, %v5446, 0
      %v5544 = vsel %vm271, %v5447, 0
      %5546 = vmatprep.subr.mxu0 0.0
      %5547 = vmatpush1.msra.mxu0 %v5449
      %5548 = vmatprep.subr.mxu0 0.0
      %5549 = vmatpush1.msra.mxu0 0.0
      %5550 = vmatprep.subr.mxu0 0.0
      %5551 = vmatpush1.msra.mxu0 0.0
      %5552 = vmatprep.subr.mxu0 0.0
      %5553 = vmatpush1.msra.mxu0 0.0
      %5554 = vmatprep.subr.mxu0 0.0
      %5555 = vmatpush1.msra.mxu0 0.0
      %5556 = vmatprep.subr.mxu0 0.0
      %5557 = vmatpush1.msra.mxu0 0.0
      %5558 = vmatprep.subr.mxu0 0.0
      %5559 = vmatpush1.msra.mxu0 0.0
      %5560 = vmatprep.subr.mxu0 0.0
      %5561 = vmatpush1.msra.mxu0 0.0
      %5562 = vmatprep.subr.mxu0 0.0
      %5563 = vmatpush1.msra.mxu0 0.0
      %5564 = vmatprep.subr.mxu0 0.0
      %5565 = vmatpush1.msra.mxu0 0.0
      %5566 = vmatprep.subr.mxu0 0.0
      %5567 = vmatpush1.msra.mxu0 0.0
      %5568 = vmatprep.subr.mxu0 0.0
      %5569 = vmatpush1.msra.mxu0 0.0
      %5570 = vmatprep.subr.mxu0 0.0
      %5571 = vmatpush1.msra.mxu0 0.0
      %5572 = vmatprep.subr.mxu0 0.0
      %5573 = vmatpush1.msra.mxu0 0.0
      %5574 = vmatprep.subr.mxu0 0.0
      %5575 = vmatpush1.msra.mxu0 0.0
      %5576 = vmatprep.subr.mxu0 0.0
      %5577 = vmatpush1.msra.mxu0 0.0
      %5578 = vmatprep.subr.mxu0 0.0
      %5579 = vmatpush1.msra.mxu0 0.0
      %5580 = vmatprep.subr.mxu0 0.0
      %5581 = vmatpush1.msra.mxu0 0.0
      %5582 = vmatprep.subr.mxu0 0.0
      %5583 = vmatpush1.msra.mxu0 0.0
      %5584 = vmatprep.subr.mxu0 0.0
      %5585 = vmatpush1.msra.mxu0 0.0
      %5586 = vmatprep.subr.mxu0 0.0
      %5587 = vmatpush1.msra.mxu0 0.0
      %5588 = vmatprep.subr.mxu0 0.0
      %5589 = vmatpush1.msra.mxu0 0.0
      %5590 = vmatprep.subr.mxu0 0.0
      %5591 = vmatpush1.msra.mxu0 0.0
      %5592 = vmatprep.subr.mxu0 0.0
      %5593 = vmatpush1.msra.mxu0 0.0
      %5594 = vmatprep.subr.mxu0 0.0
      %5595 = vmatpush1.msra.mxu0 0.0
      %5596 = vmatprep.subr.mxu0 0.0
      %5597 = vmatpush1.msra.mxu0 0.0
      %5598 = vmatprep.subr.mxu0 0.0
      %5599 = vmatpush1.msra.mxu0 0.0
      %5600 = vmatprep.subr.mxu0 0.0
      %5601 = vmatpush1.msra.mxu0 0.0
      %5602 = vmatprep.subr.mxu0 0.0
      %5603 = vmatpush1.msra.mxu0 0.0
      %5604 = vmatprep.subr.mxu0 0.0
      %5605 = vmatpush1.msra.mxu0 0.0
      %5606 = vmatprep.subr.mxu0 0.0
      %5607 = vmatpush1.msra.mxu0 0.0
      %5608 = vmatprep.subr.mxu0 0.0
      %5609 = vmatpush1.msra.mxu0 0.0
      %5610 = vmatprep.mubr.f32.mxu0 0.0
      %5611 = vmatmul.mubr.f32.gmra.mrb[0].mxu0 %v5451
      %v5612 = vpop.f32.mrb[0].mxu0
      %v5613 = vadd.f32 0.0, %v5612
      %v5614 = vpop.f32.mrb[0].mxu0
      %5615 = vmatprep.mubr.f32.mxu0 0.0
      %5616 = vmatmul.mubr.f32.gmra.mrb[0].mxu0 %v5454
      %v5617 = vpop.f32.mrb[0].mxu0
      %v5618 = vadd.f32 0.0, %v5617
      %v5619 = vpop.f32.mrb[0].mxu0
      %5620 = vmatprep.mubr.f32.mxu0 0.0
      %5621 = vmatmul.mubr.f32.gmra.mrb[0].mxu0 %v5457
      %v5622 = vpop.f32.mrb[0].mxu0
      %v5623 = vadd.f32 0.0, %v5622
      %v5624 = vpop.f32.mrb[0].mxu0
      %5625 = vmatprep.mubr.f32.mxu0 0.0
      %5626 = vmatmul.mubr.f32.gmra.mrb[0].mxu0 %v5460
      %v5627 = vpop.f32.mrb[0].mxu0
      %v5628 = vadd.f32 0.0, %v5627
      %v5629 = vpop.f32.mrb[0].mxu0
      %5630 = vmatprep.mubr.f32.mxu0 0.0
      %5631 = vmatmul.mubr.f32.gmra.mrb[0].mxu0 %v5463
      %v5632 = vpop.f32.mrb[0].mxu0
      %v5633 = vadd.f32 0.0, %v5632
      %v5634 = vpop.f32.mrb[0].mxu0
      %5635 = vmatprep.mubr.f32.mxu0 0.0
      %5636 = vmatmul.mubr.f32.gmra.mrb[0].mxu0 %v5466
      %v5637 = vpop.f32.mrb[0].mxu0
      %v5638 = vadd.f32 0.0, %v5637
      %v5639 = vpop.f32.mrb[0].mxu0
      %5640 = vmatprep.mubr.f32.mxu0 0.0
      %5641 = vmatmul.mubr.f32.gmra.mrb[0].mxu0 %v5469
      %v5642 = vpop.f32.mrb[0].mxu0
      %v5643 = vadd.f32 0.0, %v5642
      %v5644 = vpop.f32.mrb[0].mxu0
      %5645 = vmatprep.mubr.f32.mxu0 0.0
      %5646 = vmatmul.mubr.f32.gmra.mrb[0].mxu0 %v5472
      %v5647 = vpop.f32.mrb[0].mxu0
      %v5648 = vadd.f32 0.0, %v5647
      %v5649 = vpop.f32.mrb[0].mxu0
      %5650 = vmatprep.mubr.f32.mxu0 0.0
      %5651 = vmatmul.mubr.f32.gmra.mrb[0].mxu0 %v5475
      %v5652 = vpop.f32.mrb[0].mxu0
      %v5653 = vadd.f32 0.0, %v5652
      %v5654 = vpop.f32.mrb[0].mxu0
      %5655 = vmatprep.mubr.f32.mxu0 0.0
      %5656 = vmatmul.mubr.f32.gmra.mrb[0].mxu0 %v5478
      %v5657 = vpop.f32.mrb[0].mxu0
      %v5658 = vadd.f32 0.0, %v5657
      %v5659 = vpop.f32.mrb[0].mxu0
      %5660 = vmatprep.mubr.f32.mxu0 0.0
      %5661 = vmatmul.mubr.f32.gmra.mrb[0].mxu0 %v5481
      %v5662 = vpop.f32.mrb[0].mxu0
      %v5663 = vadd.f32 0.0, %v5662
      %v5664 = vpop.f32.mrb[0].mxu0
      %5665 = vmatprep.mubr.f32.mxu0 0.0
      %5666 = vmatmul.mubr.f32.gmra.mrb[0].mxu0 %v5484
      %v5667 = vpop.f32.mrb[0].mxu0
      %v5668 = vadd.f32 0.0, %v5667
      %v5669 = vpop.f32.mrb[0].mxu0
      %5670 = vmatprep.mubr.f32.mxu0 0.0
      %5671 = vmatmul.mubr.f32.gmra.mrb[0].mxu0 %v5487
      %v5672 = vpop.f32.mrb[0].mxu0
      %v5673 = vadd.f32 0.0, %v5672
      %v5674 = vpop.f32.mrb[0].mxu0
      %5675 = vmatprep.mubr.f32.mxu0 0.0
      %5676 = vmatmul.mubr.f32.gmra.mrb[0].mxu0 %v5490
      %v5677 = vpop.f32.mrb[0].mxu0
      %v5678 = vadd.f32 0.0, %v5677
      %v5679 = vpop.f32.mrb[0].mxu0
      %5680 = vmatprep.mubr.f32.mxu0 0.0
      %5681 = vmatmul.mubr.f32.gmra.mrb[0].mxu0 %v5493
      %v5682 = vpop.f32.mrb[0].mxu0
      %v5683 = vadd.f32 0.0, %v5682
      %v5684 = vpop.f32.mrb[0].mxu0
      %5685 = vmatprep.mubr.f32.mxu0 0.0
      %5686 = vmatmul.mubr.f32.gmra.mrb[0].mxu0 %v5496
      %v5687 = vpop.f32.mrb[0].mxu0
      %v5688 = vadd.f32 0.0, %v5687
      %v5689 = vpop.f32.mrb[0].mxu0
      %5690 = vmatprep.mubr.f32.mxu0 0.0
      %5691 = vmatmul.mubr.f32.gmra.mrb[0].mxu0 %v5499
      %v5692 = vpop.f32.mrb[0].mxu0
      %v5693 = vadd.f32 0.0, %v5692
      %v5694 = vpop.f32.mrb[0].mxu0
      %5695 = vmatprep.mubr.f32.mxu0 0.0
      %5696 = vmatmul.mubr.f32.gmra.mrb[0].mxu0 %v5502
      %v5697 = vpop.f32.mrb[0].mxu0
      %v5698 = vadd.f32 0.0, %v5697
      %v5699 = vpop.f32.mrb[0].mxu0
      %5700 = vmatprep.mubr.f32.mxu0 0.0
      %5701 = vmatmul.mubr.f32.gmra.mrb[0].mxu0 %v5505
      %v5702 = vpop.f32.mrb[0].mxu0
      %v5703 = vadd.f32 0.0, %v5702
      %v5704 = vpop.f32.mrb[0].mxu0
      %5705 = vmatprep.mubr.f32.mxu0 0.0
      %5706 = vmatmul.mubr.f32.gmra.mrb[0].mxu0 %v5508
      %v5707 = vpop.f32.mrb[0].mxu0
      %v5708 = vadd.f32 0.0, %v5707
      %v5709 = vpop.f32.mrb[0].mxu0
      %5710 = vmatprep.mubr.f32.mxu0 0.0
      %5711 = vmatmul.mubr.f32.gmra.mrb[0].mxu0 %v5511
      %v5712 = vpop.f32.mrb[0].mxu0
      %v5713 = vadd.f32 0.0, %v5712
      %v5714 = vpop.f32.mrb[0].mxu0
      %5715 = vmatprep.mubr.f32.mxu0 0.0
      %5716 = vmatmul.mubr.f32.gmra.mrb[0].mxu0 %v5514
      %v5717 = vpop.f32.mrb[0].mxu0
      %v5718 = vadd.f32 0.0, %v5717
      %v5719 = vpop.f32.mrb[0].mxu0
      %5720 = vmatprep.mubr.f32.mxu0 0.0
      %5721 = vmatmul.mubr.f32.gmra.mrb[0].mxu0 %v5517
      %v5722 = vpop.f32.mrb[0].mxu0
      %v5723 = vadd.f32 0.0, %v5722
      %v5724 = vpop.f32.mrb[0].mxu0
      %5725 = vmatprep.mubr.f32.mxu0 0.0
      %5726 = vmatmul.mubr.f32.gmra.mrb[0].mxu0 %v5520
      %v5727 = vpop.f32.mrb[0].mxu0
      %v5728 = vadd.f32 0.0, %v5727
      %v5729 = vpop.f32.mrb[0].mxu0
      %5730 = vmatprep.mubr.f32.mxu0 0.0
      %5731 = vmatmul.mubr.f32.gmra.mrb[0].mxu0 %v5523
      %v5732 = vpop.f32.mrb[0].mxu0
      %v5733 = vadd.f32 0.0, %v5732
      %v5734 = vpop.f32.mrb[0].mxu0
      %5735 = vmatprep.mubr.f32.mxu0 0.0
      %5736 = vmatmul.mubr.f32.gmra.mrb[0].mxu0 %v5526
      %v5737 = vpop.f32.mrb[0].mxu0
      %v5738 = vadd.f32 0.0, %v5737
      %v5739 = vpop.f32.mrb[0].mxu0
      %5740 = vmatprep.mubr.f32.mxu0 0.0
      %5741 = vmatmul.mubr.f32.gmra.mrb[0].mxu0 %v5529
      %v5742 = vpop.f32.mrb[0].mxu0
      %v5743 = vadd.f32 0.0, %v5742
      %v5744 = vpop.f32.mrb[0].mxu0
      %5745 = vmatprep.mubr.f32.mxu0 0.0
      %5746 = vmatmul.mubr.f32.gmra.mrb[0].mxu0 %v5532
      %v5747 = vpop.f32.mrb[0].mxu0
      %v5748 = vadd.f32 0.0, %v5747
      %v5749 = vpop.f32.mrb[0].mxu0
      %5750 = vmatprep.mubr.f32.mxu0 0.0
      %5751 = vmatmul.mubr.f32.gmra.mrb[0].mxu0 %v5535
      %v5752 = vpop.f32.mrb[0].mxu0
      %v5753 = vadd.f32 0.0, %v5752
      %v5754 = vpop.f32.mrb[0].mxu0
      %5755 = vmatprep.mubr.f32.mxu0 0.0
      %5756 = vmatmul.mubr.f32.gmra.mrb[0].mxu0 %v5538
      %v5757 = vpop.f32.mrb[0].mxu0
      %v5758 = vadd.f32 0.0, %v5757
      %v5759 = vpop.f32.mrb[0].mxu0
      %5760 = vmatprep.mubr.f32.mxu0 0.0
      %5761 = vmatmul.mubr.f32.gmra.mrb[0].mxu0 %v5541
      %v5762 = vpop.f32.mrb[0].mxu0
      %v5763 = vadd.f32 0.0, %v5762
      %v5764 = vpop.f32.mrb[0].mxu0
      %5765 = vmatprep.mubr.f32.mxu0 0.0
      %5766 = vmatmul.mubr.f32.gmra.mrb[0].mxu0 %v5544
      %v5767 = vpop.f32.mrb[0].mxu0
      %v5768 = vadd.f32 0.0, %v5767
      %v5769 = vpop.f32.mrb[0].mxu0
      %5770 = vdwg.mxu0
      %v5771 = vadd.f32 %v5384, %v5613
      %v5772 = vadd.f32 %v5385, %v5618
      %v5773 = vadd.f32 %v5386, %v5623
      %v5774 = vadd.f32 %v5387, %v5628
      %v5775 = vadd.f32 %v5388, %v5633
      %v5776 = vadd.f32 %v5389, %v5638
      %v5777 = vadd.f32 %v5390, %v5643
      %v5778 = vadd.f32 %v5391, %v5648
      %v5779 = vadd.f32 %v5392, %v5653
      %v5780 = vadd.f32 %v5393, %v5658
      %v5781 = vadd.f32 %v5394, %v5663
      %v5782 = vadd.f32 %v5395, %v5668
      %v5783 = vadd.f32 %v5396, %v5673
      %v5784 = vadd.f32 %v5397, %v5678
      %v5785 = vadd.f32 %v5398, %v5683
      %v5786 = vadd.f32 %v5399, %v5688
      %v5787 = vadd.f32 %v5400, %v5693
      %v5788 = vadd.f32 %v5401, %v5698
      %v5789 = vadd.f32 %v5402, %v5703
      %v5790 = vadd.f32 %v5403, %v5708
      %v5791 = vadd.f32 %v5404, %v5713
      %v5792 = vadd.f32 %v5405, %v5718
      %v5793 = vadd.f32 %v5406, %v5723
      %v5794 = vadd.f32 %v5407, %v5728
      %v5795 = vadd.f32 %v5408, %v5733
      %v5796 = vadd.f32 %v5409, %v5738
      %v5797 = vadd.f32 %v5410, %v5743
      %v5798 = vadd.f32 %v5411, %v5748
      %v5799 = vadd.f32 %v5412, %v5753
      %v5800 = vadd.f32 %v5413, %v5758
      %v5801 = vadd.f32 %v5414, %v5763
      %v5802 = vadd.f32 %v5415, %v5768
      %v5803 = vld [vmem:[%s3900 + $0x2] sm:$0xff]
      %v5804 = vld [vmem:[%s3900 + $0xa] sm:$0xff]
      %v5805 = vld [vmem:[%s3900 + $0x1a] sm:$0xff]
      %v5806 = vld [vmem:[%s3900 + $0x22] sm:$0xff]
      %v5807 = vld [vmem:[%s3900 + $0x32] sm:$0xff]
      %v5808 = vld [vmem:[%s3900 + $0x3a] sm:$0xff]
      %v5809 = vld [vmem:[%s3900 + $0x4a] sm:$0xff]
      %v5810 = vld [vmem:[%s3900 + $0x52] sm:$0xff]
      %v5811 = vld [vmem:[%s3900 + $0x62] sm:$0xff]
      %v5812 = vld [vmem:[%s3900 + $0x6a] sm:$0xff]
      %v5813 = vld [vmem:[%s3900 + $0x7a] sm:$0xff]
      %v5814 = vld [vmem:[%s3900 + $0x82] sm:$0xff]
      %v5815 = vld [vmem:[%s3900 + $0x92] sm:$0xff]
      %v5816 = vld [vmem:[%s3900 + $0x9a] sm:$0xff]
      %v5817 = vld [vmem:[%s3900 + $0xaa] sm:$0xff]
      %v5818 = vld [vmem:[%s3900 + $0xb2] sm:$0xff]
      %v5819 = vld [vmem:[%s3900 + $0xc2] sm:$0xff]
      %v5820 = vld [vmem:[%s3900 + $0xca] sm:$0xff]
      %v5821 = vld [vmem:[%s3900 + $0xda] sm:$0xff]
      %v5822 = vld [vmem:[%s3900 + $0xe2] sm:$0xff]
      %v5823 = vld [vmem:[%s3900 + $0xf2] sm:$0xff]
      %v5824 = vld [vmem:[%s3900 + $0xfa] sm:$0xff]
      %v5825 = vld [vmem:[%s3900 + $0x10a] sm:$0xff]
      %v5826 = vld [vmem:[%s3900 + $0x112] sm:$0xff]
      %v5827 = vld [vmem:[%s3900 + $0x122] sm:$0xff]
      %v5828 = vld [vmem:[%s3900 + $0x12a] sm:$0xff]
      %v5829 = vld [vmem:[%s3900 + $0x13a] sm:$0xff]
      %v5830 = vld [vmem:[%s3900 + $0x142] sm:$0xff]
      %v5831 = vld [vmem:[%s3900 + $0x152] sm:$0xff]
      %v5832 = vld [vmem:[%s3900 + $0x15a] sm:$0xff]
      %v5833 = vld [vmem:[%s3900 + $0x16a] sm:$0xff]
      %v5834 = vld [vmem:[%s3900 + $0x172] sm:$0xff]
      %s5835 = scalar_lea.vmem %s3, 40
      %v5836 = vld [vmem:[%s5835] sm:$0xff]
      %v5838 = vsel %vm271, %v5803, 0
      %v5841 = vsel %vm271, %v5804, 0
      %v5844 = vsel %vm271, %v5805, 0
      %v5847 = vsel %vm271, %v5806, 0
      %v5850 = vsel %vm271, %v5807, 0
      %v5853 = vsel %vm271, %v5808, 0
      %v5856 = vsel %vm271, %v5809, 0
      %v5859 = vsel %vm271, %v5810, 0
      %v5862 = vsel %vm271, %v5811, 0
      %v5865 = vsel %vm271, %v5812, 0
      %v5868 = vsel %vm271, %v5813, 0
      %v5871 = vsel %vm271, %v5814, 0
      %v5874 = vsel %vm271, %v5815, 0
      %v5877 = vsel %vm271, %v5816, 0
      %v5880 = vsel %vm271, %v5817, 0
      %v5883 = vsel %vm271, %v5818, 0
      %v5886 = vsel %vm271, %v5819, 0
      %v5889 = vsel %vm271, %v5820, 0
      %v5892 = vsel %vm271, %v5821, 0
      %v5895 = vsel %vm271, %v5822, 0
      %v5898 = vsel %vm271, %v5823, 0
      %v5901 = vsel %vm271, %v5824, 0
      %v5904 = vsel %vm271, %v5825, 0
      %v5907 = vsel %vm271, %v5826, 0
      %v5910 = vsel %vm271, %v5827, 0
      %v5913 = vsel %vm271, %v5828, 0
      %v5916 = vsel %vm271, %v5829, 0
      %v5919 = vsel %vm271, %v5830, 0
      %v5922 = vsel %vm271, %v5831, 0
      %v5925 = vsel %vm271, %v5832, 0
      %v5928 = vsel %vm271, %v5833, 0
      %v5931 = vsel %vm271, %v5834, 0
      %5933 = vmatprep.subr.mxu0 0.0
      %5934 = vmatpush1.msra.mxu0 %v5836
      %5935 = vmatprep.subr.mxu0 0.0
      %5936 = vmatpush1.msra.mxu0 0.0
      %5937 = vmatprep.subr.mxu0 0.0
      %5938 = vmatpush1.msra.mxu0 0.0
      %5939 = vmatprep.subr.mxu0 0.0
      %5940 = vmatpush1.msra.mxu0 0.0
      %5941 = vmatprep.subr.mxu0 0.0
      %5942 = vmatpush1.msra.mxu0 0.0
      %5943 = vmatprep.subr.mxu0 0.0
      %5944 = vmatpush1.msra.mxu0 0.0
      %5945 = vmatprep.subr.mxu0 0.0
      %5946 = vmatpush1.msra.mxu0 0.0
      %5947 = vmatprep.subr.mxu0 0.0
      %5948 = vmatpush1.msra.mxu0 0.0
      %5949 = vmatprep.subr.mxu0 0.0
      %5950 = vmatpush1.msra.mxu0 0.0
      %5951 = vmatprep.subr.mxu0 0.0
      %5952 = vmatpush1.msra.mxu0 0.0
      %5953 = vmatprep.subr.mxu0 0.0
      %5954 = vmatpush1.msra.mxu0 0.0
      %5955 = vmatprep.subr.mxu0 0.0
      %5956 = vmatpush1.msra.mxu0 0.0
      %5957 = vmatprep.subr.mxu0 0.0
      %5958 = vmatpush1.msra.mxu0 0.0
      %5959 = vmatprep.subr.mxu0 0.0
      %5960 = vmatpush1.msra.mxu0 0.0
      %5961 = vmatprep.subr.mxu0 0.0
      %5962 = vmatpush1.msra.mxu0 0.0
      %5963 = vmatprep.subr.mxu0 0.0
      %5964 = vmatpush1.msra.mxu0 0.0
      %5965 = vmatprep.subr.mxu0 0.0
      %5966 = vmatpush1.msra.mxu0 0.0
      %5967 = vmatprep.subr.mxu0 0.0
      %5968 = vmatpush1.msra.mxu0 0.0
      %5969 = vmatprep.subr.mxu0 0.0
      %5970 = vmatpush1.msra.mxu0 0.0
      %5971 = vmatprep.subr.mxu0 0.0
      %5972 = vmatpush1.msra.mxu0 0.0
      %5973 = vmatprep.subr.mxu0 0.0
      %5974 = vmatpush1.msra.mxu0 0.0
      %5975 = vmatprep.subr.mxu0 0.0
      %5976 = vmatpush1.msra.mxu0 0.0
      %5977 = vmatprep.subr.mxu0 0.0
      %5978 = vmatpush1.msra.mxu0 0.0
      %5979 = vmatprep.subr.mxu0 0.0
      %5980 = vmatpush1.msra.mxu0 0.0
      %5981 = vmatprep.subr.mxu0 0.0
      %5982 = vmatpush1.msra.mxu0 0.0
      %5983 = vmatprep.subr.mxu0 0.0
      %5984 = vmatpush1.msra.mxu0 0.0
      %5985 = vmatprep.subr.mxu0 0.0
      %5986 = vmatpush1.msra.mxu0 0.0
      %5987 = vmatprep.subr.mxu0 0.0
      %5988 = vmatpush1.msra.mxu0 0.0
      %5989 = vmatprep.subr.mxu0 0.0
      %5990 = vmatpush1.msra.mxu0 0.0
      %5991 = vmatprep.subr.mxu0 0.0
      %5992 = vmatpush1.msra.mxu0 0.0
      %5993 = vmatprep.subr.mxu0 0.0
      %5994 = vmatpush1.msra.mxu0 0.0
      %5995 = vmatprep.subr.mxu0 0.0
      %5996 = vmatpush1.msra.mxu0 0.0
      %5997 = vmatprep.mubr.f32.mxu0 0.0
      %5998 = vmatmul.mubr.f32.gmra.mrb[0].mxu0 %v5838
      %v5999 = vpop.f32.mrb[0].mxu0
      %v6000 = vadd.f32 0.0, %v5999
      %v6001 = vpop.f32.mrb[0].mxu0
      %6002 = vmatprep.mubr.f32.mxu0 0.0
      %6003 = vmatmul.mubr.f32.gmra.mrb[0].mxu0 %v5841
      %v6004 = vpop.f32.mrb[0].mxu0
      %v6005 = vadd.f32 0.0, %v6004
      %v6006 = vpop.f32.mrb[0].mxu0
      %6007 = vmatprep.mubr.f32.mxu0 0.0
      %6008 = vmatmul.mubr.f32.gmra.mrb[0].mxu0 %v5844
      %v6009 = vpop.f32.mrb[0].mxu0
      %v6010 = vadd.f32 0.0, %v6009
      %v6011 = vpop.f32.mrb[0].mxu0
      %6012 = vmatprep.mubr.f32.mxu0 0.0
      %6013 = vmatmul.mubr.f32.gmra.mrb[0].mxu0 %v5847
      %v6014 = vpop.f32.mrb[0].mxu0
      %v6015 = vadd.f32 0.0, %v6014
      %v6016 = vpop.f32.mrb[0].mxu0
      %6017 = vmatprep.mubr.f32.mxu0 0.0
      %6018 = vmatmul.mubr.f32.gmra.mrb[0].mxu0 %v5850
      %v6019 = vpop.f32.mrb[0].mxu0
      %v6020 = vadd.f32 0.0, %v6019
      %v6021 = vpop.f32.mrb[0].mxu0
      %6022 = vmatprep.mubr.f32.mxu0 0.0
      %6023 = vmatmul.mubr.f32.gmra.mrb[0].mxu0 %v5853
      %v6024 = vpop.f32.mrb[0].mxu0
      %v6025 = vadd.f32 0.0, %v6024
      %v6026 = vpop.f32.mrb[0].mxu0
      %6027 = vmatprep.mubr.f32.mxu0 0.0
      %6028 = vmatmul.mubr.f32.gmra.mrb[0].mxu0 %v5856
      %v6029 = vpop.f32.mrb[0].mxu0
      %v6030 = vadd.f32 0.0, %v6029
      %v6031 = vpop.f32.mrb[0].mxu0
      %6032 = vmatprep.mubr.f32.mxu0 0.0
      %6033 = vmatmul.mubr.f32.gmra.mrb[0].mxu0 %v5859
      %v6034 = vpop.f32.mrb[0].mxu0
      %v6035 = vadd.f32 0.0, %v6034
      %v6036 = vpop.f32.mrb[0].mxu0
      %6037 = vmatprep.mubr.f32.mxu0 0.0
      %6038 = vmatmul.mubr.f32.gmra.mrb[0].mxu0 %v5862
      %v6039 = vpop.f32.mrb[0].mxu0
      %v6040 = vadd.f32 0.0, %v6039
      %v6041 = vpop.f32.mrb[0].mxu0
      %6042 = vmatprep.mubr.f32.mxu0 0.0
      %6043 = vmatmul.mubr.f32.gmra.mrb[0].mxu0 %v5865
      %v6044 = vpop.f32.mrb[0].mxu0
      %v6045 = vadd.f32 0.0, %v6044
      %v6046 = vpop.f32.mrb[0].mxu0
      %6047 = vmatprep.mubr.f32.mxu0 0.0
      %6048 = vmatmul.mubr.f32.gmra.mrb[0].mxu0 %v5868
      %v6049 = vpop.f32.mrb[0].mxu0
      %v6050 = vadd.f32 0.0, %v6049
      %v6051 = vpop.f32.mrb[0].mxu0
      %6052 = vmatprep.mubr.f32.mxu0 0.0
      %6053 = vmatmul.mubr.f32.gmra.mrb[0].mxu0 %v5871
      %v6054 = vpop.f32.mrb[0].mxu0
      %v6055 = vadd.f32 0.0, %v6054
      %v6056 = vpop.f32.mrb[0].mxu0
      %6057 = vmatprep.mubr.f32.mxu0 0.0
      %6058 = vmatmul.mubr.f32.gmra.mrb[0].mxu0 %v5874
      %v6059 = vpop.f32.mrb[0].mxu0
      %v6060 = vadd.f32 0.0, %v6059
      %v6061 = vpop.f32.mrb[0].mxu0
      %6062 = vmatprep.mubr.f32.mxu0 0.0
      %6063 = vmatmul.mubr.f32.gmra.mrb[0].mxu0 %v5877
      %v6064 = vpop.f32.mrb[0].mxu0
      %v6065 = vadd.f32 0.0, %v6064
      %v6066 = vpop.f32.mrb[0].mxu0
      %6067 = vmatprep.mubr.f32.mxu0 0.0
      %6068 = vmatmul.mubr.f32.gmra.mrb[0].mxu0 %v5880
      %v6069 = vpop.f32.mrb[0].mxu0
      %v6070 = vadd.f32 0.0, %v6069
      %v6071 = vpop.f32.mrb[0].mxu0
      %6072 = vmatprep.mubr.f32.mxu0 0.0
      %6073 = vmatmul.mubr.f32.gmra.mrb[0].mxu0 %v5883
      %v6074 = vpop.f32.mrb[0].mxu0
      %v6075 = vadd.f32 0.0, %v6074
      %v6076 = vpop.f32.mrb[0].mxu0
      %6077 = vmatprep.mubr.f32.mxu0 0.0
      %6078 = vmatmul.mubr.f32.gmra.mrb[0].mxu0 %v5886
      %v6079 = vpop.f32.mrb[0].mxu0
      %v6080 = vadd.f32 0.0, %v6079
      %v6081 = vpop.f32.mrb[0].mxu0
      %6082 = vmatprep.mubr.f32.mxu0 0.0
      %6083 = vmatmul.mubr.f32.gmra.mrb[0].mxu0 %v5889
      %v6084 = vpop.f32.mrb[0].mxu0
      %v6085 = vadd.f32 0.0, %v6084
      %v6086 = vpop.f32.mrb[0].mxu0
      %6087 = vmatprep.mubr.f32.mxu0 0.0
      %6088 = vmatmul.mubr.f32.gmra.mrb[0].mxu0 %v5892
      %v6089 = vpop.f32.mrb[0].mxu0
      %v6090 = vadd.f32 0.0, %v6089
      %v6091 = vpop.f32.mrb[0].mxu0
      %6092 = vmatprep.mubr.f32.mxu0 0.0
      %6093 = vmatmul.mubr.f32.gmra.mrb[0].mxu0 %v5895
      %v6094 = vpop.f32.mrb[0].mxu0
      %v6095 = vadd.f32 0.0, %v6094
      %v6096 = vpop.f32.mrb[0].mxu0
      %6097 = vmatprep.mubr.f32.mxu0 0.0
      %6098 = vmatmul.mubr.f32.gmra.mrb[0].mxu0 %v5898
      %v6099 = vpop.f32.mrb[0].mxu0
      %v6100 = vadd.f32 0.0, %v6099
      %v6101 = vpop.f32.mrb[0].mxu0
      %6102 = vmatprep.mubr.f32.mxu0 0.0
      %6103 = vmatmul.mubr.f32.gmra.mrb[0].mxu0 %v5901
      %v6104 = vpop.f32.mrb[0].mxu0
      %v6105 = vadd.f32 0.0, %v6104
      %v6106 = vpop.f32.mrb[0].mxu0
      %6107 = vmatprep.mubr.f32.mxu0 0.0
      %6108 = vmatmul.mubr.f32.gmra.mrb[0].mxu0 %v5904
      %v6109 = vpop.f32.mrb[0].mxu0
      %v6110 = vadd.f32 0.0, %v6109
      %v6111 = vpop.f32.mrb[0].mxu0
      %6112 = vmatprep.mubr.f32.mxu0 0.0
      %6113 = vmatmul.mubr.f32.gmra.mrb[0].mxu0 %v5907
      %v6114 = vpop.f32.mrb[0].mxu0
      %v6115 = vadd.f32 0.0, %v6114
      %v6116 = vpop.f32.mrb[0].mxu0
      %6117 = vmatprep.mubr.f32.mxu0 0.0
      %6118 = vmatmul.mubr.f32.gmra.mrb[0].mxu0 %v5910
      %v6119 = vpop.f32.mrb[0].mxu0
      %v6120 = vadd.f32 0.0, %v6119
      %v6121 = vpop.f32.mrb[0].mxu0
      %6122 = vmatprep.mubr.f32.mxu0 0.0
      %6123 = vmatmul.mubr.f32.gmra.mrb[0].mxu0 %v5913
      %v6124 = vpop.f32.mrb[0].mxu0
      %v6125 = vadd.f32 0.0, %v6124
      %v6126 = vpop.f32.mrb[0].mxu0
      %6127 = vmatprep.mubr.f32.mxu0 0.0
      %6128 = vmatmul.mubr.f32.gmra.mrb[0].mxu0 %v5916
      %v6129 = vpop.f32.mrb[0].mxu0
      %v6130 = vadd.f32 0.0, %v6129
      %v6131 = vpop.f32.mrb[0].mxu0
      %6132 = vmatprep.mubr.f32.mxu0 0.0
      %6133 = vmatmul.mubr.f32.gmra.mrb[0].mxu0 %v5919
      %v6134 = vpop.f32.mrb[0].mxu0
      %v6135 = vadd.f32 0.0, %v6134
      %v6136 = vpop.f32.mrb[0].mxu0
      %6137 = vmatprep.mubr.f32.mxu0 0.0
      %6138 = vmatmul.mubr.f32.gmra.mrb[0].mxu0 %v5922
      %v6139 = vpop.f32.mrb[0].mxu0
      %v6140 = vadd.f32 0.0, %v6139
      %v6141 = vpop.f32.mrb[0].mxu0
      %6142 = vmatprep.mubr.f32.mxu0 0.0
      %6143 = vmatmul.mubr.f32.gmra.mrb[0].mxu0 %v5925
      %v6144 = vpop.f32.mrb[0].mxu0
      %v6145 = vadd.f32 0.0, %v6144
      %v6146 = vpop.f32.mrb[0].mxu0
      %6147 = vmatprep.mubr.f32.mxu0 0.0
      %6148 = vmatmul.mubr.f32.gmra.mrb[0].mxu0 %v5928
      %v6149 = vpop.f32.mrb[0].mxu0
      %v6150 = vadd.f32 0.0, %v6149
      %v6151 = vpop.f32.mrb[0].mxu0
      %6152 = vmatprep.mubr.f32.mxu0 0.0
      %6153 = vmatmul.mubr.f32.gmra.mrb[0].mxu0 %v5931
      %v6154 = vpop.f32.mrb[0].mxu0
      %v6155 = vadd.f32 0.0, %v6154
      %v6156 = vpop.f32.mrb[0].mxu0
      %6157 = vdwg.mxu0
      %v6158 = vadd.f32 %v5771, %v6000
      %v6159 = vadd.f32 %v5772, %v6005
      %v6160 = vadd.f32 %v5773, %v6010
      %v6161 = vadd.f32 %v5774, %v6015
      %v6162 = vadd.f32 %v5775, %v6020
      %v6163 = vadd.f32 %v5776, %v6025
      %v6164 = vadd.f32 %v5777, %v6030
      %v6165 = vadd.f32 %v5778, %v6035
      %v6166 = vadd.f32 %v5779, %v6040
      %v6167 = vadd.f32 %v5780, %v6045
      %v6168 = vadd.f32 %v5781, %v6050
      %v6169 = vadd.f32 %v5782, %v6055
      %v6170 = vadd.f32 %v5783, %v6060
      %v6171 = vadd.f32 %v5784, %v6065
      %v6172 = vadd.f32 %v5785, %v6070
      %v6173 = vadd.f32 %v5786, %v6075
      %v6174 = vadd.f32 %v5787, %v6080
      %v6175 = vadd.f32 %v5788, %v6085
      %v6176 = vadd.f32 %v5789, %v6090
      %v6177 = vadd.f32 %v5790, %v6095
      %v6178 = vadd.f32 %v5791, %v6100
      %v6179 = vadd.f32 %v5792, %v6105
      %v6180 = vadd.f32 %v5793, %v6110
      %v6181 = vadd.f32 %v5794, %v6115
      %v6182 = vadd.f32 %v5795, %v6120
      %v6183 = vadd.f32 %v5796, %v6125
      %v6184 = vadd.f32 %v5797, %v6130
      %v6185 = vadd.f32 %v5798, %v6135
      %v6186 = vadd.f32 %v5799, %v6140
      %v6187 = vadd.f32 %v5800, %v6145
      %v6188 = vadd.f32 %v5801, %v6150
      %v6189 = vadd.f32 %v5802, %v6155
      %s6190 = scalar_lea.vmem [#allocation3], 48
      %v6191 = vld [vmem:[%s6190] sm:$0xff]
      %v6192 = vld [vmem:[%s6190 + $0x8] sm:$0xff]
      %v6193 = vld [vmem:[%s6190 + $0x18] sm:$0xff]
      %v6194 = vld [vmem:[%s6190 + $0x20] sm:$0xff]
      %v6195 = vld [vmem:[%s6190 + $0x30] sm:$0xff]
      %v6196 = vld [vmem:[%s6190 + $0x38] sm:$0xff]
      %v6197 = vld [vmem:[%s6190 + $0x48] sm:$0xff]
      %v6198 = vld [vmem:[%s6190 + $0x50] sm:$0xff]
      %v6199 = vld [vmem:[%s6190 + $0x60] sm:$0xff]
      %v6200 = vld [vmem:[%s6190 + $0x68] sm:$0xff]
      %v6201 = vld [vmem:[%s6190 + $0x78] sm:$0xff]
      %v6202 = vld [vmem:[%s6190 + $0x80] sm:$0xff]
      %v6203 = vld [vmem:[%s6190 + $0x90] sm:$0xff]
      %v6204 = vld [vmem:[%s6190 + $0x98] sm:$0xff]
      %v6205 = vld [vmem:[%s6190 + $0xa8] sm:$0xff]
      %v6206 = vld [vmem:[%s6190 + $0xb0] sm:$0xff]
      %v6207 = vld [vmem:[%s6190 + $0xc0] sm:$0xff]
      %v6208 = vld [vmem:[%s6190 + $0xc8] sm:$0xff]
      %v6209 = vld [vmem:[%s6190 + $0xd8] sm:$0xff]
      %v6210 = vld [vmem:[%s6190 + $0xe0] sm:$0xff]
      %v6211 = vld [vmem:[%s6190 + $0xf0] sm:$0xff]
      %v6212 = vld [vmem:[%s6190 + $0xf8] sm:$0xff]
      %v6213 = vld [vmem:[%s6190 + $0x108] sm:$0xff]
      %v6214 = vld [vmem:[%s6190 + $0x110] sm:$0xff]
      %v6215 = vld [vmem:[%s6190 + $0x120] sm:$0xff]
      %v6216 = vld [vmem:[%s6190 + $0x128] sm:$0xff]
      %v6217 = vld [vmem:[%s6190 + $0x138] sm:$0xff]
      %v6218 = vld [vmem:[%s6190 + $0x140] sm:$0xff]
      %v6219 = vld [vmem:[%s6190 + $0x150] sm:$0xff]
      %v6220 = vld [vmem:[%s6190 + $0x158] sm:$0xff]
      %v6221 = vld [vmem:[%s6190 + $0x168] sm:$0xff]
      %v6222 = vld [vmem:[%s6190 + $0x170] sm:$0xff]
      %s6223 = scalar_lea.vmem %s3, 48
      %v6224 = vld [vmem:[%s6223] sm:$0xff]
      %v6226 = vsel %vm271, %v6191, 0
      %v6229 = vsel %vm271, %v6192, 0
      %v6232 = vsel %vm271, %v6193, 0
      %v6235 = vsel %vm271, %v6194, 0
      %v6238 = vsel %vm271, %v6195, 0
      %v6241 = vsel %vm271, %v6196, 0
      %v6244 = vsel %vm271, %v6197, 0
      %v6247 = vsel %vm271, %v6198, 0
      %v6250 = vsel %vm271, %v6199, 0
      %v6253 = vsel %vm271, %v6200, 0
      %v6256 = vsel %vm271, %v6201, 0
      %v6259 = vsel %vm271, %v6202, 0
      %v6262 = vsel %vm271, %v6203, 0
      %v6265 = vsel %vm271, %v6204, 0
      %v6268 = vsel %vm271, %v6205, 0
      %v6271 = vsel %vm271, %v6206, 0
      %v6274 = vsel %vm271, %v6207, 0
      %v6277 = vsel %vm271, %v6208, 0
      %v6280 = vsel %vm271, %v6209, 0
      %v6283 = vsel %vm271, %v6210, 0
      %v6286 = vsel %vm271, %v6211, 0
      %v6289 = vsel %vm271, %v6212, 0
      %v6292 = vsel %vm271, %v6213, 0
      %v6295 = vsel %vm271, %v6214, 0
      %v6298 = vsel %vm271, %v6215, 0
      %v6301 = vsel %vm271, %v6216, 0
      %v6304 = vsel %vm271, %v6217, 0
      %v6307 = vsel %vm271, %v6218, 0
      %v6310 = vsel %vm271, %v6219, 0
      %v6313 = vsel %vm271, %v6220, 0
      %v6316 = vsel %vm271, %v6221, 0
      %v6319 = vsel %vm271, %v6222, 0
      %6321 = vmatprep.subr.mxu0 0.0
      %6322 = vmatpush1.msra.mxu0 %v6224
      %6323 = vmatprep.subr.mxu0 0.0
      %6324 = vmatpush1.msra.mxu0 0.0
      %6325 = vmatprep.subr.mxu0 0.0
      %6326 = vmatpush1.msra.mxu0 0.0
      %6327 = vmatprep.subr.mxu0 0.0
      %6328 = vmatpush1.msra.mxu0 0.0
      %6329 = vmatprep.subr.mxu0 0.0
      %6330 = vmatpush1.msra.mxu0 0.0
      %6331 = vmatprep.subr.mxu0 0.0
      %6332 = vmatpush1.msra.mxu0 0.0
      %6333 = vmatprep.subr.mxu0 0.0
      %6334 = vmatpush1.msra.mxu0 0.0
      %6335 = vmatprep.subr.mxu0 0.0
      %6336 = vmatpush1.msra.mxu0 0.0
      %6337 = vmatprep.subr.mxu0 0.0
      %6338 = vmatpush1.msra.mxu0 0.0
      %6339 = vmatprep.subr.mxu0 0.0
      %6340 = vmatpush1.msra.mxu0 0.0
      %6341 = vmatprep.subr.mxu0 0.0
      %6342 = vmatpush1.msra.mxu0 0.0
      %6343 = vmatprep.subr.mxu0 0.0
      %6344 = vmatpush1.msra.mxu0 0.0
      %6345 = vmatprep.subr.mxu0 0.0
      %6346 = vmatpush1.msra.mxu0 0.0
      %6347 = vmatprep.subr.mxu0 0.0
      %6348 = vmatpush1.msra.mxu0 0.0
      %6349 = vmatprep.subr.mxu0 0.0
      %6350 = vmatpush1.msra.mxu0 0.0
      %6351 = vmatprep.subr.mxu0 0.0
      %6352 = vmatpush1.msra.mxu0 0.0
      %6353 = vmatprep.subr.mxu0 0.0
      %6354 = vmatpush1.msra.mxu0 0.0
      %6355 = vmatprep.subr.mxu0 0.0
      %6356 = vmatpush1.msra.mxu0 0.0
      %6357 = vmatprep.subr.mxu0 0.0
      %6358 = vmatpush1.msra.mxu0 0.0
      %6359 = vmatprep.subr.mxu0 0.0
      %6360 = vmatpush1.msra.mxu0 0.0
      %6361 = vmatprep.subr.mxu0 0.0
      %6362 = vmatpush1.msra.mxu0 0.0
      %6363 = vmatprep.subr.mxu0 0.0
      %6364 = vmatpush1.msra.mxu0 0.0
      %6365 = vmatprep.subr.mxu0 0.0
      %6366 = vmatpush1.msra.mxu0 0.0
      %6367 = vmatprep.subr.mxu0 0.0
      %6368 = vmatpush1.msra.mxu0 0.0
      %6369 = vmatprep.subr.mxu0 0.0
      %6370 = vmatpush1.msra.mxu0 0.0
      %6371 = vmatprep.subr.mxu0 0.0
      %6372 = vmatpush1.msra.mxu0 0.0
      %6373 = vmatprep.subr.mxu0 0.0
      %6374 = vmatpush1.msra.mxu0 0.0
      %6375 = vmatprep.subr.mxu0 0.0
      %6376 = vmatpush1.msra.mxu0 0.0
      %6377 = vmatprep.subr.mxu0 0.0
      %6378 = vmatpush1.msra.mxu0 0.0
      %6379 = vmatprep.subr.mxu0 0.0
      %6380 = vmatpush1.msra.mxu0 0.0
      %6381 = vmatprep.subr.mxu0 0.0
      %6382 = vmatpush1.msra.mxu0 0.0
      %6383 = vmatprep.subr.mxu0 0.0
      %6384 = vmatpush1.msra.mxu0 0.0
      %6385 = vmatprep.mubr.f32.mxu0 0.0
      %6386 = vmatmul.mubr.f32.gmra.mrb[0].mxu0 %v6226
      %v6387 = vpop.f32.mrb[0].mxu0
      %v6388 = vadd.f32 0.0, %v6387
      %v6389 = vpop.f32.mrb[0].mxu0
      %6390 = vmatprep.mubr.f32.mxu0 0.0
      %6391 = vmatmul.mubr.f32.gmra.mrb[0].mxu0 %v6229
      %v6392 = vpop.f32.mrb[0].mxu0
      %v6393 = vadd.f32 0.0, %v6392
      %v6394 = vpop.f32.mrb[0].mxu0
      %6395 = vmatprep.mubr.f32.mxu0 0.0
      %6396 = vmatmul.mubr.f32.gmra.mrb[0].mxu0 %v6232
      %v6397 = vpop.f32.mrb[0].mxu0
      %v6398 = vadd.f32 0.0, %v6397
      %v6399 = vpop.f32.mrb[0].mxu0
      %6400 = vmatprep.mubr.f32.mxu0 0.0
      %6401 = vmatmul.mubr.f32.gmra.mrb[0].mxu0 %v6235
      %v6402 = vpop.f32.mrb[0].mxu0
      %v6403 = vadd.f32 0.0, %v6402
      %v6404 = vpop.f32.mrb[0].mxu0
      %6405 = vmatprep.mubr.f32.mxu0 0.0
      %6406 = vmatmul.mubr.f32.gmra.mrb[0].mxu0 %v6238
      %v6407 = vpop.f32.mrb[0].mxu0
      %v6408 = vadd.f32 0.0, %v6407
      %v6409 = vpop.f32.mrb[0].mxu0
      %6410 = vmatprep.mubr.f32.mxu0 0.0
      %6411 = vmatmul.mubr.f32.gmra.mrb[0].mxu0 %v6241
      %v6412 = vpop.f32.mrb[0].mxu0
      %v6413 = vadd.f32 0.0, %v6412
      %v6414 = vpop.f32.mrb[0].mxu0
      %6415 = vmatprep.mubr.f32.mxu0 0.0
      %6416 = vmatmul.mubr.f32.gmra.mrb[0].mxu0 %v6244
      %v6417 = vpop.f32.mrb[0].mxu0
      %v6418 = vadd.f32 0.0, %v6417
      %v6419 = vpop.f32.mrb[0].mxu0
      %6420 = vmatprep.mubr.f32.mxu0 0.0
      %6421 = vmatmul.mubr.f32.gmra.mrb[0].mxu0 %v6247
      %v6422 = vpop.f32.mrb[0].mxu0
      %v6423 = vadd.f32 0.0, %v6422
      %v6424 = vpop.f32.mrb[0].mxu0
      %6425 = vmatprep.mubr.f32.mxu0 0.0
      %6426 = vmatmul.mubr.f32.gmra.mrb[0].mxu0 %v6250
      %v6427 = vpop.f32.mrb[0].mxu0
      %v6428 = vadd.f32 0.0, %v6427
      %v6429 = vpop.f32.mrb[0].mxu0
      %6430 = vmatprep.mubr.f32.mxu0 0.0
      %6431 = vmatmul.mubr.f32.gmra.mrb[0].mxu0 %v6253
      %v6432 = vpop.f32.mrb[0].mxu0
      %v6433 = vadd.f32 0.0, %v6432
      %v6434 = vpop.f32.mrb[0].mxu0
      %6435 = vmatprep.mubr.f32.mxu0 0.0
      %6436 = vmatmul.mubr.f32.gmra.mrb[0].mxu0 %v6256
      %v6437 = vpop.f32.mrb[0].mxu0
      %v6438 = vadd.f32 0.0, %v6437
      %v6439 = vpop.f32.mrb[0].mxu0
      %6440 = vmatprep.mubr.f32.mxu0 0.0
      %6441 = vmatmul.mubr.f32.gmra.mrb[0].mxu0 %v6259
      %v6442 = vpop.f32.mrb[0].mxu0
      %v6443 = vadd.f32 0.0, %v6442
      %v6444 = vpop.f32.mrb[0].mxu0
      %6445 = vmatprep.mubr.f32.mxu0 0.0
      %6446 = vmatmul.mubr.f32.gmra.mrb[0].mxu0 %v6262
      %v6447 = vpop.f32.mrb[0].mxu0
      %v6448 = vadd.f32 0.0, %v6447
      %v6449 = vpop.f32.mrb[0].mxu0
      %6450 = vmatprep.mubr.f32.mxu0 0.0
      %6451 = vmatmul.mubr.f32.gmra.mrb[0].mxu0 %v6265
      %v6452 = vpop.f32.mrb[0].mxu0
      %v6453 = vadd.f32 0.0, %v6452
      %v6454 = vpop.f32.mrb[0].mxu0
      %6455 = vmatprep.mubr.f32.mxu0 0.0
      %6456 = vmatmul.mubr.f32.gmra.mrb[0].mxu0 %v6268
      %v6457 = vpop.f32.mrb[0].mxu0
      %v6458 = vadd.f32 0.0, %v6457
      %v6459 = vpop.f32.mrb[0].mxu0
      %6460 = vmatprep.mubr.f32.mxu0 0.0
      %6461 = vmatmul.mubr.f32.gmra.mrb[0].mxu0 %v6271
      %v6462 = vpop.f32.mrb[0].mxu0
      %v6463 = vadd.f32 0.0, %v6462
      %v6464 = vpop.f32.mrb[0].mxu0
      %6465 = vmatprep.mubr.f32.mxu0 0.0
      %6466 = vmatmul.mubr.f32.gmra.mrb[0].mxu0 %v6274
      %v6467 = vpop.f32.mrb[0].mxu0
      %v6468 = vadd.f32 0.0, %v6467
      %v6469 = vpop.f32.mrb[0].mxu0
      %6470 = vmatprep.mubr.f32.mxu0 0.0
      %6471 = vmatmul.mubr.f32.gmra.mrb[0].mxu0 %v6277
      %v6472 = vpop.f32.mrb[0].mxu0
      %v6473 = vadd.f32 0.0, %v6472
      %v6474 = vpop.f32.mrb[0].mxu0
      %6475 = vmatprep.mubr.f32.mxu0 0.0
      %6476 = vmatmul.mubr.f32.gmra.mrb[0].mxu0 %v6280
      %v6477 = vpop.f32.mrb[0].mxu0
      %v6478 = vadd.f32 0.0, %v6477
      %v6479 = vpop.f32.mrb[0].mxu0
      %6480 = vmatprep.mubr.f32.mxu0 0.0
      %6481 = vmatmul.mubr.f32.gmra.mrb[0].mxu0 %v6283
      %v6482 = vpop.f32.mrb[0].mxu0
      %v6483 = vadd.f32 0.0, %v6482
      %v6484 = vpop.f32.mrb[0].mxu0
      %6485 = vmatprep.mubr.f32.mxu0 0.0
      %6486 = vmatmul.mubr.f32.gmra.mrb[0].mxu0 %v6286
      %v6487 = vpop.f32.mrb[0].mxu0
      %v6488 = vadd.f32 0.0, %v6487
      %v6489 = vpop.f32.mrb[0].mxu0
      %6490 = vmatprep.mubr.f32.mxu0 0.0
      %6491 = vmatmul.mubr.f32.gmra.mrb[0].mxu0 %v6289
      %v6492 = vpop.f32.mrb[0].mxu0
      %v6493 = vadd.f32 0.0, %v6492
      %v6494 = vpop.f32.mrb[0].mxu0
      %6495 = vmatprep.mubr.f32.mxu0 0.0
      %6496 = vmatmul.mubr.f32.gmra.mrb[0].mxu0 %v6292
      %v6497 = vpop.f32.mrb[0].mxu0
      %v6498 = vadd.f32 0.0, %v6497
      %v6499 = vpop.f32.mrb[0].mxu0
      %6500 = vmatprep.mubr.f32.mxu0 0.0
      %6501 = vmatmul.mubr.f32.gmra.mrb[0].mxu0 %v6295
      %v6502 = vpop.f32.mrb[0].mxu0
      %v6503 = vadd.f32 0.0, %v6502
      %v6504 = vpop.f32.mrb[0].mxu0
      %6505 = vmatprep.mubr.f32.mxu0 0.0
      %6506 = vmatmul.mubr.f32.gmra.mrb[0].mxu0 %v6298
      %v6507 = vpop.f32.mrb[0].mxu0
      %v6508 = vadd.f32 0.0, %v6507
      %v6509 = vpop.f32.mrb[0].mxu0
      %6510 = vmatprep.mubr.f32.mxu0 0.0
      %6511 = vmatmul.mubr.f32.gmra.mrb[0].mxu0 %v6301
      %v6512 = vpop.f32.mrb[0].mxu0
      %v6513 = vadd.f32 0.0, %v6512
      %v6514 = vpop.f32.mrb[0].mxu0
      %6515 = vmatprep.mubr.f32.mxu0 0.0
      %6516 = vmatmul.mubr.f32.gmra.mrb[0].mxu0 %v6304
      %v6517 = vpop.f32.mrb[0].mxu0
      %v6518 = vadd.f32 0.0, %v6517
      %v6519 = vpop.f32.mrb[0].mxu0
      %6520 = vmatprep.mubr.f32.mxu0 0.0
      %6521 = vmatmul.mubr.f32.gmra.mrb[0].mxu0 %v6307
      %v6522 = vpop.f32.mrb[0].mxu0
      %v6523 = vadd.f32 0.0, %v6522
      %v6524 = vpop.f32.mrb[0].mxu0
      %6525 = vmatprep.mubr.f32.mxu0 0.0
      %6526 = vmatmul.mubr.f32.gmra.mrb[0].mxu0 %v6310
      %v6527 = vpop.f32.mrb[0].mxu0
      %v6528 = vadd.f32 0.0, %v6527
      %v6529 = vpop.f32.mrb[0].mxu0
      %6530 = vmatprep.mubr.f32.mxu0 0.0
      %6531 = vmatmul.mubr.f32.gmra.mrb[0].mxu0 %v6313
      %v6532 = vpop.f32.mrb[0].mxu0
      %v6533 = vadd.f32 0.0, %v6532
      %v6534 = vpop.f32.mrb[0].mxu0
      %6535 = vmatprep.mubr.f32.mxu0 0.0
      %6536 = vmatmul.mubr.f32.gmra.mrb[0].mxu0 %v6316
      %v6537 = vpop.f32.mrb[0].mxu0
      %v6538 = vadd.f32 0.0, %v6537
      %v6539 = vpop.f32.mrb[0].mxu0
      %6540 = vmatprep.mubr.f32.mxu0 0.0
      %6541 = vmatmul.mubr.f32.gmra.mrb[0].mxu0 %v6319
      %v6542 = vpop.f32.mrb[0].mxu0
      %v6543 = vadd.f32 0.0, %v6542
      %v6544 = vpop.f32.mrb[0].mxu0
      %6545 = vdwg.mxu0
      %v6546 = vadd.f32 %v6158, %v6388
      %v6547 = vadd.f32 %v6159, %v6393
      %v6548 = vadd.f32 %v6160, %v6398
      %v6549 = vadd.f32 %v6161, %v6403
      %v6550 = vadd.f32 %v6162, %v6408
      %v6551 = vadd.f32 %v6163, %v6413
      %v6552 = vadd.f32 %v6164, %v6418
      %v6553 = vadd.f32 %v6165, %v6423
      %v6554 = vadd.f32 %v6166, %v6428
      %v6555 = vadd.f32 %v6167, %v6433
      %v6556 = vadd.f32 %v6168, %v6438
      %v6557 = vadd.f32 %v6169, %v6443
      %v6558 = vadd.f32 %v6170, %v6448
      %v6559 = vadd.f32 %v6171, %v6453
      %v6560 = vadd.f32 %v6172, %v6458
      %v6561 = vadd.f32 %v6173, %v6463
      %v6562 = vadd.f32 %v6174, %v6468
      %v6563 = vadd.f32 %v6175, %v6473
      %v6564 = vadd.f32 %v6176, %v6478
      %v6565 = vadd.f32 %v6177, %v6483
      %v6566 = vadd.f32 %v6178, %v6488
      %v6567 = vadd.f32 %v6179, %v6493
      %v6568 = vadd.f32 %v6180, %v6498
      %v6569 = vadd.f32 %v6181, %v6503
      %v6570 = vadd.f32 %v6182, %v6508
      %v6571 = vadd.f32 %v6183, %v6513
      %v6572 = vadd.f32 %v6184, %v6518
      %v6573 = vadd.f32 %v6185, %v6523
      %v6574 = vadd.f32 %v6186, %v6528
      %v6575 = vadd.f32 %v6187, %v6533
      %v6576 = vadd.f32 %v6188, %v6538
      %v6577 = vadd.f32 %v6189, %v6543
      %v6578 = vld [vmem:[%s6190 + $0x1] sm:$0xff]
      %v6579 = vld [vmem:[%s6190 + $0x9] sm:$0xff]
      %v6580 = vld [vmem:[%s6190 + $0x19] sm:$0xff]
      %v6581 = vld [vmem:[%s6190 + $0x21] sm:$0xff]
      %v6582 = vld [vmem:[%s6190 + $0x31] sm:$0xff]
      %v6583 = vld [vmem:[%s6190 + $0x39] sm:$0xff]
      %v6584 = vld [vmem:[%s6190 + $0x49] sm:$0xff]
      %v6585 = vld [vmem:[%s6190 + $0x51] sm:$0xff]
      %v6586 = vld [vmem:[%s6190 + $0x61] sm:$0xff]
      %v6587 = vld [vmem:[%s6190 + $0x69] sm:$0xff]
      %v6588 = vld [vmem:[%s6190 + $0x79] sm:$0xff]
      %v6589 = vld [vmem:[%s6190 + $0x81] sm:$0xff]
      %v6590 = vld [vmem:[%s6190 + $0x91] sm:$0xff]
      %v6591 = vld [vmem:[%s6190 + $0x99] sm:$0xff]
      %v6592 = vld [vmem:[%s6190 + $0xa9] sm:$0xff]
      %v6593 = vld [vmem:[%s6190 + $0xb1] sm:$0xff]
      %v6594 = vld [vmem:[%s6190 + $0xc1] sm:$0xff]
      %v6595 = vld [vmem:[%s6190 + $0xc9] sm:$0xff]
      %v6596 = vld [vmem:[%s6190 + $0xd9] sm:$0xff]
      %v6597 = vld [vmem:[%s6190 + $0xe1] sm:$0xff]
      %v6598 = vld [vmem:[%s6190 + $0xf1] sm:$0xff]
      %v6599 = vld [vmem:[%s6190 + $0xf9] sm:$0xff]
      %v6600 = vld [vmem:[%s6190 + $0x109] sm:$0xff]
      %v6601 = vld [vmem:[%s6190 + $0x111] sm:$0xff]
      %v6602 = vld [vmem:[%s6190 + $0x121] sm:$0xff]
      %v6603 = vld [vmem:[%s6190 + $0x129] sm:$0xff]
      %v6604 = vld [vmem:[%s6190 + $0x139] sm:$0xff]
      %v6605 = vld [vmem:[%s6190 + $0x141] sm:$0xff]
      %v6606 = vld [vmem:[%s6190 + $0x151] sm:$0xff]
      %v6607 = vld [vmem:[%s6190 + $0x159] sm:$0xff]
      %v6608 = vld [vmem:[%s6190 + $0x169] sm:$0xff]
      %v6609 = vld [vmem:[%s6190 + $0x171] sm:$0xff]
      %s6610 = scalar_lea.vmem %s3, 56
      %v6611 = vld [vmem:[%s6610] sm:$0xff]
      %v6613 = vsel %vm271, %v6578, 0
      %v6616 = vsel %vm271, %v6579, 0
      %v6619 = vsel %vm271, %v6580, 0
      %v6622 = vsel %vm271, %v6581, 0
      %v6625 = vsel %vm271, %v6582, 0
      %v6628 = vsel %vm271, %v6583, 0
      %v6631 = vsel %vm271, %v6584, 0
      %v6634 = vsel %vm271, %v6585, 0
      %v6637 = vsel %vm271, %v6586, 0
      %v6640 = vsel %vm271, %v6587, 0
      %v6643 = vsel %vm271, %v6588, 0
      %v6646 = vsel %vm271, %v6589, 0
      %v6649 = vsel %vm271, %v6590, 0
      %v6652 = vsel %vm271, %v6591, 0
      %v6655 = vsel %vm271, %v6592, 0
      %v6658 = vsel %vm271, %v6593, 0
      %v6661 = vsel %vm271, %v6594, 0
      %v6664 = vsel %vm271, %v6595, 0
      %v6667 = vsel %vm271, %v6596, 0
      %v6670 = vsel %vm271, %v6597, 0
      %v6673 = vsel %vm271, %v6598, 0
      %v6676 = vsel %vm271, %v6599, 0
      %v6679 = vsel %vm271, %v6600, 0
      %v6682 = vsel %vm271, %v6601, 0
      %v6685 = vsel %vm271, %v6602, 0
      %v6688 = vsel %vm271, %v6603, 0
      %v6691 = vsel %vm271, %v6604, 0
      %v6694 = vsel %vm271, %v6605, 0
      %v6697 = vsel %vm271, %v6606, 0
      %v6700 = vsel %vm271, %v6607, 0
      %v6703 = vsel %vm271, %v6608, 0
      %v6706 = vsel %vm271, %v6609, 0
      %6708 = vmatprep.subr.mxu0 0.0
      %6709 = vmatpush1.msra.mxu0 %v6611
      %6710 = vmatprep.subr.mxu0 0.0
      %6711 = vmatpush1.msra.mxu0 0.0
      %6712 = vmatprep.subr.mxu0 0.0
      %6713 = vmatpush1.msra.mxu0 0.0
      %6714 = vmatprep.subr.mxu0 0.0
      %6715 = vmatpush1.msra.mxu0 0.0
      %6716 = vmatprep.subr.mxu0 0.0
      %6717 = vmatpush1.msra.mxu0 0.0
      %6718 = vmatprep.subr.mxu0 0.0
      %6719 = vmatpush1.msra.mxu0 0.0
      %6720 = vmatprep.subr.mxu0 0.0
      %6721 = vmatpush1.msra.mxu0 0.0
      %6722 = vmatprep.subr.mxu0 0.0
      %6723 = vmatpush1.msra.mxu0 0.0
      %6724 = vmatprep.subr.mxu0 0.0
      %6725 = vmatpush1.msra.mxu0 0.0
      %6726 = vmatprep.subr.mxu0 0.0
      %6727 = vmatpush1.msra.mxu0 0.0
      %6728 = vmatprep.subr.mxu0 0.0
      %6729 = vmatpush1.msra.mxu0 0.0
      %6730 = vmatprep.subr.mxu0 0.0
      %6731 = vmatpush1.msra.mxu0 0.0
      %6732 = vmatprep.subr.mxu0 0.0
      %6733 = vmatpush1.msra.mxu0 0.0
      %6734 = vmatprep.subr.mxu0 0.0
      %6735 = vmatpush1.msra.mxu0 0.0
      %6736 = vmatprep.subr.mxu0 0.0
      %6737 = vmatpush1.msra.mxu0 0.0
      %6738 = vmatprep.subr.mxu0 0.0
      %6739 = vmatpush1.msra.mxu0 0.0
      %6740 = vmatprep.subr.mxu0 0.0
      %6741 = vmatpush1.msra.mxu0 0.0
      %6742 = vmatprep.subr.mxu0 0.0
      %6743 = vmatpush1.msra.mxu0 0.0
      %6744 = vmatprep.subr.mxu0 0.0
      %6745 = vmatpush1.msra.mxu0 0.0
      %6746 = vmatprep.subr.mxu0 0.0
      %6747 = vmatpush1.msra.mxu0 0.0
      %6748 = vmatprep.subr.mxu0 0.0
      %6749 = vmatpush1.msra.mxu0 0.0
      %6750 = vmatprep.subr.mxu0 0.0
      %6751 = vmatpush1.msra.mxu0 0.0
      %6752 = vmatprep.subr.mxu0 0.0
      %6753 = vmatpush1.msra.mxu0 0.0
      %6754 = vmatprep.subr.mxu0 0.0
      %6755 = vmatpush1.msra.mxu0 0.0
      %6756 = vmatprep.subr.mxu0 0.0
      %6757 = vmatpush1.msra.mxu0 0.0
      %6758 = vmatprep.subr.mxu0 0.0
      %6759 = vmatpush1.msra.mxu0 0.0
      %6760 = vmatprep.subr.mxu0 0.0
      %6761 = vmatpush1.msra.mxu0 0.0
      %6762 = vmatprep.subr.mxu0 0.0
      %6763 = vmatpush1.msra.mxu0 0.0
      %6764 = vmatprep.subr.mxu0 0.0
      %6765 = vmatpush1.msra.mxu0 0.0
      %6766 = vmatprep.subr.mxu0 0.0
      %6767 = vmatpush1.msra.mxu0 0.0
      %6768 = vmatprep.subr.mxu0 0.0
      %6769 = vmatpush1.msra.mxu0 0.0
      %6770 = vmatprep.subr.mxu0 0.0
      %6771 = vmatpush1.msra.mxu0 0.0
      %6772 = vmatprep.mubr.f32.mxu0 0.0
      %6773 = vmatmul.mubr.f32.gmra.mrb[0].mxu0 %v6613
      %v6774 = vpop.f32.mrb[0].mxu0
      %v6775 = vadd.f32 0.0, %v6774
      %v6776 = vpop.f32.mrb[0].mxu0
      %6777 = vmatprep.mubr.f32.mxu0 0.0
      %6778 = vmatmul.mubr.f32.gmra.mrb[0].mxu0 %v6616
      %v6779 = vpop.f32.mrb[0].mxu0
      %v6780 = vadd.f32 0.0, %v6779
      %v6781 = vpop.f32.mrb[0].mxu0
      %6782 = vmatprep.mubr.f32.mxu0 0.0
      %6783 = vmatmul.mubr.f32.gmra.mrb[0].mxu0 %v6619
      %v6784 = vpop.f32.mrb[0].mxu0
      %v6785 = vadd.f32 0.0, %v6784
      %v6786 = vpop.f32.mrb[0].mxu0
      %6787 = vmatprep.mubr.f32.mxu0 0.0
      %6788 = vmatmul.mubr.f32.gmra.mrb[0].mxu0 %v6622
      %v6789 = vpop.f32.mrb[0].mxu0
      %v6790 = vadd.f32 0.0, %v6789
      %v6791 = vpop.f32.mrb[0].mxu0
      %6792 = vmatprep.mubr.f32.mxu0 0.0
      %6793 = vmatmul.mubr.f32.gmra.mrb[0].mxu0 %v6625
      %v6794 = vpop.f32.mrb[0].mxu0
      %v6795 = vadd.f32 0.0, %v6794
      %v6796 = vpop.f32.mrb[0].mxu0
      %6797 = vmatprep.mubr.f32.mxu0 0.0
      %6798 = vmatmul.mubr.f32.gmra.mrb[0].mxu0 %v6628
      %v6799 = vpop.f32.mrb[0].mxu0
      %v6800 = vadd.f32 0.0, %v6799
      %v6801 = vpop.f32.mrb[0].mxu0
      %6802 = vmatprep.mubr.f32.mxu0 0.0
      %6803 = vmatmul.mubr.f32.gmra.mrb[0].mxu0 %v6631
      %v6804 = vpop.f32.mrb[0].mxu0
      %v6805 = vadd.f32 0.0, %v6804
      %v6806 = vpop.f32.mrb[0].mxu0
      %6807 = vmatprep.mubr.f32.mxu0 0.0
      %6808 = vmatmul.mubr.f32.gmra.mrb[0].mxu0 %v6634
      %v6809 = vpop.f32.mrb[0].mxu0
      %v6810 = vadd.f32 0.0, %v6809
      %v6811 = vpop.f32.mrb[0].mxu0
      %6812 = vmatprep.mubr.f32.mxu0 0.0
      %6813 = vmatmul.mubr.f32.gmra.mrb[0].mxu0 %v6637
      %v6814 = vpop.f32.mrb[0].mxu0
      %v6815 = vadd.f32 0.0, %v6814
      %v6816 = vpop.f32.mrb[0].mxu0
      %6817 = vmatprep.mubr.f32.mxu0 0.0
      %6818 = vmatmul.mubr.f32.gmra.mrb[0].mxu0 %v6640
      %v6819 = vpop.f32.mrb[0].mxu0
      %v6820 = vadd.f32 0.0, %v6819
      %v6821 = vpop.f32.mrb[0].mxu0
      %6822 = vmatprep.mubr.f32.mxu0 0.0
      %6823 = vmatmul.mubr.f32.gmra.mrb[0].mxu0 %v6643
      %v6824 = vpop.f32.mrb[0].mxu0
      %v6825 = vadd.f32 0.0, %v6824
      %v6826 = vpop.f32.mrb[0].mxu0
      %6827 = vmatprep.mubr.f32.mxu0 0.0
      %6828 = vmatmul.mubr.f32.gmra.mrb[0].mxu0 %v6646
      %v6829 = vpop.f32.mrb[0].mxu0
      %v6830 = vadd.f32 0.0, %v6829
      %v6831 = vpop.f32.mrb[0].mxu0
      %6832 = vmatprep.mubr.f32.mxu0 0.0
      %6833 = vmatmul.mubr.f32.gmra.mrb[0].mxu0 %v6649
      %v6834 = vpop.f32.mrb[0].mxu0
      %v6835 = vadd.f32 0.0, %v6834
      %v6836 = vpop.f32.mrb[0].mxu0
      %6837 = vmatprep.mubr.f32.mxu0 0.0
      %6838 = vmatmul.mubr.f32.gmra.mrb[0].mxu0 %v6652
      %v6839 = vpop.f32.mrb[0].mxu0
      %v6840 = vadd.f32 0.0, %v6839
      %v6841 = vpop.f32.mrb[0].mxu0
      %6842 = vmatprep.mubr.f32.mxu0 0.0
      %6843 = vmatmul.mubr.f32.gmra.mrb[0].mxu0 %v6655
      %v6844 = vpop.f32.mrb[0].mxu0
      %v6845 = vadd.f32 0.0, %v6844
      %v6846 = vpop.f32.mrb[0].mxu0
      %6847 = vmatprep.mubr.f32.mxu0 0.0
      %6848 = vmatmul.mubr.f32.gmra.mrb[0].mxu0 %v6658
      %v6849 = vpop.f32.mrb[0].mxu0
      %v6850 = vadd.f32 0.0, %v6849
      %v6851 = vpop.f32.mrb[0].mxu0
      %6852 = vmatprep.mubr.f32.mxu0 0.0
      %6853 = vmatmul.mubr.f32.gmra.mrb[0].mxu0 %v6661
      %v6854 = vpop.f32.mrb[0].mxu0
      %v6855 = vadd.f32 0.0, %v6854
      %v6856 = vpop.f32.mrb[0].mxu0
      %6857 = vmatprep.mubr.f32.mxu0 0.0
      %6858 = vmatmul.mubr.f32.gmra.mrb[0].mxu0 %v6664
      %v6859 = vpop.f32.mrb[0].mxu0
      %v6860 = vadd.f32 0.0, %v6859
      %v6861 = vpop.f32.mrb[0].mxu0
      %6862 = vmatprep.mubr.f32.mxu0 0.0
      %6863 = vmatmul.mubr.f32.gmra.mrb[0].mxu0 %v6667
      %v6864 = vpop.f32.mrb[0].mxu0
      %v6865 = vadd.f32 0.0, %v6864
      %v6866 = vpop.f32.mrb[0].mxu0
      %6867 = vmatprep.mubr.f32.mxu0 0.0
      %6868 = vmatmul.mubr.f32.gmra.mrb[0].mxu0 %v6670
      %v6869 = vpop.f32.mrb[0].mxu0
      %v6870 = vadd.f32 0.0, %v6869
      %v6871 = vpop.f32.mrb[0].mxu0
      %6872 = vmatprep.mubr.f32.mxu0 0.0
      %6873 = vmatmul.mubr.f32.gmra.mrb[0].mxu0 %v6673
      %v6874 = vpop.f32.mrb[0].mxu0
      %v6875 = vadd.f32 0.0, %v6874
      %v6876 = vpop.f32.mrb[0].mxu0
      %6877 = vmatprep.mubr.f32.mxu0 0.0
      %6878 = vmatmul.mubr.f32.gmra.mrb[0].mxu0 %v6676
      %v6879 = vpop.f32.mrb[0].mxu0
      %v6880 = vadd.f32 0.0, %v6879
      %v6881 = vpop.f32.mrb[0].mxu0
      %6882 = vmatprep.mubr.f32.mxu0 0.0
      %6883 = vmatmul.mubr.f32.gmra.mrb[0].mxu0 %v6679
      %v6884 = vpop.f32.mrb[0].mxu0
      %v6885 = vadd.f32 0.0, %v6884
      %v6886 = vpop.f32.mrb[0].mxu0
      %6887 = vmatprep.mubr.f32.mxu0 0.0
      %6888 = vmatmul.mubr.f32.gmra.mrb[0].mxu0 %v6682
      %v6889 = vpop.f32.mrb[0].mxu0
      %v6890 = vadd.f32 0.0, %v6889
      %v6891 = vpop.f32.mrb[0].mxu0
      %6892 = vmatprep.mubr.f32.mxu0 0.0
      %6893 = vmatmul.mubr.f32.gmra.mrb[0].mxu0 %v6685
      %v6894 = vpop.f32.mrb[0].mxu0
      %v6895 = vadd.f32 0.0, %v6894
      %v6896 = vpop.f32.mrb[0].mxu0
      %6897 = vmatprep.mubr.f32.mxu0 0.0
      %6898 = vmatmul.mubr.f32.gmra.mrb[0].mxu0 %v6688
      %v6899 = vpop.f32.mrb[0].mxu0
      %v6900 = vadd.f32 0.0, %v6899
      %v6901 = vpop.f32.mrb[0].mxu0
      %6902 = vmatprep.mubr.f32.mxu0 0.0
      %6903 = vmatmul.mubr.f32.gmra.mrb[0].mxu0 %v6691
      %v6904 = vpop.f32.mrb[0].mxu0
      %v6905 = vadd.f32 0.0, %v6904
      %v6906 = vpop.f32.mrb[0].mxu0
      %6907 = vmatprep.mubr.f32.mxu0 0.0
      %6908 = vmatmul.mubr.f32.gmra.mrb[0].mxu0 %v6694
      %v6909 = vpop.f32.mrb[0].mxu0
      %v6910 = vadd.f32 0.0, %v6909
      %v6911 = vpop.f32.mrb[0].mxu0
      %6912 = vmatprep.mubr.f32.mxu0 0.0
      %6913 = vmatmul.mubr.f32.gmra.mrb[0].mxu0 %v6697
      %v6914 = vpop.f32.mrb[0].mxu0
      %v6915 = vadd.f32 0.0, %v6914
      %v6916 = vpop.f32.mrb[0].mxu0
      %6917 = vmatprep.mubr.f32.mxu0 0.0
      %6918 = vmatmul.mubr.f32.gmra.mrb[0].mxu0 %v6700
      %v6919 = vpop.f32.mrb[0].mxu0
      %v6920 = vadd.f32 0.0, %v6919
      %v6921 = vpop.f32.mrb[0].mxu0
      %6922 = vmatprep.mubr.f32.mxu0 0.0
      %6923 = vmatmul.mubr.f32.gmra.mrb[0].mxu0 %v6703
      %v6924 = vpop.f32.mrb[0].mxu0
      %v6925 = vadd.f32 0.0, %v6924
      %v6926 = vpop.f32.mrb[0].mxu0
      %6927 = vmatprep.mubr.f32.mxu0 0.0
      %6928 = vmatmul.mubr.f32.gmra.mrb[0].mxu0 %v6706
      %v6929 = vpop.f32.mrb[0].mxu0
      %v6930 = vadd.f32 0.0, %v6929
      %v6931 = vpop.f32.mrb[0].mxu0
      %6932 = vdwg.mxu0
      %v6933 = vadd.f32 %v6546, %v6775
      %v6934 = vadd.f32 %v6547, %v6780
      %v6935 = vadd.f32 %v6548, %v6785
      %v6936 = vadd.f32 %v6549, %v6790
      %v6937 = vadd.f32 %v6550, %v6795
      %v6938 = vadd.f32 %v6551, %v6800
      %v6939 = vadd.f32 %v6552, %v6805
      %v6940 = vadd.f32 %v6553, %v6810
      %v6941 = vadd.f32 %v6554, %v6815
      %v6942 = vadd.f32 %v6555, %v6820
      %v6943 = vadd.f32 %v6556, %v6825
      %v6944 = vadd.f32 %v6557, %v6830
      %v6945 = vadd.f32 %v6558, %v6835
      %v6946 = vadd.f32 %v6559, %v6840
      %v6947 = vadd.f32 %v6560, %v6845
      %v6948 = vadd.f32 %v6561, %v6850
      %v6949 = vadd.f32 %v6562, %v6855
      %v6950 = vadd.f32 %v6563, %v6860
      %v6951 = vadd.f32 %v6564, %v6865
      %v6952 = vadd.f32 %v6565, %v6870
      %v6953 = vadd.f32 %v6566, %v6875
      %v6954 = vadd.f32 %v6567, %v6880
      %v6955 = vadd.f32 %v6568, %v6885
      %v6956 = vadd.f32 %v6569, %v6890
      %v6957 = vadd.f32 %v6570, %v6895
      %v6958 = vadd.f32 %v6571, %v6900
      %v6959 = vadd.f32 %v6572, %v6905
      %v6960 = vadd.f32 %v6573, %v6910
      %v6961 = vadd.f32 %v6574, %v6915
      %v6962 = vadd.f32 %v6575, %v6920
      %v6963 = vadd.f32 %v6576, %v6925
      %v6964 = vadd.f32 %v6577, %v6930
      %v6965 = vld [vmem:[%s6190 + $0x2] sm:$0xff]
      %v6966 = vld [vmem:[%s6190 + $0xa] sm:$0xff]
      %v6967 = vld [vmem:[%s6190 + $0x1a] sm:$0xff]
      %v6968 = vld [vmem:[%s6190 + $0x22] sm:$0xff]
      %v6969 = vld [vmem:[%s6190 + $0x32] sm:$0xff]
      %v6970 = vld [vmem:[%s6190 + $0x3a] sm:$0xff]
      %v6971 = vld [vmem:[%s6190 + $0x4a] sm:$0xff]
      %v6972 = vld [vmem:[%s6190 + $0x52] sm:$0xff]
      %v6973 = vld [vmem:[%s6190 + $0x62] sm:$0xff]
      %v6974 = vld [vmem:[%s6190 + $0x6a] sm:$0xff]
      %v6975 = vld [vmem:[%s6190 + $0x7a] sm:$0xff]
      %v6976 = vld [vmem:[%s6190 + $0x82] sm:$0xff]
      %v6977 = vld [vmem:[%s6190 + $0x92] sm:$0xff]
      %v6978 = vld [vmem:[%s6190 + $0x9a] sm:$0xff]
      %v6979 = vld [vmem:[%s6190 + $0xaa] sm:$0xff]
      %v6980 = vld [vmem:[%s6190 + $0xb2] sm:$0xff]
      %v6981 = vld [vmem:[%s6190 + $0xc2] sm:$0xff]
      %v6982 = vld [vmem:[%s6190 + $0xca] sm:$0xff]
      %v6983 = vld [vmem:[%s6190 + $0xda] sm:$0xff]
      %v6984 = vld [vmem:[%s6190 + $0xe2] sm:$0xff]
      %v6985 = vld [vmem:[%s6190 + $0xf2] sm:$0xff]
      %v6986 = vld [vmem:[%s6190 + $0xfa] sm:$0xff]
      %v6987 = vld [vmem:[%s6190 + $0x10a] sm:$0xff]
      %v6988 = vld [vmem:[%s6190 + $0x112] sm:$0xff]
      %v6989 = vld [vmem:[%s6190 + $0x122] sm:$0xff]
      %v6990 = vld [vmem:[%s6190 + $0x12a] sm:$0xff]
      %v6991 = vld [vmem:[%s6190 + $0x13a] sm:$0xff]
      %v6992 = vld [vmem:[%s6190 + $0x142] sm:$0xff]
      %v6993 = vld [vmem:[%s6190 + $0x152] sm:$0xff]
      %v6994 = vld [vmem:[%s6190 + $0x15a] sm:$0xff]
      %v6995 = vld [vmem:[%s6190 + $0x16a] sm:$0xff]
      %v6996 = vld [vmem:[%s6190 + $0x172] sm:$0xff]
      %s6997 = scalar_lea.vmem %s3, 64
      %v6998 = vld [vmem:[%s6997] sm:$0xff]
      %v7000 = vsel %vm271, %v6965, 0
      %v7003 = vsel %vm271, %v6966, 0
      %v7006 = vsel %vm271, %v6967, 0
      %v7009 = vsel %vm271, %v6968, 0
      %v7012 = vsel %vm271, %v6969, 0
      %v7015 = vsel %vm271, %v6970, 0
      %v7018 = vsel %vm271, %v6971, 0
      %v7021 = vsel %vm271, %v6972, 0
      %v7024 = vsel %vm271, %v6973, 0
      %v7027 = vsel %vm271, %v6974, 0
      %v7030 = vsel %vm271, %v6975, 0
      %v7033 = vsel %vm271, %v6976, 0
      %v7036 = vsel %vm271, %v6977, 0
      %v7039 = vsel %vm271, %v6978, 0
      %v7042 = vsel %vm271, %v6979, 0
      %v7045 = vsel %vm271, %v6980, 0
      %v7048 = vsel %vm271, %v6981, 0
      %v7051 = vsel %vm271, %v6982, 0
      %v7054 = vsel %vm271, %v6983, 0
      %v7057 = vsel %vm271, %v6984, 0
      %v7060 = vsel %vm271, %v6985, 0
      %v7063 = vsel %vm271, %v6986, 0
      %v7066 = vsel %vm271, %v6987, 0
      %v7069 = vsel %vm271, %v6988, 0
      %v7072 = vsel %vm271, %v6989, 0
      %v7075 = vsel %vm271, %v6990, 0
      %v7078 = vsel %vm271, %v6991, 0
      %v7081 = vsel %vm271, %v6992, 0
      %v7084 = vsel %vm271, %v6993, 0
      %v7087 = vsel %vm271, %v6994, 0
      %v7090 = vsel %vm271, %v6995, 0
      %v7093 = vsel %vm271, %v6996, 0
      %7095 = vmatprep.subr.mxu0 0.0
      %7096 = vmatpush1.msra.mxu0 %v6998
      %7097 = vmatprep.subr.mxu0 0.0
      %7098 = vmatpush1.msra.mxu0 0.0
      %7099 = vmatprep.subr.mxu0 0.0
      %7100 = vmatpush1.msra.mxu0 0.0
      %7101 = vmatprep.subr.mxu0 0.0
      %7102 = vmatpush1.msra.mxu0 0.0
      %7103 = vmatprep.subr.mxu0 0.0
      %7104 = vmatpush1.msra.mxu0 0.0
      %7105 = vmatprep.subr.mxu0 0.0
      %7106 = vmatpush1.msra.mxu0 0.0
      %7107 = vmatprep.subr.mxu0 0.0
      %7108 = vmatpush1.msra.mxu0 0.0
      %7109 = vmatprep.subr.mxu0 0.0
      %7110 = vmatpush1.msra.mxu0 0.0
      %7111 = vmatprep.subr.mxu0 0.0
      %7112 = vmatpush1.msra.mxu0 0.0
      %7113 = vmatprep.subr.mxu0 0.0
      %7114 = vmatpush1.msra.mxu0 0.0
      %7115 = vmatprep.subr.mxu0 0.0
      %7116 = vmatpush1.msra.mxu0 0.0
      %7117 = vmatprep.subr.mxu0 0.0
      %7118 = vmatpush1.msra.mxu0 0.0
      %7119 = vmatprep.subr.mxu0 0.0
      %7120 = vmatpush1.msra.mxu0 0.0
      %7121 = vmatprep.subr.mxu0 0.0
      %7122 = vmatpush1.msra.mxu0 0.0
      %7123 = vmatprep.subr.mxu0 0.0
      %7124 = vmatpush1.msra.mxu0 0.0
      %7125 = vmatprep.subr.mxu0 0.0
      %7126 = vmatpush1.msra.mxu0 0.0
      %7127 = vmatprep.subr.mxu0 0.0
      %7128 = vmatpush1.msra.mxu0 0.0
      %7129 = vmatprep.subr.mxu0 0.0
      %7130 = vmatpush1.msra.mxu0 0.0
      %7131 = vmatprep.subr.mxu0 0.0
      %7132 = vmatpush1.msra.mxu0 0.0
      %7133 = vmatprep.subr.mxu0 0.0
      %7134 = vmatpush1.msra.mxu0 0.0
      %7135 = vmatprep.subr.mxu0 0.0
      %7136 = vmatpush1.msra.mxu0 0.0
      %7137 = vmatprep.subr.mxu0 0.0
      %7138 = vmatpush1.msra.mxu0 0.0
      %7139 = vmatprep.subr.mxu0 0.0
      %7140 = vmatpush1.msra.mxu0 0.0
      %7141 = vmatprep.subr.mxu0 0.0
      %7142 = vmatpush1.msra.mxu0 0.0
      %7143 = vmatprep.subr.mxu0 0.0
      %7144 = vmatpush1.msra.mxu0 0.0
      %7145 = vmatprep.subr.mxu0 0.0
      %7146 = vmatpush1.msra.mxu0 0.0
      %7147 = vmatprep.subr.mxu0 0.0
      %7148 = vmatpush1.msra.mxu0 0.0
      %7149 = vmatprep.subr.mxu0 0.0
      %7150 = vmatpush1.msra.mxu0 0.0
      %7151 = vmatprep.subr.mxu0 0.0
      %7152 = vmatpush1.msra.mxu0 0.0
      %7153 = vmatprep.subr.mxu0 0.0
      %7154 = vmatpush1.msra.mxu0 0.0
      %7155 = vmatprep.subr.mxu0 0.0
      %7156 = vmatpush1.msra.mxu0 0.0
      %7157 = vmatprep.subr.mxu0 0.0
      %7158 = vmatpush1.msra.mxu0 0.0
      %7159 = vmatprep.mubr.f32.mxu0 0.0
      %7160 = vmatmul.mubr.f32.gmra.mrb[0].mxu0 %v7000
      %v7161 = vpop.f32.mrb[0].mxu0
      %v7162 = vadd.f32 0.0, %v7161
      %v7163 = vpop.f32.mrb[0].mxu0
      %7164 = vmatprep.mubr.f32.mxu0 0.0
      %7165 = vmatmul.mubr.f32.gmra.mrb[0].mxu0 %v7003
      %v7166 = vpop.f32.mrb[0].mxu0
      %v7167 = vadd.f32 0.0, %v7166
      %v7168 = vpop.f32.mrb[0].mxu0
      %7169 = vmatprep.mubr.f32.mxu0 0.0
      %7170 = vmatmul.mubr.f32.gmra.mrb[0].mxu0 %v7006
      %v7171 = vpop.f32.mrb[0].mxu0
      %v7172 = vadd.f32 0.0, %v7171
      %v7173 = vpop.f32.mrb[0].mxu0
      %7174 = vmatprep.mubr.f32.mxu0 0.0
      %7175 = vmatmul.mubr.f32.gmra.mrb[0].mxu0 %v7009
      %v7176 = vpop.f32.mrb[0].mxu0
      %v7177 = vadd.f32 0.0, %v7176
      %v7178 = vpop.f32.mrb[0].mxu0
      %7179 = vmatprep.mubr.f32.mxu0 0.0
      %7180 = vmatmul.mubr.f32.gmra.mrb[0].mxu0 %v7012
      %v7181 = vpop.f32.mrb[0].mxu0
      %v7182 = vadd.f32 0.0, %v7181
      %v7183 = vpop.f32.mrb[0].mxu0
      %7184 = vmatprep.mubr.f32.mxu0 0.0
      %7185 = vmatmul.mubr.f32.gmra.mrb[0].mxu0 %v7015
      %v7186 = vpop.f32.mrb[0].mxu0
      %v7187 = vadd.f32 0.0, %v7186
      %v7188 = vpop.f32.mrb[0].mxu0
      %7189 = vmatprep.mubr.f32.mxu0 0.0
      %7190 = vmatmul.mubr.f32.gmra.mrb[0].mxu0 %v7018
      %v7191 = vpop.f32.mrb[0].mxu0
      %v7192 = vadd.f32 0.0, %v7191
      %v7193 = vpop.f32.mrb[0].mxu0
      %7194 = vmatprep.mubr.f32.mxu0 0.0
      %7195 = vmatmul.mubr.f32.gmra.mrb[0].mxu0 %v7021
      %v7196 = vpop.f32.mrb[0].mxu0
      %v7197 = vadd.f32 0.0, %v7196
      %v7198 = vpop.f32.mrb[0].mxu0
      %7199 = vmatprep.mubr.f32.mxu0 0.0
      %7200 = vmatmul.mubr.f32.gmra.mrb[0].mxu0 %v7024
      %v7201 = vpop.f32.mrb[0].mxu0
      %v7202 = vadd.f32 0.0, %v7201
      %v7203 = vpop.f32.mrb[0].mxu0
      %7204 = vmatprep.mubr.f32.mxu0 0.0
      %7205 = vmatmul.mubr.f32.gmra.mrb[0].mxu0 %v7027
      %v7206 = vpop.f32.mrb[0].mxu0
      %v7207 = vadd.f32 0.0, %v7206
      %v7208 = vpop.f32.mrb[0].mxu0
      %7209 = vmatprep.mubr.f32.mxu0 0.0
      %7210 = vmatmul.mubr.f32.gmra.mrb[0].mxu0 %v7030
      %v7211 = vpop.f32.mrb[0].mxu0
      %v7212 = vadd.f32 0.0, %v7211
      %v7213 = vpop.f32.mrb[0].mxu0
      %7214 = vmatprep.mubr.f32.mxu0 0.0
      %7215 = vmatmul.mubr.f32.gmra.mrb[0].mxu0 %v7033
      %v7216 = vpop.f32.mrb[0].mxu0
      %v7217 = vadd.f32 0.0, %v7216
      %v7218 = vpop.f32.mrb[0].mxu0
      %7219 = vmatprep.mubr.f32.mxu0 0.0
      %7220 = vmatmul.mubr.f32.gmra.mrb[0].mxu0 %v7036
      %v7221 = vpop.f32.mrb[0].mxu0
      %v7222 = vadd.f32 0.0, %v7221
      %v7223 = vpop.f32.mrb[0].mxu0
      %7224 = vmatprep.mubr.f32.mxu0 0.0
      %7225 = vmatmul.mubr.f32.gmra.mrb[0].mxu0 %v7039
      %v7226 = vpop.f32.mrb[0].mxu0
      %v7227 = vadd.f32 0.0, %v7226
      %v7228 = vpop.f32.mrb[0].mxu0
      %7229 = vmatprep.mubr.f32.mxu0 0.0
      %7230 = vmatmul.mubr.f32.gmra.mrb[0].mxu0 %v7042
      %v7231 = vpop.f32.mrb[0].mxu0
      %v7232 = vadd.f32 0.0, %v7231
      %v7233 = vpop.f32.mrb[0].mxu0
      %7234 = vmatprep.mubr.f32.mxu0 0.0
      %7235 = vmatmul.mubr.f32.gmra.mrb[0].mxu0 %v7045
      %v7236 = vpop.f32.mrb[0].mxu0
      %v7237 = vadd.f32 0.0, %v7236
      %v7238 = vpop.f32.mrb[0].mxu0
      %7239 = vmatprep.mubr.f32.mxu0 0.0
      %7240 = vmatmul.mubr.f32.gmra.mrb[0].mxu0 %v7048
      %v7241 = vpop.f32.mrb[0].mxu0
      %v7242 = vadd.f32 0.0, %v7241
      %v7243 = vpop.f32.mrb[0].mxu0
      %7244 = vmatprep.mubr.f32.mxu0 0.0
      %7245 = vmatmul.mubr.f32.gmra.mrb[0].mxu0 %v7051
      %v7246 = vpop.f32.mrb[0].mxu0
      %v7247 = vadd.f32 0.0, %v7246
      %v7248 = vpop.f32.mrb[0].mxu0
      %7249 = vmatprep.mubr.f32.mxu0 0.0
      %7250 = vmatmul.mubr.f32.gmra.mrb[0].mxu0 %v7054
      %v7251 = vpop.f32.mrb[0].mxu0
      %v7252 = vadd.f32 0.0, %v7251
      %v7253 = vpop.f32.mrb[0].mxu0
      %7254 = vmatprep.mubr.f32.mxu0 0.0
      %7255 = vmatmul.mubr.f32.gmra.mrb[0].mxu0 %v7057
      %v7256 = vpop.f32.mrb[0].mxu0
      %v7257 = vadd.f32 0.0, %v7256
      %v7258 = vpop.f32.mrb[0].mxu0
      %7259 = vmatprep.mubr.f32.mxu0 0.0
      %7260 = vmatmul.mubr.f32.gmra.mrb[0].mxu0 %v7060
      %v7261 = vpop.f32.mrb[0].mxu0
      %v7262 = vadd.f32 0.0, %v7261
      %v7263 = vpop.f32.mrb[0].mxu0
      %7264 = vmatprep.mubr.f32.mxu0 0.0
      %7265 = vmatmul.mubr.f32.gmra.mrb[0].mxu0 %v7063
      %v7266 = vpop.f32.mrb[0].mxu0
      %v7267 = vadd.f32 0.0, %v7266
      %v7268 = vpop.f32.mrb[0].mxu0
      %7269 = vmatprep.mubr.f32.mxu0 0.0
      %7270 = vmatmul.mubr.f32.gmra.mrb[0].mxu0 %v7066
      %v7271 = vpop.f32.mrb[0].mxu0
      %v7272 = vadd.f32 0.0, %v7271
      %v7273 = vpop.f32.mrb[0].mxu0
      %7274 = vmatprep.mubr.f32.mxu0 0.0
      %7275 = vmatmul.mubr.f32.gmra.mrb[0].mxu0 %v7069
      %v7276 = vpop.f32.mrb[0].mxu0
      %v7277 = vadd.f32 0.0, %v7276
      %v7278 = vpop.f32.mrb[0].mxu0
      %7279 = vmatprep.mubr.f32.mxu0 0.0
      %7280 = vmatmul.mubr.f32.gmra.mrb[0].mxu0 %v7072
      %v7281 = vpop.f32.mrb[0].mxu0
      %v7282 = vadd.f32 0.0, %v7281
      %v7283 = vpop.f32.mrb[0].mxu0
      %7284 = vmatprep.mubr.f32.mxu0 0.0
      %7285 = vmatmul.mubr.f32.gmra.mrb[0].mxu0 %v7075
      %v7286 = vpop.f32.mrb[0].mxu0
      %v7287 = vadd.f32 0.0, %v7286
      %v7288 = vpop.f32.mrb[0].mxu0
      %7289 = vmatprep.mubr.f32.mxu0 0.0
      %7290 = vmatmul.mubr.f32.gmra.mrb[0].mxu0 %v7078
      %v7291 = vpop.f32.mrb[0].mxu0
      %v7292 = vadd.f32 0.0, %v7291
      %v7293 = vpop.f32.mrb[0].mxu0
      %7294 = vmatprep.mubr.f32.mxu0 0.0
      %7295 = vmatmul.mubr.f32.gmra.mrb[0].mxu0 %v7081
      %v7296 = vpop.f32.mrb[0].mxu0
      %v7297 = vadd.f32 0.0, %v7296
      %v7298 = vpop.f32.mrb[0].mxu0
      %7299 = vmatprep.mubr.f32.mxu0 0.0
      %7300 = vmatmul.mubr.f32.gmra.mrb[0].mxu0 %v7084
      %v7301 = vpop.f32.mrb[0].mxu0
      %v7302 = vadd.f32 0.0, %v7301
      %v7303 = vpop.f32.mrb[0].mxu0
      %7304 = vmatprep.mubr.f32.mxu0 0.0
      %7305 = vmatmul.mubr.f32.gmra.mrb[0].mxu0 %v7087
      %v7306 = vpop.f32.mrb[0].mxu0
      %v7307 = vadd.f32 0.0, %v7306
      %v7308 = vpop.f32.mrb[0].mxu0
      %7309 = vmatprep.mubr.f32.mxu0 0.0
      %7310 = vmatmul.mubr.f32.gmra.mrb[0].mxu0 %v7090
      %v7311 = vpop.f32.mrb[0].mxu0
      %v7312 = vadd.f32 0.0, %v7311
      %v7313 = vpop.f32.mrb[0].mxu0
      %7314 = vmatprep.mubr.f32.mxu0 0.0
      %7315 = vmatmul.mubr.f32.gmra.mrb[0].mxu0 %v7093
      %v7316 = vpop.f32.mrb[0].mxu0
      %v7317 = vadd.f32 0.0, %v7316
      %v7318 = vpop.f32.mrb[0].mxu0
      %7319 = vdwg.mxu0
      %v7320 = vadd.f32 %v6933, %v7162
      %v7321 = vadd.f32 %v6934, %v7167
      %v7322 = vadd.f32 %v6935, %v7172
      %v7323 = vadd.f32 %v6936, %v7177
      %v7324 = vadd.f32 %v6937, %v7182
      %v7325 = vadd.f32 %v6938, %v7187
      %v7326 = vadd.f32 %v6939, %v7192
      %v7327 = vadd.f32 %v6940, %v7197
      %v7328 = vadd.f32 %v6941, %v7202
      %v7329 = vadd.f32 %v6942, %v7207
      %v7330 = vadd.f32 %v6943, %v7212
      %v7331 = vadd.f32 %v6944, %v7217
      %v7332 = vadd.f32 %v6945, %v7222
      %v7333 = vadd.f32 %v6946, %v7227
      %v7334 = vadd.f32 %v6947, %v7232
      %v7335 = vadd.f32 %v6948, %v7237
      %v7336 = vadd.f32 %v6949, %v7242
      %v7337 = vadd.f32 %v6950, %v7247
      %v7338 = vadd.f32 %v6951, %v7252
      %v7339 = vadd.f32 %v6952, %v7257
      %v7340 = vadd.f32 %v6953, %v7262
      %v7341 = vadd.f32 %v6954, %v7267
      %v7342 = vadd.f32 %v6955, %v7272
      %v7343 = vadd.f32 %v6956, %v7277
      %v7344 = vadd.f32 %v6957, %v7282
      %v7345 = vadd.f32 %v6958, %v7287
      %v7346 = vadd.f32 %v6959, %v7292
      %v7347 = vadd.f32 %v6960, %v7297
      %v7348 = vadd.f32 %v6961, %v7302
      %v7349 = vadd.f32 %v6962, %v7307
      %v7350 = vadd.f32 %v6963, %v7312
      %v7351 = vadd.f32 %v6964, %v7317
      %v7352 = vld [vmem:[%s4] sm:$0x1]
      %v7354 = vlaneseq
      %v7355 = vshrl.u32 %v7354, 7
      %v7356 = vsub.s32 0, %v7355
      %v7357 = vrot.slane %v7352, %v7356
      %v7359 = vadd.f32 %v7320, %v7357
      %v7360 = vadd.f32 %v7321, %v7357
      %v7361 = vadd.f32 %v7322, %v7357
      %v7362 = vadd.f32 %v7323, %v7357
      %v7363 = vadd.f32 %v7324, %v7357
      %v7364 = vadd.f32 %v7325, %v7357
      %v7365 = vadd.f32 %v7326, %v7357
      %v7366 = vadd.f32 %v7327, %v7357
      %v7367 = vadd.f32 %v7328, %v7357
      %v7368 = vadd.f32 %v7329, %v7357
      %v7369 = vadd.f32 %v7330, %v7357
      %v7370 = vadd.f32 %v7331, %v7357
      %v7371 = vadd.f32 %v7332, %v7357
      %v7372 = vadd.f32 %v7333, %v7357
      %v7373 = vadd.f32 %v7334, %v7357
      %v7374 = vadd.f32 %v7335, %v7357
      %v7375 = vadd.f32 %v7336, %v7357
      %v7376 = vadd.f32 %v7337, %v7357
      %v7377 = vadd.f32 %v7338, %v7357
      %v7378 = vadd.f32 %v7339, %v7357
      %v7379 = vadd.f32 %v7340, %v7357
      %v7380 = vadd.f32 %v7341, %v7357
      %v7381 = vadd.f32 %v7342, %v7357
      %v7382 = vadd.f32 %v7343, %v7357
      %v7383 = vadd.f32 %v7344, %v7357
      %v7384 = vadd.f32 %v7345, %v7357
      %v7385 = vadd.f32 %v7346, %v7357
      %v7386 = vadd.f32 %v7347, %v7357
      %v7387 = vadd.f32 %v7348, %v7357
      %v7388 = vadd.f32 %v7349, %v7357
      %v7389 = vadd.f32 %v7350, %v7357
      %v7390 = vadd.f32 %v7351, %v7357
      %v7391 = vmax.f32 %v7359, 0.0
      %v7392 = vmax.f32 %v7360, 0.0
      %v7393 = vmax.f32 %v7361, 0.0
      %v7394 = vmax.f32 %v7362, 0.0
      %v7395 = vmax.f32 %v7363, 0.0
      %v7396 = vmax.f32 %v7364, 0.0
      %v7397 = vmax.f32 %v7365, 0.0
      %v7398 = vmax.f32 %v7366, 0.0
      %v7399 = vmax.f32 %v7367, 0.0
      %v7400 = vmax.f32 %v7368, 0.0
      %v7401 = vmax.f32 %v7369, 0.0
      %v7402 = vmax.f32 %v7370, 0.0
      %v7403 = vmax.f32 %v7371, 0.0
      %v7404 = vmax.f32 %v7372, 0.0
      %v7405 = vmax.f32 %v7373, 0.0
      %v7406 = vmax.f32 %v7374, 0.0
      %v7407 = vmax.f32 %v7375, 0.0
      %v7408 = vmax.f32 %v7376, 0.0
      %v7409 = vmax.f32 %v7377, 0.0
      %v7410 = vmax.f32 %v7378, 0.0
      %v7411 = vmax.f32 %v7379, 0.0
      %v7412 = vmax.f32 %v7380, 0.0
      %v7413 = vmax.f32 %v7381, 0.0
      %v7414 = vmax.f32 %v7382, 0.0
      %v7415 = vmax.f32 %v7383, 0.0
      %v7416 = vmax.f32 %v7384, 0.0
      %v7417 = vmax.f32 %v7385, 0.0
      %v7418 = vmax.f32 %v7386, 0.0
      %v7419 = vmax.f32 %v7387, 0.0
      %v7420 = vmax.f32 %v7388, 0.0
      %v7421 = vmax.f32 %v7389, 0.0
      %v7422 = vmax.f32 %v7390, 0.0
      %7423 = vxpose.xlu0.b32.start [1/16] %v7391, 128
      %7424 = vxpose.xlu0.b32.cont [2/16] %v7392, 128
      %7425 = vxpose.xlu0.b32.cont [3/16] %v7393, 128
      %7426 = vxpose.xlu0.b32.cont [4/16] %v7394, 128
      %7427 = vxpose.xlu0.b32.cont [5/16] %v7395, 128
      %7428 = vxpose.xlu0.b32.cont [6/16] %v7396, 128
      %7429 = vxpose.xlu0.b32.cont [7/16] %v7397, 128
      %7430 = vxpose.xlu0.b32.cont [8/16] %v7398, 128
      %7431 = vxpose.xlu0.b32.cont [9/16] %v7399, 128
      %7432 = vxpose.xlu0.b32.cont [10/16] %v7400, 128
      %7433 = vxpose.xlu0.b32.cont [11/16] %v7401, 128
      %7434 = vxpose.xlu0.b32.cont [12/16] %v7402, 128
      %7435 = vxpose.xlu0.b32.cont [13/16] %v7403, 128
      %7436 = vxpose.xlu0.b32.cont [14/16] %v7404, 128
      %7437 = vxpose.xlu0.b32.cont [15/16] %v7405, 128
      %7438 = vxpose.xlu0.b32.end [16/16] %v7406, 128
      %v7439 = vpop.trf.xlu0
      %v7440 = vpop.trf.xlu0
      %v7441 = vpop.trf.xlu0
      %v7442 = vpop.trf.xlu0
      %v7443 = vpop.trf.xlu0
      %v7444 = vpop.trf.xlu0
      %v7445 = vpop.trf.xlu0
      %v7446 = vpop.trf.xlu0
      %v7447 = vpop.trf.xlu0
      %v7448 = vpop.trf.xlu0
      %v7449 = vpop.trf.xlu0
      %v7450 = vpop.trf.xlu0
      %v7451 = vpop.trf.xlu0
      %v7452 = vpop.trf.xlu0
      %v7453 = vpop.trf.xlu0
      %v7454 = vpop.trf.xlu0
      %7455 = vxpose.xlu0.b32.start [1/16] %v7407, 128
      %7456 = vxpose.xlu0.b32.cont [2/16] %v7408, 128
      %7457 = vxpose.xlu0.b32.cont [3/16] %v7409, 128
      %7458 = vxpose.xlu0.b32.cont [4/16] %v7410, 128
      %7459 = vxpose.xlu0.b32.cont [5/16] %v7411, 128
      %7460 = vxpose.xlu0.b32.cont [6/16] %v7412, 128
      %7461 = vxpose.xlu0.b32.cont [7/16] %v7413, 128
      %7462 = vxpose.xlu0.b32.cont [8/16] %v7414, 128
      %7463 = vxpose.xlu0.b32.cont [9/16] %v7415, 128
      %7464 = vxpose.xlu0.b32.cont [10/16] %v7416, 128
      %7465 = vxpose.xlu0.b32.cont [11/16] %v7417, 128
      %7466 = vxpose.xlu0.b32.cont [12/16] %v7418, 128
      %7467 = vxpose.xlu0.b32.cont [13/16] %v7419, 128
      %7468 = vxpose.xlu0.b32.cont [14/16] %v7420, 128
      %7469 = vxpose.xlu0.b32.cont [15/16] %v7421, 128
      %7470 = vxpose.xlu0.b32.end [16/16] %v7422, 128
      %v7471 = vpop.trf.xlu0
      %v7472 = vpop.trf.xlu0
      %v7473 = vpop.trf.xlu0
      %v7474 = vpop.trf.xlu0
      %v7475 = vpop.trf.xlu0
      %v7476 = vpop.trf.xlu0
      %v7477 = vpop.trf.xlu0
      %v7478 = vpop.trf.xlu0
      %v7479 = vpop.trf.xlu0
      %v7480 = vpop.trf.xlu0
      %v7481 = vpop.trf.xlu0
      %v7482 = vpop.trf.xlu0
      %v7483 = vpop.trf.xlu0
      %v7484 = vpop.trf.xlu0
      %v7485 = vpop.trf.xlu0
      %v7486 = vpop.trf.xlu0
      %7487 = vst [vmem:[%s224] sm:$0xff] %v7439
      %7488 = vst [vmem:[%s224 + $0x8] sm:$0xff] %v7471
      %p7489 = scmp.lt.s32.totalorder %s16, 1
      %s7490 = scalar_select %p7489, %s16, 1
      %s7491 = smul.addr %s7490, 2
      %s7492 = smul.addr %s7491, 8
      %s7493 = scalar_lea.vmem %s5, %s7492
      // Predicated region
      $region41: #{inconv_forward.1} parent=39 // pred_check
        %p7494 = pneg %p144
      $region42: #{inconv_forward.1} parent=39 // pred_check_branch
        %7496 = sbr.rel (%p7494) target = $region44
      $region43: #{inconv_forward.1} parent=39 // pred_region
        _
      $region44: #{inconv_forward.1} parent=39 // pred_fallthru
        _
    $region40: #{inconv_forward.1} parent=5 // pred_fallthru
      _
    %p7497 = scmp.le.s32.totalorder 2, %s11
    // Predicated region
    $region45: #{inconv_forward.1} parent=5 // pred_check
      %p7498 = pneg %p7497
    $region46: #{inconv_forward.1} parent=5 // pred_check_branch
      %7500 = sbr.rel (%p7498) target = $region48
    $region47: #{inconv_forward.1} parent=5 // pred_region
      %s7501 = ssub.s32 %s11, 2
      // Predicated region
      $region49: #{inconv_forward.1} parent=47 // pred_check
        %p7502 = pneg %p150
      $region50: #{inconv_forward.1} parent=47 // pred_check_branch
        %7504 = sbr.rel (%p7502) target = $region52
      $region51: #{inconv_forward.1} parent=47 // pred_region
        %p7505 = scmp.lt.s32.totalorder %s17, 1
        %s7506 = scalar_select %p7505, %s17, 1
        %s7507 = smul.addr %s7506, 2
        %s7508 = smul.addr %s7507, 8
        %s7509 = scalar_lea.vmem %s5, %s7508
      $region52: #{inconv_forward.1} parent=47 // pred_fallthru
        _
    $region48: #{inconv_forward.1} parent=5 // pred_fallthru
      _
  $region6: #{inconv_forward.1} parent=0 // loop_footer
    %s15 = sadd.s32 1, %s11
  $region7: #{inconv_forward.1} parent=0 // loop_footer_branch
    %10 = sbr.rel target = $region3
  $region8: #{inconv_forward.1} parent=0 // loop_exit
    _

</llo_original>
